<compile_context>
chip_gen: v5e
topology: v5e:2x2
jax: 0.10.0
libtpu: 0.0.40
codegen_flags: <defaults>
</compile_context>

<pallas_src>
import jax
import jax.numpy as jnp
from jax.experimental import pallas as pl
from jax.experimental.pallas import tpu as pltpu

# ---------------- hyperparameters consistent with NeuroNexusOmega / EnhancedMetaLearning ----------
DIM = 128
VOCAB = 1280                 # multiple of 10 so NUM_SYMBOLS = VOCAB // 10 == DIM
N_HEADS = 2
N_LAYERS = 2
MAX_SEQ = 32
SEQ = 16
BATCH = 1
FRACTAL_DEPTH = 4
MAX_EXPANSION = 4
NUM_SYMBOLS = VOCAB // 10    # == DIM (rule_network / symbols need this to line up)
NUM_RULES = 8                # reference uses 100; reduced for the small synthetic run
NUM_UNIVERSES = 5
TEMPORAL_STEPS = 5
NUM_TASKS = 16               # reference task_embedding has 1000 rows; reduced


def _softmax(v, axis):
    m = jnp.max(v, axis=axis, keepdims=True)
    e = jnp.exp(v - m)
    return e / jnp.sum(e, axis=axis, keepdims=True)


# ----------------------------------- fused per-layer kernel --------------------------------------
def _layer_kernel(x_ref,
                  fa_w_ref, fa_mw_ref, fa_mb_ref,
                  gate_w_ref, gate_b_ref, exp_w_ref, exp_b_ref, comp_w_ref, comp_b_ref,
                  sym_ref, rules_ref, w1x_ref, w1r_ref, b1_ref, w2_ref, b2_ref,
                  er_w1_ref, er_b1_ref, er_w2_ref, er_b2_ref,
                  xo_ref, score_ref):
    f32 = jnp.float32
    x = x_ref[...]                                   # (S, D) activation, resident in VMEM/vregs
    S = x.shape[0]
    D = x.shape[1]

    # ---- FractalAttention -----------------------------------------------------------------
    # TODO(synk): reference cat(dim=-1) makes the (dim,dim) matmul shape-invalid; since the
    # per-depth transform is token-wise and all segments at a depth share weights[d], the fractal
    # recursion collapses to one full-sequence pass per depth.  Heads are pre-concatenated along N
    # so each depth is two MXU matmuls ((S,128)x(128,256) then (S,256)x(256,128)) instead of
    # 15 + 15 tiny kernel launches.
    for d in range(FRACTAL_DEPTH):
        mh = jnp.dot(x, fa_w_ref[d], preferred_element_type=f32)                     # (S, H*D)
        x = jnp.dot(mh, fa_mw_ref[...], preferred_element_type=f32) + fa_mb_ref[...]  # (S, D)

    # ---- AdaptiveCompressionExpansion -------------------------------------------------------
    factors = _softmax(
        jnp.dot(x, gate_w_ref[...], preferred_element_type=f32) + gate_b_ref[...], axis=-1)   # (S,E)
    expanded = jnp.dot(x, exp_w_ref[...], preferred_element_type=f32) + exp_b_ref[...]        # (S,E*D)
    gated = factors[:, 0:1] * expanded[:, 0:D]
    for e in range(1, MAX_EXPANSION):
        gated = gated + factors[:, e:e + 1] * expanded[:, e * D:(e + 1) * D]
    # TODO(synk): reference compression is Linear(dim*4, dim) but receives (..., dim); use dim->dim.
    x = jnp.dot(gated, comp_w_ref[...], preferred_element_type=f32) + comp_b_ref[...]

    # ---- NeuroSymbolicReasoning --------------------------------------------------------------
    # rule_inputs @ W1 == x @ W1[:D] + rules @ W1[D:], so x is never replicated NUM_RULES times
    # through HBM; the (R*S, D) hidden is assembled in VMEM with a sublane broadcast per rule.
    a_x = jnp.dot(x, w1x_ref[...], preferred_element_type=f32)                        # (S, D)
    a_r = jnp.dot(rules_ref[...], w1r_ref[...], preferred_element_type=f32)           # (R, D)
    chunks = []
    for r in range(NUM_RULES):
        chunks.append(a_x + jnp.broadcast_to(a_r[r:r + 1, :], (S, D)))
    h = jnp.maximum(jnp.concatenate(chunks, axis=0) + b1_ref[...], 0.0)               # (R*S, D)
    logits = jnp.dot(h, w2_ref[...], preferred_element_type=f32) + b2_ref[...]        # (R*S, NS)
    probs = _softmax(logits, axis=-1)
    reasoning = jnp.dot(probs, sym_ref[...], preferred_element_type=f32)              # (R*S, D)
    # TODO(synk): reference `x + reasoning_output` broadcast is shape-inconsistent; mean over rules.
    acc = reasoning[0:S, :]
    for r in range(1, NUM_RULES):
        acc = acc + reasoning[r * S:(r + 1) * S, :]
    x = x + acc * (1.0 / NUM_RULES)
    # (symbol_activations in the reference is dead code -> skipped.)

    # ---- EthicalReasoningModule --------------------------------------------------------------
    hh = jnp.maximum(
        jnp.dot(x, er_w1_ref[...], preferred_element_type=f32) + er_b1_ref[...], 0.0)  # (S, D)
    # D -> 1 projection as a VPU lane-reduction instead of an N=1 MXU matmul.
    score = jnp.sum(hh * er_w2_ref[...], axis=-1, keepdims=True) + er_b2_ref[...]      # (S, 1)
    w = _softmax(score, axis=0)                                                         # over seq
    # TODO(synk): cosine "ethical_alignment" is computed but unused in the reference -> skipped.
    xo_ref[...] = x * w
    score_ref[...] = score


# ------------------------------------- fused epilogue kernel -------------------------------------
def _epilogue_kernel(x_ref, temb_ref,
                     twx_ref, tws_ref, tb_ref,
                     uw_ref, ub_ref, sw_ref, sb_ref,
                     ow_ref, ob_ref,
                     out_ref, hid_ref, temp_ref, mv_ref):
    f32 = jnp.float32
    x = x_ref[...]                                   # (S, D)
    S = x.shape[0]
    D = x.shape[1]

    # ---- TemporalRecursionModule: loop-invariant x-projection hoisted, state stays in vregs ----
    xproj_mean = jnp.mean(jnp.dot(x, twx_ref[...], preferred_element_type=f32),
                          axis=0, keepdims=True)                                       # (1, D)
    state = x[S - 1:S, :]                                                               # x[:, -1, :]
    for t in range(TEMPORAL_STEPS):
        state = xproj_mean + jnp.dot(state, tws_ref[...], preferred_element_type=f32) + tb_ref[...]
        temp_ref[pl.ds(t, 1), :] = state

    # ---- MultiversalInferenceEngine: universes stacked along N -> one lane-dense matmul ----
    uo = jnp.dot(x, uw_ref[...], preferred_element_type=f32) + ub_ref[...]              # (S, U*D)
    uo_sum = uo[:, 0:D]
    for u in range(1, NUM_UNIVERSES):
        uo_sum = uo_sum + uo[:, u * D:(u + 1) * D]
    sel = _softmax(jnp.dot(jnp.mean(x, axis=0, keepdims=True), sw_ref[...],
                           preferred_element_type=f32) + sb_ref[...], axis=-1)          # (1, U)

    # ---- epilogue adds fused in front of the single output projection ----
    # TODO(synk): faithful to torch broadcasting for B=1: multiversal_out[u] = sel[u] * sum_i uo[i]
    # and the residual broadcasts x/temporal/task_emb to (U, S, D).
    base = x + state + temb_ref[...]                                                    # (S, D)
    mv_chunks = []
    xf_chunks = []
    for u in range(NUM_UNIVERSES):
        mv_u = sel[:, u:u + 1] * uo_sum
        mv_chunks.append(mv_u)
        xf_chunks.append(base + mv_u)
    mv = jnp.concatenate(mv_chunks, axis=0)                                             # (U*S, D)
    xf = jnp.concatenate(xf_chunks, axis=0)                                             # (U*S, D)
    mv_ref[...] = mv
    hid_ref[...] = xf
    out_ref[...] = jnp.dot(xf, ow_ref[...], preferred_element_type=f32) + ob_ref[...]   # (U*S, V)


# --------------------------------------- pallas_call wrapper -------------------------------------
def _call_fused(kernel, inputs, out_shapes):
    in_specs = [pl.BlockSpec(a.shape, lambda i, _n=a.ndim: (0,) * _n) for a in inputs]
    out_specs = tuple(pl.BlockSpec(s.shape, lambda i, _n=len(s.shape): (0,) * _n)
                      for s in out_shapes)
    return pl.pallas_call(
        kernel,
        out_shape=out_shapes,
        grid=(1,),
        in_specs=in_specs,
        out_specs=out_specs,
        compiler_params=pltpu.CompilerParams(dimension_semantics=("arbitrary",)),
    )(*inputs)


# -------------------------------------- module forward passes ------------------------------------
def neuronexus_forward(params, x_ids, task_emb):
    B, S = x_ids.shape
    # TODO(synk): the torch broadcasting in MultiversalInferenceEngine / the final residual only
    # type-checks for B == 1 (as used by EnhancedMetaLearning); this fused path assumes B == 1.
    x = (params['embedding'][x_ids] + params['pos'][:S]).reshape(B * S, DIM)
    # TODO(synk): QuantumTensorNetwork defines no forward() (reference would raise) and its output
    # is unused downstream -> skipped.  image/audio are None here -> multimodal fusion skipped.
    ethical_scores = []
    for lp in params['layers']:
        x, score = _call_fused(
            _layer_kernel,
            (x, lp['fa_w'], lp['fa_mix_w'], lp['fa_mix_b'],
             lp['ce_gate_w'], lp['ce_gate_b'], lp['ce_exp_w'], lp['ce_exp_b'],
             lp['ce_comp_w'], lp['ce_comp_b'],
             lp['ns_symbols'], lp['ns_rules'], lp['ns_w1x'], lp['ns_w1r'],
             lp['ns_b1'], lp['ns_w2'], lp['ns_b2'],
             lp['er_w1'], lp['er_b1'], lp['er_w2'], lp['er_b2']),
            (jax.ShapeDtypeStruct((B * S, DIM), jnp.float32),
             jax.ShapeDtypeStruct((B * S, 1), jnp.float32)))
        ethical_scores.append(score[:, 0])

    out, hidden, temporal, mv = _call_fused(
        _epilogue_kernel,
        (x, task_emb,
         params['temporal_wx'], params['temporal_ws'], params['temporal_b'],
         params['uni_w'], params['uni_b'], params['sel_w'], params['sel_b'],
         params['out_w'], params['out_b']),
        (jax.ShapeDtypeStruct((NUM_UNIVERSES * B * S, VOCAB), jnp.float32),
         jax.ShapeDtypeStruct((NUM_UNIVERSES * B * S, DIM), jnp.float32),
         jax.ShapeDtypeStruct((TEMPORAL_STEPS, DIM), jnp.float32),
         jax.ShapeDtypeStruct((NUM_UNIVERSES * B * S, DIM), jnp.float32)))

    return {
        'output': out.reshape(NUM_UNIVERSES, S, VOCAB),
        'hidden_state': hidden.reshape(NUM_UNIVERSES, S, DIM),
        'ethical_scores': jnp.stack(ethical_scores, axis=0)[None],   # (1, n_layers, S)
        'temporal_output': temporal[None],                            # (1, steps, D)
        'multiversal_output': mv.reshape(NUM_UNIVERSES, S, DIM),
    }


def enhanced_meta_learning_forward(params, x_ids, task_id):
    task_emb = params['task_embedding'][task_id]      # (1, D) embedding lookup
    return neuronexus_forward(params, x_ids, task_emb)


# ------------------------------------------ parameter init ---------------------------------------
def init_params(key):
    kit = iter(jax.random.split(key, 256))

    def nrm(shape, fan_in=1.0):
        return jax.random.normal(next(kit), shape, dtype=jnp.float32) / jnp.sqrt(float(fan_in))

    def w(fin, fout):
        return nrm((fin, fout), fin)

    def b(n):
        return jnp.zeros((1, n), jnp.float32)

    layers = []
    for _ in range(N_LAYERS):
        layers.append({
            # FractalAttention: heads pre-concatenated along N -> (depth, D, H*D); shared head-mix.
            'fa_w': nrm((FRACTAL_DEPTH, DIM, N_HEADS * DIM), DIM),
            'fa_mix_w': w(N_HEADS * DIM, DIM), 'fa_mix_b': b(DIM),
            # AdaptiveCompressionExpansion
            'ce_gate_w': w(DIM, MAX_EXPANSION), 'ce_gate_b': b(MAX_EXPANSION),
            'ce_exp_w': w(DIM, MAX_EXPANSION * DIM), 'ce_exp_b': b(MAX_EXPANSION * DIM),
            'ce_comp_w': w(DIM, DIM), 'ce_comp_b': b(DIM),
            # NeuroSymbolicReasoning: rule_network Linear(2*dim, dim) split into x-half / rules-half
            'ns_symbols': nrm((NUM_SYMBOLS, DIM), DIM),
            'ns_rules': nrm((NUM_RULES, NUM_SYMBOLS), NUM_SYMBOLS),
            'ns_w1x': nrm((DIM, DIM), 2 * DIM), 'ns_w1r': nrm((NUM_SYMBOLS, DIM), 2 * DIM),
            'ns_b1': b(DIM),
            'ns_w2': w(DIM, NUM_SYMBOLS), 'ns_b2': b(NUM_SYMBOLS),
            # EthicalReasoningModule ('principles' is unused in this forward path -> omitted)
            'er_w1': w(DIM, DIM), 'er_b1': b(DIM),
            'er_w2': nrm((1, DIM), DIM), 'er_b2': jnp.zeros((1, 1), jnp.float32),
        })
    return {
        'embedding': nrm((VOCAB, DIM), 1.0),
        'pos': nrm((MAX_SEQ, DIM), DIM),
        'task_embedding': nrm((NUM_TASKS, DIM), DIM),
        'layers': layers,
        # TemporalRecursion: Linear(2*dim, dim) split into x-rows / state-rows
        'temporal_wx': nrm((DIM, DIM), 2 * DIM), 'temporal_ws': nrm((DIM, DIM), 2 * DIM),
        'temporal_b': b(DIM),
        # MultiversalInference: universe projections stacked along N; selection head
        'uni_w': nrm((DIM, NUM_UNIVERSES * DIM), DIM), 'uni_b': b(NUM_UNIVERSES * DIM),
        'sel_w': w(DIM, NUM_UNIVERSES), 'sel_b': b(NUM_UNIVERSES),
        'out_w': w(DIM, VOCAB), 'out_b': b(VOCAB),
    }


# ------------------------------------------------ main -------------------------------------------
if __name__ == "__main__":
    key = jax.random.PRNGKey(0)
    pkey, xkey = jax.random.split(key)
    params = init_params(pkey)
    x_ids = jax.random.randint(xkey, (BATCH, SEQ), 0, VOCAB, dtype=jnp.int32)
    task_id = jnp.array([3], dtype=jnp.int32)

    fwd = jax.jit(enhanced_meta_learning_forward)
    out = fwd(params, x_ids, task_id)
    jax.block_until_ready(out)

    # shape sanity (faithful torch broadcasting makes the output batch == NUM_UNIVERSES when B=1)
    assert out['output'].shape == (NUM_UNIVERSES, SEQ, VOCAB)
    assert out['hidden_state'].shape == (NUM_UNIVERSES, SEQ, DIM)
    assert out['ethical_scores'].shape == (BATCH, N_LAYERS, SEQ)
    assert out['temporal_output'].shape == (BATCH, TEMPORAL_STEPS, DIM)
    assert out['multiversal_output'].shape == (NUM_UNIVERSES, SEQ, DIM)

    print("KERNEL_OK")
</pallas_src>

<mosaic_0001>
module attributes {stable_mosaic.version = 11 : i64} {
  func.func @_layer_kernel(%arg0: i32, %arg1: memref<16x128xf32, #tpu.memory_space<vmem>>, %arg2: memref<4x128x256xf32, #tpu.memory_space<vmem>>, %arg3: memref<256x128xf32, #tpu.memory_space<vmem>>, %arg4: memref<1x128xf32, #tpu.memory_space<vmem>>, %arg5: memref<128x4xf32, #tpu.memory_space<vmem>>, %arg6: memref<1x4xf32, #tpu.memory_space<vmem>>, %arg7: memref<128x512xf32, #tpu.memory_space<vmem>>, %arg8: memref<1x512xf32, #tpu.memory_space<vmem>>, %arg9: memref<128x128xf32, #tpu.memory_space<vmem>>, %arg10: memref<1x128xf32, #tpu.memory_space<vmem>>, %arg11: memref<128x128xf32, #tpu.memory_space<vmem>>, %arg12: memref<8x128xf32, #tpu.memory_space<vmem>>, %arg13: memref<128x128xf32, #tpu.memory_space<vmem>>, %arg14: memref<128x128xf32, #tpu.memory_space<vmem>>, %arg15: memref<1x128xf32, #tpu.memory_space<vmem>>, %arg16: memref<128x128xf32, #tpu.memory_space<vmem>>, %arg17: memref<1x128xf32, #tpu.memory_space<vmem>>, %arg18: memref<128x128xf32, #tpu.memory_space<vmem>>, %arg19: memref<1x128xf32, #tpu.memory_space<vmem>>, %arg20: memref<1x128xf32, #tpu.memory_space<vmem>>, %arg21: memref<1x1xf32, #tpu.memory_space<vmem>>, %arg22: memref<16x128xf32, #tpu.memory_space<vmem>>, %arg23: memref<16x1xf32, #tpu.memory_space<vmem>>) attributes {dimension_semantics = [#tpu.dimension_semantics<arbitrary>], iteration_bounds = array<i64: 1>, scalar_prefetch = 0 : i64, scratch_operands = 0 : i64, tpu.core_type = #tpu.core_type<tc>, window_params = [{pipeline_mode = #tpu.pipeline_mode<synchronous>, transform_indices = @transform_0, window_bounds = array<i64: 16, 128>}, {pipeline_mode = #tpu.pipeline_mode<synchronous>, transform_indices = @transform_1, window_bounds = array<i64: 4, 128, 256>}, {pipeline_mode = #tpu.pipeline_mode<synchronous>, transform_indices = @transform_2, window_bounds = array<i64: 256, 128>}, {pipeline_mode = #tpu.pipeline_mode<synchronous>, transform_indices = @transform_3, window_bounds = array<i64: 1, 128>}, {pipeline_mode = #tpu.pipeline_mode<synchronous>, transform_indices = @transform_4, window_bounds = array<i64: 128, 4>}, {pipeline_mode = #tpu.pipeline_mode<synchronous>, transform_indices = @transform_5, window_bounds = array<i64: 1, 4>}, {pipeline_mode = #tpu.pipeline_mode<synchronous>, transform_indices = @transform_6, window_bounds = array<i64: 128, 512>}, {pipeline_mode = #tpu.pipeline_mode<synchronous>, transform_indices = @transform_7, window_bounds = array<i64: 1, 512>}, {pipeline_mode = #tpu.pipeline_mode<synchronous>, transform_indices = @transform_8, window_bounds = array<i64: 128, 128>}, {pipeline_mode = #tpu.pipeline_mode<synchronous>, transform_indices = @transform_9, window_bounds = array<i64: 1, 128>}, {pipeline_mode = #tpu.pipeline_mode<synchronous>, transform_indices = @transform_10, window_bounds = array<i64: 128, 128>}, {pipeline_mode = #tpu.pipeline_mode<synchronous>, transform_indices = @transform_11, window_bounds = array<i64: 8, 128>}, {pipeline_mode = #tpu.pipeline_mode<synchronous>, transform_indices = @transform_12, window_bounds = array<i64: 128, 128>}, {pipeline_mode = #tpu.pipeline_mode<synchronous>, transform_indices = @transform_13, window_bounds = array<i64: 128, 128>}, {pipeline_mode = #tpu.pipeline_mode<synchronous>, transform_indices = @transform_14, window_bounds = array<i64: 1, 128>}, {pipeline_mode = #tpu.pipeline_mode<synchronous>, transform_indices = @transform_15, window_bounds = array<i64: 128, 128>}, {pipeline_mode = #tpu.pipeline_mode<synchronous>, transform_indices = @transform_16, window_bounds = array<i64: 1, 128>}, {pipeline_mode = #tpu.pipeline_mode<synchronous>, transform_indices = @transform_17, window_bounds = array<i64: 128, 128>}, {pipeline_mode = #tpu.pipeline_mode<synchronous>, transform_indices = @transform_18, window_bounds = array<i64: 1, 128>}, {pipeline_mode = #tpu.pipeline_mode<synchronous>, transform_indices = @transform_19, window_bounds = array<i64: 1, 128>}, {pipeline_mode = #tpu.pipeline_mode<synchronous>, transform_indices = @transform_20, window_bounds = array<i64: 1, 1>}, {pipeline_mode = #tpu.pipeline_mode<synchronous>, transform_indices = @transform_21, window_bounds = array<i64: 16, 128>}, {pipeline_mode = #tpu.pipeline_mode<synchronous>, transform_indices = @transform_22, window_bounds = array<i64: 16, 1>}]} {
    %c0 = arith.constant 0 : index
    %c0_0 = arith.constant 0 : index
    %0 = vector.load %arg1[%c0, %c0_0] : memref<16x128xf32, #tpu.memory_space<vmem>>, vector<16x128xf32>
    %c0_1 = arith.constant 0 : index
    %c0_2 = arith.constant 0 : index
    %c0_3 = arith.constant 0 : index
    %1 = vector.load %arg2[%c0_1, %c0_2, %c0_3] : memref<4x128x256xf32, #tpu.memory_space<vmem>>, vector<1x128x256xf32>
    %2 = vector.shape_cast %1 : vector<1x128x256xf32> to vector<128x256xf32>
    %cst = arith.constant dense<0.000000e+00> : vector<16x256xf32>
    %3 = tpu.matmul %0, %2, %cst {dimension_numbers = #tpu.dot_dimension_numbers<[1], [0], [0], [1], [0, 0, 1, 1], [], []>} : vector<16x128xf32>, vector<128x256xf32>, vector<16x256xf32> -> vector<16x256xf32>
    %c0_4 = arith.constant 0 : index
    %c0_5 = arith.constant 0 : index
    %4 = vector.load %arg3[%c0_4, %c0_5] : memref<256x128xf32, #tpu.memory_space<vmem>>, vector<256x128xf32>
    %cst_6 = arith.constant dense<0.000000e+00> : vector<16x128xf32>
    %5 = tpu.matmul %3, %4, %cst_6 {dimension_numbers = #tpu.dot_dimension_numbers<[1], [0], [0], [1], [0, 0, 1, 1], [], []>} : vector<16x256xf32>, vector<256x128xf32>, vector<16x128xf32> -> vector<16x128xf32>
    %c0_7 = arith.constant 0 : index
    %c0_8 = arith.constant 0 : index
    %6 = vector.load %arg4[%c0_7, %c0_8] : memref<1x128xf32, #tpu.memory_space<vmem>>, vector<1x128xf32>
    %7 = vector.broadcast %6 : vector<1x128xf32> to vector<16x128xf32>
    %8 = arith.addf %5, %7 : vector<16x128xf32>
    %c1 = arith.constant 1 : index
    %c0_9 = arith.constant 0 : index
    %c0_10 = arith.constant 0 : index
    %9 = vector.load %arg2[%c1, %c0_9, %c0_10] : memref<4x128x256xf32, #tpu.memory_space<vmem>>, vector<1x128x256xf32>
    %10 = vector.shape_cast %9 : vector<1x128x256xf32> to vector<128x256xf32>
    %cst_11 = arith.constant dense<0.000000e+00> : vector<16x256xf32>
    %11 = tpu.matmul %8, %10, %cst_11 {dimension_numbers = #tpu.dot_dimension_numbers<[1], [0], [0], [1], [0, 0, 1, 1], [], []>} : vector<16x128xf32>, vector<128x256xf32>, vector<16x256xf32> -> vector<16x256xf32>
    %c0_12 = arith.constant 0 : index
    %c0_13 = arith.constant 0 : index
    %12 = vector.load %arg3[%c0_12, %c0_13] : memref<256x128xf32, #tpu.memory_space<vmem>>, vector<256x128xf32>
    %cst_14 = arith.constant dense<0.000000e+00> : vector<16x128xf32>
    %13 = tpu.matmul %11, %12, %cst_14 {dimension_numbers = #tpu.dot_dimension_numbers<[1], [0], [0], [1], [0, 0, 1, 1], [], []>} : vector<16x256xf32>, vector<256x128xf32>, vector<16x128xf32> -> vector<16x128xf32>
    %c0_15 = arith.constant 0 : index
    %c0_16 = arith.constant 0 : index
    %14 = vector.load %arg4[%c0_15, %c0_16] : memref<1x128xf32, #tpu.memory_space<vmem>>, vector<1x128xf32>
    %15 = vector.broadcast %14 : vector<1x128xf32> to vector<16x128xf32>
    %16 = arith.addf %13, %15 : vector<16x128xf32>
    %c2 = arith.constant 2 : index
    %c0_17 = arith.constant 0 : index
    %c0_18 = arith.constant 0 : index
    %17 = vector.load %arg2[%c2, %c0_17, %c0_18] : memref<4x128x256xf32, #tpu.memory_space<vmem>>, vector<1x128x256xf32>
    %18 = vector.shape_cast %17 : vector<1x128x256xf32> to vector<128x256xf32>
    %cst_19 = arith.constant dense<0.000000e+00> : vector<16x256xf32>
    %19 = tpu.matmul %16, %18, %cst_19 {dimension_numbers = #tpu.dot_dimension_numbers<[1], [0], [0], [1], [0, 0, 1, 1], [], []>} : vector<16x128xf32>, vector<128x256xf32>, vector<16x256xf32> -> vector<16x256xf32>
    %c0_20 = arith.constant 0 : index
    %c0_21 = arith.constant 0 : index
    %20 = vector.load %arg3[%c0_20, %c0_21] : memref<256x128xf32, #tpu.memory_space<vmem>>, vector<256x128xf32>
    %cst_22 = arith.constant dense<0.000000e+00> : vector<16x128xf32>
    %21 = tpu.matmul %19, %20, %cst_22 {dimension_numbers = #tpu.dot_dimension_numbers<[1], [0], [0], [1], [0, 0, 1, 1], [], []>} : vector<16x256xf32>, vector<256x128xf32>, vector<16x128xf32> -> vector<16x128xf32>
    %c0_23 = arith.constant 0 : index
    %c0_24 = arith.constant 0 : index
    %22 = vector.load %arg4[%c0_23, %c0_24] : memref<1x128xf32, #tpu.memory_space<vmem>>, vector<1x128xf32>
    %23 = vector.broadcast %22 : vector<1x128xf32> to vector<16x128xf32>
    %24 = arith.addf %21, %23 : vector<16x128xf32>
    %c3 = arith.constant 3 : index
    %c0_25 = arith.constant 0 : index
    %c0_26 = arith.constant 0 : index
    %25 = vector.load %arg2[%c3, %c0_25, %c0_26] : memref<4x128x256xf32, #tpu.memory_space<vmem>>, vector<1x128x256xf32>
    %26 = vector.shape_cast %25 : vector<1x128x256xf32> to vector<128x256xf32>
    %cst_27 = arith.constant dense<0.000000e+00> : vector<16x256xf32>
    %27 = tpu.matmul %24, %26, %cst_27 {dimension_numbers = #tpu.dot_dimension_numbers<[1], [0], [0], [1], [0, 0, 1, 1], [], []>} : vector<16x128xf32>, vector<128x256xf32>, vector<16x256xf32> -> vector<16x256xf32>
    %c0_28 = arith.constant 0 : index
    %c0_29 = arith.constant 0 : index
    %28 = vector.load %arg3[%c0_28, %c0_29] : memref<256x128xf32, #tpu.memory_space<vmem>>, vector<256x128xf32>
    %cst_30 = arith.constant dense<0.000000e+00> : vector<16x128xf32>
    %29 = tpu.matmul %27, %28, %cst_30 {dimension_numbers = #tpu.dot_dimension_numbers<[1], [0], [0], [1], [0, 0, 1, 1], [], []>} : vector<16x256xf32>, vector<256x128xf32>, vector<16x128xf32> -> vector<16x128xf32>
    %c0_31 = arith.constant 0 : index
    %c0_32 = arith.constant 0 : index
    %30 = vector.load %arg4[%c0_31, %c0_32] : memref<1x128xf32, #tpu.memory_space<vmem>>, vector<1x128xf32>
    %31 = vector.broadcast %30 : vector<1x128xf32> to vector<16x128xf32>
    %32 = arith.addf %29, %31 : vector<16x128xf32>
    %c0_33 = arith.constant 0 : index
    %c0_34 = arith.constant 0 : index
    %33 = vector.load %arg5[%c0_33, %c0_34] : memref<128x4xf32, #tpu.memory_space<vmem>>, vector<128x4xf32>
    %cst_35 = arith.constant dense<0.000000e+00> : vector<16x4xf32>
    %34 = tpu.matmul %32, %33, %cst_35 {dimension_numbers = #tpu.dot_dimension_numbers<[1], [0], [0], [1], [0, 0, 1, 1], [], []>} : vector<16x128xf32>, vector<128x4xf32>, vector<16x4xf32> -> vector<16x4xf32>
    %c0_36 = arith.constant 0 : index
    %c0_37 = arith.constant 0 : index
    %35 = vector.load %arg6[%c0_36, %c0_37] : memref<1x4xf32, #tpu.memory_space<vmem>>, vector<1x4xf32>
    %36 = vector.broadcast %35 : vector<1x4xf32> to vector<16x4xf32>
    %37 = arith.addf %34, %36 : vector<16x4xf32>
    %cst_38 = arith.constant dense<0xFF800000> : vector<16xf32>
    %38 = vector.multi_reduction <maximumf>, %37, %cst_38 [1] : vector<16x4xf32> to vector<16xf32>
    %39 = vector.shape_cast %38 : vector<16xf32> to vector<16x1xf32>
    %40 = vector.broadcast %39 : vector<16x1xf32> to vector<16x4xf32>
    %41 = arith.subf %37, %40 : vector<16x4xf32>
    %42 = math.exp %41 : vector<16x4xf32>
    %cst_39 = arith.constant dense<0.000000e+00> : vector<16xf32>
    %43 = vector.multi_reduction <add>, %42, %cst_39 [1] : vector<16x4xf32> to vector<16xf32>
    %44 = vector.shape_cast %43 : vector<16xf32> to vector<16x1xf32>
    %45 = vector.broadcast %44 : vector<16x1xf32> to vector<16x4xf32>
    %46 = arith.divf %42, %45 : vector<16x4xf32>
    %c0_40 = arith.constant 0 : index
    %c0_41 = arith.constant 0 : index
    %47 = vector.load %arg7[%c0_40, %c0_41] : memref<128x512xf32, #tpu.memory_space<vmem>>, vector<128x512xf32>
    %cst_42 = arith.constant dense<0.000000e+00> : vector<16x512xf32>
    %48 = tpu.matmul %32, %47, %cst_42 {dimension_numbers = #tpu.dot_dimension_numbers<[1], [0], [0], [1], [0, 0, 1, 1], [], []>} : vector<16x128xf32>, vector<128x512xf32>, vector<16x512xf32> -> vector<16x512xf32>
    %c0_43 = arith.constant 0 : index
    %c0_44 = arith.constant 0 : index
    %49 = vector.load %arg8[%c0_43, %c0_44] : memref<1x512xf32, #tpu.memory_space<vmem>>, vector<1x512xf32>
    %50 = vector.broadcast %49 : vector<1x512xf32> to vector<16x512xf32>
    %51 = arith.addf %48, %50 : vector<16x512xf32>
    %52 = vector.extract_strided_slice %46 {offsets = [0, 0], sizes = [16, 1], strides = [1, 1]} : vector<16x4xf32> to vector<16x1xf32>
    %53 = vector.extract_strided_slice %51 {offsets = [0, 0], sizes = [16, 128], strides = [1, 1]} : vector<16x512xf32> to vector<16x128xf32>
    %54 = vector.broadcast %52 : vector<16x1xf32> to vector<16x128xf32>
    %55 = arith.mulf %54, %53 : vector<16x128xf32>
    %56 = vector.extract_strided_slice %46 {offsets = [0, 1], sizes = [16, 1], strides = [1, 1]} : vector<16x4xf32> to vector<16x1xf32>
    %57 = vector.extract_strided_slice %51 {offsets = [0, 128], sizes = [16, 128], strides = [1, 1]} : vector<16x512xf32> to vector<16x128xf32>
    %58 = vector.broadcast %56 : vector<16x1xf32> to vector<16x128xf32>
    %59 = arith.mulf %58, %57 : vector<16x128xf32>
    %60 = arith.addf %55, %59 : vector<16x128xf32>
    %61 = vector.extract_strided_slice %46 {offsets = [0, 2], sizes = [16, 1], strides = [1, 1]} : vector<16x4xf32> to vector<16x1xf32>
    %62 = vector.extract_strided_slice %51 {offsets = [0, 256], sizes = [16, 128], strides = [1, 1]} : vector<16x512xf32> to vector<16x128xf32>
    %63 = vector.broadcast %61 : vector<16x1xf32> to vector<16x128xf32>
    %64 = arith.mulf %63, %62 : vector<16x128xf32>
    %65 = arith.addf %60, %64 : vector<16x128xf32>
    %66 = vector.extract_strided_slice %46 {offsets = [0, 3], sizes = [16, 1], strides = [1, 1]} : vector<16x4xf32> to vector<16x1xf32>
    %67 = vector.extract_strided_slice %51 {offsets = [0, 384], sizes = [16, 128], strides = [1, 1]} : vector<16x512xf32> to vector<16x128xf32>
    %68 = vector.broadcast %66 : vector<16x1xf32> to vector<16x128xf32>
    %69 = arith.mulf %68, %67 : vector<16x128xf32>
    %70 = arith.addf %65, %69 : vector<16x128xf32>
    %c0_45 = arith.constant 0 : index
    %c0_46 = arith.constant 0 : index
    %71 = vector.load %arg9[%c0_45, %c0_46] : memref<128x128xf32, #tpu.memory_space<vmem>>, vector<128x128xf32>
    %cst_47 = arith.constant dense<0.000000e+00> : vector<16x128xf32>
    %72 = tpu.matmul %70, %71, %cst_47 {dimension_numbers = #tpu.dot_dimension_numbers<[1], [0], [0], [1], [0, 0, 1, 1], [], []>} : vector<16x128xf32>, vector<128x128xf32>, vector<16x128xf32> -> vector<16x128xf32>
    %c0_48 = arith.constant 0 : index
    %c0_49 = arith.constant 0 : index
    %73 = vector.load %arg10[%c0_48, %c0_49] : memref<1x128xf32, #tpu.memory_space<vmem>>, vector<1x128xf32>
    %74 = vector.broadcast %73 : vector<1x128xf32> to vector<16x128xf32>
    %75 = arith.addf %72, %74 : vector<16x128xf32>
    %c0_50 = arith.constant 0 : index
    %c0_51 = arith.constant 0 : index
    %76 = vector.load %arg13[%c0_50, %c0_51] : memref<128x128xf32, #tpu.memory_space<vmem>>, vector<128x128xf32>
    %cst_52 = arith.constant dense<0.000000e+00> : vector<16x128xf32>
    %77 = tpu.matmul %75, %76, %cst_52 {dimension_numbers = #tpu.dot_dimension_numbers<[1], [0], [0], [1], [0, 0, 1, 1], [], []>} : vector<16x128xf32>, vector<128x128xf32>, vector<16x128xf32> -> vector<16x128xf32>
    %c0_53 = arith.constant 0 : index
    %c0_54 = arith.constant 0 : index
    %78 = vector.load %arg12[%c0_53, %c0_54] : memref<8x128xf32, #tpu.memory_space<vmem>>, vector<8x128xf32>
    %c0_55 = arith.constant 0 : index
    %c0_56 = arith.constant 0 : index
    %79 = vector.load %arg14[%c0_55, %c0_56] : memref<128x128xf32, #tpu.memory_space<vmem>>, vector<128x128xf32>
    %cst_57 = arith.constant dense<0.000000e+00> : vector<8x128xf32>
    %80 = tpu.matmul %78, %79, %cst_57 {dimension_numbers = #tpu.dot_dimension_numbers<[1], [0], [0], [1], [0, 0, 1, 1], [], []>} : vector<8x128xf32>, vector<128x128xf32>, vector<8x128xf32> -> vector<8x128xf32>
    %81 = vector.extract_strided_slice %80 {offsets = [0, 0], sizes = [1, 128], strides = [1, 1]} : vector<8x128xf32> to vector<1x128xf32>
    %82 = vector.shape_cast %81 : vector<1x128xf32> to vector<1x128xf32>
    %83 = vector.broadcast %82 : vector<1x128xf32> to vector<16x128xf32>
    %84 = arith.addf %77, %83 : vector<16x128xf32>
    %85 = vector.extract_strided_slice %80 {offsets = [1, 0], sizes = [1, 128], strides = [1, 1]} : vector<8x128xf32> to vector<1x128xf32>
    %86 = vector.shape_cast %85 : vector<1x128xf32> to vector<1x128xf32>
    %87 = vector.broadcast %86 : vector<1x128xf32> to vector<16x128xf32>
    %88 = arith.addf %77, %87 : vector<16x128xf32>
    %89 = vector.extract_strided_slice %80 {offsets = [2, 0], sizes = [1, 128], strides = [1, 1]} : vector<8x128xf32> to vector<1x128xf32>
    %90 = vector.shape_cast %89 : vector<1x128xf32> to vector<1x128xf32>
    %91 = vector.broadcast %90 : vector<1x128xf32> to vector<16x128xf32>
    %92 = arith.addf %77, %91 : vector<16x128xf32>
    %93 = vector.extract_strided_slice %80 {offsets = [3, 0], sizes = [1, 128], strides = [1, 1]} : vector<8x128xf32> to vector<1x128xf32>
    %94 = vector.shape_cast %93 : vector<1x128xf32> to vector<1x128xf32>
    %95 = vector.broadcast %94 : vector<1x128xf32> to vector<16x128xf32>
    %96 = arith.addf %77, %95 : vector<16x128xf32>
    %97 = vector.extract_strided_slice %80 {offsets = [4, 0], sizes = [1, 128], strides = [1, 1]} : vector<8x128xf32> to vector<1x128xf32>
    %98 = vector.shape_cast %97 : vector<1x128xf32> to vector<1x128xf32>
    %99 = vector.broadcast %98 : vector<1x128xf32> to vector<16x128xf32>
    %100 = arith.addf %77, %99 : vector<16x128xf32>
    %101 = vector.extract_strided_slice %80 {offsets = [5, 0], sizes = [1, 128], strides = [1, 1]} : vector<8x128xf32> to vector<1x128xf32>
    %102 = vector.shape_cast %101 : vector<1x128xf32> to vector<1x128xf32>
    %103 = vector.broadcast %102 : vector<1x128xf32> to vector<16x128xf32>
    %104 = arith.addf %77, %103 : vector<16x128xf32>
    %105 = vector.extract_strided_slice %80 {offsets = [6, 0], sizes = [1, 128], strides = [1, 1]} : vector<8x128xf32> to vector<1x128xf32>
    %106 = vector.shape_cast %105 : vector<1x128xf32> to vector<1x128xf32>
    %107 = vector.broadcast %106 : vector<1x128xf32> to vector<16x128xf32>
    %108 = arith.addf %77, %107 : vector<16x128xf32>
    %109 = vector.extract_strided_slice %80 {offsets = [7, 0], sizes = [1, 128], strides = [1, 1]} : vector<8x128xf32> to vector<1x128xf32>
    %110 = vector.shape_cast %109 : vector<1x128xf32> to vector<1x128xf32>
    %111 = vector.broadcast %110 : vector<1x128xf32> to vector<16x128xf32>
    %112 = arith.addf %77, %111 : vector<16x128xf32>
    %113 = tpu.concatenate %84, %88, %92, %96, %100, %104, %108, %112 in 0 : vector<16x128xf32>, vector<16x128xf32>, vector<16x128xf32>, vector<16x128xf32>, vector<16x128xf32>, vector<16x128xf32>, vector<16x128xf32>, vector<16x128xf32> -> vector<128x128xf32>
    %c0_58 = arith.constant 0 : index
    %c0_59 = arith.constant 0 : index
    %114 = vector.load %arg15[%c0_58, %c0_59] : memref<1x128xf32, #tpu.memory_space<vmem>>, vector<1x128xf32>
    %115 = vector.broadcast %114 : vector<1x128xf32> to vector<128x128xf32>
    %116 = arith.addf %113, %115 : vector<128x128xf32>
    %cst_60 = arith.constant 0.000000e+00 : f32
    %117 = vector.broadcast %cst_60 : f32 to vector<128x128xf32>
    %118 = arith.maximumf %116, %117 : vector<128x128xf32>
    %c0_61 = arith.constant 0 : index
    %c0_62 = arith.constant 0 : index
    %119 = vector.load %arg16[%c0_61, %c0_62] : memref<128x128xf32, #tpu.memory_space<vmem>>, vector<128x128xf32>
    %cst_63 = arith.constant dense<0.000000e+00> : vector<128x128xf32>
    %120 = tpu.matmul %118, %119, %cst_63 {dimension_numbers = #tpu.dot_dimension_numbers<[1], [0], [0], [1], [0, 0, 1, 1], [], []>} : vector<128x128xf32>, vector<128x128xf32>, vector<128x128xf32> -> vector<128x128xf32>
    %c0_64 = arith.constant 0 : index
    %c0_65 = arith.constant 0 : index
    %121 = vector.load %arg17[%c0_64, %c0_65] : memref<1x128xf32, #tpu.memory_space<vmem>>, vector<1x128xf32>
    %122 = vector.broadcast %121 : vector<1x128xf32> to vector<128x128xf32>
    %123 = arith.addf %120, %122 : vector<128x128xf32>
    %cst_66 = arith.constant dense<0xFF800000> : vector<128xf32>
    %124 = vector.multi_reduction <maximumf>, %123, %cst_66 [1] : vector<128x128xf32> to vector<128xf32>
    %125 = vector.shape_cast %124 : vector<128xf32> to vector<128x1xf32>
    %126 = vector.broadcast %125 : vector<128x1xf32> to vector<128x128xf32>
    %127 = arith.subf %123, %126 : vector<128x128xf32>
    %128 = math.exp %127 : vector<128x128xf32>
    %cst_67 = arith.constant dense<0.000000e+00> : vector<128xf32>
    %129 = vector.multi_reduction <add>, %128, %cst_67 [1] : vector<128x128xf32> to vector<128xf32>
    %130 = vector.shape_cast %129 : vector<128xf32> to vector<128x1xf32>
    %131 = vector.broadcast %130 : vector<128x1xf32> to vector<128x128xf32>
    %132 = arith.divf %128, %131 : vector<128x128xf32>
    %c0_68 = arith.constant 0 : index
    %c0_69 = arith.constant 0 : index
    %133 = vector.load %arg11[%c0_68, %c0_69] : memref<128x128xf32, #tpu.memory_space<vmem>>, vector<128x128xf32>
    %cst_70 = arith.constant dense<0.000000e+00> : vector<128x128xf32>
    %134 = tpu.matmul %132, %133, %cst_70 {dimension_numbers = #tpu.dot_dimension_numbers<[1], [0], [0], [1], [0, 0, 1, 1], [], []>} : vector<128x128xf32>, vector<128x128xf32>, vector<128x128xf32> -> vector<128x128xf32>
    %135 = vector.extract_strided_slice %134 {offsets = [0, 0], sizes = [16, 128], strides = [1, 1]} : vector<128x128xf32> to vector<16x128xf32>
    %136 = vector.extract_strided_slice %134 {offsets = [16, 0], sizes = [16, 128], strides = [1, 1]} : vector<128x128xf32> to vector<16x128xf32>
    %137 = arith.addf %135, %136 : vector<16x128xf32>
    %138 = vector.extract_strided_slice %134 {offsets = [32, 0], sizes = [16, 128], strides = [1, 1]} : vector<128x128xf32> to vector<16x128xf32>
    %139 = arith.addf %137, %138 : vector<16x128xf32>
    %140 = vector.extract_strided_slice %134 {offsets = [48, 0], sizes = [16, 128], strides = [1, 1]} : vector<128x128xf32> to vector<16x128xf32>
    %141 = arith.addf %139, %140 : vector<16x128xf32>
    %142 = vector.extract_strided_slice %134 {offsets = [64, 0], sizes = [16, 128], strides = [1, 1]} : vector<128x128xf32> to vector<16x128xf32>
    %143 = arith.addf %141, %142 : vector<16x128xf32>
    %144 = vector.extract_strided_slice %134 {offsets = [80, 0], sizes = [16, 128], strides = [1, 1]} : vector<128x128xf32> to vector<16x128xf32>
    %145 = arith.addf %143, %144 : vector<16x128xf32>
    %146 = vector.extract_strided_slice %134 {offsets = [96, 0], sizes = [16, 128], strides = [1, 1]} : vector<128x128xf32> to vector<16x128xf32>
    %147 = arith.addf %145, %146 : vector<16x128xf32>
    %148 = vector.extract_strided_slice %134 {offsets = [112, 0], sizes = [16, 128], strides = [1, 1]} : vector<128x128xf32> to vector<16x128xf32>
    %149 = arith.addf %147, %148 : vector<16x128xf32>
    %cst_71 = arith.constant 1.250000e-01 : f32
    %150 = vector.broadcast %cst_71 : f32 to vector<16x128xf32>
    %151 = arith.mulf %149, %150 : vector<16x128xf32>
    %152 = arith.addf %75, %151 : vector<16x128xf32>
    %c0_72 = arith.constant 0 : index
    %c0_73 = arith.constant 0 : index
    %153 = vector.load %arg18[%c0_72, %c0_73] : memref<128x128xf32, #tpu.memory_space<vmem>>, vector<128x128xf32>
    %cst_74 = arith.constant dense<0.000000e+00> : vector<16x128xf32>
    %154 = tpu.matmul %152, %153, %cst_74 {dimension_numbers = #tpu.dot_dimension_numbers<[1], [0], [0], [1], [0, 0, 1, 1], [], []>} : vector<16x128xf32>, vector<128x128xf32>, vector<16x128xf32> -> vector<16x128xf32>
    %c0_75 = arith.constant 0 : index
    %c0_76 = arith.constant 0 : index
    %155 = vector.load %arg19[%c0_75, %c0_76] : memref<1x128xf32, #tpu.memory_space<vmem>>, vector<1x128xf32>
    %156 = vector.broadcast %155 : vector<1x128xf32> to vector<16x128xf32>
    %157 = arith.addf %154, %156 : vector<16x128xf32>
    %cst_77 = arith.constant 0.000000e+00 : f32
    %158 = vector.broadcast %cst_77 : f32 to vector<16x128xf32>
    %159 = arith.maximumf %157, %158 : vector<16x128xf32>
    %c0_78 = arith.constant 0 : index
    %c0_79 = arith.constant 0 : index
    %160 = vector.load %arg20[%c0_78, %c0_79] : memref<1x128xf32, #tpu.memory_space<vmem>>, vector<1x128xf32>
    %161 = vector.broadcast %160 : vector<1x128xf32> to vector<16x128xf32>
    %162 = arith.mulf %159, %161 : vector<16x128xf32>
    %cst_80 = arith.constant dense<0.000000e+00> : vector<16xf32>
    %163 = vector.multi_reduction <add>, %162, %cst_80 [1] : vector<16x128xf32> to vector<16xf32>
    %164 = vector.shape_cast %163 : vector<16xf32> to vector<16x1xf32>
    %c0_81 = arith.constant 0 : index
    %c0_82 = arith.constant 0 : index
    %165 = vector.load %arg21[%c0_81, %c0_82] : memref<1x1xf32, #tpu.memory_space<vmem>>, vector<1x1xf32>
    %166 = vector.broadcast %165 : vector<1x1xf32> to vector<16x1xf32>
    %167 = arith.addf %164, %166 : vector<16x1xf32>
    %cst_83 = arith.constant dense<0xFF800000> : vector<1xf32>
    %168 = vector.multi_reduction <maximumf>, %167, %cst_83 [0] : vector<16x1xf32> to vector<1xf32>
    %169 = vector.shape_cast %168 : vector<1xf32> to vector<1x1xf32>
    %170 = vector.broadcast %169 : vector<1x1xf32> to vector<16x1xf32>
    %171 = arith.subf %167, %170 : vector<16x1xf32>
    %172 = math.exp %171 : vector<16x1xf32>
    %cst_84 = arith.constant dense<0.000000e+00> : vector<1xf32>
    %173 = vector.multi_reduction <add>, %172, %cst_84 [0] : vector<16x1xf32> to vector<1xf32>
    %174 = vector.shape_cast %173 : vector<1xf32> to vector<1x1xf32>
    %175 = vector.broadcast %174 : vector<1x1xf32> to vector<16x1xf32>
    %176 = arith.divf %172, %175 : vector<16x1xf32>
    %177 = vector.broadcast %176 : vector<16x1xf32> to vector<16x128xf32>
    %178 = arith.mulf %152, %177 : vector<16x128xf32>
    %c0_85 = arith.constant 0 : index
    %c0_86 = arith.constant 0 : index
    %179 = vector.load %arg22[%c0_85, %c0_86] : memref<16x128xf32, #tpu.memory_space<vmem>>, vector<16x128xf32>
    tpu.vector_store %arg22[%c0_85, %c0_86], %178 {strides = array<i32>} : memref<16x128xf32, #tpu.memory_space<vmem>>, vector<16x128xf32>,
    %c0_87 = arith.constant 0 : index
    %c0_88 = arith.constant 0 : index
    %180 = vector.load %arg23[%c0_87, %c0_88] : memref<16x1xf32, #tpu.memory_space<vmem>>, vector<16x1xf32>
    tpu.vector_store %arg23[%c0_87, %c0_88], %167 {strides = array<i32>} : memref<16x1xf32, #tpu.memory_space<vmem>>, vector<16x1xf32>,
    return
  }
  func.func @transform_0(%arg0: i32) -> (i32, i32) {
    %c0_i32 = arith.constant 0 : i32
    %c0_i32_0 = arith.constant 0 : i32
    %c0_i32_1 = arith.constant 0 : i32
    return %c0_i32, %c0_i32_0 : i32, i32
  }
  func.func @transform_1(%arg0: i32) -> (i32, i32, i32) {
    %c0_i32 = arith.constant 0 : i32
    %c0_i32_0 = arith.constant 0 : i32
    %c0_i32_1 = arith.constant 0 : i32
    %c0_i32_2 = arith.constant 0 : i32
    return %c0_i32, %c0_i32_0, %c0_i32_1 : i32, i32, i32
  }
  func.func @transform_2(%arg0: i32) -> (i32, i32) {
    %c0_i32 = arith.constant 0 : i32
    %c0_i32_0 = arith.constant 0 : i32
    %c0_i32_1 = arith.constant 0 : i32
    return %c0_i32, %c0_i32_0 : i32, i32
  }
  func.func @transform_3(%arg0: i32) -> (i32, i32) {
    %c0_i32 = arith.constant 0 : i32
    %c0_i32_0 = arith.constant 0 : i32
    %c0_i32_1 = arith.constant 0 : i32
    return %c0_i32, %c0_i32_0 : i32, i32
  }
  func.func @transform_4(%arg0: i32) -> (i32, i32) {
    %c0_i32 = arith.constant 0 : i32
    %c0_i32_0 = arith.constant 0 : i32
    %c0_i32_1 = arith.constant 0 : i32
    return %c0_i32, %c0_i32_0 : i32, i32
  }
  func.func @transform_5(%arg0: i32) -> (i32, i32) {
    %c0_i32 = arith.constant 0 : i32
    %c0_i32_0 = arith.constant 0 : i32
    %c0_i32_1 = arith.constant 0 : i32
    return %c0_i32, %c0_i32_0 : i32, i32
  }
  func.func @transform_6(%arg0: i32) -> (i32, i32) {
    %c0_i32 = arith.constant 0 : i32
    %c0_i32_0 = arith.constant 0 : i32
    %c0_i32_1 = arith.constant 0 : i32
    return %c0_i32, %c0_i32_0 : i32, i32
  }
  func.func @transform_7(%arg0: i32) -> (i32, i32) {
    %c0_i32 = arith.constant 0 : i32
    %c0_i32_0 = arith.constant 0 : i32
    %c0_i32_1 = arith.constant 0 : i32
    return %c0_i32, %c0_i32_0 : i32, i32
  }
  func.func @transform_8(%arg0: i32) -> (i32, i32) {
    %c0_i32 = arith.constant 0 : i32
    %c0_i32_0 = arith.constant 0 : i32
    %c0_i32_1 = arith.constant 0 : i32
    return %c0_i32, %c0_i32_0 : i32, i32
  }
  func.func @transform_9(%arg0: i32) -> (i32, i32) {
    %c0_i32 = arith.constant 0 : i32
    %c0_i32_0 = arith.constant 0 : i32
    %c0_i32_1 = arith.constant 0 : i32
    return %c0_i32, %c0_i32_0 : i32, i32
  }
  func.func @transform_10(%arg0: i32) -> (i32, i32) {
    %c0_i32 = arith.constant 0 : i32
    %c0_i32_0 = arith.constant 0 : i32
    %c0_i32_1 = arith.constant 0 : i32
    return %c0_i32, %c0_i32_0 : i32, i32
  }
  func.func @transform_11(%arg0: i32) -> (i32, i32) {
    %c0_i32 = arith.constant 0 : i32
    %c0_i32_0 = arith.constant 0 : i32
    %c0_i32_1 = arith.constant 0 : i32
    return %c0_i32, %c0_i32_0 : i32, i32
  }
  func.func @transform_12(%arg0: i32) -> (i32, i32) {
    %c0_i32 = arith.constant 0 : i32
    %c0_i32_0 = arith.constant 0 : i32
    %c0_i32_1 = arith.constant 0 : i32
    return %c0_i32, %c0_i32_0 : i32, i32
  }
  func.func @transform_13(%arg0: i32) -> (i32, i32) {
    %c0_i32 = arith.constant 0 : i32
    %c0_i32_0 = arith.constant 0 : i32
    %c0_i32_1 = arith.constant 0 : i32
    return %c0_i32, %c0_i32_0 : i32, i32
  }
  func.func @transform_14(%arg0: i32) -> (i32, i32) {
    %c0_i32 = arith.constant 0 : i32
    %c0_i32_0 = arith.constant 0 : i32
    %c0_i32_1 = arith.constant 0 : i32
    return %c0_i32, %c0_i32_0 : i32, i32
  }
  func.func @transform_15(%arg0: i32) -> (i32, i32) {
    %c0_i32 = arith.constant 0 : i32
    %c0_i32_0 = arith.constant 0 : i32
    %c0_i32_1 = arith.constant 0 : i32
    return %c0_i32, %c0_i32_0 : i32, i32
  }
  func.func @transform_16(%arg0: i32) -> (i32, i32) {
    %c0_i32 = arith.constant 0 : i32
    %c0_i32_0 = arith.constant 0 : i32
    %c0_i32_1 = arith.constant 0 : i32
    return %c0_i32, %c0_i32_0 : i32, i32
  }
  func.func @transform_17(%arg0: i32) -> (i32, i32) {
    %c0_i32 = arith.constant 0 : i32
    %c0_i32_0 = arith.constant 0 : i32
    %c0_i32_1 = arith.constant 0 : i32
    return %c0_i32, %c0_i32_0 : i32, i32
  }
  func.func @transform_18(%arg0: i32) -> (i32, i32) {
    %c0_i32 = arith.constant 0 : i32
    %c0_i32_0 = arith.constant 0 : i32
    %c0_i32_1 = arith.constant 0 : i32
    return %c0_i32, %c0_i32_0 : i32, i32
  }
  func.func @transform_19(%arg0: i32) -> (i32, i32) {
    %c0_i32 = arith.constant 0 : i32
    %c0_i32_0 = arith.constant 0 : i32
    %c0_i32_1 = arith.constant 0 : i32
    return %c0_i32, %c0_i32_0 : i32, i32
  }
  func.func @transform_20(%arg0: i32) -> (i32, i32) {
    %c0_i32 = arith.constant 0 : i32
    %c0_i32_0 = arith.constant 0 : i32
    %c0_i32_1 = arith.constant 0 : i32
    return %c0_i32, %c0_i32_0 : i32, i32
  }
  func.func @transform_21(%arg0: i32) -> (i32, i32) {
    %c0_i32 = arith.constant 0 : i32
    %c0_i32_0 = arith.constant 0 : i32
    %c0_i32_1 = arith.constant 0 : i32
    return %c0_i32, %c0_i32_0 : i32, i32
  }
  func.func @transform_22(%arg0: i32) -> (i32, i32) {
    %c0_i32 = arith.constant 0 : i32
    %c0_i32_0 = arith.constant 0 : i32
    %c0_i32_1 = arith.constant 0 : i32
    return %c0_i32, %c0_i32_0 : i32, i32
  }
}

module attributes {stable_mosaic.version = 11 : i64} {
  func.func @_layer_kernel(%arg0: i32, %arg1: memref<16x128xf32, #tpu.memory_space<vmem>>, %arg2: memref<4x128x256xf32, #tpu.memory_space<vmem>>, %arg3: memref<256x128xf32, #tpu.memory_space<vmem>>, %arg4: memref<1x128xf32, #tpu.memory_space<vmem>>, %arg5: memref<128x4xf32, #tpu.memory_space<vmem>>, %arg6: memref<1x4xf32, #tpu.memory_space<vmem>>, %arg7: memref<128x512xf32, #tpu.memory_space<vmem>>, %arg8: memref<1x512xf32, #tpu.memory_space<vmem>>, %arg9: memref<128x128xf32, #tpu.memory_space<vmem>>, %arg10: memref<1x128xf32, #tpu.memory_space<vmem>>, %arg11: memref<128x128xf32, #tpu.memory_space<vmem>>, %arg12: memref<8x128xf32, #tpu.memory_space<vmem>>, %arg13: memref<128x128xf32, #tpu.memory_space<vmem>>, %arg14: memref<128x128xf32, #tpu.memory_space<vmem>>, %arg15: memref<1x128xf32, #tpu.memory_space<vmem>>, %arg16: memref<128x128xf32, #tpu.memory_space<vmem>>, %arg17: memref<1x128xf32, #tpu.memory_space<vmem>>, %arg18: memref<128x128xf32, #tpu.memory_space<vmem>>, %arg19: memref<1x128xf32, #tpu.memory_space<vmem>>, %arg20: memref<1x128xf32, #tpu.memory_space<vmem>>, %arg21: memref<1x1xf32, #tpu.memory_space<vmem>>, %arg22: memref<16x128xf32, #tpu.memory_space<vmem>>, %arg23: memref<16x1xf32, #tpu.memory_space<vmem>>) attributes {dimension_semantics = [#tpu.dimension_semantics<arbitrary>], iteration_bounds = array<i64: 1>, scalar_prefetch = 0 : i64, scratch_operands = 0 : i64, tpu.core_type = #tpu.core_type<tc>, window_params = [{pipeline_mode = #tpu.pipeline_mode<synchronous>, transform_indices = @transform_0, window_bounds = array<i64: 16, 128>}, {pipeline_mode = #tpu.pipeline_mode<synchronous>, transform_indices = @transform_1, window_bounds = array<i64: 4, 128, 256>}, {pipeline_mode = #tpu.pipeline_mode<synchronous>, transform_indices = @transform_2, window_bounds = array<i64: 256, 128>}, {pipeline_mode = #tpu.pipeline_mode<synchronous>, transform_indices = @transform_3, window_bounds = array<i64: 1, 128>}, {pipeline_mode = #tpu.pipeline_mode<synchronous>, transform_indices = @transform_4, window_bounds = array<i64: 128, 4>}, {pipeline_mode = #tpu.pipeline_mode<synchronous>, transform_indices = @transform_5, window_bounds = array<i64: 1, 4>}, {pipeline_mode = #tpu.pipeline_mode<synchronous>, transform_indices = @transform_6, window_bounds = array<i64: 128, 512>}, {pipeline_mode = #tpu.pipeline_mode<synchronous>, transform_indices = @transform_7, window_bounds = array<i64: 1, 512>}, {pipeline_mode = #tpu.pipeline_mode<synchronous>, transform_indices = @transform_8, window_bounds = array<i64: 128, 128>}, {pipeline_mode = #tpu.pipeline_mode<synchronous>, transform_indices = @transform_9, window_bounds = array<i64: 1, 128>}, {pipeline_mode = #tpu.pipeline_mode<synchronous>, transform_indices = @transform_10, window_bounds = array<i64: 128, 128>}, {pipeline_mode = #tpu.pipeline_mode<synchronous>, transform_indices = @transform_11, window_bounds = array<i64: 8, 128>}, {pipeline_mode = #tpu.pipeline_mode<synchronous>, transform_indices = @transform_12, window_bounds = array<i64: 128, 128>}, {pipeline_mode = #tpu.pipeline_mode<synchronous>, transform_indices = @transform_13, window_bounds = array<i64: 128, 128>}, {pipeline_mode = #tpu.pipeline_mode<synchronous>, transform_indices = @transform_14, window_bounds = array<i64: 1, 128>}, {pipeline_mode = #tpu.pipeline_mode<synchronous>, transform_indices = @transform_15, window_bounds = array<i64: 128, 128>}, {pipeline_mode = #tpu.pipeline_mode<synchronous>, transform_indices = @transform_16, window_bounds = array<i64: 1, 128>}, {pipeline_mode = #tpu.pipeline_mode<synchronous>, transform_indices = @transform_17, window_bounds = array<i64: 128, 128>}, {pipeline_mode = #tpu.pipeline_mode<synchronous>, transform_indices = @transform_18, window_bounds = array<i64: 1, 128>}, {pipeline_mode = #tpu.pipeline_mode<synchronous>, transform_indices = @transform_19, window_bounds = array<i64: 1, 128>}, {pipeline_mode = #tpu.pipeline_mode<synchronous>, transform_indices = @transform_20, window_bounds = array<i64: 1, 1>}, {pipeline_mode = #tpu.pipeline_mode<synchronous>, transform_indices = @transform_21, window_bounds = array<i64: 16, 128>}, {pipeline_mode = #tpu.pipeline_mode<synchronous>, transform_indices = @transform_22, window_bounds = array<i64: 16, 1>}]} {
    %c0 = arith.constant 0 : index
    %c0_0 = arith.constant 0 : index
    %0 = vector.load %arg1[%c0, %c0_0] : memref<16x128xf32, #tpu.memory_space<vmem>>, vector<16x128xf32>
    %c0_1 = arith.constant 0 : index
    %c0_2 = arith.constant 0 : index
    %c0_3 = arith.constant 0 : index
    %1 = vector.load %arg2[%c0_1, %c0_2, %c0_3] : memref<4x128x256xf32, #tpu.memory_space<vmem>>, vector<1x128x256xf32>
    %2 = vector.shape_cast %1 : vector<1x128x256xf32> to vector<128x256xf32>
    %cst = arith.constant dense<0.000000e+00> : vector<16x256xf32>
    %3 = tpu.matmul %0, %2, %cst {dimension_numbers = #tpu.dot_dimension_numbers<[1], [0], [0], [1], [0, 0, 1, 1], [], []>} : vector<16x128xf32>, vector<128x256xf32>, vector<16x256xf32> -> vector<16x256xf32>
    %c0_4 = arith.constant 0 : index
    %c0_5 = arith.constant 0 : index
    %4 = vector.load %arg3[%c0_4, %c0_5] : memref<256x128xf32, #tpu.memory_space<vmem>>, vector<256x128xf32>
    %cst_6 = arith.constant dense<0.000000e+00> : vector<16x128xf32>
    %5 = tpu.matmul %3, %4, %cst_6 {dimension_numbers = #tpu.dot_dimension_numbers<[1], [0], [0], [1], [0, 0, 1, 1], [], []>} : vector<16x256xf32>, vector<256x128xf32>, vector<16x128xf32> -> vector<16x128xf32>
    %c0_7 = arith.constant 0 : index
    %c0_8 = arith.constant 0 : index
    %6 = vector.load %arg4[%c0_7, %c0_8] : memref<1x128xf32, #tpu.memory_space<vmem>>, vector<1x128xf32>
    %7 = vector.broadcast %6 : vector<1x128xf32> to vector<16x128xf32>
    %8 = arith.addf %5, %7 : vector<16x128xf32>
    %c1 = arith.constant 1 : index
    %c0_9 = arith.constant 0 : index
    %c0_10 = arith.constant 0 : index
    %9 = vector.load %arg2[%c1, %c0_9, %c0_10] : memref<4x128x256xf32, #tpu.memory_space<vmem>>, vector<1x128x256xf32>
    %10 = vector.shape_cast %9 : vector<1x128x256xf32> to vector<128x256xf32>
    %cst_11 = arith.constant dense<0.000000e+00> : vector<16x256xf32>
    %11 = tpu.matmul %8, %10, %cst_11 {dimension_numbers = #tpu.dot_dimension_numbers<[1], [0], [0], [1], [0, 0, 1, 1], [], []>} : vector<16x128xf32>, vector<128x256xf32>, vector<16x256xf32> -> vector<16x256xf32>
    %c0_12 = arith.constant 0 : index
    %c0_13 = arith.constant 0 : index
    %12 = vector.load %arg3[%c0_12, %c0_13] : memref<256x128xf32, #tpu.memory_space<vmem>>, vector<256x128xf32>
    %cst_14 = arith.constant dense<0.000000e+00> : vector<16x128xf32>
    %13 = tpu.matmul %11, %12, %cst_14 {dimension_numbers = #tpu.dot_dimension_numbers<[1], [0], [0], [1], [0, 0, 1, 1], [], []>} : vector<16x256xf32>, vector<256x128xf32>, vector<16x128xf32> -> vector<16x128xf32>
    %c0_15 = arith.constant 0 : index
    %c0_16 = arith.constant 0 : index
    %14 = vector.load %arg4[%c0_15, %c0_16] : memref<1x128xf32, #tpu.memory_space<vmem>>, vector<1x128xf32>
    %15 = vector.broadcast %14 : vector<1x128xf32> to vector<16x128xf32>
    %16 = arith.addf %13, %15 : vector<16x128xf32>
    %c2 = arith.constant 2 : index
    %c0_17 = arith.constant 0 : index
    %c0_18 = arith.constant 0 : index
    %17 = vector.load %arg2[%c2, %c0_17, %c0_18] : memref<4x128x256xf32, #tpu.memory_space<vmem>>, vector<1x128x256xf32>
    %18 = vector.shape_cast %17 : vector<1x128x256xf32> to vector<128x256xf32>
    %cst_19 = arith.constant dense<0.000000e+00> : vector<16x256xf32>
    %19 = tpu.matmul %16, %18, %cst_19 {dimension_numbers = #tpu.dot_dimension_numbers<[1], [0], [0], [1], [0, 0, 1, 1], [], []>} : vector<16x128xf32>, vector<128x256xf32>, vector<16x256xf32> -> vector<16x256xf32>
    %c0_20 = arith.constant 0 : index
    %c0_21 = arith.constant 0 : index
    %20 = vector.load %arg3[%c0_20, %c0_21] : memref<256x128xf32, #tpu.memory_space<vmem>>, vector<256x128xf32>
    %cst_22 = arith.constant dense<0.000000e+00> : vector<16x128xf32>
    %21 = tpu.matmul %19, %20, %cst_22 {dimension_numbers = #tpu.dot_dimension_numbers<[1], [0], [0], [1], [0, 0, 1, 1], [], []>} : vector<16x256xf32>, vector<256x128xf32>, vector<16x128xf32> -> vector<16x128xf32>
    %c0_23 = arith.constant 0 : index
    %c0_24 = arith.constant 0 : index
    %22 = vector.load %arg4[%c0_23, %c0_24] : memref<1x128xf32, #tpu.memory_space<vmem>>, vector<1x128xf32>
    %23 = vector.broadcast %22 : vector<1x128xf32> to vector<16x128xf32>
    %24 = arith.addf %21, %23 : vector<16x128xf32>
    %c3 = arith.constant 3 : index
    %c0_25 = arith.constant 0 : index
    %c0_26 = arith.constant 0 : index
    %25 = vector.load %arg2[%c3, %c0_25, %c0_26] : memref<4x128x256xf32, #tpu.memory_space<vmem>>, vector<1x128x256xf32>
    %26 = vector.shape_cast %25 : vector<1x128x256xf32> to vector<128x256xf32>
    %cst_27 = arith.constant dense<0.000000e+00> : vector<16x256xf32>
    %27 = tpu.matmul %24, %26, %cst_27 {dimension_numbers = #tpu.dot_dimension_numbers<[1], [0], [0], [1], [0, 0, 1, 1], [], []>} : vector<16x128xf32>, vector<128x256xf32>, vector<16x256xf32> -> vector<16x256xf32>
    %c0_28 = arith.constant 0 : index
    %c0_29 = arith.constant 0 : index
    %28 = vector.load %arg3[%c0_28, %c0_29] : memref<256x128xf32, #tpu.memory_space<vmem>>, vector<256x128xf32>
    %cst_30 = arith.constant dense<0.000000e+00> : vector<16x128xf32>
    %29 = tpu.matmul %27, %28, %cst_30 {dimension_numbers = #tpu.dot_dimension_numbers<[1], [0], [0], [1], [0, 0, 1, 1], [], []>} : vector<16x256xf32>, vector<256x128xf32>, vector<16x128xf32> -> vector<16x128xf32>
    %c0_31 = arith.constant 0 : index
    %c0_32 = arith.constant 0 : index
    %30 = vector.load %arg4[%c0_31, %c0_32] : memref<1x128xf32, #tpu.memory_space<vmem>>, vector<1x128xf32>
    %31 = vector.broadcast %30 : vector<1x128xf32> to vector<16x128xf32>
    %32 = arith.addf %29, %31 : vector<16x128xf32>
    %c0_33 = arith.constant 0 : index
    %c0_34 = arith.constant 0 : index
    %33 = vector.load %arg5[%c0_33, %c0_34] : memref<128x4xf32, #tpu.memory_space<vmem>>, vector<128x4xf32>
    %cst_35 = arith.constant dense<0.000000e+00> : vector<16x4xf32>
    %34 = tpu.matmul %32, %33, %cst_35 {dimension_numbers = #tpu.dot_dimension_numbers<[1], [0], [0], [1], [0, 0, 1, 1], [], []>} : vector<16x128xf32>, vector<128x4xf32>, vector<16x4xf32> -> vector<16x4xf32>
    %c0_36 = arith.constant 0 : index
    %c0_37 = arith.constant 0 : index
    %35 = vector.load %arg6[%c0_36, %c0_37] : memref<1x4xf32, #tpu.memory_space<vmem>>, vector<1x4xf32>
    %36 = vector.broadcast %35 : vector<1x4xf32> to vector<16x4xf32>
    %37 = arith.addf %34, %36 : vector<16x4xf32>
    %cst_38 = arith.constant dense<0xFF800000> : vector<16xf32>
    %38 = vector.multi_reduction <maximumf>, %37, %cst_38 [1] : vector<16x4xf32> to vector<16xf32>
    %39 = vector.shape_cast %38 : vector<16xf32> to vector<16x1xf32>
    %40 = vector.broadcast %39 : vector<16x1xf32> to vector<16x4xf32>
    %41 = arith.subf %37, %40 : vector<16x4xf32>
    %42 = math.exp %41 : vector<16x4xf32>
    %cst_39 = arith.constant dense<0.000000e+00> : vector<16xf32>
    %43 = vector.multi_reduction <add>, %42, %cst_39 [1] : vector<16x4xf32> to vector<16xf32>
    %44 = vector.shape_cast %43 : vector<16xf32> to vector<16x1xf32>
    %45 = vector.broadcast %44 : vector<16x1xf32> to vector<16x4xf32>
    %46 = arith.divf %42, %45 : vector<16x4xf32>
    %c0_40 = arith.constant 0 : index
    %c0_41 = arith.constant 0 : index
    %47 = vector.load %arg7[%c0_40, %c0_41] : memref<128x512xf32, #tpu.memory_space<vmem>>, vector<128x512xf32>
    %cst_42 = arith.constant dense<0.000000e+00> : vector<16x512xf32>
    %48 = tpu.matmul %32, %47, %cst_42 {dimension_numbers = #tpu.dot_dimension_numbers<[1], [0], [0], [1], [0, 0, 1, 1], [], []>} : vector<16x128xf32>, vector<128x512xf32>, vector<16x512xf32> -> vector<16x512xf32>
    %c0_43 = arith.constant 0 : index
    %c0_44 = arith.constant 0 : index
    %49 = vector.load %arg8[%c0_43, %c0_44] : memref<1x512xf32, #tpu.memory_space<vmem>>, vector<1x512xf32>
    %50 = vector.broadcast %49 : vector<1x512xf32> to vector<16x512xf32>
    %51 = arith.addf %48, %50 : vector<16x512xf32>
    %52 = vector.extract_strided_slice %46 {offsets = [0, 0], sizes = [16, 1], strides = [1, 1]} : vector<16x4xf32> to vector<16x1xf32>
    %53 = vector.extract_strided_slice %51 {offsets = [0, 0], sizes = [16, 128], strides = [1, 1]} : vector<16x512xf32> to vector<16x128xf32>
    %54 = vector.broadcast %52 : vector<16x1xf32> to vector<16x128xf32>
    %55 = arith.mulf %54, %53 : vector<16x128xf32>
    %56 = vector.extract_strided_slice %46 {offsets = [0, 1], sizes = [16, 1], strides = [1, 1]} : vector<16x4xf32> to vector<16x1xf32>
    %57 = vector.extract_strided_slice %51 {offsets = [0, 128], sizes = [16, 128], strides = [1, 1]} : vector<16x512xf32> to vector<16x128xf32>
    %58 = vector.broadcast %56 : vector<16x1xf32> to vector<16x128xf32>
    %59 = arith.mulf %58, %57 : vector<16x128xf32>
    %60 = arith.addf %55, %59 : vector<16x128xf32>
    %61 = vector.extract_strided_slice %46 {offsets = [0, 2], sizes = [16, 1], strides = [1, 1]} : vector<16x4xf32> to vector<16x1xf32>
    %62 = vector.extract_strided_slice %51 {offsets = [0, 256], sizes = [16, 128], strides = [1, 1]} : vector<16x512xf32> to vector<16x128xf32>
    %63 = vector.broadcast %61 : vector<16x1xf32> to vector<16x128xf32>
    %64 = arith.mulf %63, %62 : vector<16x128xf32>
    %65 = arith.addf %60, %64 : vector<16x128xf32>
    %66 = vector.extract_strided_slice %46 {offsets = [0, 3], sizes = [16, 1], strides = [1, 1]} : vector<16x4xf32> to vector<16x1xf32>
    %67 = vector.extract_strided_slice %51 {offsets = [0, 384], sizes = [16, 128], strides = [1, 1]} : vector<16x512xf32> to vector<16x128xf32>
    %68 = vector.broadcast %66 : vector<16x1xf32> to vector<16x128xf32>
    %69 = arith.mulf %68, %67 : vector<16x128xf32>
    %70 = arith.addf %65, %69 : vector<16x128xf32>
    %c0_45 = arith.constant 0 : index
    %c0_46 = arith.constant 0 : index
    %71 = vector.load %arg9[%c0_45, %c0_46] : memref<128x128xf32, #tpu.memory_space<vmem>>, vector<128x128xf32>
    %cst_47 = arith.constant dense<0.000000e+00> : vector<16x128xf32>
    %72 = tpu.matmul %70, %71, %cst_47 {dimension_numbers = #tpu.dot_dimension_numbers<[1], [0], [0], [1], [0, 0, 1, 1], [], []>} : vector<16x128xf32>, vector<128x128xf32>, vector<16x128xf32> -> vector<16x128xf32>
    %c0_48 = arith.constant 0 : index
    %c0_49 = arith.constant 0 : index
    %73 = vector.load %arg10[%c0_48, %c0_49] : memref<1x128xf32, #tpu.memory_space<vmem>>, vector<1x128xf32>
    %74 = vector.broadcast %73 : vector<1x128xf32> to vector<16x128xf32>
    %75 = arith.addf %72, %74 : vector<16x128xf32>
    %c0_50 = arith.constant 0 : index
    %c0_51 = arith.constant 0 : index
    %76 = vector.load %arg13[%c0_50, %c0_51] : memref<128x128xf32, #tpu.memory_space<vmem>>, vector<128x128xf32>
    %cst_52 = arith.constant dense<0.000000e+00> : vector<16x128xf32>
    %77 = tpu.matmul %75, %76, %cst_52 {dimension_numbers = #tpu.dot_dimension_numbers<[1], [0], [0], [1], [0, 0, 1, 1], [], []>} : vector<16x128xf32>, vector<128x128xf32>, vector<16x128xf32> -> vector<16x128xf32>
    %c0_53 = arith.constant 0 : index
    %c0_54 = arith.constant 0 : index
    %78 = vector.load %arg12[%c0_53, %c0_54] : memref<8x128xf32, #tpu.memory_space<vmem>>, vector<8x128xf32>
    %c0_55 = arith.constant 0 : index
    %c0_56 = arith.constant 0 : index
    %79 = vector.load %arg14[%c0_55, %c0_56] : memref<128x128xf32, #tpu.memory_space<vmem>>, vector<128x128xf32>
    %cst_57 = arith.constant dense<0.000000e+00> : vector<8x128xf32>
    %80 = tpu.matmul %78, %79, %cst_57 {dimension_numbers = #tpu.dot_dimension_numbers<[1], [0], [0], [1], [0, 0, 1, 1], [], []>} : vector<8x128xf32>, vector<128x128xf32>, vector<8x128xf32> -> vector<8x128xf32>
    %81 = vector.extract_strided_slice %80 {offsets = [0, 0], sizes = [1, 128], strides = [1, 1]} : vector<8x128xf32> to vector<1x128xf32>
    %82 = vector.shape_cast %81 : vector<1x128xf32> to vector<1x128xf32>
    %83 = vector.broadcast %82 : vector<1x128xf32> to vector<16x128xf32>
    %84 = arith.addf %77, %83 : vector<16x128xf32>
    %85 = vector.extract_strided_slice %80 {offsets = [1, 0], sizes = [1, 128], strides = [1, 1]} : vector<8x128xf32> to vector<1x128xf32>
    %86 = vector.shape_cast %85 : vector<1x128xf32> to vector<1x128xf32>
    %87 = vector.broadcast %86 : vector<1x128xf32> to vector<16x128xf32>
    %88 = arith.addf %77, %87 : vector<16x128xf32>
    %89 = vector.extract_strided_slice %80 {offsets = [2, 0], sizes = [1, 128], strides = [1, 1]} : vector<8x128xf32> to vector<1x128xf32>
    %90 = vector.shape_cast %89 : vector<1x128xf32> to vector<1x128xf32>
    %91 = vector.broadcast %90 : vector<1x128xf32> to vector<16x128xf32>
    %92 = arith.addf %77, %91 : vector<16x128xf32>
    %93 = vector.extract_strided_slice %80 {offsets = [3, 0], sizes = [1, 128], strides = [1, 1]} : vector<8x128xf32> to vector<1x128xf32>
    %94 = vector.shape_cast %93 : vector<1x128xf32> to vector<1x128xf32>
    %95 = vector.broadcast %94 : vector<1x128xf32> to vector<16x128xf32>
    %96 = arith.addf %77, %95 : vector<16x128xf32>
    %97 = vector.extract_strided_slice %80 {offsets = [4, 0], sizes = [1, 128], strides = [1, 1]} : vector<8x128xf32> to vector<1x128xf32>
    %98 = vector.shape_cast %97 : vector<1x128xf32> to vector<1x128xf32>
    %99 = vector.broadcast %98 : vector<1x128xf32> to vector<16x128xf32>
    %100 = arith.addf %77, %99 : vector<16x128xf32>
    %101 = vector.extract_strided_slice %80 {offsets = [5, 0], sizes = [1, 128], strides = [1, 1]} : vector<8x128xf32> to vector<1x128xf32>
    %102 = vector.shape_cast %101 : vector<1x128xf32> to vector<1x128xf32>
    %103 = vector.broadcast %102 : vector<1x128xf32> to vector<16x128xf32>
    %104 = arith.addf %77, %103 : vector<16x128xf32>
    %105 = vector.extract_strided_slice %80 {offsets = [6, 0], sizes = [1, 128], strides = [1, 1]} : vector<8x128xf32> to vector<1x128xf32>
    %106 = vector.shape_cast %105 : vector<1x128xf32> to vector<1x128xf32>
    %107 = vector.broadcast %106 : vector<1x128xf32> to vector<16x128xf32>
    %108 = arith.addf %77, %107 : vector<16x128xf32>
    %109 = vector.extract_strided_slice %80 {offsets = [7, 0], sizes = [1, 128], strides = [1, 1]} : vector<8x128xf32> to vector<1x128xf32>
    %110 = vector.shape_cast %109 : vector<1x128xf32> to vector<1x128xf32>
    %111 = vector.broadcast %110 : vector<1x128xf32> to vector<16x128xf32>
    %112 = arith.addf %77, %111 : vector<16x128xf32>
    %113 = tpu.concatenate %84, %88, %92, %96, %100, %104, %108, %112 in 0 : vector<16x128xf32>, vector<16x128xf32>, vector<16x128xf32>, vector<16x128xf32>, vector<16x128xf32>, vector<16x128xf32>, vector<16x128xf32>, vector<16x128xf32> -> vector<128x128xf32>
    %c0_58 = arith.constant 0 : index
    %c0_59 = arith.constant 0 : index
    %114 = vector.load %arg15[%c0_58, %c0_59] : memref<1x128xf32, #tpu.memory_space<vmem>>, vector<1x128xf32>
    %115 = vector.broadcast %114 : vector<1x128xf32> to vector<128x128xf32>
    %116 = arith.addf %113, %115 : vector<128x128xf32>
    %cst_60 = arith.constant 0.000000e+00 : f32
    %117 = vector.broadcast %cst_60 : f32 to vector<128x128xf32>
    %118 = arith.maximumf %116, %117 : vector<128x128xf32>
    %c0_61 = arith.constant 0 : index
    %c0_62 = arith.constant 0 : index
    %119 = vector.load %arg16[%c0_61, %c0_62] : memref<128x128xf32, #tpu.memory_space<vmem>>, vector<128x128xf32>
    %cst_63 = arith.constant dense<0.000000e+00> : vector<128x128xf32>
    %120 = tpu.matmul %118, %119, %cst_63 {dimension_numbers = #tpu.dot_dimension_numbers<[1], [0], [0], [1], [0, 0, 1, 1], [], []>} : vector<128x128xf32>, vector<128x128xf32>, vector<128x128xf32> -> vector<128x128xf32>
    %c0_64 = arith.constant 0 : index
    %c0_65 = arith.constant 0 : index
    %121 = vector.load %arg17[%c0_64, %c0_65] : memref<1x128xf32, #tpu.memory_space<vmem>>, vector<1x128xf32>
    %122 = vector.broadcast %121 : vector<1x128xf32> to vector<128x128xf32>
    %123 = arith.addf %120, %122 : vector<128x128xf32>
    %cst_66 = arith.constant dense<0xFF800000> : vector<128xf32>
    %124 = vector.multi_reduction <maximumf>, %123, %cst_66 [1] : vector<128x128xf32> to vector<128xf32>
    %125 = vector.shape_cast %124 : vector<128xf32> to vector<128x1xf32>
    %126 = vector.broadcast %125 : vector<128x1xf32> to vector<128x128xf32>
    %127 = arith.subf %123, %126 : vector<128x128xf32>
    %128 = math.exp %127 : vector<128x128xf32>
    %cst_67 = arith.constant dense<0.000000e+00> : vector<128xf32>
    %129 = vector.multi_reduction <add>, %128, %cst_67 [1] : vector<128x128xf32> to vector<128xf32>
    %130 = vector.shape_cast %129 : vector<128xf32> to vector<128x1xf32>
    %131 = vector.broadcast %130 : vector<128x1xf32> to vector<128x128xf32>
    %132 = arith.divf %128, %131 : vector<128x128xf32>
    %c0_68 = arith.constant 0 : index
    %c0_69 = arith.constant 0 : index
    %133 = vector.load %arg11[%c0_68, %c0_69] : memref<128x128xf32, #tpu.memory_space<vmem>>, vector<128x128xf32>
    %cst_70 = arith.constant dense<0.000000e+00> : vector<128x128xf32>
    %134 = tpu.matmul %132, %133, %cst_70 {dimension_numbers = #tpu.dot_dimension_numbers<[1], [0], [0], [1], [0, 0, 1, 1], [], []>} : vector<128x128xf32>, vector<128x128xf32>, vector<128x128xf32> -> vector<128x128xf32>
    %135 = vector.extract_strided_slice %134 {offsets = [0, 0], sizes = [16, 128], strides = [1, 1]} : vector<128x128xf32> to vector<16x128xf32>
    %136 = vector.extract_strided_slice %134 {offsets = [16, 0], sizes = [16, 128], strides = [1, 1]} : vector<128x128xf32> to vector<16x128xf32>
    %137 = arith.addf %135, %136 : vector<16x128xf32>
    %138 = vector.extract_strided_slice %134 {offsets = [32, 0], sizes = [16, 128], strides = [1, 1]} : vector<128x128xf32> to vector<16x128xf32>
    %139 = arith.addf %137, %138 : vector<16x128xf32>
    %140 = vector.extract_strided_slice %134 {offsets = [48, 0], sizes = [16, 128], strides = [1, 1]} : vector<128x128xf32> to vector<16x128xf32>
    %141 = arith.addf %139, %140 : vector<16x128xf32>
    %142 = vector.extract_strided_slice %134 {offsets = [64, 0], sizes = [16, 128], strides = [1, 1]} : vector<128x128xf32> to vector<16x128xf32>
    %143 = arith.addf %141, %142 : vector<16x128xf32>
    %144 = vector.extract_strided_slice %134 {offsets = [80, 0], sizes = [16, 128], strides = [1, 1]} : vector<128x128xf32> to vector<16x128xf32>
    %145 = arith.addf %143, %144 : vector<16x128xf32>
    %146 = vector.extract_strided_slice %134 {offsets = [96, 0], sizes = [16, 128], strides = [1, 1]} : vector<128x128xf32> to vector<16x128xf32>
    %147 = arith.addf %145, %146 : vector<16x128xf32>
    %148 = vector.extract_strided_slice %134 {offsets = [112, 0], sizes = [16, 128], strides = [1, 1]} : vector<128x128xf32> to vector<16x128xf32>
    %149 = arith.addf %147, %148 : vector<16x128xf32>
    %cst_71 = arith.constant 1.250000e-01 : f32
    %150 = vector.broadcast %cst_71 : f32 to vector<16x128xf32>
    %151 = arith.mulf %149, %150 : vector<16x128xf32>
    %152 = arith.addf %75, %151 : vector<16x128xf32>
    %c0_72 = arith.constant 0 : index
    %c0_73 = arith.constant 0 : index
    %153 = vector.load %arg18[%c0_72, %c0_73] : memref<128x128xf32, #tpu.memory_space<vmem>>, vector<128x128xf32>
    %cst_74 = arith.constant dense<0.000000e+00> : vector<16x128xf32>
    %154 = tpu.matmul %152, %153, %cst_74 {dimension_numbers = #tpu.dot_dimension_numbers<[1], [0], [0], [1], [0, 0, 1, 1], [], []>} : vector<16x128xf32>, vector<128x128xf32>, vector<16x128xf32> -> vector<16x128xf32>
    %c0_75 = arith.constant 0 : index
    %c0_76 = arith.constant 0 : index
    %155 = vector.load %arg19[%c0_75, %c0_76] : memref<1x128xf32, #tpu.memory_space<vmem>>, vector<1x128xf32>
    %156 = vector.broadcast %155 : vector<1x128xf32> to vector<16x128xf32>
    %157 = arith.addf %154, %156 : vector<16x128xf32>
    %cst_77 = arith.constant 0.000000e+00 : f32
    %158 = vector.broadcast %cst_77 : f32 to vector<16x128xf32>
    %159 = arith.maximumf %157, %158 : vector<16x128xf32>
    %c0_78 = arith.constant 0 : index
    %c0_79 = arith.constant 0 : index
    %160 = vector.load %arg20[%c0_78, %c0_79] : memref<1x128xf32, #tpu.memory_space<vmem>>, vector<1x128xf32>
    %161 = vector.broadcast %160 : vector<1x128xf32> to vector<16x128xf32>
    %162 = arith.mulf %159, %161 : vector<16x128xf32>
    %cst_80 = arith.constant dense<0.000000e+00> : vector<16xf32>
    %163 = vector.multi_reduction <add>, %162, %cst_80 [1] : vector<16x128xf32> to vector<16xf32>
    %164 = vector.shape_cast %163 : vector<16xf32> to vector<16x1xf32>
    %c0_81 = arith.constant 0 : index
    %c0_82 = arith.constant 0 : index
    %165 = vector.load %arg21[%c0_81, %c0_82] : memref<1x1xf32, #tpu.memory_space<vmem>>, vector<1x1xf32>
    %166 = vector.broadcast %165 : vector<1x1xf32> to vector<16x1xf32>
    %167 = arith.addf %164, %166 : vector<16x1xf32>
    %cst_83 = arith.constant dense<0xFF800000> : vector<1xf32>
    %168 = vector.multi_reduction <maximumf>, %167, %cst_83 [0] : vector<16x1xf32> to vector<1xf32>
    %169 = vector.shape_cast %168 : vector<1xf32> to vector<1x1xf32>
    %170 = vector.broadcast %169 : vector<1x1xf32> to vector<16x1xf32>
    %171 = arith.subf %167, %170 : vector<16x1xf32>
    %172 = math.exp %171 : vector<16x1xf32>
    %cst_84 = arith.constant dense<0.000000e+00> : vector<1xf32>
    %173 = vector.multi_reduction <add>, %172, %cst_84 [0] : vector<16x1xf32> to vector<1xf32>
    %174 = vector.shape_cast %173 : vector<1xf32> to vector<1x1xf32>
    %175 = vector.broadcast %174 : vector<1x1xf32> to vector<16x1xf32>
    %176 = arith.divf %172, %175 : vector<16x1xf32>
    %177 = vector.broadcast %176 : vector<16x1xf32> to vector<16x128xf32>
    %178 = arith.mulf %152, %177 : vector<16x128xf32>
    %c0_85 = arith.constant 0 : index
    %c0_86 = arith.constant 0 : index
    %179 = vector.load %arg22[%c0_85, %c0_86] : memref<16x128xf32, #tpu.memory_space<vmem>>, vector<16x128xf32>
    tpu.vector_store %arg22[%c0_85, %c0_86], %178 {strides = array<i32>} : memref<16x128xf32, #tpu.memory_space<vmem>>, vector<16x128xf32>,
    %c0_87 = arith.constant 0 : index
    %c0_88 = arith.constant 0 : index
    %180 = vector.load %arg23[%c0_87, %c0_88] : memref<16x1xf32, #tpu.memory_space<vmem>>, vector<16x1xf32>
    tpu.vector_store %arg23[%c0_87, %c0_88], %167 {strides = array<i32>} : memref<16x1xf32, #tpu.memory_space<vmem>>, vector<16x1xf32>,
    return
  }
  func.func @transform_0(%arg0: i32) -> (i32, i32) {
    %c0_i32 = arith.constant 0 : i32
    %c0_i32_0 = arith.constant 0 : i32
    %c0_i32_1 = arith.constant 0 : i32
    return %c0_i32, %c0_i32_0 : i32, i32
  }
  func.func @transform_1(%arg0: i32) -> (i32, i32, i32) {
    %c0_i32 = arith.constant 0 : i32
    %c0_i32_0 = arith.constant 0 : i32
    %c0_i32_1 = arith.constant 0 : i32
    %c0_i32_2 = arith.constant 0 : i32
    return %c0_i32, %c0_i32_0, %c0_i32_1 : i32, i32, i32
  }
  func.func @transform_2(%arg0: i32) -> (i32, i32) {
    %c0_i32 = arith.constant 0 : i32
    %c0_i32_0 = arith.constant 0 : i32
    %c0_i32_1 = arith.constant 0 : i32
    return %c0_i32, %c0_i32_0 : i32, i32
  }
  func.func @transform_3(%arg0: i32) -> (i32, i32) {
    %c0_i32 = arith.constant 0 : i32
    %c0_i32_0 = arith.constant 0 : i32
    %c0_i32_1 = arith.constant 0 : i32
    return %c0_i32, %c0_i32_0 : i32, i32
  }
  func.func @transform_4(%arg0: i32) -> (i32, i32) {
    %c0_i32 = arith.constant 0 : i32
    %c0_i32_0 = arith.constant 0 : i32
    %c0_i32_1 = arith.constant 0 : i32
    return %c0_i32, %c0_i32_0 : i32, i32
  }
  func.func @transform_5(%arg0: i32) -> (i32, i32) {
    %c0_i32 = arith.constant 0 : i32
    %c0_i32_0 = arith.constant 0 : i32
    %c0_i32_1 = arith.constant 0 : i32
    return %c0_i32, %c0_i32_0 : i32, i32
  }
  func.func @transform_6(%arg0: i32) -> (i32, i32) {
    %c0_i32 = arith.constant 0 : i32
    %c0_i32_0 = arith.constant 0 : i32
    %c0_i32_1 = arith.constant 0 : i32
    return %c0_i32, %c0_i32_0 : i32, i32
  }
  func.func @transform_7(%arg0: i32) -> (i32, i32) {
    %c0_i32 = arith.constant 0 : i32
    %c0_i32_0 = arith.constant 0 : i32
    %c0_i32_1 = arith.constant 0 : i32
    return %c0_i32, %c0_i32_0 : i32, i32
  }
  func.func @transform_8(%arg0: i32) -> (i32, i32) {
    %c0_i32 = arith.constant 0 : i32
    %c0_i32_0 = arith.constant 0 : i32
    %c0_i32_1 = arith.constant 0 : i32
    return %c0_i32, %c0_i32_0 : i32, i32
  }
  func.func @transform_9(%arg0: i32) -> (i32, i32) {
    %c0_i32 = arith.constant 0 : i32
    %c0_i32_0 = arith.constant 0 : i32
    %c0_i32_1 = arith.constant 0 : i32
    return %c0_i32, %c0_i32_0 : i32, i32
  }
  func.func @transform_10(%arg0: i32) -> (i32, i32) {
    %c0_i32 = arith.constant 0 : i32
    %c0_i32_0 = arith.constant 0 : i32
    %c0_i32_1 = arith.constant 0 : i32
    return %c0_i32, %c0_i32_0 : i32, i32
  }
  func.func @transform_11(%arg0: i32) -> (i32, i32) {
    %c0_i32 = arith.constant 0 : i32
    %c0_i32_0 = arith.constant 0 : i32
    %c0_i32_1 = arith.constant 0 : i32
    return %c0_i32, %c0_i32_0 : i32, i32
  }
  func.func @transform_12(%arg0: i32) -> (i32, i32) {
    %c0_i32 = arith.constant 0 : i32
    %c0_i32_0 = arith.constant 0 : i32
    %c0_i32_1 = arith.constant 0 : i32
    return %c0_i32, %c0_i32_0 : i32, i32
  }
  func.func @transform_13(%arg0: i32) -> (i32, i32) {
    %c0_i32 = arith.constant 0 : i32
    %c0_i32_0 = arith.constant 0 : i32
    %c0_i32_1 = arith.constant 0 : i32
    return %c0_i32, %c0_i32_0 : i32, i32
  }
  func.func @transform_14(%arg0: i32) -> (i32, i32) {
    %c0_i32 = arith.constant 0 : i32
    %c0_i32_0 = arith.constant 0 : i32
    %c0_i32_1 = arith.constant 0 : i32
    return %c0_i32, %c0_i32_0 : i32, i32
  }
  func.func @transform_15(%arg0: i32) -> (i32, i32) {
    %c0_i32 = arith.constant 0 : i32
    %c0_i32_0 = arith.constant 0 : i32
    %c0_i32_1 = arith.constant 0 : i32
    return %c0_i32, %c0_i32_0 : i32, i32
  }
  func.func @transform_16(%arg0: i32) -> (i32, i32) {
    %c0_i32 = arith.constant 0 : i32
    %c0_i32_0 = arith.constant 0 : i32
    %c0_i32_1 = arith.constant 0 : i32
    return %c0_i32, %c0_i32_0 : i32, i32
  }
  func.func @transform_17(%arg0: i32) -> (i32, i32) {
    %c0_i32 = arith.constant 0 : i32
    %c0_i32_0 = arith.constant 0 : i32
    %c0_i32_1 = arith.constant 0 : i32
    return %c0_i32, %c0_i32_0 : i32, i32
  }
  func.func @transform_18(%arg0: i32) -> (i32, i32) {
    %c0_i32 = arith.constant 0 : i32
    %c0_i32_0 = arith.constant 0 : i32
    %c0_i32_1 = arith.constant 0 : i32
    return %c0_i32, %c0_i32_0 : i32, i32
  }
  func.func @transform_19(%arg0: i32) -> (i32, i32) {
    %c0_i32 = arith.constant 0 : i32
    %c0_i32_0 = arith.constant 0 : i32
    %c0_i32_1 = arith.constant 0 : i32
    return %c0_i32, %c0_i32_0 : i32, i32
  }
  func.func @transform_20(%arg0: i32) -> (i32, i32) {
    %c0_i32 = arith.constant 0 : i32
    %c0_i32_0 = arith.constant 0 : i32
    %c0_i32_1 = arith.constant 0 : i32
    return %c0_i32, %c0_i32_0 : i32, i32
  }
  func.func @transform_21(%arg0: i32) -> (i32, i32) {
    %c0_i32 = arith.constant 0 : i32
    %c0_i32_0 = arith.constant 0 : i32
    %c0_i32_1 = arith.constant 0 : i32
    return %c0_i32, %c0_i32_0 : i32, i32
  }
  func.func @transform_22(%arg0: i32) -> (i32, i32) {
    %c0_i32 = arith.constant 0 : i32
    %c0_i32_0 = arith.constant 0 : i32
    %c0_i32_1 = arith.constant 0 : i32
    return %c0_i32, %c0_i32_0 : i32, i32
  }
}

module attributes {stable_mosaic.version = 11 : i64} {
  func.func @_epilogue_kernel(%arg0: i32, %arg1: memref<16x128xf32, #tpu.memory_space<vmem>>, %arg2: memref<1x128xf32, #tpu.memory_space<vmem>>, %arg3: memref<128x128xf32, #tpu.memory_space<vmem>>, %arg4: memref<128x128xf32, #tpu.memory_space<vmem>>, %arg5: memref<1x128xf32, #tpu.memory_space<vmem>>, %arg6: memref<128x640xf32, #tpu.memory_space<vmem>>, %arg7: memref<1x640xf32, #tpu.memory_space<vmem>>, %arg8: memref<128x5xf32, #tpu.memory_space<vmem>>, %arg9: memref<1x5xf32, #tpu.memory_space<vmem>>, %arg10: memref<128x1280xf32, #tpu.memory_space<vmem>>, %arg11: memref<1x1280xf32, #tpu.memory_space<vmem>>, %arg12: memref<80x1280xf32, #tpu.memory_space<vmem>>, %arg13: memref<80x128xf32, #tpu.memory_space<vmem>>, %arg14: memref<5x128xf32, #tpu.memory_space<vmem>>, %arg15: memref<80x128xf32, #tpu.memory_space<vmem>>) attributes {dimension_semantics = [#tpu.dimension_semantics<arbitrary>], iteration_bounds = array<i64: 1>, scalar_prefetch = 0 : i64, scratch_operands = 0 : i64, tpu.core_type = #tpu.core_type<tc>, window_params = [{pipeline_mode = #tpu.pipeline_mode<synchronous>, transform_indices = @transform_0, window_bounds = array<i64: 16, 128>}, {pipeline_mode = #tpu.pipeline_mode<synchronous>, transform_indices = @transform_1, window_bounds = array<i64: 1, 128>}, {pipeline_mode = #tpu.pipeline_mode<synchronous>, transform_indices = @transform_2, window_bounds = array<i64: 128, 128>}, {pipeline_mode = #tpu.pipeline_mode<synchronous>, transform_indices = @transform_3, window_bounds = array<i64: 128, 128>}, {pipeline_mode = #tpu.pipeline_mode<synchronous>, transform_indices = @transform_4, window_bounds = array<i64: 1, 128>}, {pipeline_mode = #tpu.pipeline_mode<synchronous>, transform_indices = @transform_5, window_bounds = array<i64: 128, 640>}, {pipeline_mode = #tpu.pipeline_mode<synchronous>, transform_indices = @transform_6, window_bounds = array<i64: 1, 640>}, {pipeline_mode = #tpu.pipeline_mode<synchronous>, transform_indices = @transform_7, window_bounds = array<i64: 128, 5>}, {pipeline_mode = #tpu.pipeline_mode<synchronous>, transform_indices = @transform_8, window_bounds = array<i64: 1, 5>}, {pipeline_mode = #tpu.pipeline_mode<synchronous>, transform_indices = @transform_9, window_bounds = array<i64: 128, 1280>}, {pipeline_mode = #tpu.pipeline_mode<synchronous>, transform_indices = @transform_10, window_bounds = array<i64: 1, 1280>}, {pipeline_mode = #tpu.pipeline_mode<synchronous>, transform_indices = @transform_11, window_bounds = array<i64: 80, 1280>}, {pipeline_mode = #tpu.pipeline_mode<synchronous>, transform_indices = @transform_12, window_bounds = array<i64: 80, 128>}, {pipeline_mode = #tpu.pipeline_mode<synchronous>, transform_indices = @transform_13, window_bounds = array<i64: 5, 128>}, {pipeline_mode = #tpu.pipeline_mode<synchronous>, transform_indices = @transform_14, window_bounds = array<i64: 80, 128>}]} {
    %c0 = arith.constant 0 : index
    %c0_0 = arith.constant 0 : index
    %0 = vector.load %arg1[%c0, %c0_0] : memref<16x128xf32, #tpu.memory_space<vmem>>, vector<16x128xf32>
    %c0_1 = arith.constant 0 : index
    %c0_2 = arith.constant 0 : index
    %1 = vector.load %arg3[%c0_1, %c0_2] : memref<128x128xf32, #tpu.memory_space<vmem>>, vector<128x128xf32>
    %cst = arith.constant dense<0.000000e+00> : vector<16x128xf32>
    %2 = tpu.matmul %0, %1, %cst {dimension_numbers = #tpu.dot_dimension_numbers<[1], [0], [0], [1], [0, 0, 1, 1], [], []>} : vector<16x128xf32>, vector<128x128xf32>, vector<16x128xf32> -> vector<16x128xf32>
    %cst_3 = arith.constant dense<0.000000e+00> : vector<128xf32>
    %3 = vector.multi_reduction <add>, %2, %cst_3 [0] : vector<16x128xf32> to vector<128xf32>
    %4 = vector.shape_cast %3 : vector<128xf32> to vector<1x128xf32>
    %cst_4 = arith.constant 1.600000e+01 : f32
    %5 = vector.broadcast %cst_4 : f32 to vector<1x128xf32>
    %6 = arith.divf %4, %5 : vector<1x128xf32>
    %7 = vector.extract_strided_slice %0 {offsets = [15, 0], sizes = [1, 128], strides = [1, 1]} : vector<16x128xf32> to vector<1x128xf32>
    %c0_5 = arith.constant 0 : index
    %c0_6 = arith.constant 0 : index
    %8 = vector.load %arg4[%c0_5, %c0_6] : memref<128x128xf32, #tpu.memory_space<vmem>>, vector<128x128xf32>
    %cst_7 = arith.constant dense<0.000000e+00> : vector<1x128xf32>
    %9 = tpu.matmul %7, %8, %cst_7 {dimension_numbers = #tpu.dot_dimension_numbers<[1], [0], [0], [1], [0, 0, 1, 1], [], []>} : vector<1x128xf32>, vector<128x128xf32>, vector<1x128xf32> -> vector<1x128xf32>
    %10 = arith.addf %6, %9 : vector<1x128xf32>
    %c0_8 = arith.constant 0 : index
    %c0_9 = arith.constant 0 : index
    %11 = vector.load %arg5[%c0_8, %c0_9] : memref<1x128xf32, #tpu.memory_space<vmem>>, vector<1x128xf32>
    %12 = arith.addf %10, %11 : vector<1x128xf32>
    %c0_10 = arith.constant 0 : index
    %c0_11 = arith.constant 0 : index
    %13 = vector.load %arg14[%c0_10, %c0_11] : memref<5x128xf32, #tpu.memory_space<vmem>>, vector<1x128xf32>
    tpu.vector_store %arg14[%c0_10, %c0_11], %12 {strides = array<i32>} : memref<5x128xf32, #tpu.memory_space<vmem>>, vector<1x128xf32>,
    %c0_12 = arith.constant 0 : index
    %c0_13 = arith.constant 0 : index
    %14 = vector.load %arg4[%c0_12, %c0_13] : memref<128x128xf32, #tpu.memory_space<vmem>>, vector<128x128xf32>
    %cst_14 = arith.constant dense<0.000000e+00> : vector<1x128xf32>
    %15 = tpu.matmul %12, %14, %cst_14 {dimension_numbers = #tpu.dot_dimension_numbers<[1], [0], [0], [1], [0, 0, 1, 1], [], []>} : vector<1x128xf32>, vector<128x128xf32>, vector<1x128xf32> -> vector<1x128xf32>
    %16 = arith.addf %6, %15 : vector<1x128xf32>
    %c0_15 = arith.constant 0 : index
    %c0_16 = arith.constant 0 : index
    %17 = vector.load %arg5[%c0_15, %c0_16] : memref<1x128xf32, #tpu.memory_space<vmem>>, vector<1x128xf32>
    %18 = arith.addf %16, %17 : vector<1x128xf32>
    %c1 = arith.constant 1 : index
    %c0_17 = arith.constant 0 : index
    %19 = vector.load %arg14[%c1, %c0_17] : memref<5x128xf32, #tpu.memory_space<vmem>>, vector<1x128xf32>
    tpu.vector_store %arg14[%c1, %c0_17], %18 {strides = array<i32>} : memref<5x128xf32, #tpu.memory_space<vmem>>, vector<1x128xf32>,
    %c0_18 = arith.constant 0 : index
    %c0_19 = arith.constant 0 : index
    %20 = vector.load %arg4[%c0_18, %c0_19] : memref<128x128xf32, #tpu.memory_space<vmem>>, vector<128x128xf32>
    %cst_20 = arith.constant dense<0.000000e+00> : vector<1x128xf32>
    %21 = tpu.matmul %18, %20, %cst_20 {dimension_numbers = #tpu.dot_dimension_numbers<[1], [0], [0], [1], [0, 0, 1, 1], [], []>} : vector<1x128xf32>, vector<128x128xf32>, vector<1x128xf32> -> vector<1x128xf32>
    %22 = arith.addf %6, %21 : vector<1x128xf32>
    %c0_21 = arith.constant 0 : index
    %c0_22 = arith.constant 0 : index
    %23 = vector.load %arg5[%c0_21, %c0_22] : memref<1x128xf32, #tpu.memory_space<vmem>>, vector<1x128xf32>
    %24 = arith.addf %22, %23 : vector<1x128xf32>
    %c2 = arith.constant 2 : index
    %c0_23 = arith.constant 0 : index
    %25 = vector.load %arg14[%c2, %c0_23] : memref<5x128xf32, #tpu.memory_space<vmem>>, vector<1x128xf32>
    tpu.vector_store %arg14[%c2, %c0_23], %24 {strides = array<i32>} : memref<5x128xf32, #tpu.memory_space<vmem>>, vector<1x128xf32>,
    %c0_24 = arith.constant 0 : index
    %c0_25 = arith.constant 0 : index
    %26 = vector.load %arg4[%c0_24, %c0_25] : memref<128x128xf32, #tpu.memory_space<vmem>>, vector<128x128xf32>
    %cst_26 = arith.constant dense<0.000000e+00> : vector<1x128xf32>
    %27 = tpu.matmul %24, %26, %cst_26 {dimension_numbers = #tpu.dot_dimension_numbers<[1], [0], [0], [1], [0, 0, 1, 1], [], []>} : vector<1x128xf32>, vector<128x128xf32>, vector<1x128xf32> -> vector<1x128xf32>
    %28 = arith.addf %6, %27 : vector<1x128xf32>
    %c0_27 = arith.constant 0 : index
    %c0_28 = arith.constant 0 : index
    %29 = vector.load %arg5[%c0_27, %c0_28] : memref<1x128xf32, #tpu.memory_space<vmem>>, vector<1x128xf32>
    %30 = arith.addf %28, %29 : vector<1x128xf32>
    %c3 = arith.constant 3 : index
    %c0_29 = arith.constant 0 : index
    %31 = vector.load %arg14[%c3, %c0_29] : memref<5x128xf32, #tpu.memory_space<vmem>>, vector<1x128xf32>
    tpu.vector_store %arg14[%c3, %c0_29], %30 {strides = array<i32>} : memref<5x128xf32, #tpu.memory_space<vmem>>, vector<1x128xf32>,
    %c0_30 = arith.constant 0 : index
    %c0_31 = arith.constant 0 : index
    %32 = vector.load %arg4[%c0_30, %c0_31] : memref<128x128xf32, #tpu.memory_space<vmem>>, vector<128x128xf32>
    %cst_32 = arith.constant dense<0.000000e+00> : vector<1x128xf32>
    %33 = tpu.matmul %30, %32, %cst_32 {dimension_numbers = #tpu.dot_dimension_numbers<[1], [0], [0], [1], [0, 0, 1, 1], [], []>} : vector<1x128xf32>, vector<128x128xf32>, vector<1x128xf32> -> vector<1x128xf32>
    %34 = arith.addf %6, %33 : vector<1x128xf32>
    %c0_33 = arith.constant 0 : index
    %c0_34 = arith.constant 0 : index
    %35 = vector.load %arg5[%c0_33, %c0_34] : memref<1x128xf32, #tpu.memory_space<vmem>>, vector<1x128xf32>
    %36 = arith.addf %34, %35 : vector<1x128xf32>
    %c4 = arith.constant 4 : index
    %c0_35 = arith.constant 0 : index
    %37 = vector.load %arg14[%c4, %c0_35] : memref<5x128xf32, #tpu.memory_space<vmem>>, vector<1x128xf32>
    tpu.vector_store %arg14[%c4, %c0_35], %36 {strides = array<i32>} : memref<5x128xf32, #tpu.memory_space<vmem>>, vector<1x128xf32>,
    %c0_36 = arith.constant 0 : index
    %c0_37 = arith.constant 0 : index
    %38 = vector.load %arg6[%c0_36, %c0_37] : memref<128x640xf32, #tpu.memory_space<vmem>>, vector<128x640xf32>
    %cst_38 = arith.constant dense<0.000000e+00> : vector<16x640xf32>
    %39 = tpu.matmul %0, %38, %cst_38 {dimension_numbers = #tpu.dot_dimension_numbers<[1], [0], [0], [1], [0, 0, 1, 1], [], []>} : vector<16x128xf32>, vector<128x640xf32>, vector<16x640xf32> -> vector<16x640xf32>
    %c0_39 = arith.constant 0 : index
    %c0_40 = arith.constant 0 : index
    %40 = vector.load %arg7[%c0_39, %c0_40] : memref<1x640xf32, #tpu.memory_space<vmem>>, vector<1x640xf32>
    %41 = vector.broadcast %40 : vector<1x640xf32> to vector<16x640xf32>
    %42 = arith.addf %39, %41 : vector<16x640xf32>
    %43 = vector.extract_strided_slice %42 {offsets = [0, 0], sizes = [16, 128], strides = [1, 1]} : vector<16x640xf32> to vector<16x128xf32>
    %44 = vector.extract_strided_slice %42 {offsets = [0, 128], sizes = [16, 128], strides = [1, 1]} : vector<16x640xf32> to vector<16x128xf32>
    %45 = arith.addf %43, %44 : vector<16x128xf32>
    %46 = vector.extract_strided_slice %42 {offsets = [0, 256], sizes = [16, 128], strides = [1, 1]} : vector<16x640xf32> to vector<16x128xf32>
    %47 = arith.addf %45, %46 : vector<16x128xf32>
    %48 = vector.extract_strided_slice %42 {offsets = [0, 384], sizes = [16, 128], strides = [1, 1]} : vector<16x640xf32> to vector<16x128xf32>
    %49 = arith.addf %47, %48 : vector<16x128xf32>
    %50 = vector.extract_strided_slice %42 {offsets = [0, 512], sizes = [16, 128], strides = [1, 1]} : vector<16x640xf32> to vector<16x128xf32>
    %51 = arith.addf %49, %50 : vector<16x128xf32>
    %cst_41 = arith.constant dense<0.000000e+00> : vector<128xf32>
    %52 = vector.multi_reduction <add>, %0, %cst_41 [0] : vector<16x128xf32> to vector<128xf32>
    %53 = vector.shape_cast %52 : vector<128xf32> to vector<1x128xf32>
    %cst_42 = arith.constant 1.600000e+01 : f32
    %54 = vector.broadcast %cst_42 : f32 to vector<1x128xf32>
    %55 = arith.divf %53, %54 : vector<1x128xf32>
    %c0_43 = arith.constant 0 : index
    %c0_44 = arith.constant 0 : index
    %56 = vector.load %arg8[%c0_43, %c0_44] : memref<128x5xf32, #tpu.memory_space<vmem>>, vector<128x5xf32>
    %cst_45 = arith.constant dense<0.000000e+00> : vector<1x5xf32>
    %57 = tpu.matmul %55, %56, %cst_45 {dimension_numbers = #tpu.dot_dimension_numbers<[1], [0], [0], [1], [0, 0, 1, 1], [], []>} : vector<1x128xf32>, vector<128x5xf32>, vector<1x5xf32> -> vector<1x5xf32>
    %c0_46 = arith.constant 0 : index
    %c0_47 = arith.constant 0 : index
    %58 = vector.load %arg9[%c0_46, %c0_47] : memref<1x5xf32, #tpu.memory_space<vmem>>, vector<1x5xf32>
    %59 = arith.addf %57, %58 : vector<1x5xf32>
    %cst_48 = arith.constant dense<0xFF800000> : vector<1xf32>
    %60 = vector.multi_reduction <maximumf>, %59, %cst_48 [1] : vector<1x5xf32> to vector<1xf32>
    %61 = vector.shape_cast %60 : vector<1xf32> to vector<1x1xf32>
    %62 = vector.broadcast %61 : vector<1x1xf32> to vector<1x5xf32>
    %63 = arith.subf %59, %62 : vector<1x5xf32>
    %64 = math.exp %63 : vector<1x5xf32>
    %cst_49 = arith.constant dense<0.000000e+00> : vector<1xf32>
    %65 = vector.multi_reduction <add>, %64, %cst_49 [1] : vector<1x5xf32> to vector<1xf32>
    %66 = vector.shape_cast %65 : vector<1xf32> to vector<1x1xf32>
    %67 = vector.broadcast %66 : vector<1x1xf32> to vector<1x5xf32>
    %68 = arith.divf %64, %67 : vector<1x5xf32>
    %69 = vector.broadcast %36 : vector<1x128xf32> to vector<16x128xf32>
    %70 = arith.addf %0, %69 : vector<16x128xf32>
    %c0_50 = arith.constant 0 : index
    %c0_51 = arith.constant 0 : index
    %71 = vector.load %arg2[%c0_50, %c0_51] : memref<1x128xf32, #tpu.memory_space<vmem>>, vector<1x128xf32>
    %72 = vector.broadcast %71 : vector<1x128xf32> to vector<16x128xf32>
    %73 = arith.addf %70, %72 : vector<16x128xf32>
    %74 = vector.extract_strided_slice %68 {offsets = [0, 0], sizes = [1, 1], strides = [1, 1]} : vector<1x5xf32> to vector<1x1xf32>
    %75 = vector.broadcast %74 : vector<1x1xf32> to vector<16x128xf32>
    %76 = arith.mulf %75, %51 : vector<16x128xf32>
    %77 = arith.addf %73, %76 : vector<16x128xf32>
    %78 = vector.extract_strided_slice %68 {offsets = [0, 1], sizes = [1, 1], strides = [1, 1]} : vector<1x5xf32> to vector<1x1xf32>
    %79 = vector.broadcast %78 : vector<1x1xf32> to vector<16x128xf32>
    %80 = arith.mulf %79, %51 : vector<16x128xf32>
    %81 = arith.addf %73, %80 : vector<16x128xf32>
    %82 = vector.extract_strided_slice %68 {offsets = [0, 2], sizes = [1, 1], strides = [1, 1]} : vector<1x5xf32> to vector<1x1xf32>
    %83 = vector.broadcast %82 : vector<1x1xf32> to vector<16x128xf32>
    %84 = arith.mulf %83, %51 : vector<16x128xf32>
    %85 = arith.addf %73, %84 : vector<16x128xf32>
    %86 = vector.extract_strided_slice %68 {offsets = [0, 3], sizes = [1, 1], strides = [1, 1]} : vector<1x5xf32> to vector<1x1xf32>
    %87 = vector.broadcast %86 : vector<1x1xf32> to vector<16x128xf32>
    %88 = arith.mulf %87, %51 : vector<16x128xf32>
    %89 = arith.addf %73, %88 : vector<16x128xf32>
    %90 = vector.extract_strided_slice %68 {offsets = [0, 4], sizes = [1, 1], strides = [1, 1]} : vector<1x5xf32> to vector<1x1xf32>
    %91 = vector.broadcast %90 : vector<1x1xf32> to vector<16x128xf32>
    %92 = arith.mulf %91, %51 : vector<16x128xf32>
    %93 = arith.addf %73, %92 : vector<16x128xf32>
    %94 = tpu.concatenate %76, %80, %84, %88, %92 in 0 : vector<16x128xf32>, vector<16x128xf32>, vector<16x128xf32>, vector<16x128xf32>, vector<16x128xf32> -> vector<80x128xf32>
    %95 = tpu.concatenate %77, %81, %85, %89, %93 in 0 : vector<16x128xf32>, vector<16x128xf32>, vector<16x128xf32>, vector<16x128xf32>, vector<16x128xf32> -> vector<80x128xf32>
    %c0_52 = arith.constant 0 : index
    %c0_53 = arith.constant 0 : index
    %96 = vector.load %arg15[%c0_52, %c0_53] : memref<80x128xf32, #tpu.memory_space<vmem>>, vector<80x128xf32>
    tpu.vector_store %arg15[%c0_52, %c0_53], %94 {strides = array<i32>} : memref<80x128xf32, #tpu.memory_space<vmem>>, vector<80x128xf32>,
    %c0_54 = arith.constant 0 : index
    %c0_55 = arith.constant 0 : index
    %97 = vector.load %arg13[%c0_54, %c0_55] : memref<80x128xf32, #tpu.memory_space<vmem>>, vector<80x128xf32>
    tpu.vector_store %arg13[%c0_54, %c0_55], %95 {strides = array<i32>} : memref<80x128xf32, #tpu.memory_space<vmem>>, vector<80x128xf32>,
    %c0_56 = arith.constant 0 : index
    %c0_57 = arith.constant 0 : index
    %98 = vector.load %arg10[%c0_56, %c0_57] : memref<128x1280xf32, #tpu.memory_space<vmem>>, vector<128x1280xf32>
    %cst_58 = arith.constant dense<0.000000e+00> : vector<80x1280xf32>
    %99 = tpu.matmul %95, %98, %cst_58 {dimension_numbers = #tpu.dot_dimension_numbers<[1], [0], [0], [1], [0, 0, 1, 1], [], []>} : vector<80x128xf32>, vector<128x1280xf32>, vector<80x1280xf32> -> vector<80x1280xf32>
    %c0_59 = arith.constant 0 : index
    %c0_60 = arith.constant 0 : index
    %100 = vector.load %arg11[%c0_59, %c0_60] : memref<1x1280xf32, #tpu.memory_space<vmem>>, vector<1x1280xf32>
    %101 = vector.broadcast %100 : vector<1x1280xf32> to vector<80x1280xf32>
    %102 = arith.addf %99, %101 : vector<80x1280xf32>
    %c0_61 = arith.constant 0 : index
    %c0_62 = arith.constant 0 : index
    %103 = vector.load %arg12[%c0_61, %c0_62] : memref<80x1280xf32, #tpu.memory_space<vmem>>, vector<80x1280xf32>
    tpu.vector_store %arg12[%c0_61, %c0_62], %102 {strides = array<i32>} : memref<80x1280xf32, #tpu.memory_space<vmem>>, vector<80x1280xf32>,
    return
  }
  func.func @transform_0(%arg0: i32) -> (i32, i32) {
    %c0_i32 = arith.constant 0 : i32
    %c0_i32_0 = arith.constant 0 : i32
    %c0_i32_1 = arith.constant 0 : i32
    return %c0_i32, %c0_i32_0 : i32, i32
  }
  func.func @transform_1(%arg0: i32) -> (i32, i32) {
    %c0_i32 = arith.constant 0 : i32
    %c0_i32_0 = arith.constant 0 : i32
    %c0_i32_1 = arith.constant 0 : i32
    return %c0_i32, %c0_i32_0 : i32, i32
  }
  func.func @transform_2(%arg0: i32) -> (i32, i32) {
    %c0_i32 = arith.constant 0 : i32
    %c0_i32_0 = arith.constant 0 : i32
    %c0_i32_1 = arith.constant 0 : i32
    return %c0_i32, %c0_i32_0 : i32, i32
  }
  func.func @transform_3(%arg0: i32) -> (i32, i32) {
    %c0_i32 = arith.constant 0 : i32
    %c0_i32_0 = arith.constant 0 : i32
    %c0_i32_1 = arith.constant 0 : i32
    return %c0_i32, %c0_i32_0 : i32, i32
  }
  func.func @transform_4(%arg0: i32) -> (i32, i32) {
    %c0_i32 = arith.constant 0 : i32
    %c0_i32_0 = arith.constant 0 : i32
    %c0_i32_1 = arith.constant 0 : i32
    return %c0_i32, %c0_i32_0 : i32, i32
  }
  func.func @transform_5(%arg0: i32) -> (i32, i32) {
    %c0_i32 = arith.constant 0 : i32
    %c0_i32_0 = arith.constant 0 : i32
    %c0_i32_1 = arith.constant 0 : i32
    return %c0_i32, %c0_i32_0 : i32, i32
  }
  func.func @transform_6(%arg0: i32) -> (i32, i32) {
    %c0_i32 = arith.constant 0 : i32
    %c0_i32_0 = arith.constant 0 : i32
    %c0_i32_1 = arith.constant 0 : i32
    return %c0_i32, %c0_i32_0 : i32, i32
  }
  func.func @transform_7(%arg0: i32) -> (i32, i32) {
    %c0_i32 = arith.constant 0 : i32
    %c0_i32_0 = arith.constant 0 : i32
    %c0_i32_1 = arith.constant 0 : i32
    return %c0_i32, %c0_i32_0 : i32, i32
  }
  func.func @transform_8(%arg0: i32) -> (i32, i32) {
    %c0_i32 = arith.constant 0 : i32
    %c0_i32_0 = arith.constant 0 : i32
    %c0_i32_1 = arith.constant 0 : i32
    return %c0_i32, %c0_i32_0 : i32, i32
  }
  func.func @transform_9(%arg0: i32) -> (i32, i32) {
    %c0_i32 = arith.constant 0 : i32
    %c0_i32_0 = arith.constant 0 : i32
    %c0_i32_1 = arith.constant 0 : i32
    return %c0_i32, %c0_i32_0 : i32, i32
  }
  func.func @transform_10(%arg0: i32) -> (i32, i32) {
    %c0_i32 = arith.constant 0 : i32
    %c0_i32_0 = arith.constant 0 : i32
    %c0_i32_1 = arith.constant 0 : i32
    return %c0_i32, %c0_i32_0 : i32, i32
  }
  func.func @transform_11(%arg0: i32) -> (i32, i32) {
    %c0_i32 = arith.constant 0 : i32
    %c0_i32_0 = arith.constant 0 : i32
    %c0_i32_1 = arith.constant 0 : i32
    return %c0_i32, %c0_i32_0 : i32, i32
  }
  func.func @transform_12(%arg0: i32) -> (i32, i32) {
    %c0_i32 = arith.constant 0 : i32
    %c0_i32_0 = arith.constant 0 : i32
    %c0_i32_1 = arith.constant 0 : i32
    return %c0_i32, %c0_i32_0 : i32, i32
  }
  func.func @transform_13(%arg0: i32) -> (i32, i32) {
    %c0_i32 = arith.constant 0 : i32
    %c0_i32_0 = arith.constant 0 : i32
    %c0_i32_1 = arith.constant 0 : i32
    return %c0_i32, %c0_i32_0 : i32, i32
  }
  func.func @transform_14(%arg0: i32) -> (i32, i32) {
    %c0_i32 = arith.constant 0 : i32
    %c0_i32_0 = arith.constant 0 : i32
    %c0_i32_1 = arith.constant 0 : i32
    return %c0_i32, %c0_i32_0 : i32, i32
  }
}

</mosaic_0001>

<llo_original>
// kernel: enhanced_meta_learning_forward.4
$region0: #{enhanced_meta_learning_forward.4}
  #allocation0 [shape = 'u32[]', space=smem, size = 0x4, offset = 0x4, fixed_abs, tag = 'smem constant byte address 0x4 - core index']
  #allocation1 [shape = 'u32[72,128]{1,0:T(1,128)}', space=vmem, size = 0x9000, scoped, tag = 'internal scratch']
  #allocation2 [shape = 'f32[1,1]{1,0:T(1,128)S(1)}', space=vmem, size = 0x200, scoped, tag = 'scoped memory for enhanced_meta_learning_forward.4']
  %s0 = inlined_call_operand.vmem [shape: f32[16,128], index: 0, kind: input, shape index: {}]
  %s1 = inlined_call_operand.hbm [shape: f32[4,128,256], index: 1, kind: input, shape index: {}]
  %s2 = inlined_call_operand.hbm [shape: f32[256,128], index: 2, kind: input, shape index: {}]
  %s3 = inlined_call_operand.vmem [shape: f32[1,128], index: 3, kind: input, shape index: {}]
  %s4 = inlined_call_operand.vmem [shape: f32[128,4], index: 4, kind: input, shape index: {}]
  %s5 = inlined_call_operand.vmem [shape: f32[1,4], index: 5, kind: input, shape index: {}]
  %s6 = inlined_call_operand.hbm [shape: f32[128,512], index: 6, kind: input, shape index: {}]
  %s7 = inlined_call_operand.vmem [shape: f32[1,512], index: 7, kind: input, shape index: {}]
  %s8 = inlined_call_operand.vmem [shape: f32[128,128], index: 8, kind: input, shape index: {}]
  %s9 = inlined_call_operand.vmem [shape: f32[1,128], index: 9, kind: input, shape index: {}]
  %s10 = inlined_call_operand.hbm [shape: f32[128,128], index: 10, kind: input, shape index: {}]
  %s11 = inlined_call_operand.vmem [shape: f32[8,128], index: 11, kind: input, shape index: {}]
  %s12 = inlined_call_operand.hbm [shape: f32[128,128], index: 12, kind: input, shape index: {}]
  %s13 = inlined_call_operand.hbm [shape: f32[128,128], index: 13, kind: input, shape index: {}]
  %s14 = inlined_call_operand.vmem [shape: f32[1,128], index: 14, kind: input, shape index: {}]
  %s15 = inlined_call_operand.hbm [shape: f32[128,128], index: 15, kind: input, shape index: {}]
  %s16 = inlined_call_operand.vmem [shape: f32[1,128], index: 16, kind: input, shape index: {}]
  %s17 = inlined_call_operand.hbm [shape: f32[128,128], index: 17, kind: input, shape index: {}]
  %s18 = inlined_call_operand.vmem [shape: f32[1,128], index: 18, kind: input, shape index: {}]
  %s19 = inlined_call_operand.vmem [shape: f32[1,128], index: 19, kind: input, shape index: {}]
  %s20 = inlined_call_operand.<no memory space> [shape: f32[1,1], index: 20, kind: input, shape index: {}]
  %s21 = inlined_call_operand.vmem [shape: f32[16,128], index: 21, kind: output, shape index: {0}]
  %s22 = inlined_call_operand.vmem [shape: f32[16,1], index: 22, kind: output, shape index: {1}]
  %23 = xla_tuple %s21, %s22
  %s24 = sld [smem:[#allocation0]]
  $region134: #{enhanced_meta_learning_forward.4} parent=0
    _
  %s26 = ssub.s32 1, %s24
  %s27 = scalar_select 0, %s26, %s24
  %v28 = vstv %s20
  %29 = vst [vmem:[#allocation2] sm:$0x1] %v28
  $region1: #{enhanced_meta_learning_forward.4} parent=0
    #allocation3 [shape = 'u8[524288]{0}', space=vmem, size = 0x80000, scoped, tag = 'input window, operand 1, single buffered']
    #allocation4 [shape = 's32[1]{0}', space=sflag, size = 0x4, scoped, tag = 'scoped memory for enhanced_meta_learning_forward.4']
    #allocation5 [shape = 'u8[131072]{0}', space=vmem, size = 0x20000, scoped, tag = 'input window, operand 2, single buffered']
    #allocation6 [shape = 's32[1]{0}', space=sflag, size = 0x4, scoped, tag = 'scoped memory for enhanced_meta_learning_forward.4']
    #allocation7 [shape = 'u8[262144]{0}', space=vmem, size = 0x40000, scoped, tag = 'input window, operand 6, single buffered']
    #allocation8 [shape = 'u8[65536]{0}', space=vmem, size = 0x10000, scoped, tag = 'input window, operand 10, single buffered']
    #allocation9 [shape = 's32[1]{0}', space=sflag, size = 0x4, scoped, tag = 'scoped memory for enhanced_meta_learning_forward.4']
    #allocation10 [shape = 'u8[65536]{0}', space=vmem, size = 0x10000, scoped, tag = 'input window, operand 12, single buffered']
    #allocation11 [shape = 'u8[65536]{0}', space=vmem, size = 0x10000, scoped, tag = 'input window, operand 13, single buffered']
    #allocation12 [shape = 's32[1]{0}', space=sflag, size = 0x4, scoped, tag = 'scoped memory for enhanced_meta_learning_forward.4']
    #allocation13 [shape = 'u8[65536]{0}', space=vmem, size = 0x10000, scoped, tag = 'input window, operand 15, single buffered']
    #allocation14 [shape = 'u8[65536]{0}', space=vmem, size = 0x10000, scoped, tag = 'input window, operand 17, single buffered']
    #allocation15 [shape = 's32[1]{0}', space=sflag, size = 0x4, scoped, tag = 'scoped memory for enhanced_meta_learning_forward.4']
    %30 = vsyncpa [#allocation4], 0
    %31 = vsyncpa [#allocation6], 0
    %32 = vsyncpa [#allocation9], 0
    %33 = vsyncpa [#allocation12], 0
    %34 = vsyncpa [#allocation15], 0
    // Predicated region
    $region2: #{enhanced_meta_learning_forward.4} parent=1 // pred_check
      _
    $region3: #{enhanced_meta_learning_forward.4} parent=1 // pred_check_branch
      %36 = sbr.rel (0) target = $region5
    $region4: #{enhanced_meta_learning_forward.4} parent=1 // pred_region
      _
    $region5: #{enhanced_meta_learning_forward.4} parent=1 // pred_fallthru
      _
    // Predicated region
    $region6: #{enhanced_meta_learning_forward.4} parent=1 // pred_check
      _
    $region7: #{enhanced_meta_learning_forward.4} parent=1 // pred_check_branch
      %38 = sbr.rel (0) target = $region9
    $region8: #{enhanced_meta_learning_forward.4} parent=1 // pred_region
      %40 = vsyncadd [#allocation4], 0
      %s41 = sshll.u32 %s1, 4
      %s42 = int_to_ptr.hbm [resolvable:$true] %s41
      %s43 = sshll.u32 [#allocation3], 4
      %s44 = int_to_ptr.vmem [resolvable:$true] %s43
      %49 = dma.hbm_to_vmem [thread:$0]  %s42, 16384, %s44, [#allocation4], 256, 256, 16
    $region9: #{enhanced_meta_learning_forward.4} parent=1 // pred_fallthru
      _
    // Predicated region
    $region10: #{enhanced_meta_learning_forward.4} parent=1 // pred_check
      _
    $region11: #{enhanced_meta_learning_forward.4} parent=1 // pred_check_branch
      %51 = sbr.rel (0) target = $region13
    $region12: #{enhanced_meta_learning_forward.4} parent=1 // pred_region
      %53 = vsyncadd [#allocation6], 0
      %s54 = sshll.u32 %s2, 4
      %s55 = int_to_ptr.hbm [resolvable:$true] %s54
      %s56 = sshll.u32 [#allocation5], 4
      %s57 = int_to_ptr.vmem [resolvable:$true] %s56
      %62 = dma.hbm_to_vmem [thread:$0]  %s55, 4096, %s57, [#allocation6], 128, 128, 8
    $region13: #{enhanced_meta_learning_forward.4} parent=1 // pred_fallthru
      _
    // Predicated region
    $region14: #{enhanced_meta_learning_forward.4} parent=1 // pred_check
      _
    $region15: #{enhanced_meta_learning_forward.4} parent=1 // pred_check_branch
      %64 = sbr.rel (0) target = $region17
    $region16: #{enhanced_meta_learning_forward.4} parent=1 // pred_region
      _
    $region17: #{enhanced_meta_learning_forward.4} parent=1 // pred_fallthru
      _
    // Predicated region
    $region18: #{enhanced_meta_learning_forward.4} parent=1 // pred_check
      _
    $region19: #{enhanced_meta_learning_forward.4} parent=1 // pred_check_branch
      %66 = sbr.rel (0) target = $region21
    $region20: #{enhanced_meta_learning_forward.4} parent=1 // pred_region
      _
    $region21: #{enhanced_meta_learning_forward.4} parent=1 // pred_fallthru
      _
    // Predicated region
    $region22: #{enhanced_meta_learning_forward.4} parent=1 // pred_check
      _
    $region23: #{enhanced_meta_learning_forward.4} parent=1 // pred_check_branch
      %68 = sbr.rel (0) target = $region25
    $region24: #{enhanced_meta_learning_forward.4} parent=1 // pred_region
      _
    $region25: #{enhanced_meta_learning_forward.4} parent=1 // pred_fallthru
      _
    // Predicated region
    $region26: #{enhanced_meta_learning_forward.4} parent=1 // pred_check
      _
    $region27: #{enhanced_meta_learning_forward.4} parent=1 // pred_check_branch
      %70 = sbr.rel (0) target = $region29
    $region28: #{enhanced_meta_learning_forward.4} parent=1 // pred_region
      %72 = vsyncadd [#allocation6], 0
      %s73 = sshll.u32 %s6, 4
      %s74 = int_to_ptr.hbm [resolvable:$true] %s73
      %s75 = sshll.u32 [#allocation7], 4
      %s76 = int_to_ptr.vmem [resolvable:$true] %s75
      %81 = dma.hbm_to_vmem [thread:$0]  %s74, 8192, %s76, [#allocation6], 512, 512, 32
    $region29: #{enhanced_meta_learning_forward.4} parent=1 // pred_fallthru
      _
    // Predicated region
    $region30: #{enhanced_meta_learning_forward.4} parent=1 // pred_check
      _
    $region31: #{enhanced_meta_learning_forward.4} parent=1 // pred_check_branch
      %83 = sbr.rel (0) target = $region33
    $region32: #{enhanced_meta_learning_forward.4} parent=1 // pred_region
      _
    $region33: #{enhanced_meta_learning_forward.4} parent=1 // pred_fallthru
      _
    // Predicated region
    $region34: #{enhanced_meta_learning_forward.4} parent=1 // pred_check
      _
    $region35: #{enhanced_meta_learning_forward.4} parent=1 // pred_check_branch
      %85 = sbr.rel (0) target = $region37
    $region36: #{enhanced_meta_learning_forward.4} parent=1 // pred_region
      _
    $region37: #{enhanced_meta_learning_forward.4} parent=1 // pred_fallthru
      _
    // Predicated region
    $region38: #{enhanced_meta_learning_forward.4} parent=1 // pred_check
      _
    $region39: #{enhanced_meta_learning_forward.4} parent=1 // pred_check_branch
      %87 = sbr.rel (0) target = $region41
    $region40: #{enhanced_meta_learning_forward.4} parent=1 // pred_region
      _
    $region41: #{enhanced_meta_learning_forward.4} parent=1 // pred_fallthru
      _
    // Predicated region
    $region42: #{enhanced_meta_learning_forward.4} parent=1 // pred_check
      _
    $region43: #{enhanced_meta_learning_forward.4} parent=1 // pred_check_branch
      %89 = sbr.rel (0) target = $region45
    $region44: #{enhanced_meta_learning_forward.4} parent=1 // pred_region
      %91 = vsyncadd [#allocation9], 0
      %s92 = sshll.u32 %s10, 4
      %s93 = int_to_ptr.hbm [resolvable:$true] %s92
      %s94 = sshll.u32 [#allocation8], 4
      %s95 = int_to_ptr.vmem [resolvable:$true] %s94
      %100 = dma.hbm_to_vmem [thread:$0]  %s93, 2048, %s95, [#allocation9], 128, 128, 8
    $region45: #{enhanced_meta_learning_forward.4} parent=1 // pred_fallthru
      _
    // Predicated region
    $region46: #{enhanced_meta_learning_forward.4} parent=1 // pred_check
      _
    $region47: #{enhanced_meta_learning_forward.4} parent=1 // pred_check_branch
      %102 = sbr.rel (0) target = $region49
    $region48: #{enhanced_meta_learning_forward.4} parent=1 // pred_region
      _
    $region49: #{enhanced_meta_learning_forward.4} parent=1 // pred_fallthru
      _
    // Predicated region
    $region50: #{enhanced_meta_learning_forward.4} parent=1 // pred_check
      _
    $region51: #{enhanced_meta_learning_forward.4} parent=1 // pred_check_branch
      %104 = sbr.rel (0) target = $region53
    $region52: #{enhanced_meta_learning_forward.4} parent=1 // pred_region
      %106 = vsyncadd [#allocation9], 0
      %s107 = sshll.u32 %s12, 4
      %s108 = int_to_ptr.hbm [resolvable:$true] %s107
      %s109 = sshll.u32 [#allocation10], 4
      %s110 = int_to_ptr.vmem [resolvable:$true] %s109
      %115 = dma.hbm_to_vmem [thread:$0]  %s108, 2048, %s110, [#allocation9], 128, 128, 8
    $region53: #{enhanced_meta_learning_forward.4} parent=1 // pred_fallthru
      _
    // Predicated region
    $region54: #{enhanced_meta_learning_forward.4} parent=1 // pred_check
      _
    $region55: #{enhanced_meta_learning_forward.4} parent=1 // pred_check_branch
      %117 = sbr.rel (0) target = $region57
    $region56: #{enhanced_meta_learning_forward.4} parent=1 // pred_region
      %119 = vsyncadd [#allocation12], 0
      %s120 = sshll.u32 %s13, 4
      %s121 = int_to_ptr.hbm [resolvable:$true] %s120
      %s122 = sshll.u32 [#allocation11], 4
      %s123 = int_to_ptr.vmem [resolvable:$true] %s122
      %128 = dma.hbm_to_vmem [thread:$0]  %s121, 2048, %s123, [#allocation12], 128, 128, 8
    $region57: #{enhanced_meta_learning_forward.4} parent=1 // pred_fallthru
      _
    // Predicated region
    $region58: #{enhanced_meta_learning_forward.4} parent=1 // pred_check
      _
    $region59: #{enhanced_meta_learning_forward.4} parent=1 // pred_check_branch
      %130 = sbr.rel (0) target = $region61
    $region60: #{enhanced_meta_learning_forward.4} parent=1 // pred_region
      _
    $region61: #{enhanced_meta_learning_forward.4} parent=1 // pred_fallthru
      _
    // Predicated region
    $region62: #{enhanced_meta_learning_forward.4} parent=1 // pred_check
      _
    $region63: #{enhanced_meta_learning_forward.4} parent=1 // pred_check_branch
      %132 = sbr.rel (0) target = $region65
    $region64: #{enhanced_meta_learning_forward.4} parent=1 // pred_region
      %134 = vsyncadd [#allocation12], 0
      %s135 = sshll.u32 %s15, 4
      %s136 = int_to_ptr.hbm [resolvable:$true] %s135
      %s137 = sshll.u32 [#allocation13], 4
      %s138 = int_to_ptr.vmem [resolvable:$true] %s137
      %143 = dma.hbm_to_vmem [thread:$0]  %s136, 2048, %s138, [#allocation12], 128, 128, 8
    $region65: #{enhanced_meta_learning_forward.4} parent=1 // pred_fallthru
      _
    // Predicated region
    $region66: #{enhanced_meta_learning_forward.4} parent=1 // pred_check
      _
    $region67: #{enhanced_meta_learning_forward.4} parent=1 // pred_check_branch
      %145 = sbr.rel (0) target = $region69
    $region68: #{enhanced_meta_learning_forward.4} parent=1 // pred_region
      _
    $region69: #{enhanced_meta_learning_forward.4} parent=1 // pred_fallthru
      _
    // Predicated region
    $region70: #{enhanced_meta_learning_forward.4} parent=1 // pred_check
      _
    $region71: #{enhanced_meta_learning_forward.4} parent=1 // pred_check_branch
      %147 = sbr.rel (0) target = $region73
    $region72: #{enhanced_meta_learning_forward.4} parent=1 // pred_region
      %149 = vsyncadd [#allocation15], 0
      %s150 = sshll.u32 %s17, 4
      %s151 = int_to_ptr.hbm [resolvable:$true] %s150
      %s152 = sshll.u32 [#allocation14], 4
      %s153 = int_to_ptr.vmem [resolvable:$true] %s152
      %158 = dma.hbm_to_vmem [thread:$0]  %s151, 2048, %s153, [#allocation15], 128, 128, 8
    $region73: #{enhanced_meta_learning_forward.4} parent=1 // pred_fallthru
      _
    // Predicated region
    $region74: #{enhanced_meta_learning_forward.4} parent=1 // pred_check
      _
    $region75: #{enhanced_meta_learning_forward.4} parent=1 // pred_check_branch
      %160 = sbr.rel (0) target = $region77
    $region76: #{enhanced_meta_learning_forward.4} parent=1 // pred_region
      _
    $region77: #{enhanced_meta_learning_forward.4} parent=1 // pred_fallthru
      _
    // Predicated region
    $region78: #{enhanced_meta_learning_forward.4} parent=1 // pred_check
      _
    $region79: #{enhanced_meta_learning_forward.4} parent=1 // pred_check_branch
      %162 = sbr.rel (0) target = $region81
    $region80: #{enhanced_meta_learning_forward.4} parent=1 // pred_region
      _
    $region81: #{enhanced_meta_learning_forward.4} parent=1 // pred_fallthru
      _
    // Predicated region
    $region82: #{enhanced_meta_learning_forward.4} parent=1 // pred_check
      _
    $region83: #{enhanced_meta_learning_forward.4} parent=1 // pred_check_branch
      %164 = sbr.rel (0) target = $region85
    $region84: #{enhanced_meta_learning_forward.4} parent=1 // pred_region
      _
    $region85: #{enhanced_meta_learning_forward.4} parent=1 // pred_fallthru
      _
    // Predicated region
    $region86: #{enhanced_meta_learning_forward.4} parent=1 // pred_check
      _
    $region87: #{enhanced_meta_learning_forward.4} parent=1 // pred_check_branch
      %166 = sbr.rel (0) target = $region89
    $region88: #{enhanced_meta_learning_forward.4} parent=1 // pred_region
      %168 = dma.done [#allocation4], 16384
    $region89: #{enhanced_meta_learning_forward.4} parent=1 // pred_fallthru
      _
    // Predicated region
    $region90: #{enhanced_meta_learning_forward.4} parent=1 // pred_check
      _
    $region91: #{enhanced_meta_learning_forward.4} parent=1 // pred_check_branch
      %170 = sbr.rel (0) target = $region93
    $region92: #{enhanced_meta_learning_forward.4} parent=1 // pred_region
      %172 = dma.done [#allocation6], 4096
    $region93: #{enhanced_meta_learning_forward.4} parent=1 // pred_fallthru
      _
    // Predicated region
    $region94: #{enhanced_meta_learning_forward.4} parent=1 // pred_check
      _
    $region95: #{enhanced_meta_learning_forward.4} parent=1 // pred_check_branch
      %174 = sbr.rel (0) target = $region97
    $region96: #{enhanced_meta_learning_forward.4} parent=1 // pred_region
      %176 = dma.done [#allocation6], 8192
    $region97: #{enhanced_meta_learning_forward.4} parent=1 // pred_fallthru
      _
    // Predicated region
    $region98: #{enhanced_meta_learning_forward.4} parent=1 // pred_check
      _
    $region99: #{enhanced_meta_learning_forward.4} parent=1 // pred_check_branch
      %178 = sbr.rel (0) target = $region101
    $region100: #{enhanced_meta_learning_forward.4} parent=1 // pred_region
      %180 = dma.done [#allocation9], 2048
    $region101: #{enhanced_meta_learning_forward.4} parent=1 // pred_fallthru
      _
    // Predicated region
    $region102: #{enhanced_meta_learning_forward.4} parent=1 // pred_check
      _
    $region103: #{enhanced_meta_learning_forward.4} parent=1 // pred_check_branch
      %182 = sbr.rel (0) target = $region105
    $region104: #{enhanced_meta_learning_forward.4} parent=1 // pred_region
      %184 = dma.done [#allocation9], 2048
    $region105: #{enhanced_meta_learning_forward.4} parent=1 // pred_fallthru
      _
    // Predicated region
    $region106: #{enhanced_meta_learning_forward.4} parent=1 // pred_check
      _
    $region107: #{enhanced_meta_learning_forward.4} parent=1 // pred_check_branch
      %186 = sbr.rel (0) target = $region109
    $region108: #{enhanced_meta_learning_forward.4} parent=1 // pred_region
      %188 = dma.done [#allocation12], 2048
    $region109: #{enhanced_meta_learning_forward.4} parent=1 // pred_fallthru
      _
    // Predicated region
    $region110: #{enhanced_meta_learning_forward.4} parent=1 // pred_check
      _
    $region111: #{enhanced_meta_learning_forward.4} parent=1 // pred_check_branch
      %190 = sbr.rel (0) target = $region113
    $region112: #{enhanced_meta_learning_forward.4} parent=1 // pred_region
      %192 = dma.done [#allocation12], 2048
    $region113: #{enhanced_meta_learning_forward.4} parent=1 // pred_fallthru
      _
    // Predicated region
    $region114: #{enhanced_meta_learning_forward.4} parent=1 // pred_check
      _
    $region115: #{enhanced_meta_learning_forward.4} parent=1 // pred_check_branch
      %194 = sbr.rel (0) target = $region117
    $region116: #{enhanced_meta_learning_forward.4} parent=1 // pred_region
      %196 = dma.done [#allocation15], 2048
    $region117: #{enhanced_meta_learning_forward.4} parent=1 // pred_fallthru
      _
    %v197 = vld [vmem:[%s0] sm:$0xff]
    %v198 = vld [vmem:[%s0 + $0x8] sm:$0xff]
    %v199 = vld [vmem:[#allocation3] sm:$0xff]
    %v200 = vld [vmem:[#allocation3 + $0x8] sm:$0xff]
    %v201 = vld [vmem:[#allocation3 + $0x10] sm:$0xff]
    %v202 = vld [vmem:[#allocation3 + $0x18] sm:$0xff]
    %v203 = vld [vmem:[#allocation3 + $0x20] sm:$0xff]
    %v204 = vld [vmem:[#allocation3 + $0x28] sm:$0xff]
    %v205 = vld [vmem:[#allocation3 + $0x30] sm:$0xff]
    %v206 = vld [vmem:[#allocation3 + $0x38] sm:$0xff]
    %v207 = vld [vmem:[#allocation3 + $0x40] sm:$0xff]
    %v208 = vld [vmem:[#allocation3 + $0x48] sm:$0xff]
    %v209 = vld [vmem:[#allocation3 + $0x50] sm:$0xff]
    %v210 = vld [vmem:[#allocation3 + $0x58] sm:$0xff]
    %v211 = vld [vmem:[#allocation3 + $0x60] sm:$0xff]
    %v212 = vld [vmem:[#allocation3 + $0x68] sm:$0xff]
    %v213 = vld [vmem:[#allocation3 + $0x70] sm:$0xff]
    %v214 = vld [vmem:[#allocation3 + $0x78] sm:$0xff]
    %v215 = vld [vmem:[#allocation3 + $0x80] sm:$0xff]
    %v216 = vld [vmem:[#allocation3 + $0x88] sm:$0xff]
    %v217 = vld [vmem:[#allocation3 + $0x90] sm:$0xff]
    %v218 = vld [vmem:[#allocation3 + $0x98] sm:$0xff]
    %v219 = vld [vmem:[#allocation3 + $0xa0] sm:$0xff]
    %v220 = vld [vmem:[#allocation3 + $0xa8] sm:$0xff]
    %v221 = vld [vmem:[#allocation3 + $0xb0] sm:$0xff]
    %v222 = vld [vmem:[#allocation3 + $0xb8] sm:$0xff]
    %v223 = vld [vmem:[#allocation3 + $0xc0] sm:$0xff]
    %v224 = vld [vmem:[#allocation3 + $0xc8] sm:$0xff]
    %v225 = vld [vmem:[#allocation3 + $0xd0] sm:$0xff]
    %v226 = vld [vmem:[#allocation3 + $0xd8] sm:$0xff]
    %v227 = vld [vmem:[#allocation3 + $0xe0] sm:$0xff]
    %v228 = vld [vmem:[#allocation3 + $0xe8] sm:$0xff]
    %v229 = vld [vmem:[#allocation3 + $0xf0] sm:$0xff]
    %v230 = vld [vmem:[#allocation3 + $0xf8] sm:$0xff]
    %231 = vmatpush.msra.mxu0 %v229
    %232 = vmatpush.msra.mxu0 %v227
    %233 = vmatpush.msra.mxu0 %v225
    %234 = vmatpush.msra.mxu0 %v223
    %235 = vmatpush.msra.mxu0 %v221
    %236 = vmatpush.msra.mxu0 %v219
    %237 = vmatpush.msra.mxu0 %v217
    %238 = vmatpush.msra.mxu0 %v215
    %239 = vmatpush.msra.mxu0 %v213
    %240 = vmatpush.msra.mxu0 %v211
    %241 = vmatpush.msra.mxu0 %v209
    %242 = vmatpush.msra.mxu0 %v207
    %243 = vmatpush.msra.mxu0 %v205
    %244 = vmatpush.msra.mxu0 %v203
    %245 = vmatpush.msra.mxu0 %v201
    %246 = vmatpush.msra.mxu0 %v199
    %247 = vmatmul.f32.gmra.mxu0 %v197
    %v248 = vpop.f32.mrf.mxu0
    %v249 = vadd.f32 0.0, %v248
    %250 = vmatmul.f32.gmra.mxu0 %v198
    %v251 = vpop.f32.mrf.mxu0
    %v252 = vadd.f32 0.0, %v251
    %253 = vdwg.mxu0
    %254 = vmatpush.msra.mxu0 %v230
    %255 = vmatpush.msra.mxu0 %v228
    %256 = vmatpush.msra.mxu0 %v226
    %257 = vmatpush.msra.mxu0 %v224
    %258 = vmatpush.msra.mxu0 %v222
    %259 = vmatpush.msra.mxu0 %v220
    %260 = vmatpush.msra.mxu0 %v218
    %261 = vmatpush.msra.mxu0 %v216
    %262 = vmatpush.msra.mxu0 %v214
    %263 = vmatpush.msra.mxu0 %v212
    %264 = vmatpush.msra.mxu0 %v210
    %265 = vmatpush.msra.mxu0 %v208
    %266 = vmatpush.msra.mxu0 %v206
    %267 = vmatpush.msra.mxu0 %v204
    %268 = vmatpush.msra.mxu0 %v202
    %269 = vmatpush.msra.mxu0 %v200
    %270 = vmatmul.f32.gmra.mxu0 %v197
    %v271 = vpop.f32.mrf.mxu0
    %v272 = vadd.f32 0.0, %v271
    %273 = vmatmul.f32.gmra.mxu0 %v198
    %v274 = vpop.f32.mrf.mxu0
    %v275 = vadd.f32 0.0, %v274
    %276 = vdwg.mxu0
    %v277 = vld [vmem:[#allocation5] sm:$0xff]
    %v278 = vld [vmem:[#allocation5 + $0x8] sm:$0xff]
    %v279 = vld [vmem:[#allocation5 + $0x10] sm:$0xff]
    %v280 = vld [vmem:[#allocation5 + $0x18] sm:$0xff]
    %v281 = vld [vmem:[#allocation5 + $0x20] sm:$0xff]
    %v282 = vld [vmem:[#allocation5 + $0x28] sm:$0xff]
    %v283 = vld [vmem:[#allocation5 + $0x30] sm:$0xff]
    %v284 = vld [vmem:[#allocation5 + $0x38] sm:$0xff]
    %v285 = vld [vmem:[#allocation5 + $0x40] sm:$0xff]
    %v286 = vld [vmem:[#allocation5 + $0x48] sm:$0xff]
    %v287 = vld [vmem:[#allocation5 + $0x50] sm:$0xff]
    %v288 = vld [vmem:[#allocation5 + $0x58] sm:$0xff]
    %v289 = vld [vmem:[#allocation5 + $0x60] sm:$0xff]
    %v290 = vld [vmem:[#allocation5 + $0x68] sm:$0xff]
    %v291 = vld [vmem:[#allocation5 + $0x70] sm:$0xff]
    %v292 = vld [vmem:[#allocation5 + $0x78] sm:$0xff]
    %v293 = vld [vmem:[#allocation5 + $0x80] sm:$0xff]
    %v294 = vld [vmem:[#allocation5 + $0x88] sm:$0xff]
    %v295 = vld [vmem:[#allocation5 + $0x90] sm:$0xff]
    %v296 = vld [vmem:[#allocation5 + $0x98] sm:$0xff]
    %v297 = vld [vmem:[#allocation5 + $0xa0] sm:$0xff]
    %v298 = vld [vmem:[#allocation5 + $0xa8] sm:$0xff]
    %v299 = vld [vmem:[#allocation5 + $0xb0] sm:$0xff]
    %v300 = vld [vmem:[#allocation5 + $0xb8] sm:$0xff]
    %v301 = vld [vmem:[#allocation5 + $0xc0] sm:$0xff]
    %v302 = vld [vmem:[#allocation5 + $0xc8] sm:$0xff]
    %v303 = vld [vmem:[#allocation5 + $0xd0] sm:$0xff]
    %v304 = vld [vmem:[#allocation5 + $0xd8] sm:$0xff]
    %v305 = vld [vmem:[#allocation5 + $0xe0] sm:$0xff]
    %v306 = vld [vmem:[#allocation5 + $0xe8] sm:$0xff]
    %v307 = vld [vmem:[#allocation5 + $0xf0] sm:$0xff]
    %v308 = vld [vmem:[#allocation5 + $0xf8] sm:$0xff]
    %v309 = vld [vmem:[%s3] sm:$0x1]
    %v311 = vperm.slane %v309, 0
    %313 = vmatpush.msra.mxu0 %v292
    %314 = vmatpush.msra.mxu0 %v291
    %315 = vmatpush.msra.mxu0 %v290
    %316 = vmatpush.msra.mxu0 %v289
    %317 = vmatpush.msra.mxu0 %v288
    %318 = vmatpush.msra.mxu0 %v287
    %319 = vmatpush.msra.mxu0 %v286
    %320 = vmatpush.msra.mxu0 %v285
    %321 = vmatpush.msra.mxu0 %v284
    %322 = vmatpush.msra.mxu0 %v283
    %323 = vmatpush.msra.mxu0 %v282
    %324 = vmatpush.msra.mxu0 %v281
    %325 = vmatpush.msra.mxu0 %v280
    %326 = vmatpush.msra.mxu0 %v279
    %327 = vmatpush.msra.mxu0 %v278
    %328 = vmatpush.msra.mxu0 %v277
    %329 = vmatmul.f32.gmra.mxu0 %v249
    %v330 = vpop.f32.mrf.mxu0
    %v331 = vadd.f32 %v311, %v330
    %332 = vmatmul.f32.gmra.mxu0 %v252
    %v333 = vpop.f32.mrf.mxu0
    %v334 = vadd.f32 %v311, %v333
    %335 = vdwg.mxu0
    %336 = vmatpush.msra.mxu0 %v308
    %337 = vmatpush.msra.mxu0 %v307
    %338 = vmatpush.msra.mxu0 %v306
    %339 = vmatpush.msra.mxu0 %v305
    %340 = vmatpush.msra.mxu0 %v304
    %341 = vmatpush.msra.mxu0 %v303
    %342 = vmatpush.msra.mxu0 %v302
    %343 = vmatpush.msra.mxu0 %v301
    %344 = vmatpush.msra.mxu0 %v300
    %345 = vmatpush.msra.mxu0 %v299
    %346 = vmatpush.msra.mxu0 %v298
    %347 = vmatpush.msra.mxu0 %v297
    %348 = vmatpush.msra.mxu0 %v296
    %349 = vmatpush.msra.mxu0 %v295
    %350 = vmatpush.msra.mxu0 %v294
    %351 = vmatpush.msra.mxu0 %v293
    %352 = vmatmul.f32.gmra.mxu0 %v272
    %v353 = vpop.f32.mrf.mxu0
    %v354 = vadd.f32 %v331, %v353
    %355 = vmatmul.f32.gmra.mxu0 %v275
    %v356 = vpop.f32.mrf.mxu0
    %v357 = vadd.f32 %v334, %v356
    %358 = vdwg.mxu0
    %s359 = scalar_lea.vmem [#allocation3], 256
    %v360 = vld [vmem:[%s359] sm:$0xff]
    %v361 = vld [vmem:[%s359 + $0x8] sm:$0xff]
    %v362 = vld [vmem:[%s359 + $0x10] sm:$0xff]
    %v363 = vld [vmem:[%s359 + $0x18] sm:$0xff]
    %v364 = vld [vmem:[%s359 + $0x20] sm:$0xff]
    %v365 = vld [vmem:[%s359 + $0x28] sm:$0xff]
    %v366 = vld [vmem:[%s359 + $0x30] sm:$0xff]
    %v367 = vld [vmem:[%s359 + $0x38] sm:$0xff]
    %v368 = vld [vmem:[%s359 + $0x40] sm:$0xff]
    %v369 = vld [vmem:[%s359 + $0x48] sm:$0xff]
    %v370 = vld [vmem:[%s359 + $0x50] sm:$0xff]
    %v371 = vld [vmem:[%s359 + $0x58] sm:$0xff]
    %v372 = vld [vmem:[%s359 + $0x60] sm:$0xff]
    %v373 = vld [vmem:[%s359 + $0x68] sm:$0xff]
    %v374 = vld [vmem:[%s359 + $0x70] sm:$0xff]
    %v375 = vld [vmem:[%s359 + $0x78] sm:$0xff]
    %v376 = vld [vmem:[%s359 + $0x80] sm:$0xff]
    %v377 = vld [vmem:[%s359 + $0x88] sm:$0xff]
    %v378 = vld [vmem:[%s359 + $0x90] sm:$0xff]
    %v379 = vld [vmem:[%s359 + $0x98] sm:$0xff]
    %v380 = vld [vmem:[%s359 + $0xa0] sm:$0xff]
    %v381 = vld [vmem:[%s359 + $0xa8] sm:$0xff]
    %v382 = vld [vmem:[%s359 + $0xb0] sm:$0xff]
    %v383 = vld [vmem:[%s359 + $0xb8] sm:$0xff]
    %v384 = vld [vmem:[%s359 + $0xc0] sm:$0xff]
    %v385 = vld [vmem:[%s359 + $0xc8] sm:$0xff]
    %v386 = vld [vmem:[%s359 + $0xd0] sm:$0xff]
    %v387 = vld [vmem:[%s359 + $0xd8] sm:$0xff]
    %v388 = vld [vmem:[%s359 + $0xe0] sm:$0xff]
    %v389 = vld [vmem:[%s359 + $0xe8] sm:$0xff]
    %v390 = vld [vmem:[%s359 + $0xf0] sm:$0xff]
    %v391 = vld [vmem:[%s359 + $0xf8] sm:$0xff]
    %392 = vmatpush.msra.mxu0 %v390
    %393 = vmatpush.msra.mxu0 %v388
    %394 = vmatpush.msra.mxu0 %v386
    %395 = vmatpush.msra.mxu0 %v384
    %396 = vmatpush.msra.mxu0 %v382
    %397 = vmatpush.msra.mxu0 %v380
    %398 = vmatpush.msra.mxu0 %v378
    %399 = vmatpush.msra.mxu0 %v376
    %400 = vmatpush.msra.mxu0 %v374
    %401 = vmatpush.msra.mxu0 %v372
    %402 = vmatpush.msra.mxu0 %v370
    %403 = vmatpush.msra.mxu0 %v368
    %404 = vmatpush.msra.mxu0 %v366
    %405 = vmatpush.msra.mxu0 %v364
    %406 = vmatpush.msra.mxu0 %v362
    %407 = vmatpush.msra.mxu0 %v360
    %408 = vmatmul.f32.gmra.mxu0 %v354
    %v409 = vpop.f32.mrf.mxu0
    %v410 = vadd.f32 0.0, %v409
    %411 = vmatmul.f32.gmra.mxu0 %v357
    %v412 = vpop.f32.mrf.mxu0
    %v413 = vadd.f32 0.0, %v412
    %414 = vdwg.mxu0
    %415 = vmatpush.msra.mxu0 %v391
    %416 = vmatpush.msra.mxu0 %v389
    %417 = vmatpush.msra.mxu0 %v387
    %418 = vmatpush.msra.mxu0 %v385
    %419 = vmatpush.msra.mxu0 %v383
    %420 = vmatpush.msra.mxu0 %v381
    %421 = vmatpush.msra.mxu0 %v379
    %422 = vmatpush.msra.mxu0 %v377
    %423 = vmatpush.msra.mxu0 %v375
    %424 = vmatpush.msra.mxu0 %v373
    %425 = vmatpush.msra.mxu0 %v371
    %426 = vmatpush.msra.mxu0 %v369
    %427 = vmatpush.msra.mxu0 %v367
    %428 = vmatpush.msra.mxu0 %v365
    %429 = vmatpush.msra.mxu0 %v363
    %430 = vmatpush.msra.mxu0 %v361
    %431 = vmatmul.f32.gmra.mxu0 %v354
    %v432 = vpop.f32.mrf.mxu0
    %v433 = vadd.f32 0.0, %v432
    %434 = vmatmul.f32.gmra.mxu0 %v357
    %v435 = vpop.f32.mrf.mxu0
    %v436 = vadd.f32 0.0, %v435
    %437 = vdwg.mxu0
    %438 = vmatpush.msra.mxu0 %v292
    %439 = vmatpush.msra.mxu0 %v291
    %440 = vmatpush.msra.mxu0 %v290
    %441 = vmatpush.msra.mxu0 %v289
    %442 = vmatpush.msra.mxu0 %v288
    %443 = vmatpush.msra.mxu0 %v287
    %444 = vmatpush.msra.mxu0 %v286
    %445 = vmatpush.msra.mxu0 %v285
    %446 = vmatpush.msra.mxu0 %v284
    %447 = vmatpush.msra.mxu0 %v283
    %448 = vmatpush.msra.mxu0 %v282
    %449 = vmatpush.msra.mxu0 %v281
    %450 = vmatpush.msra.mxu0 %v280
    %451 = vmatpush.msra.mxu0 %v279
    %452 = vmatpush.msra.mxu0 %v278
    %453 = vmatpush.msra.mxu0 %v277
    %454 = vmatmul.f32.gmra.mxu0 %v410
    %v455 = vpop.f32.mrf.mxu0
    %v456 = vadd.f32 %v311, %v455
    %457 = vmatmul.f32.gmra.mxu0 %v413
    %v458 = vpop.f32.mrf.mxu0
    %v459 = vadd.f32 %v311, %v458
    %460 = vdwg.mxu0
    %461 = vmatpush.msra.mxu0 %v308
    %462 = vmatpush.msra.mxu0 %v307
    %463 = vmatpush.msra.mxu0 %v306
    %464 = vmatpush.msra.mxu0 %v305
    %465 = vmatpush.msra.mxu0 %v304
    %466 = vmatpush.msra.mxu0 %v303
    %467 = vmatpush.msra.mxu0 %v302
    %468 = vmatpush.msra.mxu0 %v301
    %469 = vmatpush.msra.mxu0 %v300
    %470 = vmatpush.msra.mxu0 %v299
    %471 = vmatpush.msra.mxu0 %v298
    %472 = vmatpush.msra.mxu0 %v297
    %473 = vmatpush.msra.mxu0 %v296
    %474 = vmatpush.msra.mxu0 %v295
    %475 = vmatpush.msra.mxu0 %v294
    %476 = vmatpush.msra.mxu0 %v293
    %477 = vmatmul.f32.gmra.mxu0 %v433
    %v478 = vpop.f32.mrf.mxu0
    %v479 = vadd.f32 %v456, %v478
    %480 = vmatmul.f32.gmra.mxu0 %v436
    %v481 = vpop.f32.mrf.mxu0
    %v482 = vadd.f32 %v459, %v481
    %483 = vdwg.mxu0
    %s484 = scalar_lea.vmem [#allocation3], 512
    %v485 = vld [vmem:[%s484] sm:$0xff]
    %v486 = vld [vmem:[%s484 + $0x8] sm:$0xff]
    %v487 = vld [vmem:[%s484 + $0x10] sm:$0xff]
    %v488 = vld [vmem:[%s484 + $0x18] sm:$0xff]
    %v489 = vld [vmem:[%s484 + $0x20] sm:$0xff]
    %v490 = vld [vmem:[%s484 + $0x28] sm:$0xff]
    %v491 = vld [vmem:[%s484 + $0x30] sm:$0xff]
    %v492 = vld [vmem:[%s484 + $0x38] sm:$0xff]
    %v493 = vld [vmem:[%s484 + $0x40] sm:$0xff]
    %v494 = vld [vmem:[%s484 + $0x48] sm:$0xff]
    %v495 = vld [vmem:[%s484 + $0x50] sm:$0xff]
    %v496 = vld [vmem:[%s484 + $0x58] sm:$0xff]
    %v497 = vld [vmem:[%s484 + $0x60] sm:$0xff]
    %v498 = vld [vmem:[%s484 + $0x68] sm:$0xff]
    %v499 = vld [vmem:[%s484 + $0x70] sm:$0xff]
    %v500 = vld [vmem:[%s484 + $0x78] sm:$0xff]
    %v501 = vld [vmem:[%s484 + $0x80] sm:$0xff]
    %v502 = vld [vmem:[%s484 + $0x88] sm:$0xff]
    %v503 = vld [vmem:[%s484 + $0x90] sm:$0xff]
    %v504 = vld [vmem:[%s484 + $0x98] sm:$0xff]
    %v505 = vld [vmem:[%s484 + $0xa0] sm:$0xff]
    %v506 = vld [vmem:[%s484 + $0xa8] sm:$0xff]
    %v507 = vld [vmem:[%s484 + $0xb0] sm:$0xff]
    %v508 = vld [vmem:[%s484 + $0xb8] sm:$0xff]
    %v509 = vld [vmem:[%s484 + $0xc0] sm:$0xff]
    %v510 = vld [vmem:[%s484 + $0xc8] sm:$0xff]
    %v511 = vld [vmem:[%s484 + $0xd0] sm:$0xff]
    %v512 = vld [vmem:[%s484 + $0xd8] sm:$0xff]
    %v513 = vld [vmem:[%s484 + $0xe0] sm:$0xff]
    %v514 = vld [vmem:[%s484 + $0xe8] sm:$0xff]
    %v515 = vld [vmem:[%s484 + $0xf0] sm:$0xff]
    %v516 = vld [vmem:[%s484 + $0xf8] sm:$0xff]
    %517 = vmatpush.msra.mxu0 %v515
    %518 = vmatpush.msra.mxu0 %v513
    %519 = vmatpush.msra.mxu0 %v511
    %520 = vmatpush.msra.mxu0 %v509
    %521 = vmatpush.msra.mxu0 %v507
    %522 = vmatpush.msra.mxu0 %v505
    %523 = vmatpush.msra.mxu0 %v503
    %524 = vmatpush.msra.mxu0 %v501
    %525 = vmatpush.msra.mxu0 %v499
    %526 = vmatpush.msra.mxu0 %v497
    %527 = vmatpush.msra.mxu0 %v495
    %528 = vmatpush.msra.mxu0 %v493
    %529 = vmatpush.msra.mxu0 %v491
    %530 = vmatpush.msra.mxu0 %v489
    %531 = vmatpush.msra.mxu0 %v487
    %532 = vmatpush.msra.mxu0 %v485
    %533 = vmatmul.f32.gmra.mxu0 %v479
    %v534 = vpop.f32.mrf.mxu0
    %v535 = vadd.f32 0.0, %v534
    %536 = vmatmul.f32.gmra.mxu0 %v482
    %v537 = vpop.f32.mrf.mxu0
    %v538 = vadd.f32 0.0, %v537
    %539 = vdwg.mxu0
    %540 = vmatpush.msra.mxu0 %v516
    %541 = vmatpush.msra.mxu0 %v514
    %542 = vmatpush.msra.mxu0 %v512
    %543 = vmatpush.msra.mxu0 %v510
    %544 = vmatpush.msra.mxu0 %v508
    %545 = vmatpush.msra.mxu0 %v506
    %546 = vmatpush.msra.mxu0 %v504
    %547 = vmatpush.msra.mxu0 %v502
    %548 = vmatpush.msra.mxu0 %v500
    %549 = vmatpush.msra.mxu0 %v498
    %550 = vmatpush.msra.mxu0 %v496
    %551 = vmatpush.msra.mxu0 %v494
    %552 = vmatpush.msra.mxu0 %v492
    %553 = vmatpush.msra.mxu0 %v490
    %554 = vmatpush.msra.mxu0 %v488
    %555 = vmatpush.msra.mxu0 %v486
    %556 = vmatmul.f32.gmra.mxu0 %v479
    %v557 = vpop.f32.mrf.mxu0
    %v558 = vadd.f32 0.0, %v557
    %559 = vmatmul.f32.gmra.mxu0 %v482
    %v560 = vpop.f32.mrf.mxu0
    %v561 = vadd.f32 0.0, %v560
    %562 = vdwg.mxu0
    %563 = vmatpush.msra.mxu0 %v292
    %564 = vmatpush.msra.mxu0 %v291
    %565 = vmatpush.msra.mxu0 %v290
    %566 = vmatpush.msra.mxu0 %v289
    %567 = vmatpush.msra.mxu0 %v288
    %568 = vmatpush.msra.mxu0 %v287
    %569 = vmatpush.msra.mxu0 %v286
    %570 = vmatpush.msra.mxu0 %v285
    %571 = vmatpush.msra.mxu0 %v284
    %572 = vmatpush.msra.mxu0 %v283
    %573 = vmatpush.msra.mxu0 %v282
    %574 = vmatpush.msra.mxu0 %v281
    %575 = vmatpush.msra.mxu0 %v280
    %576 = vmatpush.msra.mxu0 %v279
    %577 = vmatpush.msra.mxu0 %v278
    %578 = vmatpush.msra.mxu0 %v277
    %579 = vmatmul.f32.gmra.mxu0 %v535
    %v580 = vpop.f32.mrf.mxu0
    %v581 = vadd.f32 %v311, %v580
    %582 = vmatmul.f32.gmra.mxu0 %v538
    %v583 = vpop.f32.mrf.mxu0
    %v584 = vadd.f32 %v311, %v583
    %585 = vdwg.mxu0
    %586 = vmatpush.msra.mxu0 %v308
    %587 = vmatpush.msra.mxu0 %v307
    %588 = vmatpush.msra.mxu0 %v306
    %589 = vmatpush.msra.mxu0 %v305
    %590 = vmatpush.msra.mxu0 %v304
    %591 = vmatpush.msra.mxu0 %v303
    %592 = vmatpush.msra.mxu0 %v302
    %593 = vmatpush.msra.mxu0 %v301
    %594 = vmatpush.msra.mxu0 %v300
    %595 = vmatpush.msra.mxu0 %v299
    %596 = vmatpush.msra.mxu0 %v298
    %597 = vmatpush.msra.mxu0 %v297
    %598 = vmatpush.msra.mxu0 %v296
    %599 = vmatpush.msra.mxu0 %v295
    %600 = vmatpush.msra.mxu0 %v294
    %601 = vmatpush.msra.mxu0 %v293
    %602 = vmatmul.f32.gmra.mxu0 %v558
    %v603 = vpop.f32.mrf.mxu0
    %v604 = vadd.f32 %v581, %v603
    %605 = vmatmul.f32.gmra.mxu0 %v561
    %v606 = vpop.f32.mrf.mxu0
    %v607 = vadd.f32 %v584, %v606
    %608 = vdwg.mxu0
    %s609 = scalar_lea.vmem [#allocation3], 768
    %v610 = vld [vmem:[%s609] sm:$0xff]
    %v611 = vld [vmem:[%s609 + $0x8] sm:$0xff]
    %v612 = vld [vmem:[%s609 + $0x10] sm:$0xff]
    %v613 = vld [vmem:[%s609 + $0x18] sm:$0xff]
    %v614 = vld [vmem:[%s609 + $0x20] sm:$0xff]
    %v615 = vld [vmem:[%s609 + $0x28] sm:$0xff]
    %v616 = vld [vmem:[%s609 + $0x30] sm:$0xff]
    %v617 = vld [vmem:[%s609 + $0x38] sm:$0xff]
    %v618 = vld [vmem:[%s609 + $0x40] sm:$0xff]
    %v619 = vld [vmem:[%s609 + $0x48] sm:$0xff]
    %v620 = vld [vmem:[%s609 + $0x50] sm:$0xff]
    %v621 = vld [vmem:[%s609 + $0x58] sm:$0xff]
    %v622 = vld [vmem:[%s609 + $0x60] sm:$0xff]
    %v623 = vld [vmem:[%s609 + $0x68] sm:$0xff]
    %v624 = vld [vmem:[%s609 + $0x70] sm:$0xff]
    %v625 = vld [vmem:[%s609 + $0x78] sm:$0xff]
    %v626 = vld [vmem:[%s609 + $0x80] sm:$0xff]
    %v627 = vld [vmem:[%s609 + $0x88] sm:$0xff]
    %v628 = vld [vmem:[%s609 + $0x90] sm:$0xff]
    %v629 = vld [vmem:[%s609 + $0x98] sm:$0xff]
    %v630 = vld [vmem:[%s609 + $0xa0] sm:$0xff]
    %v631 = vld [vmem:[%s609 + $0xa8] sm:$0xff]
    %v632 = vld [vmem:[%s609 + $0xb0] sm:$0xff]
    %v633 = vld [vmem:[%s609 + $0xb8] sm:$0xff]
    %v634 = vld [vmem:[%s609 + $0xc0] sm:$0xff]
    %v635 = vld [vmem:[%s609 + $0xc8] sm:$0xff]
    %v636 = vld [vmem:[%s609 + $0xd0] sm:$0xff]
    %v637 = vld [vmem:[%s609 + $0xd8] sm:$0xff]
    %v638 = vld [vmem:[%s609 + $0xe0] sm:$0xff]
    %v639 = vld [vmem:[%s609 + $0xe8] sm:$0xff]
    %v640 = vld [vmem:[%s609 + $0xf0] sm:$0xff]
    %v641 = vld [vmem:[%s609 + $0xf8] sm:$0xff]
    %642 = vmatpush.msra.mxu0 %v640
    %643 = vmatpush.msra.mxu0 %v638
    %644 = vmatpush.msra.mxu0 %v636
    %645 = vmatpush.msra.mxu0 %v634
    %646 = vmatpush.msra.mxu0 %v632
    %647 = vmatpush.msra.mxu0 %v630
    %648 = vmatpush.msra.mxu0 %v628
    %649 = vmatpush.msra.mxu0 %v626
    %650 = vmatpush.msra.mxu0 %v624
    %651 = vmatpush.msra.mxu0 %v622
    %652 = vmatpush.msra.mxu0 %v620
    %653 = vmatpush.msra.mxu0 %v618
    %654 = vmatpush.msra.mxu0 %v616
    %655 = vmatpush.msra.mxu0 %v614
    %656 = vmatpush.msra.mxu0 %v612
    %657 = vmatpush.msra.mxu0 %v610
    %658 = vmatmul.f32.gmra.mxu0 %v604
    %v659 = vpop.f32.mrf.mxu0
    %v660 = vadd.f32 0.0, %v659
    %661 = vmatmul.f32.gmra.mxu0 %v607
    %v662 = vpop.f32.mrf.mxu0
    %v663 = vadd.f32 0.0, %v662
    %664 = vdwg.mxu0
    %665 = vmatpush.msra.mxu0 %v641
    %666 = vmatpush.msra.mxu0 %v639
    %667 = vmatpush.msra.mxu0 %v637
    %668 = vmatpush.msra.mxu0 %v635
    %669 = vmatpush.msra.mxu0 %v633
    %670 = vmatpush.msra.mxu0 %v631
    %671 = vmatpush.msra.mxu0 %v629
    %672 = vmatpush.msra.mxu0 %v627
    %673 = vmatpush.msra.mxu0 %v625
    %674 = vmatpush.msra.mxu0 %v623
    %675 = vmatpush.msra.mxu0 %v621
    %676 = vmatpush.msra.mxu0 %v619
    %677 = vmatpush.msra.mxu0 %v617
    %678 = vmatpush.msra.mxu0 %v615
    %679 = vmatpush.msra.mxu0 %v613
    %680 = vmatpush.msra.mxu0 %v611
    %681 = vmatmul.f32.gmra.mxu0 %v604
    %v682 = vpop.f32.mrf.mxu0
    %v683 = vadd.f32 0.0, %v682
    %684 = vmatmul.f32.gmra.mxu0 %v607
    %v685 = vpop.f32.mrf.mxu0
    %v686 = vadd.f32 0.0, %v685
    %687 = vdwg.mxu0
    %688 = vmatpush.msra.mxu0 %v292
    %689 = vmatpush.msra.mxu0 %v291
    %690 = vmatpush.msra.mxu0 %v290
    %691 = vmatpush.msra.mxu0 %v289
    %692 = vmatpush.msra.mxu0 %v288
    %693 = vmatpush.msra.mxu0 %v287
    %694 = vmatpush.msra.mxu0 %v286
    %695 = vmatpush.msra.mxu0 %v285
    %696 = vmatpush.msra.mxu0 %v284
    %697 = vmatpush.msra.mxu0 %v283
    %698 = vmatpush.msra.mxu0 %v282
    %699 = vmatpush.msra.mxu0 %v281
    %700 = vmatpush.msra.mxu0 %v280
    %701 = vmatpush.msra.mxu0 %v279
    %702 = vmatpush.msra.mxu0 %v278
    %703 = vmatpush.msra.mxu0 %v277
    %704 = vmatmul.f32.gmra.mxu0 %v660
    %v705 = vpop.f32.mrf.mxu0
    %v706 = vadd.f32 %v311, %v705
    %707 = vmatmul.f32.gmra.mxu0 %v663
    %v708 = vpop.f32.mrf.mxu0
    %v709 = vadd.f32 %v311, %v708
    %710 = vdwg.mxu0
    %711 = vmatpush.msra.mxu0 %v308
    %712 = vmatpush.msra.mxu0 %v307
    %713 = vmatpush.msra.mxu0 %v306
    %714 = vmatpush.msra.mxu0 %v305
    %715 = vmatpush.msra.mxu0 %v304
    %716 = vmatpush.msra.mxu0 %v303
    %717 = vmatpush.msra.mxu0 %v302
    %718 = vmatpush.msra.mxu0 %v301
    %719 = vmatpush.msra.mxu0 %v300
    %720 = vmatpush.msra.mxu0 %v299
    %721 = vmatpush.msra.mxu0 %v298
    %722 = vmatpush.msra.mxu0 %v297
    %723 = vmatpush.msra.mxu0 %v296
    %724 = vmatpush.msra.mxu0 %v295
    %725 = vmatpush.msra.mxu0 %v294
    %726 = vmatpush.msra.mxu0 %v293
    %727 = vmatmul.f32.gmra.mxu0 %v683
    %v728 = vpop.f32.mrf.mxu0
    %v729 = vadd.f32 %v706, %v728
    %730 = vmatmul.f32.gmra.mxu0 %v686
    %v731 = vpop.f32.mrf.mxu0
    %v732 = vadd.f32 %v709, %v731
    %733 = vdwg.mxu0
    %v734 = vld [vmem:[%s4] sm:$0xff]
    %v735 = vld [vmem:[%s4 + $0x8] sm:$0xff]
    %v736 = vld [vmem:[%s4 + $0x10] sm:$0xff]
    %v737 = vld [vmem:[%s4 + $0x18] sm:$0xff]
    %v738 = vld [vmem:[%s4 + $0x20] sm:$0xff]
    %v739 = vld [vmem:[%s4 + $0x28] sm:$0xff]
    %v740 = vld [vmem:[%s4 + $0x30] sm:$0xff]
    %v741 = vld [vmem:[%s4 + $0x38] sm:$0xff]
    %v742 = vld [vmem:[%s4 + $0x40] sm:$0xff]
    %v743 = vld [vmem:[%s4 + $0x48] sm:$0xff]
    %v744 = vld [vmem:[%s4 + $0x50] sm:$0xff]
    %v745 = vld [vmem:[%s4 + $0x58] sm:$0xff]
    %v746 = vld [vmem:[%s4 + $0x60] sm:$0xff]
    %v747 = vld [vmem:[%s4 + $0x68] sm:$0xff]
    %v748 = vld [vmem:[%s4 + $0x70] sm:$0xff]
    %v749 = vld [vmem:[%s4 + $0x78] sm:$0xff]
    %v750 = vld [vmem:[%s5] sm:$0x1]
    %v752 = vperm.slane %v750, 0
    %754 = vmatpush.msra.mxu0 %v749
    %755 = vmatpush.msra.mxu0 %v748
    %756 = vmatpush.msra.mxu0 %v747
    %757 = vmatpush.msra.mxu0 %v746
    %758 = vmatpush.msra.mxu0 %v745
    %759 = vmatpush.msra.mxu0 %v744
    %760 = vmatpush.msra.mxu0 %v743
    %761 = vmatpush.msra.mxu0 %v742
    %762 = vmatpush.msra.mxu0 %v741
    %763 = vmatpush.msra.mxu0 %v740
    %764 = vmatpush.msra.mxu0 %v739
    %765 = vmatpush.msra.mxu0 %v738
    %766 = vmatpush.msra.mxu0 %v737
    %767 = vmatpush.msra.mxu0 %v736
    %768 = vmatpush.msra.mxu0 %v735
    %769 = vmatpush.msra.mxu0 %v734
    %770 = vmatmul.f32.gmra.mxu0 %v729
    %v771 = vpop.f32.mrf.mxu0
    %v772 = vadd.f32 %v752, %v771
    %773 = vmatmul.f32.gmra.mxu0 %v732
    %v774 = vpop.f32.mrf.mxu0
    %v775 = vadd.f32 %v752, %v774
    %776 = vdwg.mxu0
    %vm777 = vcmask 31744
    %v778 = vsel %vm777, %v772, -inf
    %779 = vmax.xlane.f32.xlu0 %v778
    %v780 = vpop.xlane.xlu0 %779
    %v781 = vsel %vm777, %v775, -inf
    %782 = vmax.xlane.f32.xlu0 %v781
    %v783 = vpop.xlane.xlu0 %782
    %v784 = vsub.f32 %v772, %v780
    %v785 = vsub.f32 %v775, %v783
    %v786 = vmul.f32 %v784, 1.442695
    %v787 = vpow.pop %v786
    %v788 = vmul.f32 %v785, 1.442695
    %v789 = vpow.pop %v788
    %v790 = vsel %vm777, %v787, 0.0
    %791 = vadd.xlane.f32.xlu0 %v790
    %v792 = vpop.xlane.xlu0 %791
    %v793 = vsel %vm777, %v789, 0.0
    %794 = vadd.xlane.f32.xlu0 %v793
    %v795 = vpop.xlane.xlu0 %794
    %v796 = vrcp.pop %v792
    %v797 = vmul.f32 %v792, %v796
    %v798 = vsub.f32 1.0, %v797
    %v799 = vmul.f32 %v796, %v798
    %v800 = vadd.f32 %v796, %v799
    %vm801 = vweird.f32 %v792
    %vm802 = vweird.f32 %v796
    %vm803 = vmor %vm801, %vm802
    %v804 = vsel %vm803, %v796, %v800
    %v805 = vand.u32 2147483647, %v792
    %vm806 = vcmp.eq.f32.partialorder %v805, 8.507059e+37
    %v807 = vand.u32 %v792, 2147483648
    %v808 = vor.u32 1.1754944e-38, %v807
    %v809 = vsel %vm806, %v808, %v804
    %v810 = vmul.f32 %v787, %v809
    %v811 = vrcp.pop %v795
    %v812 = vmul.f32 %v795, %v811
    %v813 = vsub.f32 1.0, %v812
    %v814 = vmul.f32 %v811, %v813
    %v815 = vadd.f32 %v811, %v814
    %vm816 = vweird.f32 %v795
    %vm817 = vweird.f32 %v811
    %vm818 = vmor %vm816, %vm817
    %v819 = vsel %vm818, %v811, %v815
    %v820 = vand.u32 2147483647, %v795
    %vm821 = vcmp.eq.f32.partialorder %v820, 8.507059e+37
    %v822 = vand.u32 %v795, 2147483648
    %v823 = vor.u32 1.1754944e-38, %v822
    %v824 = vsel %vm821, %v823, %v819
    %v825 = vmul.f32 %v789, %v824
    %v826 = vld [vmem:[#allocation7] sm:$0xff]
    %v827 = vld [vmem:[#allocation7 + $0x8] sm:$0xff]
    %v828 = vld [vmem:[#allocation7 + $0x10] sm:$0xff]
    %v829 = vld [vmem:[#allocation7 + $0x18] sm:$0xff]
    %v830 = vld [vmem:[#allocation7 + $0x20] sm:$0xff]
    %v831 = vld [vmem:[#allocation7 + $0x28] sm:$0xff]
    %v832 = vld [vmem:[#allocation7 + $0x30] sm:$0xff]
    %v833 = vld [vmem:[#allocation7 + $0x38] sm:$0xff]
    %v834 = vld [vmem:[#allocation7 + $0x40] sm:$0xff]
    %v835 = vld [vmem:[#allocation7 + $0x48] sm:$0xff]
    %v836 = vld [vmem:[#allocation7 + $0x50] sm:$0xff]
    %v837 = vld [vmem:[#allocation7 + $0x58] sm:$0xff]
    %v838 = vld [vmem:[#allocation7 + $0x60] sm:$0xff]
    %v839 = vld [vmem:[#allocation7 + $0x68] sm:$0xff]
    %v840 = vld [vmem:[#allocation7 + $0x70] sm:$0xff]
    %v841 = vld [vmem:[#allocation7 + $0x78] sm:$0xff]
    %v842 = vld [vmem:[#allocation7 + $0x80] sm:$0xff]
    %v843 = vld [vmem:[#allocation7 + $0x88] sm:$0xff]
    %v844 = vld [vmem:[#allocation7 + $0x90] sm:$0xff]
    %v845 = vld [vmem:[#allocation7 + $0x98] sm:$0xff]
    %v846 = vld [vmem:[#allocation7 + $0xa0] sm:$0xff]
    %v847 = vld [vmem:[#allocation7 + $0xa8] sm:$0xff]
    %v848 = vld [vmem:[#allocation7 + $0xb0] sm:$0xff]
    %v849 = vld [vmem:[#allocation7 + $0xb8] sm:$0xff]
    %v850 = vld [vmem:[#allocation7 + $0xc0] sm:$0xff]
    %v851 = vld [vmem:[#allocation7 + $0xc8] sm:$0xff]
    %v852 = vld [vmem:[#allocation7 + $0xd0] sm:$0xff]
    %v853 = vld [vmem:[#allocation7 + $0xd8] sm:$0xff]
    %v854 = vld [vmem:[#allocation7 + $0xe0] sm:$0xff]
    %v855 = vld [vmem:[#allocation7 + $0xe8] sm:$0xff]
    %v856 = vld [vmem:[#allocation7 + $0xf0] sm:$0xff]
    %v857 = vld [vmem:[#allocation7 + $0xf8] sm:$0xff]
    %v858 = vld [vmem:[#allocation7 + $0x100] sm:$0xff]
    %v859 = vld [vmem:[#allocation7 + $0x108] sm:$0xff]
    %v860 = vld [vmem:[#allocation7 + $0x110] sm:$0xff]
    %v861 = vld [vmem:[#allocation7 + $0x118] sm:$0xff]
    %v862 = vld [vmem:[#allocation7 + $0x120] sm:$0xff]
    %v863 = vld [vmem:[#allocation7 + $0x128] sm:$0xff]
    %v864 = vld [vmem:[#allocation7 + $0x130] sm:$0xff]
    %v865 = vld [vmem:[#allocation7 + $0x138] sm:$0xff]
    %v866 = vld [vmem:[#allocation7 + $0x140] sm:$0xff]
    %v867 = vld [vmem:[#allocation7 + $0x148] sm:$0xff]
    %v868 = vld [vmem:[#allocation7 + $0x150] sm:$0xff]
    %v869 = vld [vmem:[#allocation7 + $0x158] sm:$0xff]
    %v870 = vld [vmem:[#allocation7 + $0x160] sm:$0xff]
    %v871 = vld [vmem:[#allocation7 + $0x168] sm:$0xff]
    %v872 = vld [vmem:[#allocation7 + $0x170] sm:$0xff]
    %v873 = vld [vmem:[#allocation7 + $0x178] sm:$0xff]
    %v874 = vld [vmem:[#allocation7 + $0x180] sm:$0xff]
    %v875 = vld [vmem:[#allocation7 + $0x188] sm:$0xff]
    %v876 = vld [vmem:[#allocation7 + $0x190] sm:$0xff]
    %v877 = vld [vmem:[#allocation7 + $0x198] sm:$0xff]
    %v878 = vld [vmem:[#allocation7 + $0x1a0] sm:$0xff]
    %v879 = vld [vmem:[#allocation7 + $0x1a8] sm:$0xff]
    %v880 = vld [vmem:[#allocation7 + $0x1b0] sm:$0xff]
    %v881 = vld [vmem:[#allocation7 + $0x1b8] sm:$0xff]
    %v882 = vld [vmem:[#allocation7 + $0x1c0] sm:$0xff]
    %v883 = vld [vmem:[#allocation7 + $0x1c8] sm:$0xff]
    %v884 = vld [vmem:[#allocation7 + $0x1d0] sm:$0xff]
    %v885 = vld [vmem:[#allocation7 + $0x1d8] sm:$0xff]
    %v886 = vld [vmem:[#allocation7 + $0x1e0] sm:$0xff]
    %v887 = vld [vmem:[#allocation7 + $0x1e8] sm:$0xff]
    %v888 = vld [vmem:[#allocation7 + $0x1f0] sm:$0xff]
    %v889 = vld [vmem:[#allocation7 + $0x1f8] sm:$0xff]
    %v890 = vld [vmem:[%s7] sm:$0xf]
    %v892 = vperm.slane %v890, 0
    %v893 = vperm.slane %v890, 1
    %v894 = vperm.slane %v890, 2
    %v895 = vperm.slane %v890, 3
    %900 = vmatpush.msra.mxu0 %v886
    %901 = vmatpush.msra.mxu0 %v882
    %902 = vmatpush.msra.mxu0 %v878
    %903 = vmatpush.msra.mxu0 %v874
    %904 = vmatpush.msra.mxu0 %v870
    %905 = vmatpush.msra.mxu0 %v866
    %906 = vmatpush.msra.mxu0 %v862
    %907 = vmatpush.msra.mxu0 %v858
    %908 = vmatpush.msra.mxu0 %v854
    %909 = vmatpush.msra.mxu0 %v850
    %910 = vmatpush.msra.mxu0 %v846
    %911 = vmatpush.msra.mxu0 %v842
    %912 = vmatpush.msra.mxu0 %v838
    %913 = vmatpush.msra.mxu0 %v834
    %914 = vmatpush.msra.mxu0 %v830
    %915 = vmatpush.msra.mxu0 %v826
    %916 = vmatmul.f32.gmra.mxu0 %v729
    %v917 = vpop.f32.mrf.mxu0
    %v918 = vadd.f32 %v892, %v917
    %919 = vmatmul.f32.gmra.mxu0 %v732
    %v920 = vpop.f32.mrf.mxu0
    %v921 = vadd.f32 %v892, %v920
    %922 = vdwg.mxu0
    %923 = vmatpush.msra.mxu0 %v887
    %924 = vmatpush.msra.mxu0 %v883
    %925 = vmatpush.msra.mxu0 %v879
    %926 = vmatpush.msra.mxu0 %v875
    %927 = vmatpush.msra.mxu0 %v871
    %928 = vmatpush.msra.mxu0 %v867
    %929 = vmatpush.msra.mxu0 %v863
    %930 = vmatpush.msra.mxu0 %v859
    %931 = vmatpush.msra.mxu0 %v855
    %932 = vmatpush.msra.mxu0 %v851
    %933 = vmatpush.msra.mxu0 %v847
    %934 = vmatpush.msra.mxu0 %v843
    %935 = vmatpush.msra.mxu0 %v839
    %936 = vmatpush.msra.mxu0 %v835
    %937 = vmatpush.msra.mxu0 %v831
    %938 = vmatpush.msra.mxu0 %v827
    %939 = vmatmul.f32.gmra.mxu0 %v729
    %v940 = vpop.f32.mrf.mxu0
    %v941 = vadd.f32 %v893, %v940
    %942 = vmatmul.f32.gmra.mxu0 %v732
    %v943 = vpop.f32.mrf.mxu0
    %v944 = vadd.f32 %v893, %v943
    %945 = vdwg.mxu0
    %946 = vmatpush.msra.mxu0 %v888
    %947 = vmatpush.msra.mxu0 %v884
    %948 = vmatpush.msra.mxu0 %v880
    %949 = vmatpush.msra.mxu0 %v876
    %950 = vmatpush.msra.mxu0 %v872
    %951 = vmatpush.msra.mxu0 %v868
    %952 = vmatpush.msra.mxu0 %v864
    %953 = vmatpush.msra.mxu0 %v860
    %954 = vmatpush.msra.mxu0 %v856
    %955 = vmatpush.msra.mxu0 %v852
    %956 = vmatpush.msra.mxu0 %v848
    %957 = vmatpush.msra.mxu0 %v844
    %958 = vmatpush.msra.mxu0 %v840
    %959 = vmatpush.msra.mxu0 %v836
    %960 = vmatpush.msra.mxu0 %v832
    %961 = vmatpush.msra.mxu0 %v828
    %962 = vmatmul.f32.gmra.mxu0 %v729
    %v963 = vpop.f32.mrf.mxu0
    %v964 = vadd.f32 %v894, %v963
    %965 = vmatmul.f32.gmra.mxu0 %v732
    %v966 = vpop.f32.mrf.mxu0
    %v967 = vadd.f32 %v894, %v966
    %968 = vdwg.mxu0
    %969 = vmatpush.msra.mxu0 %v889
    %970 = vmatpush.msra.mxu0 %v885
    %971 = vmatpush.msra.mxu0 %v881
    %972 = vmatpush.msra.mxu0 %v877
    %973 = vmatpush.msra.mxu0 %v873
    %974 = vmatpush.msra.mxu0 %v869
    %975 = vmatpush.msra.mxu0 %v865
    %976 = vmatpush.msra.mxu0 %v861
    %977 = vmatpush.msra.mxu0 %v857
    %978 = vmatpush.msra.mxu0 %v853
    %979 = vmatpush.msra.mxu0 %v849
    %980 = vmatpush.msra.mxu0 %v845
    %981 = vmatpush.msra.mxu0 %v841
    %982 = vmatpush.msra.mxu0 %v837
    %983 = vmatpush.msra.mxu0 %v833
    %984 = vmatpush.msra.mxu0 %v829
    %985 = vmatmul.f32.gmra.mxu0 %v729
    %v986 = vpop.f32.mrf.mxu0
    %v987 = vadd.f32 %v895, %v986
    %988 = vmatmul.f32.gmra.mxu0 %v732
    %v989 = vpop.f32.mrf.mxu0
    %v990 = vadd.f32 %v895, %v989
    %991 = vdwg.mxu0
    %993 = vset.pattern.permute.xlu0 0
    %994 = vperm.xlu0 %993, %v810
    %v995 = vpop.permute.xlu0 %994
    %998 = vset.pattern.permute.xlu0 0
    %999 = vperm.xlu0 %998, %v825
    %v1000 = vpop.permute.xlu0 %999
    %v1002 = vmul.f32 %v995, %v918
    %v1003 = vmul.f32 %v1000, %v921
    %1004 = vset.pattern.permute.xlu0 1
    %1005 = vperm.xlu0 %1004, %v810
    %v1006 = vpop.permute.xlu0 %1005
    %1008 = vset.pattern.permute.xlu0 1
    %1009 = vperm.xlu0 %1008, %v825
    %v1010 = vpop.permute.xlu0 %1009
    %v1012 = vmul.f32 %v1006, %v941
    %v1013 = vmul.f32 %v1010, %v944
    %v1014 = vadd.f32 %v1002, %v1012
    %v1015 = vadd.f32 %v1003, %v1013
    %1016 = vset.pattern.permute.xlu0 2
    %1017 = vperm.xlu0 %1016, %v810
    %v1018 = vpop.permute.xlu0 %1017
    %1020 = vset.pattern.permute.xlu0 2
    %1021 = vperm.xlu0 %1020, %v825
    %v1022 = vpop.permute.xlu0 %1021
    %v1024 = vmul.f32 %v1018, %v964
    %v1025 = vmul.f32 %v1022, %v967
    %v1026 = vadd.f32 %v1014, %v1024
    %v1027 = vadd.f32 %v1015, %v1025
    %1028 = vset.pattern.permute.xlu0 3
    %1029 = vperm.xlu0 %1028, %v810
    %v1030 = vpop.permute.xlu0 %1029
    %1032 = vset.pattern.permute.xlu0 3
    %1033 = vperm.xlu0 %1032, %v825
    %v1034 = vpop.permute.xlu0 %1033
    %v1036 = vmul.f32 %v1030, %v987
    %v1037 = vmul.f32 %v1034, %v990
    %v1038 = vadd.f32 %v1026, %v1036
    %v1039 = vadd.f32 %v1027, %v1037
    %v1040 = vld [vmem:[%s8] sm:$0xff]
    %v1041 = vld [vmem:[%s8 + $0x8] sm:$0xff]
    %v1042 = vld [vmem:[%s8 + $0x10] sm:$0xff]
    %v1043 = vld [vmem:[%s8 + $0x18] sm:$0xff]
    %v1044 = vld [vmem:[%s8 + $0x20] sm:$0xff]
    %v1045 = vld [vmem:[%s8 + $0x28] sm:$0xff]
    %v1046 = vld [vmem:[%s8 + $0x30] sm:$0xff]
    %v1047 = vld [vmem:[%s8 + $0x38] sm:$0xff]
    %v1048 = vld [vmem:[%s8 + $0x40] sm:$0xff]
    %v1049 = vld [vmem:[%s8 + $0x48] sm:$0xff]
    %v1050 = vld [vmem:[%s8 + $0x50] sm:$0xff]
    %v1051 = vld [vmem:[%s8 + $0x58] sm:$0xff]
    %v1052 = vld [vmem:[%s8 + $0x60] sm:$0xff]
    %v1053 = vld [vmem:[%s8 + $0x68] sm:$0xff]
    %v1054 = vld [vmem:[%s8 + $0x70] sm:$0xff]
    %v1055 = vld [vmem:[%s8 + $0x78] sm:$0xff]
    %v1056 = vld [vmem:[%s9] sm:$0x1]
    %v1058 = vperm.slane %v1056, 0
    %1060 = vmatpush.msra.mxu0 %v1055
    %1061 = vmatpush.msra.mxu0 %v1054
    %1062 = vmatpush.msra.mxu0 %v1053
    %1063 = vmatpush.msra.mxu0 %v1052
    %1064 = vmatpush.msra.mxu0 %v1051
    %1065 = vmatpush.msra.mxu0 %v1050
    %1066 = vmatpush.msra.mxu0 %v1049
    %1067 = vmatpush.msra.mxu0 %v1048
    %1068 = vmatpush.msra.mxu0 %v1047
    %1069 = vmatpush.msra.mxu0 %v1046
    %1070 = vmatpush.msra.mxu0 %v1045
    %1071 = vmatpush.msra.mxu0 %v1044
    %1072 = vmatpush.msra.mxu0 %v1043
    %1073 = vmatpush.msra.mxu0 %v1042
    %1074 = vmatpush.msra.mxu0 %v1041
    %1075 = vmatpush.msra.mxu0 %v1040
    %1076 = vmatmul.f32.gmra.mxu0 %v1038
    %v1077 = vpop.f32.mrf.mxu0
    %v1078 = vadd.f32 %v1058, %v1077
    %1079 = vmatmul.f32.gmra.mxu0 %v1039
    %v1080 = vpop.f32.mrf.mxu0
    %v1081 = vadd.f32 %v1058, %v1080
    %1082 = vdwg.mxu0
    %v1083 = vld [vmem:[#allocation10] sm:$0xff]
    %v1084 = vld [vmem:[#allocation10 + $0x8] sm:$0xff]
    %v1085 = vld [vmem:[#allocation10 + $0x10] sm:$0xff]
    %v1086 = vld [vmem:[#allocation10 + $0x18] sm:$0xff]
    %v1087 = vld [vmem:[#allocation10 + $0x20] sm:$0xff]
    %v1088 = vld [vmem:[#allocation10 + $0x28] sm:$0xff]
    %v1089 = vld [vmem:[#allocation10 + $0x30] sm:$0xff]
    %v1090 = vld [vmem:[#allocation10 + $0x38] sm:$0xff]
    %v1091 = vld [vmem:[#allocation10 + $0x40] sm:$0xff]
    %v1092 = vld [vmem:[#allocation10 + $0x48] sm:$0xff]
    %v1093 = vld [vmem:[#allocation10 + $0x50] sm:$0xff]
    %v1094 = vld [vmem:[#allocation10 + $0x58] sm:$0xff]
    %v1095 = vld [vmem:[#allocation10 + $0x60] sm:$0xff]
    %v1096 = vld [vmem:[#allocation10 + $0x68] sm:$0xff]
    %v1097 = vld [vmem:[#allocation10 + $0x70] sm:$0xff]
    %v1098 = vld [vmem:[#allocation10 + $0x78] sm:$0xff]
    %1099 = vmatpush.msra.mxu0 %v1098
    %1100 = vmatpush.msra.mxu0 %v1097
    %1101 = vmatpush.msra.mxu0 %v1096
    %1102 = vmatpush.msra.mxu0 %v1095
    %1103 = vmatpush.msra.mxu0 %v1094
    %1104 = vmatpush.msra.mxu0 %v1093
    %1105 = vmatpush.msra.mxu0 %v1092
    %1106 = vmatpush.msra.mxu0 %v1091
    %1107 = vmatpush.msra.mxu0 %v1090
    %1108 = vmatpush.msra.mxu0 %v1089
    %1109 = vmatpush.msra.mxu0 %v1088
    %1110 = vmatpush.msra.mxu0 %v1087
    %1111 = vmatpush.msra.mxu0 %v1086
    %1112 = vmatpush.msra.mxu0 %v1085
    %1113 = vmatpush.msra.mxu0 %v1084
    %1114 = vmatpush.msra.mxu0 %v1083
    %1115 = vmatmul.f32.gmra.mxu0 %v1078
    %v1116 = vpop.f32.mrf.mxu0
    %v1117 = vadd.f32 0.0, %v1116
    %1118 = vmatmul.f32.gmra.mxu0 %v1081
    %v1119 = vpop.f32.mrf.mxu0
    %v1120 = vadd.f32 0.0, %v1119
    %1121 = vdwg.mxu0
    %v1122 = vld [vmem:[%s11] sm:$0xff]
    %v1123 = vld [vmem:[#allocation11] sm:$0xff]
    %v1124 = vld [vmem:[#allocation11 + $0x8] sm:$0xff]
    %v1125 = vld [vmem:[#allocation11 + $0x10] sm:$0xff]
    %v1126 = vld [vmem:[#allocation11 + $0x18] sm:$0xff]
    %v1127 = vld [vmem:[#allocation11 + $0x20] sm:$0xff]
    %v1128 = vld [vmem:[#allocation11 + $0x28] sm:$0xff]
    %v1129 = vld [vmem:[#allocation11 + $0x30] sm:$0xff]
    %v1130 = vld [vmem:[#allocation11 + $0x38] sm:$0xff]
    %v1131 = vld [vmem:[#allocation11 + $0x40] sm:$0xff]
    %v1132 = vld [vmem:[#allocation11 + $0x48] sm:$0xff]
    %v1133 = vld [vmem:[#allocation11 + $0x50] sm:$0xff]
    %v1134 = vld [vmem:[#allocation11 + $0x58] sm:$0xff]
    %v1135 = vld [vmem:[#allocation11 + $0x60] sm:$0xff]
    %v1136 = vld [vmem:[#allocation11 + $0x68] sm:$0xff]
    %v1137 = vld [vmem:[#allocation11 + $0x70] sm:$0xff]
    %v1138 = vld [vmem:[#allocation11 + $0x78] sm:$0xff]
    %1139 = vmatpush.msra.mxu0 %v1138
    %1140 = vmatpush.msra.mxu0 %v1137
    %1141 = vmatpush.msra.mxu0 %v1136
    %1142 = vmatpush.msra.mxu0 %v1135
    %1143 = vmatpush.msra.mxu0 %v1134
    %1144 = vmatpush.msra.mxu0 %v1133
    %1145 = vmatpush.msra.mxu0 %v1132
    %1146 = vmatpush.msra.mxu0 %v1131
    %1147 = vmatpush.msra.mxu0 %v1130
    %1148 = vmatpush.msra.mxu0 %v1129
    %1149 = vmatpush.msra.mxu0 %v1128
    %1150 = vmatpush.msra.mxu0 %v1127
    %1151 = vmatpush.msra.mxu0 %v1126
    %1152 = vmatpush.msra.mxu0 %v1125
    %1153 = vmatpush.msra.mxu0 %v1124
    %1154 = vmatpush.msra.mxu0 %v1123
    %1155 = vmatmul.f32.gmra.mxu0 %v1122
    %v1156 = vpop.f32.mrf.mxu0
    %v1157 = vadd.f32 0.0, %v1156
    %1158 = vdwg.mxu0
    %v1159 = vperm.slane %v1157, 0
    %v1160 = vadd.f32 %v1117, %v1159
    %v1161 = vadd.f32 %v1120, %v1159
    %v1162 = vperm.slane %v1157, 1
    %v1163 = vadd.f32 %v1117, %v1162
    %v1164 = vadd.f32 %v1120, %v1162
    %v1165 = vperm.slane %v1157, 2
    %v1166 = vadd.f32 %v1117, %v1165
    %v1167 = vadd.f32 %v1120, %v1165
    %v1168 = vperm.slane %v1157, 3
    %v1169 = vadd.f32 %v1117, %v1168
    %v1170 = vadd.f32 %v1120, %v1168
    %v1171 = vperm.slane %v1157, 4
    %v1172 = vadd.f32 %v1117, %v1171
    %v1173 = vadd.f32 %v1120, %v1171
    %v1174 = vperm.slane %v1157, 5
    %v1175 = vadd.f32 %v1117, %v1174
    %v1176 = vadd.f32 %v1120, %v1174
    %v1177 = vperm.slane %v1157, 6
    %v1178 = vadd.f32 %v1117, %v1177
    %v1179 = vadd.f32 %v1120, %v1177
    %v1180 = vperm.slane %v1157, 7
    %v1181 = vadd.f32 %v1117, %v1180
    %v1182 = vadd.f32 %v1120, %v1180
    %v1183 = vld [vmem:[%s14] sm:$0x1]
    %v1185 = vperm.slane %v1183, 0
    %v1187 = vadd.f32 %v1160, %v1185
    %v1188 = vadd.f32 %v1161, %v1185
    %v1189 = vadd.f32 %v1163, %v1185
    %v1190 = vadd.f32 %v1164, %v1185
    %v1191 = vadd.f32 %v1166, %v1185
    %v1192 = vadd.f32 %v1167, %v1185
    %v1193 = vadd.f32 %v1169, %v1185
    %v1194 = vadd.f32 %v1170, %v1185
    %v1195 = vadd.f32 %v1172, %v1185
    %v1196 = vadd.f32 %v1173, %v1185
    %v1197 = vadd.f32 %v1175, %v1185
    %v1198 = vadd.f32 %v1176, %v1185
    %v1199 = vadd.f32 %v1178, %v1185
    %v1200 = vadd.f32 %v1179, %v1185
    %v1201 = vadd.f32 %v1181, %v1185
    %v1202 = vadd.f32 %v1182, %v1185
    %v1203 = vmax.f32 %v1187, 0.0
    %v1204 = vmax.f32 %v1188, 0.0
    %v1205 = vmax.f32 %v1189, 0.0
    %v1206 = vmax.f32 %v1190, 0.0
    %v1207 = vmax.f32 %v1191, 0.0
    %v1208 = vmax.f32 %v1192, 0.0
    %v1209 = vmax.f32 %v1193, 0.0
    %v1210 = vmax.f32 %v1194, 0.0
    %v1211 = vmax.f32 %v1195, 0.0
    %v1212 = vmax.f32 %v1196, 0.0
    %v1213 = vmax.f32 %v1197, 0.0
    %v1214 = vmax.f32 %v1198, 0.0
    %v1215 = vmax.f32 %v1199, 0.0
    %v1216 = vmax.f32 %v1200, 0.0
    %v1217 = vmax.f32 %v1201, 0.0
    %v1218 = vmax.f32 %v1202, 0.0
    %v1219 = vld [vmem:[#allocation13] sm:$0xff]
    %v1220 = vld [vmem:[#allocation13 + $0x8] sm:$0xff]
    %v1221 = vld [vmem:[#allocation13 + $0x10] sm:$0xff]
    %v1222 = vld [vmem:[#allocation13 + $0x18] sm:$0xff]
    %v1223 = vld [vmem:[#allocation13 + $0x20] sm:$0xff]
    %v1224 = vld [vmem:[#allocation13 + $0x28] sm:$0xff]
    %v1225 = vld [vmem:[#allocation13 + $0x30] sm:$0xff]
    %v1226 = vld [vmem:[#allocation13 + $0x38] sm:$0xff]
    %v1227 = vld [vmem:[#allocation13 + $0x40] sm:$0xff]
    %v1228 = vld [vmem:[#allocation13 + $0x48] sm:$0xff]
    %v1229 = vld [vmem:[#allocation13 + $0x50] sm:$0xff]
    %v1230 = vld [vmem:[#allocation13 + $0x58] sm:$0xff]
    %v1231 = vld [vmem:[#allocation13 + $0x60] sm:$0xff]
    %v1232 = vld [vmem:[#allocation13 + $0x68] sm:$0xff]
    %v1233 = vld [vmem:[#allocation13 + $0x70] sm:$0xff]
    %v1234 = vld [vmem:[#allocation13 + $0x78] sm:$0xff]
    %v1235 = vld [vmem:[%s16] sm:$0x1]
    %v1237 = vperm.slane %v1235, 0
    %1239 = vmatpush.msra.mxu0 %v1234
    %1240 = vmatpush.msra.mxu0 %v1233
    %1241 = vmatpush.msra.mxu0 %v1232
    %1242 = vmatpush.msra.mxu0 %v1231
    %1243 = vmatpush.msra.mxu0 %v1230
    %1244 = vmatpush.msra.mxu0 %v1229
    %1245 = vmatpush.msra.mxu0 %v1228
    %1246 = vmatpush.msra.mxu0 %v1227
    %1247 = vmatpush.msra.mxu0 %v1226
    %1248 = vmatpush.msra.mxu0 %v1225
    %1249 = vmatpush.msra.mxu0 %v1224
    %1250 = vmatpush.msra.mxu0 %v1223
    %1251 = vmatpush.msra.mxu0 %v1222
    %1252 = vmatpush.msra.mxu0 %v1221
    %1253 = vmatpush.msra.mxu0 %v1220
    %1254 = vmatpush.msra.mxu0 %v1219
    %1255 = vmatmul.f32.gmra.mxu0 %v1203
    %v1256 = vpop.f32.mrf.mxu0
    %v1257 = vadd.f32 %v1237, %v1256
    %1258 = vmatmul.f32.gmra.mxu0 %v1204
    %v1259 = vpop.f32.mrf.mxu0
    %v1260 = vadd.f32 %v1237, %v1259
    %1261 = vmatmul.f32.gmra.mxu0 %v1205
    %v1262 = vpop.f32.mrf.mxu0
    %v1263 = vadd.f32 %v1237, %v1262
    %1264 = vmatmul.f32.gmra.mxu0 %v1206
    %v1265 = vpop.f32.mrf.mxu0
    %v1266 = vadd.f32 %v1237, %v1265
    %1267 = vmatmul.f32.gmra.mxu0 %v1207
    %v1268 = vpop.f32.mrf.mxu0
    %v1269 = vadd.f32 %v1237, %v1268
    %1270 = vmatmul.f32.gmra.mxu0 %v1208
    %v1271 = vpop.f32.mrf.mxu0
    %v1272 = vadd.f32 %v1237, %v1271
    %1273 = vmatmul.f32.gmra.mxu0 %v1209
    %v1274 = vpop.f32.mrf.mxu0
    %v1275 = vadd.f32 %v1237, %v1274
    %1276 = vmatmul.f32.gmra.mxu0 %v1210
    %v1277 = vpop.f32.mrf.mxu0
    %v1278 = vadd.f32 %v1237, %v1277
    %1279 = vmatmul.f32.gmra.mxu0 %v1211
    %v1280 = vpop.f32.mrf.mxu0
    %v1281 = vadd.f32 %v1237, %v1280
    %1282 = vmatmul.f32.gmra.mxu0 %v1212
    %v1283 = vpop.f32.mrf.mxu0
    %v1284 = vadd.f32 %v1237, %v1283
    %1285 = vmatmul.f32.gmra.mxu0 %v1213
    %v1286 = vpop.f32.mrf.mxu0
    %v1287 = vadd.f32 %v1237, %v1286
    %1288 = vmatmul.f32.gmra.mxu0 %v1214
    %v1289 = vpop.f32.mrf.mxu0
    %v1290 = vadd.f32 %v1237, %v1289
    %1291 = vmatmul.f32.gmra.mxu0 %v1215
    %v1292 = vpop.f32.mrf.mxu0
    %v1293 = vadd.f32 %v1237, %v1292
    %1294 = vmatmul.f32.gmra.mxu0 %v1216
    %v1295 = vpop.f32.mrf.mxu0
    %v1296 = vadd.f32 %v1237, %v1295
    %1297 = vmatmul.f32.gmra.mxu0 %v1217
    %v1298 = vpop.f32.mrf.mxu0
    %v1299 = vadd.f32 %v1237, %v1298
    %1300 = vmatmul.f32.gmra.mxu0 %v1218
    %v1301 = vpop.f32.mrf.mxu0
    %v1302 = vadd.f32 %v1237, %v1301
    %1303 = vdwg.mxu0
    %1304 = vmax.xlane.f32.xlu0 %v1257
    %v1305 = vpop.xlane.xlu0 %1304
    %1306 = vmax.xlane.f32.xlu0 %v1260
    %v1307 = vpop.xlane.xlu0 %1306
    %1308 = vmax.xlane.f32.xlu0 %v1263
    %v1309 = vpop.xlane.xlu0 %1308
    %1310 = vmax.xlane.f32.xlu0 %v1266
    %v1311 = vpop.xlane.xlu0 %1310
    %1312 = vmax.xlane.f32.xlu0 %v1269
    %v1313 = vpop.xlane.xlu0 %1312
    %1314 = vmax.xlane.f32.xlu0 %v1272
    %v1315 = vpop.xlane.xlu0 %1314
    %1316 = vmax.xlane.f32.xlu0 %v1275
    %v1317 = vpop.xlane.xlu0 %1316
    %1318 = vmax.xlane.f32.xlu0 %v1278
    %v1319 = vpop.xlane.xlu0 %1318
    %1320 = vmax.xlane.f32.xlu0 %v1281
    %v1321 = vpop.xlane.xlu0 %1320
    %1322 = vmax.xlane.f32.xlu0 %v1284
    %v1323 = vpop.xlane.xlu0 %1322
    %1324 = vmax.xlane.f32.xlu0 %v1287
    %v1325 = vpop.xlane.xlu0 %1324
    %1326 = vmax.xlane.f32.xlu0 %v1290
    %v1327 = vpop.xlane.xlu0 %1326
    %1328 = vmax.xlane.f32.xlu0 %v1293
    %v1329 = vpop.xlane.xlu0 %1328
    %1330 = vmax.xlane.f32.xlu0 %v1296
    %v1331 = vpop.xlane.xlu0 %1330
    %1332 = vmax.xlane.f32.xlu0 %v1299
    %v1333 = vpop.xlane.xlu0 %1332
    %1334 = vmax.xlane.f32.xlu0 %v1302
    %v1335 = vpop.xlane.xlu0 %1334
    %v1336 = vsub.f32 %v1257, %v1305
    %v1337 = vsub.f32 %v1260, %v1307
    %v1338 = vsub.f32 %v1263, %v1309
    %v1339 = vsub.f32 %v1266, %v1311
    %v1340 = vsub.f32 %v1269, %v1313
    %v1341 = vsub.f32 %v1272, %v1315
    %v1342 = vsub.f32 %v1275, %v1317
    %v1343 = vsub.f32 %v1278, %v1319
    %v1344 = vsub.f32 %v1281, %v1321
    %v1345 = vsub.f32 %v1284, %v1323
    %v1346 = vsub.f32 %v1287, %v1325
    %v1347 = vsub.f32 %v1290, %v1327
    %v1348 = vsub.f32 %v1293, %v1329
    %v1349 = vsub.f32 %v1296, %v1331
    %v1350 = vsub.f32 %v1299, %v1333
    %v1351 = vsub.f32 %v1302, %v1335
    %v1352 = vmul.f32 %v1336, 1.442695
    %v1353 = vpow.pop %v1352
    %v1354 = vmul.f32 %v1337, 1.442695
    %v1355 = vpow.pop %v1354
    %v1356 = vmul.f32 %v1338, 1.442695
    %v1357 = vpow.pop %v1356
    %v1358 = vmul.f32 %v1339, 1.442695
    %v1359 = vpow.pop %v1358
    %v1360 = vmul.f32 %v1340, 1.442695
    %v1361 = vpow.pop %v1360
    %v1362 = vmul.f32 %v1341, 1.442695
    %v1363 = vpow.pop %v1362
    %v1364 = vmul.f32 %v1342, 1.442695
    %v1365 = vpow.pop %v1364
    %v1366 = vmul.f32 %v1343, 1.442695
    %v1367 = vpow.pop %v1366
    %v1368 = vmul.f32 %v1344, 1.442695
    %v1369 = vpow.pop %v1368
    %v1370 = vmul.f32 %v1345, 1.442695
    %v1371 = vpow.pop %v1370
    %v1372 = vmul.f32 %v1346, 1.442695
    %v1373 = vpow.pop %v1372
    %v1374 = vmul.f32 %v1347, 1.442695
    %v1375 = vpow.pop %v1374
    %v1376 = vmul.f32 %v1348, 1.442695
    %v1377 = vpow.pop %v1376
    %v1378 = vmul.f32 %v1349, 1.442695
    %v1379 = vpow.pop %v1378
    %v1380 = vmul.f32 %v1350, 1.442695
    %v1381 = vpow.pop %v1380
    %v1382 = vmul.f32 %v1351, 1.442695
    %v1383 = vpow.pop %v1382
    %1384 = vadd.xlane.f32.xlu0 %v1353
    %v1385 = vpop.xlane.xlu0 %1384
    %1386 = vadd.xlane.f32.xlu0 %v1355
    %v1387 = vpop.xlane.xlu0 %1386
    %1388 = vadd.xlane.f32.xlu0 %v1357
    %v1389 = vpop.xlane.xlu0 %1388
    %1390 = vadd.xlane.f32.xlu0 %v1359
    %v1391 = vpop.xlane.xlu0 %1390
    %1392 = vadd.xlane.f32.xlu0 %v1361
    %v1393 = vpop.xlane.xlu0 %1392
    %1394 = vadd.xlane.f32.xlu0 %v1363
    %v1395 = vpop.xlane.xlu0 %1394
    %1396 = vadd.xlane.f32.xlu0 %v1365
    %v1397 = vpop.xlane.xlu0 %1396
    %1398 = vadd.xlane.f32.xlu0 %v1367
    %v1399 = vpop.xlane.xlu0 %1398
    %1400 = vadd.xlane.f32.xlu0 %v1369
    %v1401 = vpop.xlane.xlu0 %1400
    %1402 = vadd.xlane.f32.xlu0 %v1371
    %v1403 = vpop.xlane.xlu0 %1402
    %1404 = vadd.xlane.f32.xlu0 %v1373
    %v1405 = vpop.xlane.xlu0 %1404
    %1406 = vadd.xlane.f32.xlu0 %v1375
    %v1407 = vpop.xlane.xlu0 %1406
    %1408 = vadd.xlane.f32.xlu0 %v1377
    %v1409 = vpop.xlane.xlu0 %1408
    %1410 = vadd.xlane.f32.xlu0 %v1379
    %v1411 = vpop.xlane.xlu0 %1410
    %1412 = vadd.xlane.f32.xlu0 %v1381
    %v1413 = vpop.xlane.xlu0 %1412
    %1414 = vadd.xlane.f32.xlu0 %v1383
    %v1415 = vpop.xlane.xlu0 %1414
    %v1416 = vrcp.pop %v1385
    %v1417 = vmul.f32 %v1385, %v1416
    %v1418 = vsub.f32 1.0, %v1417
    %v1419 = vmul.f32 %v1416, %v1418
    %v1420 = vadd.f32 %v1416, %v1419
    %vm1421 = vweird.f32 %v1385
    %vm1422 = vweird.f32 %v1416
    %vm1423 = vmor %vm1421, %vm1422
    %v1424 = vsel %vm1423, %v1416, %v1420
    %v1425 = vand.u32 2147483647, %v1385
    %vm1426 = vcmp.eq.f32.partialorder %v1425, 8.507059e+37
    %v1427 = vand.u32 %v1385, 2147483648
    %v1428 = vor.u32 1.1754944e-38, %v1427
    %v1429 = vsel %vm1426, %v1428, %v1424
    %v1430 = vmul.f32 %v1353, %v1429
    %v1431 = vrcp.pop %v1387
    %v1432 = vmul.f32 %v1387, %v1431
    %v1433 = vsub.f32 1.0, %v1432
    %v1434 = vmul.f32 %v1431, %v1433
    %v1435 = vadd.f32 %v1431, %v1434
    %vm1436 = vweird.f32 %v1387
    %vm1437 = vweird.f32 %v1431
    %vm1438 = vmor %vm1436, %vm1437
    %v1439 = vsel %vm1438, %v1431, %v1435
    %v1440 = vand.u32 2147483647, %v1387
    %vm1441 = vcmp.eq.f32.partialorder %v1440, 8.507059e+37
    %v1442 = vand.u32 %v1387, 2147483648
    %v1443 = vor.u32 1.1754944e-38, %v1442
    %v1444 = vsel %vm1441, %v1443, %v1439
    %v1445 = vmul.f32 %v1355, %v1444
    %v1446 = vrcp.pop %v1389
    %v1447 = vmul.f32 %v1389, %v1446
    %v1448 = vsub.f32 1.0, %v1447
    %v1449 = vmul.f32 %v1446, %v1448
    %v1450 = vadd.f32 %v1446, %v1449
    %vm1451 = vweird.f32 %v1389
    %vm1452 = vweird.f32 %v1446
    %vm1453 = vmor %vm1451, %vm1452
    %v1454 = vsel %vm1453, %v1446, %v1450
    %v1455 = vand.u32 2147483647, %v1389
    %vm1456 = vcmp.eq.f32.partialorder %v1455, 8.507059e+37
    %v1457 = vand.u32 %v1389, 2147483648
    %v1458 = vor.u32 1.1754944e-38, %v1457
    %v1459 = vsel %vm1456, %v1458, %v1454
    %v1460 = vmul.f32 %v1357, %v1459
    %v1461 = vrcp.pop %v1391
    %v1462 = vmul.f32 %v1391, %v1461
    %v1463 = vsub.f32 1.0, %v1462
    %v1464 = vmul.f32 %v1461, %v1463
    %v1465 = vadd.f32 %v1461, %v1464
    %vm1466 = vweird.f32 %v1391
    %vm1467 = vweird.f32 %v1461
    %vm1468 = vmor %vm1466, %vm1467
    %v1469 = vsel %vm1468, %v1461, %v1465
    %v1470 = vand.u32 2147483647, %v1391
    %vm1471 = vcmp.eq.f32.partialorder %v1470, 8.507059e+37
    %v1472 = vand.u32 %v1391, 2147483648
    %v1473 = vor.u32 1.1754944e-38, %v1472
    %v1474 = vsel %vm1471, %v1473, %v1469
    %v1475 = vmul.f32 %v1359, %v1474
    %v1476 = vrcp.pop %v1393
    %v1477 = vmul.f32 %v1393, %v1476
    %v1478 = vsub.f32 1.0, %v1477
    %v1479 = vmul.f32 %v1476, %v1478
    %v1480 = vadd.f32 %v1476, %v1479
    %vm1481 = vweird.f32 %v1393
    %vm1482 = vweird.f32 %v1476
    %vm1483 = vmor %vm1481, %vm1482
    %v1484 = vsel %vm1483, %v1476, %v1480
    %v1485 = vand.u32 2147483647, %v1393
    %vm1486 = vcmp.eq.f32.partialorder %v1485, 8.507059e+37
    %v1487 = vand.u32 %v1393, 2147483648
    %v1488 = vor.u32 1.1754944e-38, %v1487
    %v1489 = vsel %vm1486, %v1488, %v1484
    %v1490 = vmul.f32 %v1361, %v1489
    %v1491 = vrcp.pop %v1395
    %v1492 = vmul.f32 %v1395, %v1491
    %v1493 = vsub.f32 1.0, %v1492
    %v1494 = vmul.f32 %v1491, %v1493
    %v1495 = vadd.f32 %v1491, %v1494
    %vm1496 = vweird.f32 %v1395
    %vm1497 = vweird.f32 %v1491
    %vm1498 = vmor %vm1496, %vm1497
    %v1499 = vsel %vm1498, %v1491, %v1495
    %v1500 = vand.u32 2147483647, %v1395
    %vm1501 = vcmp.eq.f32.partialorder %v1500, 8.507059e+37
    %v1502 = vand.u32 %v1395, 2147483648
    %v1503 = vor.u32 1.1754944e-38, %v1502
    %v1504 = vsel %vm1501, %v1503, %v1499
    %v1505 = vmul.f32 %v1363, %v1504
    %v1506 = vrcp.pop %v1397
    %v1507 = vmul.f32 %v1397, %v1506
    %v1508 = vsub.f32 1.0, %v1507
    %v1509 = vmul.f32 %v1506, %v1508
    %v1510 = vadd.f32 %v1506, %v1509
    %vm1511 = vweird.f32 %v1397
    %vm1512 = vweird.f32 %v1506
    %vm1513 = vmor %vm1511, %vm1512
    %v1514 = vsel %vm1513, %v1506, %v1510
    %v1515 = vand.u32 2147483647, %v1397
    %vm1516 = vcmp.eq.f32.partialorder %v1515, 8.507059e+37
    %v1517 = vand.u32 %v1397, 2147483648
    %v1518 = vor.u32 1.1754944e-38, %v1517
    %v1519 = vsel %vm1516, %v1518, %v1514
    %v1520 = vmul.f32 %v1365, %v1519
    %v1521 = vrcp.pop %v1399
    %v1522 = vmul.f32 %v1399, %v1521
    %v1523 = vsub.f32 1.0, %v1522
    %v1524 = vmul.f32 %v1521, %v1523
    %v1525 = vadd.f32 %v1521, %v1524
    %vm1526 = vweird.f32 %v1399
    %vm1527 = vweird.f32 %v1521
    %vm1528 = vmor %vm1526, %vm1527
    %v1529 = vsel %vm1528, %v1521, %v1525
    %v1530 = vand.u32 2147483647, %v1399
    %vm1531 = vcmp.eq.f32.partialorder %v1530, 8.507059e+37
    %v1532 = vand.u32 %v1399, 2147483648
    %v1533 = vor.u32 1.1754944e-38, %v1532
    %v1534 = vsel %vm1531, %v1533, %v1529
    %v1535 = vmul.f32 %v1367, %v1534
    %v1536 = vrcp.pop %v1401
    %v1537 = vmul.f32 %v1401, %v1536
    %v1538 = vsub.f32 1.0, %v1537
    %v1539 = vmul.f32 %v1536, %v1538
    %v1540 = vadd.f32 %v1536, %v1539
    %vm1541 = vweird.f32 %v1401
    %vm1542 = vweird.f32 %v1536
    %vm1543 = vmor %vm1541, %vm1542
    %v1544 = vsel %vm1543, %v1536, %v1540
    %v1545 = vand.u32 2147483647, %v1401
    %vm1546 = vcmp.eq.f32.partialorder %v1545, 8.507059e+37
    %v1547 = vand.u32 %v1401, 2147483648
    %v1548 = vor.u32 1.1754944e-38, %v1547
    %v1549 = vsel %vm1546, %v1548, %v1544
    %v1550 = vmul.f32 %v1369, %v1549
    %v1551 = vrcp.pop %v1403
    %v1552 = vmul.f32 %v1403, %v1551
    %v1553 = vsub.f32 1.0, %v1552
    %v1554 = vmul.f32 %v1551, %v1553
    %v1555 = vadd.f32 %v1551, %v1554
    %vm1556 = vweird.f32 %v1403
    %vm1557 = vweird.f32 %v1551
    %vm1558 = vmor %vm1556, %vm1557
    %v1559 = vsel %vm1558, %v1551, %v1555
    %v1560 = vand.u32 2147483647, %v1403
    %vm1561 = vcmp.eq.f32.partialorder %v1560, 8.507059e+37
    %v1562 = vand.u32 %v1403, 2147483648
    %v1563 = vor.u32 1.1754944e-38, %v1562
    %v1564 = vsel %vm1561, %v1563, %v1559
    %v1565 = vmul.f32 %v1371, %v1564
    %v1566 = vrcp.pop %v1405
    %v1567 = vmul.f32 %v1405, %v1566
    %v1568 = vsub.f32 1.0, %v1567
    %v1569 = vmul.f32 %v1566, %v1568
    %v1570 = vadd.f32 %v1566, %v1569
    %vm1571 = vweird.f32 %v1405
    %vm1572 = vweird.f32 %v1566
    %vm1573 = vmor %vm1571, %vm1572
    %v1574 = vsel %vm1573, %v1566, %v1570
    %v1575 = vand.u32 2147483647, %v1405
    %vm1576 = vcmp.eq.f32.partialorder %v1575, 8.507059e+37
    %v1577 = vand.u32 %v1405, 2147483648
    %v1578 = vor.u32 1.1754944e-38, %v1577
    %v1579 = vsel %vm1576, %v1578, %v1574
    %v1580 = vmul.f32 %v1373, %v1579
    %v1581 = vrcp.pop %v1407
    %v1582 = vmul.f32 %v1407, %v1581
    %v1583 = vsub.f32 1.0, %v1582
    %v1584 = vmul.f32 %v1581, %v1583
    %v1585 = vadd.f32 %v1581, %v1584
    %vm1586 = vweird.f32 %v1407
    %vm1587 = vweird.f32 %v1581
    %vm1588 = vmor %vm1586, %vm1587
    %v1589 = vsel %vm1588, %v1581, %v1585
    %v1590 = vand.u32 2147483647, %v1407
    %vm1591 = vcmp.eq.f32.partialorder %v1590, 8.507059e+37
    %v1592 = vand.u32 %v1407, 2147483648
    %v1593 = vor.u32 1.1754944e-38, %v1592
    %v1594 = vsel %vm1591, %v1593, %v1589
    %v1595 = vmul.f32 %v1375, %v1594
    %v1596 = vrcp.pop %v1409
    %v1597 = vmul.f32 %v1409, %v1596
    %v1598 = vsub.f32 1.0, %v1597
    %v1599 = vmul.f32 %v1596, %v1598
    %v1600 = vadd.f32 %v1596, %v1599
    %vm1601 = vweird.f32 %v1409
    %vm1602 = vweird.f32 %v1596
    %vm1603 = vmor %vm1601, %vm1602
    %v1604 = vsel %vm1603, %v1596, %v1600
    %v1605 = vand.u32 2147483647, %v1409
    %vm1606 = vcmp.eq.f32.partialorder %v1605, 8.507059e+37
    %v1607 = vand.u32 %v1409, 2147483648
    %v1608 = vor.u32 1.1754944e-38, %v1607
    %v1609 = vsel %vm1606, %v1608, %v1604
    %v1610 = vmul.f32 %v1377, %v1609
    %v1611 = vrcp.pop %v1411
    %v1612 = vmul.f32 %v1411, %v1611
    %v1613 = vsub.f32 1.0, %v1612
    %v1614 = vmul.f32 %v1611, %v1613
    %v1615 = vadd.f32 %v1611, %v1614
    %vm1616 = vweird.f32 %v1411
    %vm1617 = vweird.f32 %v1611
    %vm1618 = vmor %vm1616, %vm1617
    %v1619 = vsel %vm1618, %v1611, %v1615
    %v1620 = vand.u32 2147483647, %v1411
    %vm1621 = vcmp.eq.f32.partialorder %v1620, 8.507059e+37
    %v1622 = vand.u32 %v1411, 2147483648
    %v1623 = vor.u32 1.1754944e-38, %v1622
    %v1624 = vsel %vm1621, %v1623, %v1619
    %v1625 = vmul.f32 %v1379, %v1624
    %v1626 = vrcp.pop %v1413
    %v1627 = vmul.f32 %v1413, %v1626
    %v1628 = vsub.f32 1.0, %v1627
    %v1629 = vmul.f32 %v1626, %v1628
    %v1630 = vadd.f32 %v1626, %v1629
    %vm1631 = vweird.f32 %v1413
    %vm1632 = vweird.f32 %v1626
    %vm1633 = vmor %vm1631, %vm1632
    %v1634 = vsel %vm1633, %v1626, %v1630
    %v1635 = vand.u32 2147483647, %v1413
    %vm1636 = vcmp.eq.f32.partialorder %v1635, 8.507059e+37
    %v1637 = vand.u32 %v1413, 2147483648
    %v1638 = vor.u32 1.1754944e-38, %v1637
    %v1639 = vsel %vm1636, %v1638, %v1634
    %v1640 = vmul.f32 %v1381, %v1639
    %v1641 = vrcp.pop %v1415
    %v1642 = vmul.f32 %v1415, %v1641
    %v1643 = vsub.f32 1.0, %v1642
    %v1644 = vmul.f32 %v1641, %v1643
    %v1645 = vadd.f32 %v1641, %v1644
    %vm1646 = vweird.f32 %v1415
    %vm1647 = vweird.f32 %v1641
    %vm1648 = vmor %vm1646, %vm1647
    %v1649 = vsel %vm1648, %v1641, %v1645
    %v1650 = vand.u32 2147483647, %v1415
    %vm1651 = vcmp.eq.f32.partialorder %v1650, 8.507059e+37
    %v1652 = vand.u32 %v1415, 2147483648
    %v1653 = vor.u32 1.1754944e-38, %v1652
    %v1654 = vsel %vm1651, %v1653, %v1649
    %v1655 = vmul.f32 %v1383, %v1654
    %v1656 = vld [vmem:[#allocation8] sm:$0xff]
    %v1657 = vld [vmem:[#allocation8 + $0x8] sm:$0xff]
    %v1658 = vld [vmem:[#allocation8 + $0x10] sm:$0xff]
    %v1659 = vld [vmem:[#allocation8 + $0x18] sm:$0xff]
    %v1660 = vld [vmem:[#allocation8 + $0x20] sm:$0xff]
    %v1661 = vld [vmem:[#allocation8 + $0x28] sm:$0xff]
    %v1662 = vld [vmem:[#allocation8 + $0x30] sm:$0xff]
    %v1663 = vld [vmem:[#allocation8 + $0x38] sm:$0xff]
    %v1664 = vld [vmem:[#allocation8 + $0x40] sm:$0xff]
    %v1665 = vld [vmem:[#allocation8 + $0x48] sm:$0xff]
    %v1666 = vld [vmem:[#allocation8 + $0x50] sm:$0xff]
    %v1667 = vld [vmem:[#allocation8 + $0x58] sm:$0xff]
    %v1668 = vld [vmem:[#allocation8 + $0x60] sm:$0xff]
    %v1669 = vld [vmem:[#allocation8 + $0x68] sm:$0xff]
    %v1670 = vld [vmem:[#allocation8 + $0x70] sm:$0xff]
    %v1671 = vld [vmem:[#allocation8 + $0x78] sm:$0xff]
    %1672 = vmatpush.msra.mxu0 %v1671
    %1673 = vmatpush.msra.mxu0 %v1670
    %1674 = vmatpush.msra.mxu0 %v1669
    %1675 = vmatpush.msra.mxu0 %v1668
    %1676 = vmatpush.msra.mxu0 %v1667
    %1677 = vmatpush.msra.mxu0 %v1666
    %1678 = vmatpush.msra.mxu0 %v1665
    %1679 = vmatpush.msra.mxu0 %v1664
    %1680 = vmatpush.msra.mxu0 %v1663
    %1681 = vmatpush.msra.mxu0 %v1662
    %1682 = vmatpush.msra.mxu0 %v1661
    %1683 = vmatpush.msra.mxu0 %v1660
    %1684 = vmatpush.msra.mxu0 %v1659
    %1685 = vmatpush.msra.mxu0 %v1658
    %1686 = vmatpush.msra.mxu0 %v1657
    %1687 = vmatpush.msra.mxu0 %v1656
    %1688 = vmatmul.f32.gmra.mxu0 %v1430
    %v1689 = vpop.f32.mrf.mxu0
    %v1690 = vadd.f32 0.0, %v1689
    %1691 = vmatmul.f32.gmra.mxu0 %v1445
    %v1692 = vpop.f32.mrf.mxu0
    %v1693 = vadd.f32 0.0, %v1692
    %1694 = vmatmul.f32.gmra.mxu0 %v1460
    %v1695 = vpop.f32.mrf.mxu0
    %v1696 = vadd.f32 0.0, %v1695
    %1697 = vmatmul.f32.gmra.mxu0 %v1475
    %v1698 = vpop.f32.mrf.mxu0
    %v1699 = vadd.f32 0.0, %v1698
    %1700 = vmatmul.f32.gmra.mxu0 %v1490
    %v1701 = vpop.f32.mrf.mxu0
    %v1702 = vadd.f32 0.0, %v1701
    %1703 = vmatmul.f32.gmra.mxu0 %v1505
    %v1704 = vpop.f32.mrf.mxu0
    %v1705 = vadd.f32 0.0, %v1704
    %1706 = vmatmul.f32.gmra.mxu0 %v1520
    %v1707 = vpop.f32.mrf.mxu0
    %v1708 = vadd.f32 0.0, %v1707
    %1709 = vmatmul.f32.gmra.mxu0 %v1535
    %v1710 = vpop.f32.mrf.mxu0
    %v1711 = vadd.f32 0.0, %v1710
    %1712 = vmatmul.f32.gmra.mxu0 %v1550
    %v1713 = vpop.f32.mrf.mxu0
    %v1714 = vadd.f32 0.0, %v1713
    %1715 = vmatmul.f32.gmra.mxu0 %v1565
    %v1716 = vpop.f32.mrf.mxu0
    %v1717 = vadd.f32 0.0, %v1716
    %1718 = vmatmul.f32.gmra.mxu0 %v1580
    %v1719 = vpop.f32.mrf.mxu0
    %v1720 = vadd.f32 0.0, %v1719
    %1721 = vmatmul.f32.gmra.mxu0 %v1595
    %v1722 = vpop.f32.mrf.mxu0
    %v1723 = vadd.f32 0.0, %v1722
    %1724 = vmatmul.f32.gmra.mxu0 %v1610
    %v1725 = vpop.f32.mrf.mxu0
    %v1726 = vadd.f32 0.0, %v1725
    %1727 = vmatmul.f32.gmra.mxu0 %v1625
    %v1728 = vpop.f32.mrf.mxu0
    %v1729 = vadd.f32 0.0, %v1728
    %1730 = vmatmul.f32.gmra.mxu0 %v1640
    %v1731 = vpop.f32.mrf.mxu0
    %v1732 = vadd.f32 0.0, %v1731
    %1733 = vmatmul.f32.gmra.mxu0 %v1655
    %v1734 = vpop.f32.mrf.mxu0
    %v1735 = vadd.f32 0.0, %v1734
    %1736 = vdwg.mxu0
    %v1737 = vadd.f32 %v1690, %v1696
    %v1738 = vadd.f32 %v1693, %v1699
    %v1739 = vadd.f32 %v1737, %v1702
    %v1740 = vadd.f32 %v1738, %v1705
    %v1741 = vadd.f32 %v1739, %v1708
    %v1742 = vadd.f32 %v1740, %v1711
    %v1743 = vadd.f32 %v1741, %v1714
    %v1744 = vadd.f32 %v1742, %v1717
    %v1745 = vadd.f32 %v1743, %v1720
    %v1746 = vadd.f32 %v1744, %v1723
    %v1747 = vadd.f32 %v1745, %v1726
    %v1748 = vadd.f32 %v1746, %v1729
    %v1749 = vadd.f32 %v1747, %v1732
    %v1750 = vadd.f32 %v1748, %v1735
    %v1751 = vmul.f32 %v1749, 0.125
    %v1752 = vmul.f32 %v1750, 0.125
    %v1753 = vadd.f32 %v1078, %v1751
    %v1754 = vadd.f32 %v1081, %v1752
    %v1755 = vld [vmem:[#allocation14] sm:$0xff]
    %v1756 = vld [vmem:[#allocation14 + $0x8] sm:$0xff]
    %v1757 = vld [vmem:[#allocation14 + $0x10] sm:$0xff]
    %v1758 = vld [vmem:[#allocation14 + $0x18] sm:$0xff]
    %v1759 = vld [vmem:[#allocation14 + $0x20] sm:$0xff]
    %v1760 = vld [vmem:[#allocation14 + $0x28] sm:$0xff]
    %v1761 = vld [vmem:[#allocation14 + $0x30] sm:$0xff]
    %v1762 = vld [vmem:[#allocation14 + $0x38] sm:$0xff]
    %v1763 = vld [vmem:[#allocation14 + $0x40] sm:$0xff]
    %v1764 = vld [vmem:[#allocation14 + $0x48] sm:$0xff]
    %v1765 = vld [vmem:[#allocation14 + $0x50] sm:$0xff]
    %v1766 = vld [vmem:[#allocation14 + $0x58] sm:$0xff]
    %v1767 = vld [vmem:[#allocation14 + $0x60] sm:$0xff]
    %v1768 = vld [vmem:[#allocation14 + $0x68] sm:$0xff]
    %v1769 = vld [vmem:[#allocation14 + $0x70] sm:$0xff]
    %v1770 = vld [vmem:[#allocation14 + $0x78] sm:$0xff]
    %v1771 = vld [vmem:[%s18] sm:$0x1]
    %v1773 = vperm.slane %v1771, 0
    %1775 = vmatpush.msra.mxu0 %v1770
    %1776 = vmatpush.msra.mxu0 %v1769
    %1777 = vmatpush.msra.mxu0 %v1768
    %1778 = vmatpush.msra.mxu0 %v1767
    %1779 = vmatpush.msra.mxu0 %v1766
    %1780 = vmatpush.msra.mxu0 %v1765
    %1781 = vmatpush.msra.mxu0 %v1764
    %1782 = vmatpush.msra.mxu0 %v1763
    %1783 = vmatpush.msra.mxu0 %v1762
    %1784 = vmatpush.msra.mxu0 %v1761
    %1785 = vmatpush.msra.mxu0 %v1760
    %1786 = vmatpush.msra.mxu0 %v1759
    %1787 = vmatpush.msra.mxu0 %v1758
    %1788 = vmatpush.msra.mxu0 %v1757
    %1789 = vmatpush.msra.mxu0 %v1756
    %1790 = vmatpush.msra.mxu0 %v1755
    %1791 = vmatmul.f32.gmra.mxu0 %v1753
    %v1792 = vpop.f32.mrf.mxu0
    %v1793 = vadd.f32 %v1773, %v1792
    %1794 = vmatmul.f32.gmra.mxu0 %v1754
    %v1795 = vpop.f32.mrf.mxu0
    %v1796 = vadd.f32 %v1773, %v1795
    %1797 = vdwg.mxu0
    %v1798 = vmax.f32 %v1793, 0.0
    %v1799 = vmax.f32 %v1796, 0.0
    %v1800 = vld [vmem:[%s19] sm:$0x1]
    %v1802 = vperm.slane %v1800, 0
    %v1804 = vmul.f32 %v1798, %v1802
    %v1805 = vmul.f32 %v1799, %v1802
    %1806 = vadd.xlane.f32.xlu0 %v1804
    %v1807 = vpop.xlane.xlu0 %1806
    %1808 = vadd.xlane.f32.xlu0 %v1805
    %v1809 = vpop.xlane.xlu0 %1808
    %v1810 = vld [vmem:[#allocation2] sm:$0x1]
    %v1812 = vperm.slane %v1810, 0
    %v1814 = vadd.f32 %v1807, %v1812
    %v1815 = vadd.f32 %v1809, %v1812
    %vm1816 = vcmask 7168
    %v1817 = vsel %vm1816, %v1814, -inf
    %v1818 = vsel %vm1816, %v1815, -inf
    %v1819 = vmax.f32 %v1817, %v1818
    %v1820 = vrot.slane %v1819, 4
    %v1821 = vmax.f32 %v1819, %v1820
    %v1822 = vrot.slane %v1821, 2
    %v1823 = vmax.f32 %v1821, %v1822
    %v1824 = vrot.slane %v1823, 1
    %v1825 = vmax.f32 %v1823, %v1824
    %v1826 = vsub.f32 %v1814, %v1825
    %v1827 = vsub.f32 %v1815, %v1825
    %v1828 = vmul.f32 %v1826, 1.442695
    %v1829 = vpow.pop %v1828
    %v1830 = vmul.f32 %v1827, 1.442695
    %v1831 = vpow.pop %v1830
    %v1832 = vsel %vm1816, %v1829, 0.0
    %v1833 = vsel %vm1816, %v1831, 0.0
    %v1834 = vadd.f32 %v1832, %v1833
    %v1835 = vrot.slane %v1834, 4
    %v1836 = vadd.f32 %v1834, %v1835
    %v1837 = vrot.slane %v1836, 2
    %v1838 = vadd.f32 %v1836, %v1837
    %v1839 = vrot.slane %v1838, 1
    %v1840 = vadd.f32 %v1838, %v1839
    %v1841 = vrcp.pop %v1840
    %v1842 = vmul.f32 %v1840, %v1841
    %v1843 = vsub.f32 1.0, %v1842
    %v1844 = vmul.f32 %v1841, %v1843
    %v1845 = vadd.f32 %v1841, %v1844
    %vm1846 = vweird.f32 %v1840
    %vm1847 = vweird.f32 %v1841
    %vm1848 = vmor %vm1846, %vm1847
    %v1849 = vsel %vm1848, %v1841, %v1845
    %v1850 = vand.u32 2147483647, %v1840
    %vm1851 = vcmp.eq.f32.partialorder %v1850, 8.507059e+37
    %v1852 = vand.u32 %v1840, 2147483648
    %v1853 = vor.u32 1.1754944e-38, %v1852
    %v1854 = vsel %vm1851, %v1853, %v1849
    %v1855 = vmul.f32 %v1829, %v1854
    %v1856 = vmul.f32 %v1831, %v1854
    %1858 = vset.pattern.permute.xlu0 0
    %1859 = vperm.xlu0 %1858, %v1855
    %v1860 = vpop.permute.xlu0 %1859
    %1863 = vset.pattern.permute.xlu0 0
    %1864 = vperm.xlu0 %1863, %v1856
    %v1865 = vpop.permute.xlu0 %1864
    %v1867 = vmul.f32 %v1753, %v1860
    %v1868 = vmul.f32 %v1754, %v1865
    %1869 = vst [vmem:[%s21] sm:$0xff] %v1867
    %1870 = vst [vmem:[%s21 + $0x8] sm:$0xff] %v1868
    %1871 = vst.msk [vmem:[%s22] sm:$0xff] %vm1816, %v1814
    %1872 = vst.msk [vmem:[%s22 + $0x8] sm:$0xff] %vm1816, %v1815
    // Predicated region
    $region118: #{enhanced_meta_learning_forward.4} parent=1 // pred_check
      _
    $region119: #{enhanced_meta_learning_forward.4} parent=1 // pred_check_branch
      %1874 = sbr.rel (0) target = $region121
    $region120: #{enhanced_meta_learning_forward.4} parent=1 // pred_region
      _
    $region121: #{enhanced_meta_learning_forward.4} parent=1 // pred_fallthru
      _
    // Predicated region
    $region122: #{enhanced_meta_learning_forward.4} parent=1 // pred_check
      _
    $region123: #{enhanced_meta_learning_forward.4} parent=1 // pred_check_branch
      %1876 = sbr.rel (0) target = $region125
    $region124: #{enhanced_meta_learning_forward.4} parent=1 // pred_region
      _
    $region125: #{enhanced_meta_learning_forward.4} parent=1 // pred_fallthru
      _
    // Predicated region
    $region126: #{enhanced_meta_learning_forward.4} parent=1 // pred_check
      _
    $region127: #{enhanced_meta_learning_forward.4} parent=1 // pred_check_branch
      %1878 = sbr.rel (0) target = $region129
    $region128: #{enhanced_meta_learning_forward.4} parent=1 // pred_region
      _
    $region129: #{enhanced_meta_learning_forward.4} parent=1 // pred_fallthru
      _
    // Predicated region
    $region130: #{enhanced_meta_learning_forward.4} parent=1 // pred_check
      _
    $region131: #{enhanced_meta_learning_forward.4} parent=1 // pred_check_branch
      %1880 = sbr.rel (0) target = $region133
    $region132: #{enhanced_meta_learning_forward.4} parent=1 // pred_region
      _
    $region133: #{enhanced_meta_learning_forward.4} parent=1 // pred_fallthru
      _
    %1881 = vsyncpa [#allocation4], 1
    %1882 = vsyncpa [#allocation6], 1
    %1883 = vsyncpa [#allocation9], 1
    %1884 = vsyncpa [#allocation12], 1
    %1885 = vsyncpa [#allocation15], 1

// kernel: enhanced_meta_learning_forward.3
$region0: #{enhanced_meta_learning_forward.3}
  #allocation0 [shape = 'u32[]', space=smem, size = 0x4, offset = 0x4, fixed_abs, tag = 'smem constant byte address 0x4 - core index']
  #allocation1 [shape = 'u32[72,128]{1,0:T(1,128)}', space=vmem, size = 0x9000, scoped, tag = 'internal scratch']
  #allocation2 [shape = 'f32[1,1]{1,0:T(1,128)S(1)}', space=vmem, size = 0x200, scoped, tag = 'scoped memory for enhanced_meta_learning_forward.3']
  %s0 = inlined_call_operand.vmem [shape: f32[16,128], index: 0, kind: input, shape index: {}]
  %s1 = inlined_call_operand.hbm [shape: f32[4,128,256], index: 1, kind: input, shape index: {}]
  %s2 = inlined_call_operand.hbm [shape: f32[256,128], index: 2, kind: input, shape index: {}]
  %s3 = inlined_call_operand.vmem [shape: f32[1,128], index: 3, kind: input, shape index: {}]
  %s4 = inlined_call_operand.vmem [shape: f32[128,4], index: 4, kind: input, shape index: {}]
  %s5 = inlined_call_operand.vmem [shape: f32[1,4], index: 5, kind: input, shape index: {}]
  %s6 = inlined_call_operand.hbm [shape: f32[128,512], index: 6, kind: input, shape index: {}]
  %s7 = inlined_call_operand.vmem [shape: f32[1,512], index: 7, kind: input, shape index: {}]
  %s8 = inlined_call_operand.vmem [shape: f32[128,128], index: 8, kind: input, shape index: {}]
  %s9 = inlined_call_operand.vmem [shape: f32[1,128], index: 9, kind: input, shape index: {}]
  %s10 = inlined_call_operand.vmem [shape: f32[128,128], index: 10, kind: input, shape index: {}]
  %s11 = inlined_call_operand.vmem [shape: f32[8,128], index: 11, kind: input, shape index: {}]
  %s12 = inlined_call_operand.hbm [shape: f32[128,128], index: 12, kind: input, shape index: {}]
  %s13 = inlined_call_operand.hbm [shape: f32[128,128], index: 13, kind: input, shape index: {}]
  %s14 = inlined_call_operand.vmem [shape: f32[1,128], index: 14, kind: input, shape index: {}]
  %s15 = inlined_call_operand.hbm [shape: f32[128,128], index: 15, kind: input, shape index: {}]
  %s16 = inlined_call_operand.vmem [shape: f32[1,128], index: 16, kind: input, shape index: {}]
  %s17 = inlined_call_operand.hbm [shape: f32[128,128], index: 17, kind: input, shape index: {}]
  %s18 = inlined_call_operand.vmem [shape: f32[1,128], index: 18, kind: input, shape index: {}]
  %s19 = inlined_call_operand.vmem [shape: f32[1,128], index: 19, kind: input, shape index: {}]
  %s20 = inlined_call_operand.<no memory space> [shape: f32[1,1], index: 20, kind: input, shape index: {}]
  %s21 = inlined_call_operand.vmem [shape: f32[16,128], index: 21, kind: output, shape index: {0}]
  %s22 = inlined_call_operand.vmem [shape: f32[16,1], index: 22, kind: output, shape index: {1}]
  %23 = xla_tuple %s21, %s22
  %s24 = sld [smem:[#allocation0]]
  $region130: #{enhanced_meta_learning_forward.3} parent=0
    _
  %s26 = ssub.s32 1, %s24
  %s27 = scalar_select 0, %s26, %s24
  %v28 = vstv %s20
  %29 = vst [vmem:[#allocation2] sm:$0x1] %v28
  $region1: #{enhanced_meta_learning_forward.3} parent=0
    #allocation3 [shape = 'u8[524288]{0}', space=vmem, size = 0x80000, scoped, tag = 'input window, operand 1, single buffered']
    #allocation4 [shape = 's32[1]{0}', space=sflag, size = 0x4, scoped, tag = 'scoped memory for enhanced_meta_learning_forward.3']
    #allocation5 [shape = 'u8[131072]{0}', space=vmem, size = 0x20000, scoped, tag = 'input window, operand 2, single buffered']
    #allocation6 [shape = 's32[1]{0}', space=sflag, size = 0x4, scoped, tag = 'scoped memory for enhanced_meta_learning_forward.3']
    #allocation7 [shape = 'u8[262144]{0}', space=vmem, size = 0x40000, scoped, tag = 'input window, operand 6, single buffered']
    #allocation8 [shape = 'u8[65536]{0}', space=vmem, size = 0x10000, scoped, tag = 'input window, operand 12, single buffered']
    #allocation9 [shape = 's32[1]{0}', space=sflag, size = 0x4, scoped, tag = 'scoped memory for enhanced_meta_learning_forward.3']
    #allocation10 [shape = 'u8[65536]{0}', space=vmem, size = 0x10000, scoped, tag = 'input window, operand 13, single buffered']
    #allocation11 [shape = 'u8[65536]{0}', space=vmem, size = 0x10000, scoped, tag = 'input window, operand 15, single buffered']
    #allocation12 [shape = 's32[1]{0}', space=sflag, size = 0x4, scoped, tag = 'scoped memory for enhanced_meta_learning_forward.3']
    #allocation13 [shape = 'u8[65536]{0}', space=vmem, size = 0x10000, scoped, tag = 'input window, operand 17, single buffered']
    %30 = vsyncpa [#allocation4], 0
    %31 = vsyncpa [#allocation6], 0
    %32 = vsyncpa [#allocation9], 0
    %33 = vsyncpa [#allocation12], 0
    // Predicated region
    $region2: #{enhanced_meta_learning_forward.3} parent=1 // pred_check
      _
    $region3: #{enhanced_meta_learning_forward.3} parent=1 // pred_check_branch
      %35 = sbr.rel (0) target = $region5
    $region4: #{enhanced_meta_learning_forward.3} parent=1 // pred_region
      _
    $region5: #{enhanced_meta_learning_forward.3} parent=1 // pred_fallthru
      _
    // Predicated region
    $region6: #{enhanced_meta_learning_forward.3} parent=1 // pred_check
      _
    $region7: #{enhanced_meta_learning_forward.3} parent=1 // pred_check_branch
      %37 = sbr.rel (0) target = $region9
    $region8: #{enhanced_meta_learning_forward.3} parent=1 // pred_region
      %39 = vsyncadd [#allocation4], 0
      %s40 = sshll.u32 %s1, 4
      %s41 = int_to_ptr.hbm [resolvable:$true] %s40
      %s42 = sshll.u32 [#allocation3], 4
      %s43 = int_to_ptr.vmem [resolvable:$true] %s42
      %48 = dma.hbm_to_vmem [thread:$0]  %s41, 16384, %s43, [#allocation4], 256, 256, 16
    $region9: #{enhanced_meta_learning_forward.3} parent=1 // pred_fallthru
      _
    // Predicated region
    $region10: #{enhanced_meta_learning_forward.3} parent=1 // pred_check
      _
    $region11: #{enhanced_meta_learning_forward.3} parent=1 // pred_check_branch
      %50 = sbr.rel (0) target = $region13
    $region12: #{enhanced_meta_learning_forward.3} parent=1 // pred_region
      %52 = vsyncadd [#allocation6], 0
      %s53 = sshll.u32 %s2, 4
      %s54 = int_to_ptr.hbm [resolvable:$true] %s53
      %s55 = sshll.u32 [#allocation5], 4
      %s56 = int_to_ptr.vmem [resolvable:$true] %s55
      %61 = dma.hbm_to_vmem [thread:$0]  %s54, 4096, %s56, [#allocation6], 128, 128, 8
    $region13: #{enhanced_meta_learning_forward.3} parent=1 // pred_fallthru
      _
    // Predicated region
    $region14: #{enhanced_meta_learning_forward.3} parent=1 // pred_check
      _
    $region15: #{enhanced_meta_learning_forward.3} parent=1 // pred_check_branch
      %63 = sbr.rel (0) target = $region17
    $region16: #{enhanced_meta_learning_forward.3} parent=1 // pred_region
      _
    $region17: #{enhanced_meta_learning_forward.3} parent=1 // pred_fallthru
      _
    // Predicated region
    $region18: #{enhanced_meta_learning_forward.3} parent=1 // pred_check
      _
    $region19: #{enhanced_meta_learning_forward.3} parent=1 // pred_check_branch
      %65 = sbr.rel (0) target = $region21
    $region20: #{enhanced_meta_learning_forward.3} parent=1 // pred_region
      _
    $region21: #{enhanced_meta_learning_forward.3} parent=1 // pred_fallthru
      _
    // Predicated region
    $region22: #{enhanced_meta_learning_forward.3} parent=1 // pred_check
      _
    $region23: #{enhanced_meta_learning_forward.3} parent=1 // pred_check_branch
      %67 = sbr.rel (0) target = $region25
    $region24: #{enhanced_meta_learning_forward.3} parent=1 // pred_region
      _
    $region25: #{enhanced_meta_learning_forward.3} parent=1 // pred_fallthru
      _
    // Predicated region
    $region26: #{enhanced_meta_learning_forward.3} parent=1 // pred_check
      _
    $region27: #{enhanced_meta_learning_forward.3} parent=1 // pred_check_branch
      %69 = sbr.rel (0) target = $region29
    $region28: #{enhanced_meta_learning_forward.3} parent=1 // pred_region
      %71 = vsyncadd [#allocation6], 0
      %s72 = sshll.u32 %s6, 4
      %s73 = int_to_ptr.hbm [resolvable:$true] %s72
      %s74 = sshll.u32 [#allocation7], 4
      %s75 = int_to_ptr.vmem [resolvable:$true] %s74
      %80 = dma.hbm_to_vmem [thread:$0]  %s73, 8192, %s75, [#allocation6], 512, 512, 32
    $region29: #{enhanced_meta_learning_forward.3} parent=1 // pred_fallthru
      _
    // Predicated region
    $region30: #{enhanced_meta_learning_forward.3} parent=1 // pred_check
      _
    $region31: #{enhanced_meta_learning_forward.3} parent=1 // pred_check_branch
      %82 = sbr.rel (0) target = $region33
    $region32: #{enhanced_meta_learning_forward.3} parent=1 // pred_region
      _
    $region33: #{enhanced_meta_learning_forward.3} parent=1 // pred_fallthru
      _
    // Predicated region
    $region34: #{enhanced_meta_learning_forward.3} parent=1 // pred_check
      _
    $region35: #{enhanced_meta_learning_forward.3} parent=1 // pred_check_branch
      %84 = sbr.rel (0) target = $region37
    $region36: #{enhanced_meta_learning_forward.3} parent=1 // pred_region
      _
    $region37: #{enhanced_meta_learning_forward.3} parent=1 // pred_fallthru
      _
    // Predicated region
    $region38: #{enhanced_meta_learning_forward.3} parent=1 // pred_check
      _
    $region39: #{enhanced_meta_learning_forward.3} parent=1 // pred_check_branch
      %86 = sbr.rel (0) target = $region41
    $region40: #{enhanced_meta_learning_forward.3} parent=1 // pred_region
      _
    $region41: #{enhanced_meta_learning_forward.3} parent=1 // pred_fallthru
      _
    // Predicated region
    $region42: #{enhanced_meta_learning_forward.3} parent=1 // pred_check
      _
    $region43: #{enhanced_meta_learning_forward.3} parent=1 // pred_check_branch
      %88 = sbr.rel (0) target = $region45
    $region44: #{enhanced_meta_learning_forward.3} parent=1 // pred_region
      _
    $region45: #{enhanced_meta_learning_forward.3} parent=1 // pred_fallthru
      _
    // Predicated region
    $region46: #{enhanced_meta_learning_forward.3} parent=1 // pred_check
      _
    $region47: #{enhanced_meta_learning_forward.3} parent=1 // pred_check_branch
      %90 = sbr.rel (0) target = $region49
    $region48: #{enhanced_meta_learning_forward.3} parent=1 // pred_region
      _
    $region49: #{enhanced_meta_learning_forward.3} parent=1 // pred_fallthru
      _
    // Predicated region
    $region50: #{enhanced_meta_learning_forward.3} parent=1 // pred_check
      _
    $region51: #{enhanced_meta_learning_forward.3} parent=1 // pred_check_branch
      %92 = sbr.rel (0) target = $region53
    $region52: #{enhanced_meta_learning_forward.3} parent=1 // pred_region
      %94 = vsyncadd [#allocation9], 0
      %s95 = sshll.u32 %s12, 4
      %s96 = int_to_ptr.hbm [resolvable:$true] %s95
      %s97 = sshll.u32 [#allocation8], 4
      %s98 = int_to_ptr.vmem [resolvable:$true] %s97
      %103 = dma.hbm_to_vmem [thread:$0]  %s96, 2048, %s98, [#allocation9], 128, 128, 8
    $region53: #{enhanced_meta_learning_forward.3} parent=1 // pred_fallthru
      _
    // Predicated region
    $region54: #{enhanced_meta_learning_forward.3} parent=1 // pred_check
      _
    $region55: #{enhanced_meta_learning_forward.3} parent=1 // pred_check_branch
      %105 = sbr.rel (0) target = $region57
    $region56: #{enhanced_meta_learning_forward.3} parent=1 // pred_region
      %107 = vsyncadd [#allocation9], 0
      %s108 = sshll.u32 %s13, 4
      %s109 = int_to_ptr.hbm [resolvable:$true] %s108
      %s110 = sshll.u32 [#allocation10], 4
      %s111 = int_to_ptr.vmem [resolvable:$true] %s110
      %116 = dma.hbm_to_vmem [thread:$0]  %s109, 2048, %s111, [#allocation9], 128, 128, 8
    $region57: #{enhanced_meta_learning_forward.3} parent=1 // pred_fallthru
      _
    // Predicated region
    $region58: #{enhanced_meta_learning_forward.3} parent=1 // pred_check
      _
    $region59: #{enhanced_meta_learning_forward.3} parent=1 // pred_check_branch
      %118 = sbr.rel (0) target = $region61
    $region60: #{enhanced_meta_learning_forward.3} parent=1 // pred_region
      _
    $region61: #{enhanced_meta_learning_forward.3} parent=1 // pred_fallthru
      _
    // Predicated region
    $region62: #{enhanced_meta_learning_forward.3} parent=1 // pred_check
      _
    $region63: #{enhanced_meta_learning_forward.3} parent=1 // pred_check_branch
      %120 = sbr.rel (0) target = $region65
    $region64: #{enhanced_meta_learning_forward.3} parent=1 // pred_region
      %122 = vsyncadd [#allocation12], 0
      %s123 = sshll.u32 %s15, 4
      %s124 = int_to_ptr.hbm [resolvable:$true] %s123
      %s125 = sshll.u32 [#allocation11], 4
      %s126 = int_to_ptr.vmem [resolvable:$true] %s125
      %131 = dma.hbm_to_vmem [thread:$0]  %s124, 2048, %s126, [#allocation12], 128, 128, 8
    $region65: #{enhanced_meta_learning_forward.3} parent=1 // pred_fallthru
      _
    // Predicated region
    $region66: #{enhanced_meta_learning_forward.3} parent=1 // pred_check
      _
    $region67: #{enhanced_meta_learning_forward.3} parent=1 // pred_check_branch
      %133 = sbr.rel (0) target = $region69
    $region68: #{enhanced_meta_learning_forward.3} parent=1 // pred_region
      _
    $region69: #{enhanced_meta_learning_forward.3} parent=1 // pred_fallthru
      _
    // Predicated region
    $region70: #{enhanced_meta_learning_forward.3} parent=1 // pred_check
      _
    $region71: #{enhanced_meta_learning_forward.3} parent=1 // pred_check_branch
      %135 = sbr.rel (0) target = $region73
    $region72: #{enhanced_meta_learning_forward.3} parent=1 // pred_region
      %137 = vsyncadd [#allocation12], 0
      %s138 = sshll.u32 %s17, 4
      %s139 = int_to_ptr.hbm [resolvable:$true] %s138
      %s140 = sshll.u32 [#allocation13], 4
      %s141 = int_to_ptr.vmem [resolvable:$true] %s140
      %146 = dma.hbm_to_vmem [thread:$0]  %s139, 2048, %s141, [#allocation12], 128, 128, 8
    $region73: #{enhanced_meta_learning_forward.3} parent=1 // pred_fallthru
      _
    // Predicated region
    $region74: #{enhanced_meta_learning_forward.3} parent=1 // pred_check
      _
    $region75: #{enhanced_meta_learning_forward.3} parent=1 // pred_check_branch
      %148 = sbr.rel (0) target = $region77
    $region76: #{enhanced_meta_learning_forward.3} parent=1 // pred_region
      _
    $region77: #{enhanced_meta_learning_forward.3} parent=1 // pred_fallthru
      _
    // Predicated region
    $region78: #{enhanced_meta_learning_forward.3} parent=1 // pred_check
      _
    $region79: #{enhanced_meta_learning_forward.3} parent=1 // pred_check_branch
      %150 = sbr.rel (0) target = $region81
    $region80: #{enhanced_meta_learning_forward.3} parent=1 // pred_region
      _
    $region81: #{enhanced_meta_learning_forward.3} parent=1 // pred_fallthru
      _
    // Predicated region
    $region82: #{enhanced_meta_learning_forward.3} parent=1 // pred_check
      _
    $region83: #{enhanced_meta_learning_forward.3} parent=1 // pred_check_branch
      %152 = sbr.rel (0) target = $region85
    $region84: #{enhanced_meta_learning_forward.3} parent=1 // pred_region
      _
    $region85: #{enhanced_meta_learning_forward.3} parent=1 // pred_fallthru
      _
    // Predicated region
    $region86: #{enhanced_meta_learning_forward.3} parent=1 // pred_check
      _
    $region87: #{enhanced_meta_learning_forward.3} parent=1 // pred_check_branch
      %154 = sbr.rel (0) target = $region89
    $region88: #{enhanced_meta_learning_forward.3} parent=1 // pred_region
      %156 = dma.done [#allocation4], 16384
    $region89: #{enhanced_meta_learning_forward.3} parent=1 // pred_fallthru
      _
    // Predicated region
    $region90: #{enhanced_meta_learning_forward.3} parent=1 // pred_check
      _
    $region91: #{enhanced_meta_learning_forward.3} parent=1 // pred_check_branch
      %158 = sbr.rel (0) target = $region93
    $region92: #{enhanced_meta_learning_forward.3} parent=1 // pred_region
      %160 = dma.done [#allocation6], 4096
    $region93: #{enhanced_meta_learning_forward.3} parent=1 // pred_fallthru
      _
    // Predicated region
    $region94: #{enhanced_meta_learning_forward.3} parent=1 // pred_check
      _
    $region95: #{enhanced_meta_learning_forward.3} parent=1 // pred_check_branch
      %162 = sbr.rel (0) target = $region97
    $region96: #{enhanced_meta_learning_forward.3} parent=1 // pred_region
      %164 = dma.done [#allocation6], 8192
    $region97: #{enhanced_meta_learning_forward.3} parent=1 // pred_fallthru
      _
    // Predicated region
    $region98: #{enhanced_meta_learning_forward.3} parent=1 // pred_check
      _
    $region99: #{enhanced_meta_learning_forward.3} parent=1 // pred_check_branch
      %166 = sbr.rel (0) target = $region101
    $region100: #{enhanced_meta_learning_forward.3} parent=1 // pred_region
      %168 = dma.done [#allocation9], 2048
    $region101: #{enhanced_meta_learning_forward.3} parent=1 // pred_fallthru
      _
    // Predicated region
    $region102: #{enhanced_meta_learning_forward.3} parent=1 // pred_check
      _
    $region103: #{enhanced_meta_learning_forward.3} parent=1 // pred_check_branch
      %170 = sbr.rel (0) target = $region105
    $region104: #{enhanced_meta_learning_forward.3} parent=1 // pred_region
      %172 = dma.done [#allocation9], 2048
    $region105: #{enhanced_meta_learning_forward.3} parent=1 // pred_fallthru
      _
    // Predicated region
    $region106: #{enhanced_meta_learning_forward.3} parent=1 // pred_check
      _
    $region107: #{enhanced_meta_learning_forward.3} parent=1 // pred_check_branch
      %174 = sbr.rel (0) target = $region109
    $region108: #{enhanced_meta_learning_forward.3} parent=1 // pred_region
      %176 = dma.done [#allocation12], 2048
    $region109: #{enhanced_meta_learning_forward.3} parent=1 // pred_fallthru
      _
    // Predicated region
    $region110: #{enhanced_meta_learning_forward.3} parent=1 // pred_check
      _
    $region111: #{enhanced_meta_learning_forward.3} parent=1 // pred_check_branch
      %178 = sbr.rel (0) target = $region113
    $region112: #{enhanced_meta_learning_forward.3} parent=1 // pred_region
      %180 = dma.done [#allocation12], 2048
    $region113: #{enhanced_meta_learning_forward.3} parent=1 // pred_fallthru
      _
    %v181 = vld [vmem:[%s0] sm:$0xff]
    %v182 = vld [vmem:[%s0 + $0x8] sm:$0xff]
    %v183 = vld [vmem:[#allocation3] sm:$0xff]
    %v184 = vld [vmem:[#allocation3 + $0x8] sm:$0xff]
    %v185 = vld [vmem:[#allocation3 + $0x10] sm:$0xff]
    %v186 = vld [vmem:[#allocation3 + $0x18] sm:$0xff]
    %v187 = vld [vmem:[#allocation3 + $0x20] sm:$0xff]
    %v188 = vld [vmem:[#allocation3 + $0x28] sm:$0xff]
    %v189 = vld [vmem:[#allocation3 + $0x30] sm:$0xff]
    %v190 = vld [vmem:[#allocation3 + $0x38] sm:$0xff]
    %v191 = vld [vmem:[#allocation3 + $0x40] sm:$0xff]
    %v192 = vld [vmem:[#allocation3 + $0x48] sm:$0xff]
    %v193 = vld [vmem:[#allocation3 + $0x50] sm:$0xff]
    %v194 = vld [vmem:[#allocation3 + $0x58] sm:$0xff]
    %v195 = vld [vmem:[#allocation3 + $0x60] sm:$0xff]
    %v196 = vld [vmem:[#allocation3 + $0x68] sm:$0xff]
    %v197 = vld [vmem:[#allocation3 + $0x70] sm:$0xff]
    %v198 = vld [vmem:[#allocation3 + $0x78] sm:$0xff]
    %v199 = vld [vmem:[#allocation3 + $0x80] sm:$0xff]
    %v200 = vld [vmem:[#allocation3 + $0x88] sm:$0xff]
    %v201 = vld [vmem:[#allocation3 + $0x90] sm:$0xff]
    %v202 = vld [vmem:[#allocation3 + $0x98] sm:$0xff]
    %v203 = vld [vmem:[#allocation3 + $0xa0] sm:$0xff]
    %v204 = vld [vmem:[#allocation3 + $0xa8] sm:$0xff]
    %v205 = vld [vmem:[#allocation3 + $0xb0] sm:$0xff]
    %v206 = vld [vmem:[#allocation3 + $0xb8] sm:$0xff]
    %v207 = vld [vmem:[#allocation3 + $0xc0] sm:$0xff]
    %v208 = vld [vmem:[#allocation3 + $0xc8] sm:$0xff]
    %v209 = vld [vmem:[#allocation3 + $0xd0] sm:$0xff]
    %v210 = vld [vmem:[#allocation3 + $0xd8] sm:$0xff]
    %v211 = vld [vmem:[#allocation3 + $0xe0] sm:$0xff]
    %v212 = vld [vmem:[#allocation3 + $0xe8] sm:$0xff]
    %v213 = vld [vmem:[#allocation3 + $0xf0] sm:$0xff]
    %v214 = vld [vmem:[#allocation3 + $0xf8] sm:$0xff]
    %215 = vmatpush.msra.mxu0 %v213
    %216 = vmatpush.msra.mxu0 %v211
    %217 = vmatpush.msra.mxu0 %v209
    %218 = vmatpush.msra.mxu0 %v207
    %219 = vmatpush.msra.mxu0 %v205
    %220 = vmatpush.msra.mxu0 %v203
    %221 = vmatpush.msra.mxu0 %v201
    %222 = vmatpush.msra.mxu0 %v199
    %223 = vmatpush.msra.mxu0 %v197
    %224 = vmatpush.msra.mxu0 %v195
    %225 = vmatpush.msra.mxu0 %v193
    %226 = vmatpush.msra.mxu0 %v191
    %227 = vmatpush.msra.mxu0 %v189
    %228 = vmatpush.msra.mxu0 %v187
    %229 = vmatpush.msra.mxu0 %v185
    %230 = vmatpush.msra.mxu0 %v183
    %231 = vmatmul.f32.gmra.mxu0 %v181
    %v232 = vpop.f32.mrf.mxu0
    %v233 = vadd.f32 0.0, %v232
    %234 = vmatmul.f32.gmra.mxu0 %v182
    %v235 = vpop.f32.mrf.mxu0
    %v236 = vadd.f32 0.0, %v235
    %237 = vdwg.mxu0
    %238 = vmatpush.msra.mxu0 %v214
    %239 = vmatpush.msra.mxu0 %v212
    %240 = vmatpush.msra.mxu0 %v210
    %241 = vmatpush.msra.mxu0 %v208
    %242 = vmatpush.msra.mxu0 %v206
    %243 = vmatpush.msra.mxu0 %v204
    %244 = vmatpush.msra.mxu0 %v202
    %245 = vmatpush.msra.mxu0 %v200
    %246 = vmatpush.msra.mxu0 %v198
    %247 = vmatpush.msra.mxu0 %v196
    %248 = vmatpush.msra.mxu0 %v194
    %249 = vmatpush.msra.mxu0 %v192
    %250 = vmatpush.msra.mxu0 %v190
    %251 = vmatpush.msra.mxu0 %v188
    %252 = vmatpush.msra.mxu0 %v186
    %253 = vmatpush.msra.mxu0 %v184
    %254 = vmatmul.f32.gmra.mxu0 %v181
    %v255 = vpop.f32.mrf.mxu0
    %v256 = vadd.f32 0.0, %v255
    %257 = vmatmul.f32.gmra.mxu0 %v182
    %v258 = vpop.f32.mrf.mxu0
    %v259 = vadd.f32 0.0, %v258
    %260 = vdwg.mxu0
    %v261 = vld [vmem:[#allocation5] sm:$0xff]
    %v262 = vld [vmem:[#allocation5 + $0x8] sm:$0xff]
    %v263 = vld [vmem:[#allocation5 + $0x10] sm:$0xff]
    %v264 = vld [vmem:[#allocation5 + $0x18] sm:$0xff]
    %v265 = vld [vmem:[#allocation5 + $0x20] sm:$0xff]
    %v266 = vld [vmem:[#allocation5 + $0x28] sm:$0xff]
    %v267 = vld [vmem:[#allocation5 + $0x30] sm:$0xff]
    %v268 = vld [vmem:[#allocation5 + $0x38] sm:$0xff]
    %v269 = vld [vmem:[#allocation5 + $0x40] sm:$0xff]
    %v270 = vld [vmem:[#allocation5 + $0x48] sm:$0xff]
    %v271 = vld [vmem:[#allocation5 + $0x50] sm:$0xff]
    %v272 = vld [vmem:[#allocation5 + $0x58] sm:$0xff]
    %v273 = vld [vmem:[#allocation5 + $0x60] sm:$0xff]
    %v274 = vld [vmem:[#allocation5 + $0x68] sm:$0xff]
    %v275 = vld [vmem:[#allocation5 + $0x70] sm:$0xff]
    %v276 = vld [vmem:[#allocation5 + $0x78] sm:$0xff]
    %v277 = vld [vmem:[#allocation5 + $0x80] sm:$0xff]
    %v278 = vld [vmem:[#allocation5 + $0x88] sm:$0xff]
    %v279 = vld [vmem:[#allocation5 + $0x90] sm:$0xff]
    %v280 = vld [vmem:[#allocation5 + $0x98] sm:$0xff]
    %v281 = vld [vmem:[#allocation5 + $0xa0] sm:$0xff]
    %v282 = vld [vmem:[#allocation5 + $0xa8] sm:$0xff]
    %v283 = vld [vmem:[#allocation5 + $0xb0] sm:$0xff]
    %v284 = vld [vmem:[#allocation5 + $0xb8] sm:$0xff]
    %v285 = vld [vmem:[#allocation5 + $0xc0] sm:$0xff]
    %v286 = vld [vmem:[#allocation5 + $0xc8] sm:$0xff]
    %v287 = vld [vmem:[#allocation5 + $0xd0] sm:$0xff]
    %v288 = vld [vmem:[#allocation5 + $0xd8] sm:$0xff]
    %v289 = vld [vmem:[#allocation5 + $0xe0] sm:$0xff]
    %v290 = vld [vmem:[#allocation5 + $0xe8] sm:$0xff]
    %v291 = vld [vmem:[#allocation5 + $0xf0] sm:$0xff]
    %v292 = vld [vmem:[#allocation5 + $0xf8] sm:$0xff]
    %v293 = vld [vmem:[%s3] sm:$0x1]
    %v295 = vperm.slane %v293, 0
    %297 = vmatpush.msra.mxu0 %v276
    %298 = vmatpush.msra.mxu0 %v275
    %299 = vmatpush.msra.mxu0 %v274
    %300 = vmatpush.msra.mxu0 %v273
    %301 = vmatpush.msra.mxu0 %v272
    %302 = vmatpush.msra.mxu0 %v271
    %303 = vmatpush.msra.mxu0 %v270
    %304 = vmatpush.msra.mxu0 %v269
    %305 = vmatpush.msra.mxu0 %v268
    %306 = vmatpush.msra.mxu0 %v267
    %307 = vmatpush.msra.mxu0 %v266
    %308 = vmatpush.msra.mxu0 %v265
    %309 = vmatpush.msra.mxu0 %v264
    %310 = vmatpush.msra.mxu0 %v263
    %311 = vmatpush.msra.mxu0 %v262
    %312 = vmatpush.msra.mxu0 %v261
    %313 = vmatmul.f32.gmra.mxu0 %v233
    %v314 = vpop.f32.mrf.mxu0
    %v315 = vadd.f32 %v295, %v314
    %316 = vmatmul.f32.gmra.mxu0 %v236
    %v317 = vpop.f32.mrf.mxu0
    %v318 = vadd.f32 %v295, %v317
    %319 = vdwg.mxu0
    %320 = vmatpush.msra.mxu0 %v292
    %321 = vmatpush.msra.mxu0 %v291
    %322 = vmatpush.msra.mxu0 %v290
    %323 = vmatpush.msra.mxu0 %v289
    %324 = vmatpush.msra.mxu0 %v288
    %325 = vmatpush.msra.mxu0 %v287
    %326 = vmatpush.msra.mxu0 %v286
    %327 = vmatpush.msra.mxu0 %v285
    %328 = vmatpush.msra.mxu0 %v284
    %329 = vmatpush.msra.mxu0 %v283
    %330 = vmatpush.msra.mxu0 %v282
    %331 = vmatpush.msra.mxu0 %v281
    %332 = vmatpush.msra.mxu0 %v280
    %333 = vmatpush.msra.mxu0 %v279
    %334 = vmatpush.msra.mxu0 %v278
    %335 = vmatpush.msra.mxu0 %v277
    %336 = vmatmul.f32.gmra.mxu0 %v256
    %v337 = vpop.f32.mrf.mxu0
    %v338 = vadd.f32 %v315, %v337
    %339 = vmatmul.f32.gmra.mxu0 %v259
    %v340 = vpop.f32.mrf.mxu0
    %v341 = vadd.f32 %v318, %v340
    %342 = vdwg.mxu0
    %s343 = scalar_lea.vmem [#allocation3], 256
    %v344 = vld [vmem:[%s343] sm:$0xff]
    %v345 = vld [vmem:[%s343 + $0x8] sm:$0xff]
    %v346 = vld [vmem:[%s343 + $0x10] sm:$0xff]
    %v347 = vld [vmem:[%s343 + $0x18] sm:$0xff]
    %v348 = vld [vmem:[%s343 + $0x20] sm:$0xff]
    %v349 = vld [vmem:[%s343 + $0x28] sm:$0xff]
    %v350 = vld [vmem:[%s343 + $0x30] sm:$0xff]
    %v351 = vld [vmem:[%s343 + $0x38] sm:$0xff]
    %v352 = vld [vmem:[%s343 + $0x40] sm:$0xff]
    %v353 = vld [vmem:[%s343 + $0x48] sm:$0xff]
    %v354 = vld [vmem:[%s343 + $0x50] sm:$0xff]
    %v355 = vld [vmem:[%s343 + $0x58] sm:$0xff]
    %v356 = vld [vmem:[%s343 + $0x60] sm:$0xff]
    %v357 = vld [vmem:[%s343 + $0x68] sm:$0xff]
    %v358 = vld [vmem:[%s343 + $0x70] sm:$0xff]
    %v359 = vld [vmem:[%s343 + $0x78] sm:$0xff]
    %v360 = vld [vmem:[%s343 + $0x80] sm:$0xff]
    %v361 = vld [vmem:[%s343 + $0x88] sm:$0xff]
    %v362 = vld [vmem:[%s343 + $0x90] sm:$0xff]
    %v363 = vld [vmem:[%s343 + $0x98] sm:$0xff]
    %v364 = vld [vmem:[%s343 + $0xa0] sm:$0xff]
    %v365 = vld [vmem:[%s343 + $0xa8] sm:$0xff]
    %v366 = vld [vmem:[%s343 + $0xb0] sm:$0xff]
    %v367 = vld [vmem:[%s343 + $0xb8] sm:$0xff]
    %v368 = vld [vmem:[%s343 + $0xc0] sm:$0xff]
    %v369 = vld [vmem:[%s343 + $0xc8] sm:$0xff]
    %v370 = vld [vmem:[%s343 + $0xd0] sm:$0xff]
    %v371 = vld [vmem:[%s343 + $0xd8] sm:$0xff]
    %v372 = vld [vmem:[%s343 + $0xe0] sm:$0xff]
    %v373 = vld [vmem:[%s343 + $0xe8] sm:$0xff]
    %v374 = vld [vmem:[%s343 + $0xf0] sm:$0xff]
    %v375 = vld [vmem:[%s343 + $0xf8] sm:$0xff]
    %376 = vmatpush.msra.mxu0 %v374
    %377 = vmatpush.msra.mxu0 %v372
    %378 = vmatpush.msra.mxu0 %v370
    %379 = vmatpush.msra.mxu0 %v368
    %380 = vmatpush.msra.mxu0 %v366
    %381 = vmatpush.msra.mxu0 %v364
    %382 = vmatpush.msra.mxu0 %v362
    %383 = vmatpush.msra.mxu0 %v360
    %384 = vmatpush.msra.mxu0 %v358
    %385 = vmatpush.msra.mxu0 %v356
    %386 = vmatpush.msra.mxu0 %v354
    %387 = vmatpush.msra.mxu0 %v352
    %388 = vmatpush.msra.mxu0 %v350
    %389 = vmatpush.msra.mxu0 %v348
    %390 = vmatpush.msra.mxu0 %v346
    %391 = vmatpush.msra.mxu0 %v344
    %392 = vmatmul.f32.gmra.mxu0 %v338
    %v393 = vpop.f32.mrf.mxu0
    %v394 = vadd.f32 0.0, %v393
    %395 = vmatmul.f32.gmra.mxu0 %v341
    %v396 = vpop.f32.mrf.mxu0
    %v397 = vadd.f32 0.0, %v396
    %398 = vdwg.mxu0
    %399 = vmatpush.msra.mxu0 %v375
    %400 = vmatpush.msra.mxu0 %v373
    %401 = vmatpush.msra.mxu0 %v371
    %402 = vmatpush.msra.mxu0 %v369
    %403 = vmatpush.msra.mxu0 %v367
    %404 = vmatpush.msra.mxu0 %v365
    %405 = vmatpush.msra.mxu0 %v363
    %406 = vmatpush.msra.mxu0 %v361
    %407 = vmatpush.msra.mxu0 %v359
    %408 = vmatpush.msra.mxu0 %v357
    %409 = vmatpush.msra.mxu0 %v355
    %410 = vmatpush.msra.mxu0 %v353
    %411 = vmatpush.msra.mxu0 %v351
    %412 = vmatpush.msra.mxu0 %v349
    %413 = vmatpush.msra.mxu0 %v347
    %414 = vmatpush.msra.mxu0 %v345
    %415 = vmatmul.f32.gmra.mxu0 %v338
    %v416 = vpop.f32.mrf.mxu0
    %v417 = vadd.f32 0.0, %v416
    %418 = vmatmul.f32.gmra.mxu0 %v341
    %v419 = vpop.f32.mrf.mxu0
    %v420 = vadd.f32 0.0, %v419
    %421 = vdwg.mxu0
    %422 = vmatpush.msra.mxu0 %v276
    %423 = vmatpush.msra.mxu0 %v275
    %424 = vmatpush.msra.mxu0 %v274
    %425 = vmatpush.msra.mxu0 %v273
    %426 = vmatpush.msra.mxu0 %v272
    %427 = vmatpush.msra.mxu0 %v271
    %428 = vmatpush.msra.mxu0 %v270
    %429 = vmatpush.msra.mxu0 %v269
    %430 = vmatpush.msra.mxu0 %v268
    %431 = vmatpush.msra.mxu0 %v267
    %432 = vmatpush.msra.mxu0 %v266
    %433 = vmatpush.msra.mxu0 %v265
    %434 = vmatpush.msra.mxu0 %v264
    %435 = vmatpush.msra.mxu0 %v263
    %436 = vmatpush.msra.mxu0 %v262
    %437 = vmatpush.msra.mxu0 %v261
    %438 = vmatmul.f32.gmra.mxu0 %v394
    %v439 = vpop.f32.mrf.mxu0
    %v440 = vadd.f32 %v295, %v439
    %441 = vmatmul.f32.gmra.mxu0 %v397
    %v442 = vpop.f32.mrf.mxu0
    %v443 = vadd.f32 %v295, %v442
    %444 = vdwg.mxu0
    %445 = vmatpush.msra.mxu0 %v292
    %446 = vmatpush.msra.mxu0 %v291
    %447 = vmatpush.msra.mxu0 %v290
    %448 = vmatpush.msra.mxu0 %v289
    %449 = vmatpush.msra.mxu0 %v288
    %450 = vmatpush.msra.mxu0 %v287
    %451 = vmatpush.msra.mxu0 %v286
    %452 = vmatpush.msra.mxu0 %v285
    %453 = vmatpush.msra.mxu0 %v284
    %454 = vmatpush.msra.mxu0 %v283
    %455 = vmatpush.msra.mxu0 %v282
    %456 = vmatpush.msra.mxu0 %v281
    %457 = vmatpush.msra.mxu0 %v280
    %458 = vmatpush.msra.mxu0 %v279
    %459 = vmatpush.msra.mxu0 %v278
    %460 = vmatpush.msra.mxu0 %v277
    %461 = vmatmul.f32.gmra.mxu0 %v417
    %v462 = vpop.f32.mrf.mxu0
    %v463 = vadd.f32 %v440, %v462
    %464 = vmatmul.f32.gmra.mxu0 %v420
    %v465 = vpop.f32.mrf.mxu0
    %v466 = vadd.f32 %v443, %v465
    %467 = vdwg.mxu0
    %s468 = scalar_lea.vmem [#allocation3], 512
    %v469 = vld [vmem:[%s468] sm:$0xff]
    %v470 = vld [vmem:[%s468 + $0x8] sm:$0xff]
    %v471 = vld [vmem:[%s468 + $0x10] sm:$0xff]
    %v472 = vld [vmem:[%s468 + $0x18] sm:$0xff]
    %v473 = vld [vmem:[%s468 + $0x20] sm:$0xff]
    %v474 = vld [vmem:[%s468 + $0x28] sm:$0xff]
    %v475 = vld [vmem:[%s468 + $0x30] sm:$0xff]
    %v476 = vld [vmem:[%s468 + $0x38] sm:$0xff]
    %v477 = vld [vmem:[%s468 + $0x40] sm:$0xff]
    %v478 = vld [vmem:[%s468 + $0x48] sm:$0xff]
    %v479 = vld [vmem:[%s468 + $0x50] sm:$0xff]
    %v480 = vld [vmem:[%s468 + $0x58] sm:$0xff]
    %v481 = vld [vmem:[%s468 + $0x60] sm:$0xff]
    %v482 = vld [vmem:[%s468 + $0x68] sm:$0xff]
    %v483 = vld [vmem:[%s468 + $0x70] sm:$0xff]
    %v484 = vld [vmem:[%s468 + $0x78] sm:$0xff]
    %v485 = vld [vmem:[%s468 + $0x80] sm:$0xff]
    %v486 = vld [vmem:[%s468 + $0x88] sm:$0xff]
    %v487 = vld [vmem:[%s468 + $0x90] sm:$0xff]
    %v488 = vld [vmem:[%s468 + $0x98] sm:$0xff]
    %v489 = vld [vmem:[%s468 + $0xa0] sm:$0xff]
    %v490 = vld [vmem:[%s468 + $0xa8] sm:$0xff]
    %v491 = vld [vmem:[%s468 + $0xb0] sm:$0xff]
    %v492 = vld [vmem:[%s468 + $0xb8] sm:$0xff]
    %v493 = vld [vmem:[%s468 + $0xc0] sm:$0xff]
    %v494 = vld [vmem:[%s468 + $0xc8] sm:$0xff]
    %v495 = vld [vmem:[%s468 + $0xd0] sm:$0xff]
    %v496 = vld [vmem:[%s468 + $0xd8] sm:$0xff]
    %v497 = vld [vmem:[%s468 + $0xe0] sm:$0xff]
    %v498 = vld [vmem:[%s468 + $0xe8] sm:$0xff]
    %v499 = vld [vmem:[%s468 + $0xf0] sm:$0xff]
    %v500 = vld [vmem:[%s468 + $0xf8] sm:$0xff]
    %501 = vmatpush.msra.mxu0 %v499
    %502 = vmatpush.msra.mxu0 %v497
    %503 = vmatpush.msra.mxu0 %v495
    %504 = vmatpush.msra.mxu0 %v493
    %505 = vmatpush.msra.mxu0 %v491
    %506 = vmatpush.msra.mxu0 %v489
    %507 = vmatpush.msra.mxu0 %v487
    %508 = vmatpush.msra.mxu0 %v485
    %509 = vmatpush.msra.mxu0 %v483
    %510 = vmatpush.msra.mxu0 %v481
    %511 = vmatpush.msra.mxu0 %v479
    %512 = vmatpush.msra.mxu0 %v477
    %513 = vmatpush.msra.mxu0 %v475
    %514 = vmatpush.msra.mxu0 %v473
    %515 = vmatpush.msra.mxu0 %v471
    %516 = vmatpush.msra.mxu0 %v469
    %517 = vmatmul.f32.gmra.mxu0 %v463
    %v518 = vpop.f32.mrf.mxu0
    %v519 = vadd.f32 0.0, %v518
    %520 = vmatmul.f32.gmra.mxu0 %v466
    %v521 = vpop.f32.mrf.mxu0
    %v522 = vadd.f32 0.0, %v521
    %523 = vdwg.mxu0
    %524 = vmatpush.msra.mxu0 %v500
    %525 = vmatpush.msra.mxu0 %v498
    %526 = vmatpush.msra.mxu0 %v496
    %527 = vmatpush.msra.mxu0 %v494
    %528 = vmatpush.msra.mxu0 %v492
    %529 = vmatpush.msra.mxu0 %v490
    %530 = vmatpush.msra.mxu0 %v488
    %531 = vmatpush.msra.mxu0 %v486
    %532 = vmatpush.msra.mxu0 %v484
    %533 = vmatpush.msra.mxu0 %v482
    %534 = vmatpush.msra.mxu0 %v480
    %535 = vmatpush.msra.mxu0 %v478
    %536 = vmatpush.msra.mxu0 %v476
    %537 = vmatpush.msra.mxu0 %v474
    %538 = vmatpush.msra.mxu0 %v472
    %539 = vmatpush.msra.mxu0 %v470
    %540 = vmatmul.f32.gmra.mxu0 %v463
    %v541 = vpop.f32.mrf.mxu0
    %v542 = vadd.f32 0.0, %v541
    %543 = vmatmul.f32.gmra.mxu0 %v466
    %v544 = vpop.f32.mrf.mxu0
    %v545 = vadd.f32 0.0, %v544
    %546 = vdwg.mxu0
    %547 = vmatpush.msra.mxu0 %v276
    %548 = vmatpush.msra.mxu0 %v275
    %549 = vmatpush.msra.mxu0 %v274
    %550 = vmatpush.msra.mxu0 %v273
    %551 = vmatpush.msra.mxu0 %v272
    %552 = vmatpush.msra.mxu0 %v271
    %553 = vmatpush.msra.mxu0 %v270
    %554 = vmatpush.msra.mxu0 %v269
    %555 = vmatpush.msra.mxu0 %v268
    %556 = vmatpush.msra.mxu0 %v267
    %557 = vmatpush.msra.mxu0 %v266
    %558 = vmatpush.msra.mxu0 %v265
    %559 = vmatpush.msra.mxu0 %v264
    %560 = vmatpush.msra.mxu0 %v263
    %561 = vmatpush.msra.mxu0 %v262
    %562 = vmatpush.msra.mxu0 %v261
    %563 = vmatmul.f32.gmra.mxu0 %v519
    %v564 = vpop.f32.mrf.mxu0
    %v565 = vadd.f32 %v295, %v564
    %566 = vmatmul.f32.gmra.mxu0 %v522
    %v567 = vpop.f32.mrf.mxu0
    %v568 = vadd.f32 %v295, %v567
    %569 = vdwg.mxu0
    %570 = vmatpush.msra.mxu0 %v292
    %571 = vmatpush.msra.mxu0 %v291
    %572 = vmatpush.msra.mxu0 %v290
    %573 = vmatpush.msra.mxu0 %v289
    %574 = vmatpush.msra.mxu0 %v288
    %575 = vmatpush.msra.mxu0 %v287
    %576 = vmatpush.msra.mxu0 %v286
    %577 = vmatpush.msra.mxu0 %v285
    %578 = vmatpush.msra.mxu0 %v284
    %579 = vmatpush.msra.mxu0 %v283
    %580 = vmatpush.msra.mxu0 %v282
    %581 = vmatpush.msra.mxu0 %v281
    %582 = vmatpush.msra.mxu0 %v280
    %583 = vmatpush.msra.mxu0 %v279
    %584 = vmatpush.msra.mxu0 %v278
    %585 = vmatpush.msra.mxu0 %v277
    %586 = vmatmul.f32.gmra.mxu0 %v542
    %v587 = vpop.f32.mrf.mxu0
    %v588 = vadd.f32 %v565, %v587
    %589 = vmatmul.f32.gmra.mxu0 %v545
    %v590 = vpop.f32.mrf.mxu0
    %v591 = vadd.f32 %v568, %v590
    %592 = vdwg.mxu0
    %s593 = scalar_lea.vmem [#allocation3], 768
    %v594 = vld [vmem:[%s593] sm:$0xff]
    %v595 = vld [vmem:[%s593 + $0x8] sm:$0xff]
    %v596 = vld [vmem:[%s593 + $0x10] sm:$0xff]
    %v597 = vld [vmem:[%s593 + $0x18] sm:$0xff]
    %v598 = vld [vmem:[%s593 + $0x20] sm:$0xff]
    %v599 = vld [vmem:[%s593 + $0x28] sm:$0xff]
    %v600 = vld [vmem:[%s593 + $0x30] sm:$0xff]
    %v601 = vld [vmem:[%s593 + $0x38] sm:$0xff]
    %v602 = vld [vmem:[%s593 + $0x40] sm:$0xff]
    %v603 = vld [vmem:[%s593 + $0x48] sm:$0xff]
    %v604 = vld [vmem:[%s593 + $0x50] sm:$0xff]
    %v605 = vld [vmem:[%s593 + $0x58] sm:$0xff]
    %v606 = vld [vmem:[%s593 + $0x60] sm:$0xff]
    %v607 = vld [vmem:[%s593 + $0x68] sm:$0xff]
    %v608 = vld [vmem:[%s593 + $0x70] sm:$0xff]
    %v609 = vld [vmem:[%s593 + $0x78] sm:$0xff]
    %v610 = vld [vmem:[%s593 + $0x80] sm:$0xff]
    %v611 = vld [vmem:[%s593 + $0x88] sm:$0xff]
    %v612 = vld [vmem:[%s593 + $0x90] sm:$0xff]
    %v613 = vld [vmem:[%s593 + $0x98] sm:$0xff]
    %v614 = vld [vmem:[%s593 + $0xa0] sm:$0xff]
    %v615 = vld [vmem:[%s593 + $0xa8] sm:$0xff]
    %v616 = vld [vmem:[%s593 + $0xb0] sm:$0xff]
    %v617 = vld [vmem:[%s593 + $0xb8] sm:$0xff]
    %v618 = vld [vmem:[%s593 + $0xc0] sm:$0xff]
    %v619 = vld [vmem:[%s593 + $0xc8] sm:$0xff]
    %v620 = vld [vmem:[%s593 + $0xd0] sm:$0xff]
    %v621 = vld [vmem:[%s593 + $0xd8] sm:$0xff]
    %v622 = vld [vmem:[%s593 + $0xe0] sm:$0xff]
    %v623 = vld [vmem:[%s593 + $0xe8] sm:$0xff]
    %v624 = vld [vmem:[%s593 + $0xf0] sm:$0xff]
    %v625 = vld [vmem:[%s593 + $0xf8] sm:$0xff]
    %626 = vmatpush.msra.mxu0 %v624
    %627 = vmatpush.msra.mxu0 %v622
    %628 = vmatpush.msra.mxu0 %v620
    %629 = vmatpush.msra.mxu0 %v618
    %630 = vmatpush.msra.mxu0 %v616
    %631 = vmatpush.msra.mxu0 %v614
    %632 = vmatpush.msra.mxu0 %v612
    %633 = vmatpush.msra.mxu0 %v610
    %634 = vmatpush.msra.mxu0 %v608
    %635 = vmatpush.msra.mxu0 %v606
    %636 = vmatpush.msra.mxu0 %v604
    %637 = vmatpush.msra.mxu0 %v602
    %638 = vmatpush.msra.mxu0 %v600
    %639 = vmatpush.msra.mxu0 %v598
    %640 = vmatpush.msra.mxu0 %v596
    %641 = vmatpush.msra.mxu0 %v594
    %642 = vmatmul.f32.gmra.mxu0 %v588
    %v643 = vpop.f32.mrf.mxu0
    %v644 = vadd.f32 0.0, %v643
    %645 = vmatmul.f32.gmra.mxu0 %v591
    %v646 = vpop.f32.mrf.mxu0
    %v647 = vadd.f32 0.0, %v646
    %648 = vdwg.mxu0
    %649 = vmatpush.msra.mxu0 %v625
    %650 = vmatpush.msra.mxu0 %v623
    %651 = vmatpush.msra.mxu0 %v621
    %652 = vmatpush.msra.mxu0 %v619
    %653 = vmatpush.msra.mxu0 %v617
    %654 = vmatpush.msra.mxu0 %v615
    %655 = vmatpush.msra.mxu0 %v613
    %656 = vmatpush.msra.mxu0 %v611
    %657 = vmatpush.msra.mxu0 %v609
    %658 = vmatpush.msra.mxu0 %v607
    %659 = vmatpush.msra.mxu0 %v605
    %660 = vmatpush.msra.mxu0 %v603
    %661 = vmatpush.msra.mxu0 %v601
    %662 = vmatpush.msra.mxu0 %v599
    %663 = vmatpush.msra.mxu0 %v597
    %664 = vmatpush.msra.mxu0 %v595
    %665 = vmatmul.f32.gmra.mxu0 %v588
    %v666 = vpop.f32.mrf.mxu0
    %v667 = vadd.f32 0.0, %v666
    %668 = vmatmul.f32.gmra.mxu0 %v591
    %v669 = vpop.f32.mrf.mxu0
    %v670 = vadd.f32 0.0, %v669
    %671 = vdwg.mxu0
    %672 = vmatpush.msra.mxu0 %v276
    %673 = vmatpush.msra.mxu0 %v275
    %674 = vmatpush.msra.mxu0 %v274
    %675 = vmatpush.msra.mxu0 %v273
    %676 = vmatpush.msra.mxu0 %v272
    %677 = vmatpush.msra.mxu0 %v271
    %678 = vmatpush.msra.mxu0 %v270
    %679 = vmatpush.msra.mxu0 %v269
    %680 = vmatpush.msra.mxu0 %v268
    %681 = vmatpush.msra.mxu0 %v267
    %682 = vmatpush.msra.mxu0 %v266
    %683 = vmatpush.msra.mxu0 %v265
    %684 = vmatpush.msra.mxu0 %v264
    %685 = vmatpush.msra.mxu0 %v263
    %686 = vmatpush.msra.mxu0 %v262
    %687 = vmatpush.msra.mxu0 %v261
    %688 = vmatmul.f32.gmra.mxu0 %v644
    %v689 = vpop.f32.mrf.mxu0
    %v690 = vadd.f32 %v295, %v689
    %691 = vmatmul.f32.gmra.mxu0 %v647
    %v692 = vpop.f32.mrf.mxu0
    %v693 = vadd.f32 %v295, %v692
    %694 = vdwg.mxu0
    %695 = vmatpush.msra.mxu0 %v292
    %696 = vmatpush.msra.mxu0 %v291
    %697 = vmatpush.msra.mxu0 %v290
    %698 = vmatpush.msra.mxu0 %v289
    %699 = vmatpush.msra.mxu0 %v288
    %700 = vmatpush.msra.mxu0 %v287
    %701 = vmatpush.msra.mxu0 %v286
    %702 = vmatpush.msra.mxu0 %v285
    %703 = vmatpush.msra.mxu0 %v284
    %704 = vmatpush.msra.mxu0 %v283
    %705 = vmatpush.msra.mxu0 %v282
    %706 = vmatpush.msra.mxu0 %v281
    %707 = vmatpush.msra.mxu0 %v280
    %708 = vmatpush.msra.mxu0 %v279
    %709 = vmatpush.msra.mxu0 %v278
    %710 = vmatpush.msra.mxu0 %v277
    %711 = vmatmul.f32.gmra.mxu0 %v667
    %v712 = vpop.f32.mrf.mxu0
    %v713 = vadd.f32 %v690, %v712
    %714 = vmatmul.f32.gmra.mxu0 %v670
    %v715 = vpop.f32.mrf.mxu0
    %v716 = vadd.f32 %v693, %v715
    %717 = vdwg.mxu0
    %v718 = vld [vmem:[%s4] sm:$0xff]
    %v719 = vld [vmem:[%s4 + $0x8] sm:$0xff]
    %v720 = vld [vmem:[%s4 + $0x10] sm:$0xff]
    %v721 = vld [vmem:[%s4 + $0x18] sm:$0xff]
    %v722 = vld [vmem:[%s4 + $0x20] sm:$0xff]
    %v723 = vld [vmem:[%s4 + $0x28] sm:$0xff]
    %v724 = vld [vmem:[%s4 + $0x30] sm:$0xff]
    %v725 = vld [vmem:[%s4 + $0x38] sm:$0xff]
    %v726 = vld [vmem:[%s4 + $0x40] sm:$0xff]
    %v727 = vld [vmem:[%s4 + $0x48] sm:$0xff]
    %v728 = vld [vmem:[%s4 + $0x50] sm:$0xff]
    %v729 = vld [vmem:[%s4 + $0x58] sm:$0xff]
    %v730 = vld [vmem:[%s4 + $0x60] sm:$0xff]
    %v731 = vld [vmem:[%s4 + $0x68] sm:$0xff]
    %v732 = vld [vmem:[%s4 + $0x70] sm:$0xff]
    %v733 = vld [vmem:[%s4 + $0x78] sm:$0xff]
    %v734 = vld [vmem:[%s5] sm:$0x1]
    %v736 = vperm.slane %v734, 0
    %738 = vmatpush.msra.mxu0 %v733
    %739 = vmatpush.msra.mxu0 %v732
    %740 = vmatpush.msra.mxu0 %v731
    %741 = vmatpush.msra.mxu0 %v730
    %742 = vmatpush.msra.mxu0 %v729
    %743 = vmatpush.msra.mxu0 %v728
    %744 = vmatpush.msra.mxu0 %v727
    %745 = vmatpush.msra.mxu0 %v726
    %746 = vmatpush.msra.mxu0 %v725
    %747 = vmatpush.msra.mxu0 %v724
    %748 = vmatpush.msra.mxu0 %v723
    %749 = vmatpush.msra.mxu0 %v722
    %750 = vmatpush.msra.mxu0 %v721
    %751 = vmatpush.msra.mxu0 %v720
    %752 = vmatpush.msra.mxu0 %v719
    %753 = vmatpush.msra.mxu0 %v718
    %754 = vmatmul.f32.gmra.mxu0 %v713
    %v755 = vpop.f32.mrf.mxu0
    %v756 = vadd.f32 %v736, %v755
    %757 = vmatmul.f32.gmra.mxu0 %v716
    %v758 = vpop.f32.mrf.mxu0
    %v759 = vadd.f32 %v736, %v758
    %760 = vdwg.mxu0
    %vm761 = vcmask 31744
    %v762 = vsel %vm761, %v756, -inf
    %763 = vmax.xlane.f32.xlu0 %v762
    %v764 = vpop.xlane.xlu0 %763
    %v765 = vsel %vm761, %v759, -inf
    %766 = vmax.xlane.f32.xlu0 %v765
    %v767 = vpop.xlane.xlu0 %766
    %v768 = vsub.f32 %v756, %v764
    %v769 = vsub.f32 %v759, %v767
    %v770 = vmul.f32 %v768, 1.442695
    %v771 = vpow.pop %v770
    %v772 = vmul.f32 %v769, 1.442695
    %v773 = vpow.pop %v772
    %v774 = vsel %vm761, %v771, 0.0
    %775 = vadd.xlane.f32.xlu0 %v774
    %v776 = vpop.xlane.xlu0 %775
    %v777 = vsel %vm761, %v773, 0.0
    %778 = vadd.xlane.f32.xlu0 %v777
    %v779 = vpop.xlane.xlu0 %778
    %v780 = vrcp.pop %v776
    %v781 = vmul.f32 %v776, %v780
    %v782 = vsub.f32 1.0, %v781
    %v783 = vmul.f32 %v780, %v782
    %v784 = vadd.f32 %v780, %v783
    %vm785 = vweird.f32 %v776
    %vm786 = vweird.f32 %v780
    %vm787 = vmor %vm785, %vm786
    %v788 = vsel %vm787, %v780, %v784
    %v789 = vand.u32 2147483647, %v776
    %vm790 = vcmp.eq.f32.partialorder %v789, 8.507059e+37
    %v791 = vand.u32 %v776, 2147483648
    %v792 = vor.u32 1.1754944e-38, %v791
    %v793 = vsel %vm790, %v792, %v788
    %v794 = vmul.f32 %v771, %v793
    %v795 = vrcp.pop %v779
    %v796 = vmul.f32 %v779, %v795
    %v797 = vsub.f32 1.0, %v796
    %v798 = vmul.f32 %v795, %v797
    %v799 = vadd.f32 %v795, %v798
    %vm800 = vweird.f32 %v779
    %vm801 = vweird.f32 %v795
    %vm802 = vmor %vm800, %vm801
    %v803 = vsel %vm802, %v795, %v799
    %v804 = vand.u32 2147483647, %v779
    %vm805 = vcmp.eq.f32.partialorder %v804, 8.507059e+37
    %v806 = vand.u32 %v779, 2147483648
    %v807 = vor.u32 1.1754944e-38, %v806
    %v808 = vsel %vm805, %v807, %v803
    %v809 = vmul.f32 %v773, %v808
    %v810 = vld [vmem:[#allocation7] sm:$0xff]
    %v811 = vld [vmem:[#allocation7 + $0x8] sm:$0xff]
    %v812 = vld [vmem:[#allocation7 + $0x10] sm:$0xff]
    %v813 = vld [vmem:[#allocation7 + $0x18] sm:$0xff]
    %v814 = vld [vmem:[#allocation7 + $0x20] sm:$0xff]
    %v815 = vld [vmem:[#allocation7 + $0x28] sm:$0xff]
    %v816 = vld [vmem:[#allocation7 + $0x30] sm:$0xff]
    %v817 = vld [vmem:[#allocation7 + $0x38] sm:$0xff]
    %v818 = vld [vmem:[#allocation7 + $0x40] sm:$0xff]
    %v819 = vld [vmem:[#allocation7 + $0x48] sm:$0xff]
    %v820 = vld [vmem:[#allocation7 + $0x50] sm:$0xff]
    %v821 = vld [vmem:[#allocation7 + $0x58] sm:$0xff]
    %v822 = vld [vmem:[#allocation7 + $0x60] sm:$0xff]
    %v823 = vld [vmem:[#allocation7 + $0x68] sm:$0xff]
    %v824 = vld [vmem:[#allocation7 + $0x70] sm:$0xff]
    %v825 = vld [vmem:[#allocation7 + $0x78] sm:$0xff]
    %v826 = vld [vmem:[#allocation7 + $0x80] sm:$0xff]
    %v827 = vld [vmem:[#allocation7 + $0x88] sm:$0xff]
    %v828 = vld [vmem:[#allocation7 + $0x90] sm:$0xff]
    %v829 = vld [vmem:[#allocation7 + $0x98] sm:$0xff]
    %v830 = vld [vmem:[#allocation7 + $0xa0] sm:$0xff]
    %v831 = vld [vmem:[#allocation7 + $0xa8] sm:$0xff]
    %v832 = vld [vmem:[#allocation7 + $0xb0] sm:$0xff]
    %v833 = vld [vmem:[#allocation7 + $0xb8] sm:$0xff]
    %v834 = vld [vmem:[#allocation7 + $0xc0] sm:$0xff]
    %v835 = vld [vmem:[#allocation7 + $0xc8] sm:$0xff]
    %v836 = vld [vmem:[#allocation7 + $0xd0] sm:$0xff]
    %v837 = vld [vmem:[#allocation7 + $0xd8] sm:$0xff]
    %v838 = vld [vmem:[#allocation7 + $0xe0] sm:$0xff]
    %v839 = vld [vmem:[#allocation7 + $0xe8] sm:$0xff]
    %v840 = vld [vmem:[#allocation7 + $0xf0] sm:$0xff]
    %v841 = vld [vmem:[#allocation7 + $0xf8] sm:$0xff]
    %v842 = vld [vmem:[#allocation7 + $0x100] sm:$0xff]
    %v843 = vld [vmem:[#allocation7 + $0x108] sm:$0xff]
    %v844 = vld [vmem:[#allocation7 + $0x110] sm:$0xff]
    %v845 = vld [vmem:[#allocation7 + $0x118] sm:$0xff]
    %v846 = vld [vmem:[#allocation7 + $0x120] sm:$0xff]
    %v847 = vld [vmem:[#allocation7 + $0x128] sm:$0xff]
    %v848 = vld [vmem:[#allocation7 + $0x130] sm:$0xff]
    %v849 = vld [vmem:[#allocation7 + $0x138] sm:$0xff]
    %v850 = vld [vmem:[#allocation7 + $0x140] sm:$0xff]
    %v851 = vld [vmem:[#allocation7 + $0x148] sm:$0xff]
    %v852 = vld [vmem:[#allocation7 + $0x150] sm:$0xff]
    %v853 = vld [vmem:[#allocation7 + $0x158] sm:$0xff]
    %v854 = vld [vmem:[#allocation7 + $0x160] sm:$0xff]
    %v855 = vld [vmem:[#allocation7 + $0x168] sm:$0xff]
    %v856 = vld [vmem:[#allocation7 + $0x170] sm:$0xff]
    %v857 = vld [vmem:[#allocation7 + $0x178] sm:$0xff]
    %v858 = vld [vmem:[#allocation7 + $0x180] sm:$0xff]
    %v859 = vld [vmem:[#allocation7 + $0x188] sm:$0xff]
    %v860 = vld [vmem:[#allocation7 + $0x190] sm:$0xff]
    %v861 = vld [vmem:[#allocation7 + $0x198] sm:$0xff]
    %v862 = vld [vmem:[#allocation7 + $0x1a0] sm:$0xff]
    %v863 = vld [vmem:[#allocation7 + $0x1a8] sm:$0xff]
    %v864 = vld [vmem:[#allocation7 + $0x1b0] sm:$0xff]
    %v865 = vld [vmem:[#allocation7 + $0x1b8] sm:$0xff]
    %v866 = vld [vmem:[#allocation7 + $0x1c0] sm:$0xff]
    %v867 = vld [vmem:[#allocation7 + $0x1c8] sm:$0xff]
    %v868 = vld [vmem:[#allocation7 + $0x1d0] sm:$0xff]
    %v869 = vld [vmem:[#allocation7 + $0x1d8] sm:$0xff]
    %v870 = vld [vmem:[#allocation7 + $0x1e0] sm:$0xff]
    %v871 = vld [vmem:[#allocation7 + $0x1e8] sm:$0xff]
    %v872 = vld [vmem:[#allocation7 + $0x1f0] sm:$0xff]
    %v873 = vld [vmem:[#allocation7 + $0x1f8] sm:$0xff]
    %v874 = vld [vmem:[%s7] sm:$0xf]
    %v876 = vperm.slane %v874, 0
    %v877 = vperm.slane %v874, 1
    %v878 = vperm.slane %v874, 2
    %v879 = vperm.slane %v874, 3
    %884 = vmatpush.msra.mxu0 %v870
    %885 = vmatpush.msra.mxu0 %v866
    %886 = vmatpush.msra.mxu0 %v862
    %887 = vmatpush.msra.mxu0 %v858
    %888 = vmatpush.msra.mxu0 %v854
    %889 = vmatpush.msra.mxu0 %v850
    %890 = vmatpush.msra.mxu0 %v846
    %891 = vmatpush.msra.mxu0 %v842
    %892 = vmatpush.msra.mxu0 %v838
    %893 = vmatpush.msra.mxu0 %v834
    %894 = vmatpush.msra.mxu0 %v830
    %895 = vmatpush.msra.mxu0 %v826
    %896 = vmatpush.msra.mxu0 %v822
    %897 = vmatpush.msra.mxu0 %v818
    %898 = vmatpush.msra.mxu0 %v814
    %899 = vmatpush.msra.mxu0 %v810
    %900 = vmatmul.f32.gmra.mxu0 %v713
    %v901 = vpop.f32.mrf.mxu0
    %v902 = vadd.f32 %v876, %v901
    %903 = vmatmul.f32.gmra.mxu0 %v716
    %v904 = vpop.f32.mrf.mxu0
    %v905 = vadd.f32 %v876, %v904
    %906 = vdwg.mxu0
    %907 = vmatpush.msra.mxu0 %v871
    %908 = vmatpush.msra.mxu0 %v867
    %909 = vmatpush.msra.mxu0 %v863
    %910 = vmatpush.msra.mxu0 %v859
    %911 = vmatpush.msra.mxu0 %v855
    %912 = vmatpush.msra.mxu0 %v851
    %913 = vmatpush.msra.mxu0 %v847
    %914 = vmatpush.msra.mxu0 %v843
    %915 = vmatpush.msra.mxu0 %v839
    %916 = vmatpush.msra.mxu0 %v835
    %917 = vmatpush.msra.mxu0 %v831
    %918 = vmatpush.msra.mxu0 %v827
    %919 = vmatpush.msra.mxu0 %v823
    %920 = vmatpush.msra.mxu0 %v819
    %921 = vmatpush.msra.mxu0 %v815
    %922 = vmatpush.msra.mxu0 %v811
    %923 = vmatmul.f32.gmra.mxu0 %v713
    %v924 = vpop.f32.mrf.mxu0
    %v925 = vadd.f32 %v877, %v924
    %926 = vmatmul.f32.gmra.mxu0 %v716
    %v927 = vpop.f32.mrf.mxu0
    %v928 = vadd.f32 %v877, %v927
    %929 = vdwg.mxu0
    %930 = vmatpush.msra.mxu0 %v872
    %931 = vmatpush.msra.mxu0 %v868
    %932 = vmatpush.msra.mxu0 %v864
    %933 = vmatpush.msra.mxu0 %v860
    %934 = vmatpush.msra.mxu0 %v856
    %935 = vmatpush.msra.mxu0 %v852
    %936 = vmatpush.msra.mxu0 %v848
    %937 = vmatpush.msra.mxu0 %v844
    %938 = vmatpush.msra.mxu0 %v840
    %939 = vmatpush.msra.mxu0 %v836
    %940 = vmatpush.msra.mxu0 %v832
    %941 = vmatpush.msra.mxu0 %v828
    %942 = vmatpush.msra.mxu0 %v824
    %943 = vmatpush.msra.mxu0 %v820
    %944 = vmatpush.msra.mxu0 %v816
    %945 = vmatpush.msra.mxu0 %v812
    %946 = vmatmul.f32.gmra.mxu0 %v713
    %v947 = vpop.f32.mrf.mxu0
    %v948 = vadd.f32 %v878, %v947
    %949 = vmatmul.f32.gmra.mxu0 %v716
    %v950 = vpop.f32.mrf.mxu0
    %v951 = vadd.f32 %v878, %v950
    %952 = vdwg.mxu0
    %953 = vmatpush.msra.mxu0 %v873
    %954 = vmatpush.msra.mxu0 %v869
    %955 = vmatpush.msra.mxu0 %v865
    %956 = vmatpush.msra.mxu0 %v861
    %957 = vmatpush.msra.mxu0 %v857
    %958 = vmatpush.msra.mxu0 %v853
    %959 = vmatpush.msra.mxu0 %v849
    %960 = vmatpush.msra.mxu0 %v845
    %961 = vmatpush.msra.mxu0 %v841
    %962 = vmatpush.msra.mxu0 %v837
    %963 = vmatpush.msra.mxu0 %v833
    %964 = vmatpush.msra.mxu0 %v829
    %965 = vmatpush.msra.mxu0 %v825
    %966 = vmatpush.msra.mxu0 %v821
    %967 = vmatpush.msra.mxu0 %v817
    %968 = vmatpush.msra.mxu0 %v813
    %969 = vmatmul.f32.gmra.mxu0 %v713
    %v970 = vpop.f32.mrf.mxu0
    %v971 = vadd.f32 %v879, %v970
    %972 = vmatmul.f32.gmra.mxu0 %v716
    %v973 = vpop.f32.mrf.mxu0
    %v974 = vadd.f32 %v879, %v973
    %975 = vdwg.mxu0
    %977 = vset.pattern.permute.xlu0 0
    %978 = vperm.xlu0 %977, %v794
    %v979 = vpop.permute.xlu0 %978
    %982 = vset.pattern.permute.xlu0 0
    %983 = vperm.xlu0 %982, %v809
    %v984 = vpop.permute.xlu0 %983
    %v986 = vmul.f32 %v979, %v902
    %v987 = vmul.f32 %v984, %v905
    %988 = vset.pattern.permute.xlu0 1
    %989 = vperm.xlu0 %988, %v794
    %v990 = vpop.permute.xlu0 %989
    %992 = vset.pattern.permute.xlu0 1
    %993 = vperm.xlu0 %992, %v809
    %v994 = vpop.permute.xlu0 %993
    %v996 = vmul.f32 %v990, %v925
    %v997 = vmul.f32 %v994, %v928
    %v998 = vadd.f32 %v986, %v996
    %v999 = vadd.f32 %v987, %v997
    %1000 = vset.pattern.permute.xlu0 2
    %1001 = vperm.xlu0 %1000, %v794
    %v1002 = vpop.permute.xlu0 %1001
    %1004 = vset.pattern.permute.xlu0 2
    %1005 = vperm.xlu0 %1004, %v809
    %v1006 = vpop.permute.xlu0 %1005
    %v1008 = vmul.f32 %v1002, %v948
    %v1009 = vmul.f32 %v1006, %v951
    %v1010 = vadd.f32 %v998, %v1008
    %v1011 = vadd.f32 %v999, %v1009
    %1012 = vset.pattern.permute.xlu0 3
    %1013 = vperm.xlu0 %1012, %v794
    %v1014 = vpop.permute.xlu0 %1013
    %1016 = vset.pattern.permute.xlu0 3
    %1017 = vperm.xlu0 %1016, %v809
    %v1018 = vpop.permute.xlu0 %1017
    %v1020 = vmul.f32 %v1014, %v971
    %v1021 = vmul.f32 %v1018, %v974
    %v1022 = vadd.f32 %v1010, %v1020
    %v1023 = vadd.f32 %v1011, %v1021
    %v1024 = vld [vmem:[%s8] sm:$0xff]
    %v1025 = vld [vmem:[%s8 + $0x8] sm:$0xff]
    %v1026 = vld [vmem:[%s8 + $0x10] sm:$0xff]
    %v1027 = vld [vmem:[%s8 + $0x18] sm:$0xff]
    %v1028 = vld [vmem:[%s8 + $0x20] sm:$0xff]
    %v1029 = vld [vmem:[%s8 + $0x28] sm:$0xff]
    %v1030 = vld [vmem:[%s8 + $0x30] sm:$0xff]
    %v1031 = vld [vmem:[%s8 + $0x38] sm:$0xff]
    %v1032 = vld [vmem:[%s8 + $0x40] sm:$0xff]
    %v1033 = vld [vmem:[%s8 + $0x48] sm:$0xff]
    %v1034 = vld [vmem:[%s8 + $0x50] sm:$0xff]
    %v1035 = vld [vmem:[%s8 + $0x58] sm:$0xff]
    %v1036 = vld [vmem:[%s8 + $0x60] sm:$0xff]
    %v1037 = vld [vmem:[%s8 + $0x68] sm:$0xff]
    %v1038 = vld [vmem:[%s8 + $0x70] sm:$0xff]
    %v1039 = vld [vmem:[%s8 + $0x78] sm:$0xff]
    %v1040 = vld [vmem:[%s9] sm:$0x1]
    %v1042 = vperm.slane %v1040, 0
    %1044 = vmatpush.msra.mxu0 %v1039
    %1045 = vmatpush.msra.mxu0 %v1038
    %1046 = vmatpush.msra.mxu0 %v1037
    %1047 = vmatpush.msra.mxu0 %v1036
    %1048 = vmatpush.msra.mxu0 %v1035
    %1049 = vmatpush.msra.mxu0 %v1034
    %1050 = vmatpush.msra.mxu0 %v1033
    %1051 = vmatpush.msra.mxu0 %v1032
    %1052 = vmatpush.msra.mxu0 %v1031
    %1053 = vmatpush.msra.mxu0 %v1030
    %1054 = vmatpush.msra.mxu0 %v1029
    %1055 = vmatpush.msra.mxu0 %v1028
    %1056 = vmatpush.msra.mxu0 %v1027
    %1057 = vmatpush.msra.mxu0 %v1026
    %1058 = vmatpush.msra.mxu0 %v1025
    %1059 = vmatpush.msra.mxu0 %v1024
    %1060 = vmatmul.f32.gmra.mxu0 %v1022
    %v1061 = vpop.f32.mrf.mxu0
    %v1062 = vadd.f32 %v1042, %v1061
    %1063 = vmatmul.f32.gmra.mxu0 %v1023
    %v1064 = vpop.f32.mrf.mxu0
    %v1065 = vadd.f32 %v1042, %v1064
    %1066 = vdwg.mxu0
    %v1067 = vld [vmem:[#allocation8] sm:$0xff]
    %v1068 = vld [vmem:[#allocation8 + $0x8] sm:$0xff]
    %v1069 = vld [vmem:[#allocation8 + $0x10] sm:$0xff]
    %v1070 = vld [vmem:[#allocation8 + $0x18] sm:$0xff]
    %v1071 = vld [vmem:[#allocation8 + $0x20] sm:$0xff]
    %v1072 = vld [vmem:[#allocation8 + $0x28] sm:$0xff]
    %v1073 = vld [vmem:[#allocation8 + $0x30] sm:$0xff]
    %v1074 = vld [vmem:[#allocation8 + $0x38] sm:$0xff]
    %v1075 = vld [vmem:[#allocation8 + $0x40] sm:$0xff]
    %v1076 = vld [vmem:[#allocation8 + $0x48] sm:$0xff]
    %v1077 = vld [vmem:[#allocation8 + $0x50] sm:$0xff]
    %v1078 = vld [vmem:[#allocation8 + $0x58] sm:$0xff]
    %v1079 = vld [vmem:[#allocation8 + $0x60] sm:$0xff]
    %v1080 = vld [vmem:[#allocation8 + $0x68] sm:$0xff]
    %v1081 = vld [vmem:[#allocation8 + $0x70] sm:$0xff]
    %v1082 = vld [vmem:[#allocation8 + $0x78] sm:$0xff]
    %1083 = vmatpush.msra.mxu0 %v1082
    %1084 = vmatpush.msra.mxu0 %v1081
    %1085 = vmatpush.msra.mxu0 %v1080
    %1086 = vmatpush.msra.mxu0 %v1079
    %1087 = vmatpush.msra.mxu0 %v1078
    %1088 = vmatpush.msra.mxu0 %v1077
    %1089 = vmatpush.msra.mxu0 %v1076
    %1090 = vmatpush.msra.mxu0 %v1075
    %1091 = vmatpush.msra.mxu0 %v1074
    %1092 = vmatpush.msra.mxu0 %v1073
    %1093 = vmatpush.msra.mxu0 %v1072
    %1094 = vmatpush.msra.mxu0 %v1071
    %1095 = vmatpush.msra.mxu0 %v1070
    %1096 = vmatpush.msra.mxu0 %v1069
    %1097 = vmatpush.msra.mxu0 %v1068
    %1098 = vmatpush.msra.mxu0 %v1067
    %1099 = vmatmul.f32.gmra.mxu0 %v1062
    %v1100 = vpop.f32.mrf.mxu0
    %v1101 = vadd.f32 0.0, %v1100
    %1102 = vmatmul.f32.gmra.mxu0 %v1065
    %v1103 = vpop.f32.mrf.mxu0
    %v1104 = vadd.f32 0.0, %v1103
    %1105 = vdwg.mxu0
    %v1106 = vld [vmem:[%s11] sm:$0xff]
    %v1107 = vld [vmem:[#allocation10] sm:$0xff]
    %v1108 = vld [vmem:[#allocation10 + $0x8] sm:$0xff]
    %v1109 = vld [vmem:[#allocation10 + $0x10] sm:$0xff]
    %v1110 = vld [vmem:[#allocation10 + $0x18] sm:$0xff]
    %v1111 = vld [vmem:[#allocation10 + $0x20] sm:$0xff]
    %v1112 = vld [vmem:[#allocation10 + $0x28] sm:$0xff]
    %v1113 = vld [vmem:[#allocation10 + $0x30] sm:$0xff]
    %v1114 = vld [vmem:[#allocation10 + $0x38] sm:$0xff]
    %v1115 = vld [vmem:[#allocation10 + $0x40] sm:$0xff]
    %v1116 = vld [vmem:[#allocation10 + $0x48] sm:$0xff]
    %v1117 = vld [vmem:[#allocation10 + $0x50] sm:$0xff]
    %v1118 = vld [vmem:[#allocation10 + $0x58] sm:$0xff]
    %v1119 = vld [vmem:[#allocation10 + $0x60] sm:$0xff]
    %v1120 = vld [vmem:[#allocation10 + $0x68] sm:$0xff]
    %v1121 = vld [vmem:[#allocation10 + $0x70] sm:$0xff]
    %v1122 = vld [vmem:[#allocation10 + $0x78] sm:$0xff]
    %1123 = vmatpush.msra.mxu0 %v1122
    %1124 = vmatpush.msra.mxu0 %v1121
    %1125 = vmatpush.msra.mxu0 %v1120
    %1126 = vmatpush.msra.mxu0 %v1119
    %1127 = vmatpush.msra.mxu0 %v1118
    %1128 = vmatpush.msra.mxu0 %v1117
    %1129 = vmatpush.msra.mxu0 %v1116
    %1130 = vmatpush.msra.mxu0 %v1115
    %1131 = vmatpush.msra.mxu0 %v1114
    %1132 = vmatpush.msra.mxu0 %v1113
    %1133 = vmatpush.msra.mxu0 %v1112
    %1134 = vmatpush.msra.mxu0 %v1111
    %1135 = vmatpush.msra.mxu0 %v1110
    %1136 = vmatpush.msra.mxu0 %v1109
    %1137 = vmatpush.msra.mxu0 %v1108
    %1138 = vmatpush.msra.mxu0 %v1107
    %1139 = vmatmul.f32.gmra.mxu0 %v1106
    %v1140 = vpop.f32.mrf.mxu0
    %v1141 = vadd.f32 0.0, %v1140
    %1142 = vdwg.mxu0
    %v1143 = vperm.slane %v1141, 0
    %v1144 = vadd.f32 %v1101, %v1143
    %v1145 = vadd.f32 %v1104, %v1143
    %v1146 = vperm.slane %v1141, 1
    %v1147 = vadd.f32 %v1101, %v1146
    %v1148 = vadd.f32 %v1104, %v1146
    %v1149 = vperm.slane %v1141, 2
    %v1150 = vadd.f32 %v1101, %v1149
    %v1151 = vadd.f32 %v1104, %v1149
    %v1152 = vperm.slane %v1141, 3
    %v1153 = vadd.f32 %v1101, %v1152
    %v1154 = vadd.f32 %v1104, %v1152
    %v1155 = vperm.slane %v1141, 4
    %v1156 = vadd.f32 %v1101, %v1155
    %v1157 = vadd.f32 %v1104, %v1155
    %v1158 = vperm.slane %v1141, 5
    %v1159 = vadd.f32 %v1101, %v1158
    %v1160 = vadd.f32 %v1104, %v1158
    %v1161 = vperm.slane %v1141, 6
    %v1162 = vadd.f32 %v1101, %v1161
    %v1163 = vadd.f32 %v1104, %v1161
    %v1164 = vperm.slane %v1141, 7
    %v1165 = vadd.f32 %v1101, %v1164
    %v1166 = vadd.f32 %v1104, %v1164
    %v1167 = vld [vmem:[%s14] sm:$0x1]
    %v1169 = vperm.slane %v1167, 0
    %v1171 = vadd.f32 %v1144, %v1169
    %v1172 = vadd.f32 %v1145, %v1169
    %v1173 = vadd.f32 %v1147, %v1169
    %v1174 = vadd.f32 %v1148, %v1169
    %v1175 = vadd.f32 %v1150, %v1169
    %v1176 = vadd.f32 %v1151, %v1169
    %v1177 = vadd.f32 %v1153, %v1169
    %v1178 = vadd.f32 %v1154, %v1169
    %v1179 = vadd.f32 %v1156, %v1169
    %v1180 = vadd.f32 %v1157, %v1169
    %v1181 = vadd.f32 %v1159, %v1169
    %v1182 = vadd.f32 %v1160, %v1169
    %v1183 = vadd.f32 %v1162, %v1169
    %v1184 = vadd.f32 %v1163, %v1169
    %v1185 = vadd.f32 %v1165, %v1169
    %v1186 = vadd.f32 %v1166, %v1169
    %v1187 = vmax.f32 %v1171, 0.0
    %v1188 = vmax.f32 %v1172, 0.0
    %v1189 = vmax.f32 %v1173, 0.0
    %v1190 = vmax.f32 %v1174, 0.0
    %v1191 = vmax.f32 %v1175, 0.0
    %v1192 = vmax.f32 %v1176, 0.0
    %v1193 = vmax.f32 %v1177, 0.0
    %v1194 = vmax.f32 %v1178, 0.0
    %v1195 = vmax.f32 %v1179, 0.0
    %v1196 = vmax.f32 %v1180, 0.0
    %v1197 = vmax.f32 %v1181, 0.0
    %v1198 = vmax.f32 %v1182, 0.0
    %v1199 = vmax.f32 %v1183, 0.0
    %v1200 = vmax.f32 %v1184, 0.0
    %v1201 = vmax.f32 %v1185, 0.0
    %v1202 = vmax.f32 %v1186, 0.0
    %v1203 = vld [vmem:[#allocation11] sm:$0xff]
    %v1204 = vld [vmem:[#allocation11 + $0x8] sm:$0xff]
    %v1205 = vld [vmem:[#allocation11 + $0x10] sm:$0xff]
    %v1206 = vld [vmem:[#allocation11 + $0x18] sm:$0xff]
    %v1207 = vld [vmem:[#allocation11 + $0x20] sm:$0xff]
    %v1208 = vld [vmem:[#allocation11 + $0x28] sm:$0xff]
    %v1209 = vld [vmem:[#allocation11 + $0x30] sm:$0xff]
    %v1210 = vld [vmem:[#allocation11 + $0x38] sm:$0xff]
    %v1211 = vld [vmem:[#allocation11 + $0x40] sm:$0xff]
    %v1212 = vld [vmem:[#allocation11 + $0x48] sm:$0xff]
    %v1213 = vld [vmem:[#allocation11 + $0x50] sm:$0xff]
    %v1214 = vld [vmem:[#allocation11 + $0x58] sm:$0xff]
    %v1215 = vld [vmem:[#allocation11 + $0x60] sm:$0xff]
    %v1216 = vld [vmem:[#allocation11 + $0x68] sm:$0xff]
    %v1217 = vld [vmem:[#allocation11 + $0x70] sm:$0xff]
    %v1218 = vld [vmem:[#allocation11 + $0x78] sm:$0xff]
    %v1219 = vld [vmem:[%s16] sm:$0x1]
    %v1221 = vperm.slane %v1219, 0
    %1223 = vmatpush.msra.mxu0 %v1218
    %1224 = vmatpush.msra.mxu0 %v1217
    %1225 = vmatpush.msra.mxu0 %v1216
    %1226 = vmatpush.msra.mxu0 %v1215
    %1227 = vmatpush.msra.mxu0 %v1214
    %1228 = vmatpush.msra.mxu0 %v1213
    %1229 = vmatpush.msra.mxu0 %v1212
    %1230 = vmatpush.msra.mxu0 %v1211
    %1231 = vmatpush.msra.mxu0 %v1210
    %1232 = vmatpush.msra.mxu0 %v1209
    %1233 = vmatpush.msra.mxu0 %v1208
    %1234 = vmatpush.msra.mxu0 %v1207
    %1235 = vmatpush.msra.mxu0 %v1206
    %1236 = vmatpush.msra.mxu0 %v1205
    %1237 = vmatpush.msra.mxu0 %v1204
    %1238 = vmatpush.msra.mxu0 %v1203
    %1239 = vmatmul.f32.gmra.mxu0 %v1187
    %v1240 = vpop.f32.mrf.mxu0
    %v1241 = vadd.f32 %v1221, %v1240
    %1242 = vmatmul.f32.gmra.mxu0 %v1188
    %v1243 = vpop.f32.mrf.mxu0
    %v1244 = vadd.f32 %v1221, %v1243
    %1245 = vmatmul.f32.gmra.mxu0 %v1189
    %v1246 = vpop.f32.mrf.mxu0
    %v1247 = vadd.f32 %v1221, %v1246
    %1248 = vmatmul.f32.gmra.mxu0 %v1190
    %v1249 = vpop.f32.mrf.mxu0
    %v1250 = vadd.f32 %v1221, %v1249
    %1251 = vmatmul.f32.gmra.mxu0 %v1191
    %v1252 = vpop.f32.mrf.mxu0
    %v1253 = vadd.f32 %v1221, %v1252
    %1254 = vmatmul.f32.gmra.mxu0 %v1192
    %v1255 = vpop.f32.mrf.mxu0
    %v1256 = vadd.f32 %v1221, %v1255
    %1257 = vmatmul.f32.gmra.mxu0 %v1193
    %v1258 = vpop.f32.mrf.mxu0
    %v1259 = vadd.f32 %v1221, %v1258
    %1260 = vmatmul.f32.gmra.mxu0 %v1194
    %v1261 = vpop.f32.mrf.mxu0
    %v1262 = vadd.f32 %v1221, %v1261
    %1263 = vmatmul.f32.gmra.mxu0 %v1195
    %v1264 = vpop.f32.mrf.mxu0
    %v1265 = vadd.f32 %v1221, %v1264
    %1266 = vmatmul.f32.gmra.mxu0 %v1196
    %v1267 = vpop.f32.mrf.mxu0
    %v1268 = vadd.f32 %v1221, %v1267
    %1269 = vmatmul.f32.gmra.mxu0 %v1197
    %v1270 = vpop.f32.mrf.mxu0
    %v1271 = vadd.f32 %v1221, %v1270
    %1272 = vmatmul.f32.gmra.mxu0 %v1198
    %v1273 = vpop.f32.mrf.mxu0
    %v1274 = vadd.f32 %v1221, %v1273
    %1275 = vmatmul.f32.gmra.mxu0 %v1199
    %v1276 = vpop.f32.mrf.mxu0
    %v1277 = vadd.f32 %v1221, %v1276
    %1278 = vmatmul.f32.gmra.mxu0 %v1200
    %v1279 = vpop.f32.mrf.mxu0
    %v1280 = vadd.f32 %v1221, %v1279
    %1281 = vmatmul.f32.gmra.mxu0 %v1201
    %v1282 = vpop.f32.mrf.mxu0
    %v1283 = vadd.f32 %v1221, %v1282
    %1284 = vmatmul.f32.gmra.mxu0 %v1202
    %v1285 = vpop.f32.mrf.mxu0
    %v1286 = vadd.f32 %v1221, %v1285
    %1287 = vdwg.mxu0
    %1288 = vmax.xlane.f32.xlu0 %v1241
    %v1289 = vpop.xlane.xlu0 %1288
    %1290 = vmax.xlane.f32.xlu0 %v1244
    %v1291 = vpop.xlane.xlu0 %1290
    %1292 = vmax.xlane.f32.xlu0 %v1247
    %v1293 = vpop.xlane.xlu0 %1292
    %1294 = vmax.xlane.f32.xlu0 %v1250
    %v1295 = vpop.xlane.xlu0 %1294
    %1296 = vmax.xlane.f32.xlu0 %v1253
    %v1297 = vpop.xlane.xlu0 %1296
    %1298 = vmax.xlane.f32.xlu0 %v1256
    %v1299 = vpop.xlane.xlu0 %1298
    %1300 = vmax.xlane.f32.xlu0 %v1259
    %v1301 = vpop.xlane.xlu0 %1300
    %1302 = vmax.xlane.f32.xlu0 %v1262
    %v1303 = vpop.xlane.xlu0 %1302
    %1304 = vmax.xlane.f32.xlu0 %v1265
    %v1305 = vpop.xlane.xlu0 %1304
    %1306 = vmax.xlane.f32.xlu0 %v1268
    %v1307 = vpop.xlane.xlu0 %1306
    %1308 = vmax.xlane.f32.xlu0 %v1271
    %v1309 = vpop.xlane.xlu0 %1308
    %1310 = vmax.xlane.f32.xlu0 %v1274
    %v1311 = vpop.xlane.xlu0 %1310
    %1312 = vmax.xlane.f32.xlu0 %v1277
    %v1313 = vpop.xlane.xlu0 %1312
    %1314 = vmax.xlane.f32.xlu0 %v1280
    %v1315 = vpop.xlane.xlu0 %1314
    %1316 = vmax.xlane.f32.xlu0 %v1283
    %v1317 = vpop.xlane.xlu0 %1316
    %1318 = vmax.xlane.f32.xlu0 %v1286
    %v1319 = vpop.xlane.xlu0 %1318
    %v1320 = vsub.f32 %v1241, %v1289
    %v1321 = vsub.f32 %v1244, %v1291
    %v1322 = vsub.f32 %v1247, %v1293
    %v1323 = vsub.f32 %v1250, %v1295
    %v1324 = vsub.f32 %v1253, %v1297
    %v1325 = vsub.f32 %v1256, %v1299
    %v1326 = vsub.f32 %v1259, %v1301
    %v1327 = vsub.f32 %v1262, %v1303
    %v1328 = vsub.f32 %v1265, %v1305
    %v1329 = vsub.f32 %v1268, %v1307
    %v1330 = vsub.f32 %v1271, %v1309
    %v1331 = vsub.f32 %v1274, %v1311
    %v1332 = vsub.f32 %v1277, %v1313
    %v1333 = vsub.f32 %v1280, %v1315
    %v1334 = vsub.f32 %v1283, %v1317
    %v1335 = vsub.f32 %v1286, %v1319
    %v1336 = vmul.f32 %v1320, 1.442695
    %v1337 = vpow.pop %v1336
    %v1338 = vmul.f32 %v1321, 1.442695
    %v1339 = vpow.pop %v1338
    %v1340 = vmul.f32 %v1322, 1.442695
    %v1341 = vpow.pop %v1340
    %v1342 = vmul.f32 %v1323, 1.442695
    %v1343 = vpow.pop %v1342
    %v1344 = vmul.f32 %v1324, 1.442695
    %v1345 = vpow.pop %v1344
    %v1346 = vmul.f32 %v1325, 1.442695
    %v1347 = vpow.pop %v1346
    %v1348 = vmul.f32 %v1326, 1.442695
    %v1349 = vpow.pop %v1348
    %v1350 = vmul.f32 %v1327, 1.442695
    %v1351 = vpow.pop %v1350
    %v1352 = vmul.f32 %v1328, 1.442695
    %v1353 = vpow.pop %v1352
    %v1354 = vmul.f32 %v1329, 1.442695
    %v1355 = vpow.pop %v1354
    %v1356 = vmul.f32 %v1330, 1.442695
    %v1357 = vpow.pop %v1356
    %v1358 = vmul.f32 %v1331, 1.442695
    %v1359 = vpow.pop %v1358
    %v1360 = vmul.f32 %v1332, 1.442695
    %v1361 = vpow.pop %v1360
    %v1362 = vmul.f32 %v1333, 1.442695
    %v1363 = vpow.pop %v1362
    %v1364 = vmul.f32 %v1334, 1.442695
    %v1365 = vpow.pop %v1364
    %v1366 = vmul.f32 %v1335, 1.442695
    %v1367 = vpow.pop %v1366
    %1368 = vadd.xlane.f32.xlu0 %v1337
    %v1369 = vpop.xlane.xlu0 %1368
    %1370 = vadd.xlane.f32.xlu0 %v1339
    %v1371 = vpop.xlane.xlu0 %1370
    %1372 = vadd.xlane.f32.xlu0 %v1341
    %v1373 = vpop.xlane.xlu0 %1372
    %1374 = vadd.xlane.f32.xlu0 %v1343
    %v1375 = vpop.xlane.xlu0 %1374
    %1376 = vadd.xlane.f32.xlu0 %v1345
    %v1377 = vpop.xlane.xlu0 %1376
    %1378 = vadd.xlane.f32.xlu0 %v1347
    %v1379 = vpop.xlane.xlu0 %1378
    %1380 = vadd.xlane.f32.xlu0 %v1349
    %v1381 = vpop.xlane.xlu0 %1380
    %1382 = vadd.xlane.f32.xlu0 %v1351
    %v1383 = vpop.xlane.xlu0 %1382
    %1384 = vadd.xlane.f32.xlu0 %v1353
    %v1385 = vpop.xlane.xlu0 %1384
    %1386 = vadd.xlane.f32.xlu0 %v1355
    %v1387 = vpop.xlane.xlu0 %1386
    %1388 = vadd.xlane.f32.xlu0 %v1357
    %v1389 = vpop.xlane.xlu0 %1388
    %1390 = vadd.xlane.f32.xlu0 %v1359
    %v1391 = vpop.xlane.xlu0 %1390
    %1392 = vadd.xlane.f32.xlu0 %v1361
    %v1393 = vpop.xlane.xlu0 %1392
    %1394 = vadd.xlane.f32.xlu0 %v1363
    %v1395 = vpop.xlane.xlu0 %1394
    %1396 = vadd.xlane.f32.xlu0 %v1365
    %v1397 = vpop.xlane.xlu0 %1396
    %1398 = vadd.xlane.f32.xlu0 %v1367
    %v1399 = vpop.xlane.xlu0 %1398
    %v1400 = vrcp.pop %v1369
    %v1401 = vmul.f32 %v1369, %v1400
    %v1402 = vsub.f32 1.0, %v1401
    %v1403 = vmul.f32 %v1400, %v1402
    %v1404 = vadd.f32 %v1400, %v1403
    %vm1405 = vweird.f32 %v1369
    %vm1406 = vweird.f32 %v1400
    %vm1407 = vmor %vm1405, %vm1406
    %v1408 = vsel %vm1407, %v1400, %v1404
    %v1409 = vand.u32 2147483647, %v1369
    %vm1410 = vcmp.eq.f32.partialorder %v1409, 8.507059e+37
    %v1411 = vand.u32 %v1369, 2147483648
    %v1412 = vor.u32 1.1754944e-38, %v1411
    %v1413 = vsel %vm1410, %v1412, %v1408
    %v1414 = vmul.f32 %v1337, %v1413
    %v1415 = vrcp.pop %v1371
    %v1416 = vmul.f32 %v1371, %v1415
    %v1417 = vsub.f32 1.0, %v1416
    %v1418 = vmul.f32 %v1415, %v1417
    %v1419 = vadd.f32 %v1415, %v1418
    %vm1420 = vweird.f32 %v1371
    %vm1421 = vweird.f32 %v1415
    %vm1422 = vmor %vm1420, %vm1421
    %v1423 = vsel %vm1422, %v1415, %v1419
    %v1424 = vand.u32 2147483647, %v1371
    %vm1425 = vcmp.eq.f32.partialorder %v1424, 8.507059e+37
    %v1426 = vand.u32 %v1371, 2147483648
    %v1427 = vor.u32 1.1754944e-38, %v1426
    %v1428 = vsel %vm1425, %v1427, %v1423
    %v1429 = vmul.f32 %v1339, %v1428
    %v1430 = vrcp.pop %v1373
    %v1431 = vmul.f32 %v1373, %v1430
    %v1432 = vsub.f32 1.0, %v1431
    %v1433 = vmul.f32 %v1430, %v1432
    %v1434 = vadd.f32 %v1430, %v1433
    %vm1435 = vweird.f32 %v1373
    %vm1436 = vweird.f32 %v1430
    %vm1437 = vmor %vm1435, %vm1436
    %v1438 = vsel %vm1437, %v1430, %v1434
    %v1439 = vand.u32 2147483647, %v1373
    %vm1440 = vcmp.eq.f32.partialorder %v1439, 8.507059e+37
    %v1441 = vand.u32 %v1373, 2147483648
    %v1442 = vor.u32 1.1754944e-38, %v1441
    %v1443 = vsel %vm1440, %v1442, %v1438
    %v1444 = vmul.f32 %v1341, %v1443
    %v1445 = vrcp.pop %v1375
    %v1446 = vmul.f32 %v1375, %v1445
    %v1447 = vsub.f32 1.0, %v1446
    %v1448 = vmul.f32 %v1445, %v1447
    %v1449 = vadd.f32 %v1445, %v1448
    %vm1450 = vweird.f32 %v1375
    %vm1451 = vweird.f32 %v1445
    %vm1452 = vmor %vm1450, %vm1451
    %v1453 = vsel %vm1452, %v1445, %v1449
    %v1454 = vand.u32 2147483647, %v1375
    %vm1455 = vcmp.eq.f32.partialorder %v1454, 8.507059e+37
    %v1456 = vand.u32 %v1375, 2147483648
    %v1457 = vor.u32 1.1754944e-38, %v1456
    %v1458 = vsel %vm1455, %v1457, %v1453
    %v1459 = vmul.f32 %v1343, %v1458
    %v1460 = vrcp.pop %v1377
    %v1461 = vmul.f32 %v1377, %v1460
    %v1462 = vsub.f32 1.0, %v1461
    %v1463 = vmul.f32 %v1460, %v1462
    %v1464 = vadd.f32 %v1460, %v1463
    %vm1465 = vweird.f32 %v1377
    %vm1466 = vweird.f32 %v1460
    %vm1467 = vmor %vm1465, %vm1466
    %v1468 = vsel %vm1467, %v1460, %v1464
    %v1469 = vand.u32 2147483647, %v1377
    %vm1470 = vcmp.eq.f32.partialorder %v1469, 8.507059e+37
    %v1471 = vand.u32 %v1377, 2147483648
    %v1472 = vor.u32 1.1754944e-38, %v1471
    %v1473 = vsel %vm1470, %v1472, %v1468
    %v1474 = vmul.f32 %v1345, %v1473
    %v1475 = vrcp.pop %v1379
    %v1476 = vmul.f32 %v1379, %v1475
    %v1477 = vsub.f32 1.0, %v1476
    %v1478 = vmul.f32 %v1475, %v1477
    %v1479 = vadd.f32 %v1475, %v1478
    %vm1480 = vweird.f32 %v1379
    %vm1481 = vweird.f32 %v1475
    %vm1482 = vmor %vm1480, %vm1481
    %v1483 = vsel %vm1482, %v1475, %v1479
    %v1484 = vand.u32 2147483647, %v1379
    %vm1485 = vcmp.eq.f32.partialorder %v1484, 8.507059e+37
    %v1486 = vand.u32 %v1379, 2147483648
    %v1487 = vor.u32 1.1754944e-38, %v1486
    %v1488 = vsel %vm1485, %v1487, %v1483
    %v1489 = vmul.f32 %v1347, %v1488
    %v1490 = vrcp.pop %v1381
    %v1491 = vmul.f32 %v1381, %v1490
    %v1492 = vsub.f32 1.0, %v1491
    %v1493 = vmul.f32 %v1490, %v1492
    %v1494 = vadd.f32 %v1490, %v1493
    %vm1495 = vweird.f32 %v1381
    %vm1496 = vweird.f32 %v1490
    %vm1497 = vmor %vm1495, %vm1496
    %v1498 = vsel %vm1497, %v1490, %v1494
    %v1499 = vand.u32 2147483647, %v1381
    %vm1500 = vcmp.eq.f32.partialorder %v1499, 8.507059e+37
    %v1501 = vand.u32 %v1381, 2147483648
    %v1502 = vor.u32 1.1754944e-38, %v1501
    %v1503 = vsel %vm1500, %v1502, %v1498
    %v1504 = vmul.f32 %v1349, %v1503
    %v1505 = vrcp.pop %v1383
    %v1506 = vmul.f32 %v1383, %v1505
    %v1507 = vsub.f32 1.0, %v1506
    %v1508 = vmul.f32 %v1505, %v1507
    %v1509 = vadd.f32 %v1505, %v1508
    %vm1510 = vweird.f32 %v1383
    %vm1511 = vweird.f32 %v1505
    %vm1512 = vmor %vm1510, %vm1511
    %v1513 = vsel %vm1512, %v1505, %v1509
    %v1514 = vand.u32 2147483647, %v1383
    %vm1515 = vcmp.eq.f32.partialorder %v1514, 8.507059e+37
    %v1516 = vand.u32 %v1383, 2147483648
    %v1517 = vor.u32 1.1754944e-38, %v1516
    %v1518 = vsel %vm1515, %v1517, %v1513
    %v1519 = vmul.f32 %v1351, %v1518
    %v1520 = vrcp.pop %v1385
    %v1521 = vmul.f32 %v1385, %v1520
    %v1522 = vsub.f32 1.0, %v1521
    %v1523 = vmul.f32 %v1520, %v1522
    %v1524 = vadd.f32 %v1520, %v1523
    %vm1525 = vweird.f32 %v1385
    %vm1526 = vweird.f32 %v1520
    %vm1527 = vmor %vm1525, %vm1526
    %v1528 = vsel %vm1527, %v1520, %v1524
    %v1529 = vand.u32 2147483647, %v1385
    %vm1530 = vcmp.eq.f32.partialorder %v1529, 8.507059e+37
    %v1531 = vand.u32 %v1385, 2147483648
    %v1532 = vor.u32 1.1754944e-38, %v1531
    %v1533 = vsel %vm1530, %v1532, %v1528
    %v1534 = vmul.f32 %v1353, %v1533
    %v1535 = vrcp.pop %v1387
    %v1536 = vmul.f32 %v1387, %v1535
    %v1537 = vsub.f32 1.0, %v1536
    %v1538 = vmul.f32 %v1535, %v1537
    %v1539 = vadd.f32 %v1535, %v1538
    %vm1540 = vweird.f32 %v1387
    %vm1541 = vweird.f32 %v1535
    %vm1542 = vmor %vm1540, %vm1541
    %v1543 = vsel %vm1542, %v1535, %v1539
    %v1544 = vand.u32 2147483647, %v1387
    %vm1545 = vcmp.eq.f32.partialorder %v1544, 8.507059e+37
    %v1546 = vand.u32 %v1387, 2147483648
    %v1547 = vor.u32 1.1754944e-38, %v1546
    %v1548 = vsel %vm1545, %v1547, %v1543
    %v1549 = vmul.f32 %v1355, %v1548
    %v1550 = vrcp.pop %v1389
    %v1551 = vmul.f32 %v1389, %v1550
    %v1552 = vsub.f32 1.0, %v1551
    %v1553 = vmul.f32 %v1550, %v1552
    %v1554 = vadd.f32 %v1550, %v1553
    %vm1555 = vweird.f32 %v1389
    %vm1556 = vweird.f32 %v1550
    %vm1557 = vmor %vm1555, %vm1556
    %v1558 = vsel %vm1557, %v1550, %v1554
    %v1559 = vand.u32 2147483647, %v1389
    %vm1560 = vcmp.eq.f32.partialorder %v1559, 8.507059e+37
    %v1561 = vand.u32 %v1389, 2147483648
    %v1562 = vor.u32 1.1754944e-38, %v1561
    %v1563 = vsel %vm1560, %v1562, %v1558
    %v1564 = vmul.f32 %v1357, %v1563
    %v1565 = vrcp.pop %v1391
    %v1566 = vmul.f32 %v1391, %v1565
    %v1567 = vsub.f32 1.0, %v1566
    %v1568 = vmul.f32 %v1565, %v1567
    %v1569 = vadd.f32 %v1565, %v1568
    %vm1570 = vweird.f32 %v1391
    %vm1571 = vweird.f32 %v1565
    %vm1572 = vmor %vm1570, %vm1571
    %v1573 = vsel %vm1572, %v1565, %v1569
    %v1574 = vand.u32 2147483647, %v1391
    %vm1575 = vcmp.eq.f32.partialorder %v1574, 8.507059e+37
    %v1576 = vand.u32 %v1391, 2147483648
    %v1577 = vor.u32 1.1754944e-38, %v1576
    %v1578 = vsel %vm1575, %v1577, %v1573
    %v1579 = vmul.f32 %v1359, %v1578
    %v1580 = vrcp.pop %v1393
    %v1581 = vmul.f32 %v1393, %v1580
    %v1582 = vsub.f32 1.0, %v1581
    %v1583 = vmul.f32 %v1580, %v1582
    %v1584 = vadd.f32 %v1580, %v1583
    %vm1585 = vweird.f32 %v1393
    %vm1586 = vweird.f32 %v1580
    %vm1587 = vmor %vm1585, %vm1586
    %v1588 = vsel %vm1587, %v1580, %v1584
    %v1589 = vand.u32 2147483647, %v1393
    %vm1590 = vcmp.eq.f32.partialorder %v1589, 8.507059e+37
    %v1591 = vand.u32 %v1393, 2147483648
    %v1592 = vor.u32 1.1754944e-38, %v1591
    %v1593 = vsel %vm1590, %v1592, %v1588
    %v1594 = vmul.f32 %v1361, %v1593
    %v1595 = vrcp.pop %v1395
    %v1596 = vmul.f32 %v1395, %v1595
    %v1597 = vsub.f32 1.0, %v1596
    %v1598 = vmul.f32 %v1595, %v1597
    %v1599 = vadd.f32 %v1595, %v1598
    %vm1600 = vweird.f32 %v1395
    %vm1601 = vweird.f32 %v1595
    %vm1602 = vmor %vm1600, %vm1601
    %v1603 = vsel %vm1602, %v1595, %v1599
    %v1604 = vand.u32 2147483647, %v1395
    %vm1605 = vcmp.eq.f32.partialorder %v1604, 8.507059e+37
    %v1606 = vand.u32 %v1395, 2147483648
    %v1607 = vor.u32 1.1754944e-38, %v1606
    %v1608 = vsel %vm1605, %v1607, %v1603
    %v1609 = vmul.f32 %v1363, %v1608
    %v1610 = vrcp.pop %v1397
    %v1611 = vmul.f32 %v1397, %v1610
    %v1612 = vsub.f32 1.0, %v1611
    %v1613 = vmul.f32 %v1610, %v1612
    %v1614 = vadd.f32 %v1610, %v1613
    %vm1615 = vweird.f32 %v1397
    %vm1616 = vweird.f32 %v1610
    %vm1617 = vmor %vm1615, %vm1616
    %v1618 = vsel %vm1617, %v1610, %v1614
    %v1619 = vand.u32 2147483647, %v1397
    %vm1620 = vcmp.eq.f32.partialorder %v1619, 8.507059e+37
    %v1621 = vand.u32 %v1397, 2147483648
    %v1622 = vor.u32 1.1754944e-38, %v1621
    %v1623 = vsel %vm1620, %v1622, %v1618
    %v1624 = vmul.f32 %v1365, %v1623
    %v1625 = vrcp.pop %v1399
    %v1626 = vmul.f32 %v1399, %v1625
    %v1627 = vsub.f32 1.0, %v1626
    %v1628 = vmul.f32 %v1625, %v1627
    %v1629 = vadd.f32 %v1625, %v1628
    %vm1630 = vweird.f32 %v1399
    %vm1631 = vweird.f32 %v1625
    %vm1632 = vmor %vm1630, %vm1631
    %v1633 = vsel %vm1632, %v1625, %v1629
    %v1634 = vand.u32 2147483647, %v1399
    %vm1635 = vcmp.eq.f32.partialorder %v1634, 8.507059e+37
    %v1636 = vand.u32 %v1399, 2147483648
    %v1637 = vor.u32 1.1754944e-38, %v1636
    %v1638 = vsel %vm1635, %v1637, %v1633
    %v1639 = vmul.f32 %v1367, %v1638
    %v1640 = vld [vmem:[%s10] sm:$0xff]
    %v1641 = vld [vmem:[%s10 + $0x8] sm:$0xff]
    %v1642 = vld [vmem:[%s10 + $0x10] sm:$0xff]
    %v1643 = vld [vmem:[%s10 + $0x18] sm:$0xff]
    %v1644 = vld [vmem:[%s10 + $0x20] sm:$0xff]
    %v1645 = vld [vmem:[%s10 + $0x28] sm:$0xff]
    %v1646 = vld [vmem:[%s10 + $0x30] sm:$0xff]
    %v1647 = vld [vmem:[%s10 + $0x38] sm:$0xff]
    %v1648 = vld [vmem:[%s10 + $0x40] sm:$0xff]
    %v1649 = vld [vmem:[%s10 + $0x48] sm:$0xff]
    %v1650 = vld [vmem:[%s10 + $0x50] sm:$0xff]
    %v1651 = vld [vmem:[%s10 + $0x58] sm:$0xff]
    %v1652 = vld [vmem:[%s10 + $0x60] sm:$0xff]
    %v1653 = vld [vmem:[%s10 + $0x68] sm:$0xff]
    %v1654 = vld [vmem:[%s10 + $0x70] sm:$0xff]
    %v1655 = vld [vmem:[%s10 + $0x78] sm:$0xff]
    %1656 = vmatpush.msra.mxu0 %v1655
    %1657 = vmatpush.msra.mxu0 %v1654
    %1658 = vmatpush.msra.mxu0 %v1653
    %1659 = vmatpush.msra.mxu0 %v1652
    %1660 = vmatpush.msra.mxu0 %v1651
    %1661 = vmatpush.msra.mxu0 %v1650
    %1662 = vmatpush.msra.mxu0 %v1649
    %1663 = vmatpush.msra.mxu0 %v1648
    %1664 = vmatpush.msra.mxu0 %v1647
    %1665 = vmatpush.msra.mxu0 %v1646
    %1666 = vmatpush.msra.mxu0 %v1645
    %1667 = vmatpush.msra.mxu0 %v1644
    %1668 = vmatpush.msra.mxu0 %v1643
    %1669 = vmatpush.msra.mxu0 %v1642
    %1670 = vmatpush.msra.mxu0 %v1641
    %1671 = vmatpush.msra.mxu0 %v1640
    %1672 = vmatmul.f32.gmra.mxu0 %v1414
    %v1673 = vpop.f32.mrf.mxu0
    %v1674 = vadd.f32 0.0, %v1673
    %1675 = vmatmul.f32.gmra.mxu0 %v1429
    %v1676 = vpop.f32.mrf.mxu0
    %v1677 = vadd.f32 0.0, %v1676
    %1678 = vmatmul.f32.gmra.mxu0 %v1444
    %v1679 = vpop.f32.mrf.mxu0
    %v1680 = vadd.f32 0.0, %v1679
    %1681 = vmatmul.f32.gmra.mxu0 %v1459
    %v1682 = vpop.f32.mrf.mxu0
    %v1683 = vadd.f32 0.0, %v1682
    %1684 = vmatmul.f32.gmra.mxu0 %v1474
    %v1685 = vpop.f32.mrf.mxu0
    %v1686 = vadd.f32 0.0, %v1685
    %1687 = vmatmul.f32.gmra.mxu0 %v1489
    %v1688 = vpop.f32.mrf.mxu0
    %v1689 = vadd.f32 0.0, %v1688
    %1690 = vmatmul.f32.gmra.mxu0 %v1504
    %v1691 = vpop.f32.mrf.mxu0
    %v1692 = vadd.f32 0.0, %v1691
    %1693 = vmatmul.f32.gmra.mxu0 %v1519
    %v1694 = vpop.f32.mrf.mxu0
    %v1695 = vadd.f32 0.0, %v1694
    %1696 = vmatmul.f32.gmra.mxu0 %v1534
    %v1697 = vpop.f32.mrf.mxu0
    %v1698 = vadd.f32 0.0, %v1697
    %1699 = vmatmul.f32.gmra.mxu0 %v1549
    %v1700 = vpop.f32.mrf.mxu0
    %v1701 = vadd.f32 0.0, %v1700
    %1702 = vmatmul.f32.gmra.mxu0 %v1564
    %v1703 = vpop.f32.mrf.mxu0
    %v1704 = vadd.f32 0.0, %v1703
    %1705 = vmatmul.f32.gmra.mxu0 %v1579
    %v1706 = vpop.f32.mrf.mxu0
    %v1707 = vadd.f32 0.0, %v1706
    %1708 = vmatmul.f32.gmra.mxu0 %v1594
    %v1709 = vpop.f32.mrf.mxu0
    %v1710 = vadd.f32 0.0, %v1709
    %1711 = vmatmul.f32.gmra.mxu0 %v1609
    %v1712 = vpop.f32.mrf.mxu0
    %v1713 = vadd.f32 0.0, %v1712
    %1714 = vmatmul.f32.gmra.mxu0 %v1624
    %v1715 = vpop.f32.mrf.mxu0
    %v1716 = vadd.f32 0.0, %v1715
    %1717 = vmatmul.f32.gmra.mxu0 %v1639
    %v1718 = vpop.f32.mrf.mxu0
    %v1719 = vadd.f32 0.0, %v1718
    %1720 = vdwg.mxu0
    %v1721 = vadd.f32 %v1674, %v1680
    %v1722 = vadd.f32 %v1677, %v1683
    %v1723 = vadd.f32 %v1721, %v1686
    %v1724 = vadd.f32 %v1722, %v1689
    %v1725 = vadd.f32 %v1723, %v1692
    %v1726 = vadd.f32 %v1724, %v1695
    %v1727 = vadd.f32 %v1725, %v1698
    %v1728 = vadd.f32 %v1726, %v1701
    %v1729 = vadd.f32 %v1727, %v1704
    %v1730 = vadd.f32 %v1728, %v1707
    %v1731 = vadd.f32 %v1729, %v1710
    %v1732 = vadd.f32 %v1730, %v1713
    %v1733 = vadd.f32 %v1731, %v1716
    %v1734 = vadd.f32 %v1732, %v1719
    %v1735 = vmul.f32 %v1733, 0.125
    %v1736 = vmul.f32 %v1734, 0.125
    %v1737 = vadd.f32 %v1062, %v1735
    %v1738 = vadd.f32 %v1065, %v1736
    %v1739 = vld [vmem:[#allocation13] sm:$0xff]
    %v1740 = vld [vmem:[#allocation13 + $0x8] sm:$0xff]
    %v1741 = vld [vmem:[#allocation13 + $0x10] sm:$0xff]
    %v1742 = vld [vmem:[#allocation13 + $0x18] sm:$0xff]
    %v1743 = vld [vmem:[#allocation13 + $0x20] sm:$0xff]
    %v1744 = vld [vmem:[#allocation13 + $0x28] sm:$0xff]
    %v1745 = vld [vmem:[#allocation13 + $0x30] sm:$0xff]
    %v1746 = vld [vmem:[#allocation13 + $0x38] sm:$0xff]
    %v1747 = vld [vmem:[#allocation13 + $0x40] sm:$0xff]
    %v1748 = vld [vmem:[#allocation13 + $0x48] sm:$0xff]
    %v1749 = vld [vmem:[#allocation13 + $0x50] sm:$0xff]
    %v1750 = vld [vmem:[#allocation13 + $0x58] sm:$0xff]
    %v1751 = vld [vmem:[#allocation13 + $0x60] sm:$0xff]
    %v1752 = vld [vmem:[#allocation13 + $0x68] sm:$0xff]
    %v1753 = vld [vmem:[#allocation13 + $0x70] sm:$0xff]
    %v1754 = vld [vmem:[#allocation13 + $0x78] sm:$0xff]
    %v1755 = vld [vmem:[%s18] sm:$0x1]
    %v1757 = vperm.slane %v1755, 0
    %1759 = vmatpush.msra.mxu0 %v1754
    %1760 = vmatpush.msra.mxu0 %v1753
    %1761 = vmatpush.msra.mxu0 %v1752
    %1762 = vmatpush.msra.mxu0 %v1751
    %1763 = vmatpush.msra.mxu0 %v1750
    %1764 = vmatpush.msra.mxu0 %v1749
    %1765 = vmatpush.msra.mxu0 %v1748
    %1766 = vmatpush.msra.mxu0 %v1747
    %1767 = vmatpush.msra.mxu0 %v1746
    %1768 = vmatpush.msra.mxu0 %v1745
    %1769 = vmatpush.msra.mxu0 %v1744
    %1770 = vmatpush.msra.mxu0 %v1743
    %1771 = vmatpush.msra.mxu0 %v1742
    %1772 = vmatpush.msra.mxu0 %v1741
    %1773 = vmatpush.msra.mxu0 %v1740
    %1774 = vmatpush.msra.mxu0 %v1739
    %1775 = vmatmul.f32.gmra.mxu0 %v1737
    %v1776 = vpop.f32.mrf.mxu0
    %v1777 = vadd.f32 %v1757, %v1776
    %1778 = vmatmul.f32.gmra.mxu0 %v1738
    %v1779 = vpop.f32.mrf.mxu0
    %v1780 = vadd.f32 %v1757, %v1779
    %1781 = vdwg.mxu0
    %v1782 = vmax.f32 %v1777, 0.0
    %v1783 = vmax.f32 %v1780, 0.0
    %v1784 = vld [vmem:[%s19] sm:$0x1]
    %v1786 = vperm.slane %v1784, 0
    %v1788 = vmul.f32 %v1782, %v1786
    %v1789 = vmul.f32 %v1783, %v1786
    %1790 = vadd.xlane.f32.xlu0 %v1788
    %v1791 = vpop.xlane.xlu0 %1790
    %1792 = vadd.xlane.f32.xlu0 %v1789
    %v1793 = vpop.xlane.xlu0 %1792
    %v1794 = vld [vmem:[#allocation2] sm:$0x1]
    %v1796 = vperm.slane %v1794, 0
    %v1798 = vadd.f32 %v1791, %v1796
    %v1799 = vadd.f32 %v1793, %v1796
    %vm1800 = vcmask 7168
    %v1801 = vsel %vm1800, %v1798, -inf
    %v1802 = vsel %vm1800, %v1799, -inf
    %v1803 = vmax.f32 %v1801, %v1802
    %v1804 = vrot.slane %v1803, 4
    %v1805 = vmax.f32 %v1803, %v1804
    %v1806 = vrot.slane %v1805, 2
    %v1807 = vmax.f32 %v1805, %v1806
    %v1808 = vrot.slane %v1807, 1
    %v1809 = vmax.f32 %v1807, %v1808
    %v1810 = vsub.f32 %v1798, %v1809
    %v1811 = vsub.f32 %v1799, %v1809
    %v1812 = vmul.f32 %v1810, 1.442695
    %v1813 = vpow.pop %v1812
    %v1814 = vmul.f32 %v1811, 1.442695
    %v1815 = vpow.pop %v1814
    %v1816 = vsel %vm1800, %v1813, 0.0
    %v1817 = vsel %vm1800, %v1815, 0.0
    %v1818 = vadd.f32 %v1816, %v1817
    %v1819 = vrot.slane %v1818, 4
    %v1820 = vadd.f32 %v1818, %v1819
    %v1821 = vrot.slane %v1820, 2
    %v1822 = vadd.f32 %v1820, %v1821
    %v1823 = vrot.slane %v1822, 1
    %v1824 = vadd.f32 %v1822, %v1823
    %v1825 = vrcp.pop %v1824
    %v1826 = vmul.f32 %v1824, %v1825
    %v1827 = vsub.f32 1.0, %v1826
    %v1828 = vmul.f32 %v1825, %v1827
    %v1829 = vadd.f32 %v1825, %v1828
    %vm1830 = vweird.f32 %v1824
    %vm1831 = vweird.f32 %v1825
    %vm1832 = vmor %vm1830, %vm1831
    %v1833 = vsel %vm1832, %v1825, %v1829
    %v1834 = vand.u32 2147483647, %v1824
    %vm1835 = vcmp.eq.f32.partialorder %v1834, 8.507059e+37
    %v1836 = vand.u32 %v1824, 2147483648
    %v1837 = vor.u32 1.1754944e-38, %v1836
    %v1838 = vsel %vm1835, %v1837, %v1833
    %v1839 = vmul.f32 %v1813, %v1838
    %v1840 = vmul.f32 %v1815, %v1838
    %1842 = vset.pattern.permute.xlu0 0
    %1843 = vperm.xlu0 %1842, %v1839
    %v1844 = vpop.permute.xlu0 %1843
    %1847 = vset.pattern.permute.xlu0 0
    %1848 = vperm.xlu0 %1847, %v1840
    %v1849 = vpop.permute.xlu0 %1848
    %v1851 = vmul.f32 %v1737, %v1844
    %v1852 = vmul.f32 %v1738, %v1849
    %1853 = vst [vmem:[%s21] sm:$0xff] %v1851
    %1854 = vst [vmem:[%s21 + $0x8] sm:$0xff] %v1852
    %1855 = vst.msk [vmem:[%s22] sm:$0xff] %vm1800, %v1798
    %1856 = vst.msk [vmem:[%s22 + $0x8] sm:$0xff] %vm1800, %v1799
    // Predicated region
    $region114: #{enhanced_meta_learning_forward.3} parent=1 // pred_check
      _
    $region115: #{enhanced_meta_learning_forward.3} parent=1 // pred_check_branch
      %1858 = sbr.rel (0) target = $region117
    $region116: #{enhanced_meta_learning_forward.3} parent=1 // pred_region
      _
    $region117: #{enhanced_meta_learning_forward.3} parent=1 // pred_fallthru
      _
    // Predicated region
    $region118: #{enhanced_meta_learning_forward.3} parent=1 // pred_check
      _
    $region119: #{enhanced_meta_learning_forward.3} parent=1 // pred_check_branch
      %1860 = sbr.rel (0) target = $region121
    $region120: #{enhanced_meta_learning_forward.3} parent=1 // pred_region
      _
    $region121: #{enhanced_meta_learning_forward.3} parent=1 // pred_fallthru
      _
    // Predicated region
    $region122: #{enhanced_meta_learning_forward.3} parent=1 // pred_check
      _
    $region123: #{enhanced_meta_learning_forward.3} parent=1 // pred_check_branch
      %1862 = sbr.rel (0) target = $region125
    $region124: #{enhanced_meta_learning_forward.3} parent=1 // pred_region
      _
    $region125: #{enhanced_meta_learning_forward.3} parent=1 // pred_fallthru
      _
    // Predicated region
    $region126: #{enhanced_meta_learning_forward.3} parent=1 // pred_check
      _
    $region127: #{enhanced_meta_learning_forward.3} parent=1 // pred_check_branch
      %1864 = sbr.rel (0) target = $region129
    $region128: #{enhanced_meta_learning_forward.3} parent=1 // pred_region
      _
    $region129: #{enhanced_meta_learning_forward.3} parent=1 // pred_fallthru
      _
    %1865 = vsyncpa [#allocation4], 1
    %1866 = vsyncpa [#allocation6], 1
    %1867 = vsyncpa [#allocation9], 1
    %1868 = vsyncpa [#allocation12], 1

// kernel: enhanced_meta_learning_forward.5
$region0: #{enhanced_meta_learning_forward.5}
  #allocation0 [shape = 'u32[]', space=smem, size = 0x4, offset = 0x4, fixed_abs, tag = 'smem constant byte address 0x4 - core index']
  #allocation1 [shape = 'u32[72,128]{1,0:T(1,128)}', space=vmem, size = 0x9000, scoped, tag = 'internal scratch']
  %s0 = inlined_call_operand.vmem [shape: f32[16,128], index: 0, kind: input, shape index: {}]
  %s1 = inlined_call_operand.vmem [shape: f32[1,128], index: 1, kind: input, shape index: {}]
  %s2 = inlined_call_operand.vmem [shape: f32[128,128], index: 2, kind: input, shape index: {}]
  %s3 = inlined_call_operand.hbm [shape: f32[128,128], index: 3, kind: input, shape index: {}]
  %s4 = inlined_call_operand.vmem [shape: f32[1,128], index: 4, kind: input, shape index: {}]
  %s5 = inlined_call_operand.hbm [shape: f32[128,640], index: 5, kind: input, shape index: {}]
  %s6 = inlined_call_operand.vmem [shape: f32[1,640], index: 6, kind: input, shape index: {}]
  %s7 = inlined_call_operand.vmem [shape: f32[128,5], index: 7, kind: input, shape index: {}]
  %s8 = inlined_call_operand.vmem [shape: f32[1,5], index: 8, kind: input, shape index: {}]
  %s9 = inlined_call_operand.hbm [shape: f32[128,1280], index: 9, kind: input, shape index: {}]
  %s10 = inlined_call_operand.vmem [shape: f32[1,1280], index: 10, kind: input, shape index: {}]
  %s11 = inlined_call_operand.hbm [shape: f32[80,1280], index: 11, kind: output, shape index: {0}]
  %s12 = inlined_call_operand.hbm [shape: f32[80,128], index: 12, kind: output, shape index: {1}]
  %s13 = inlined_call_operand.vmem [shape: f32[5,128], index: 13, kind: output, shape index: {2}]
  %s14 = inlined_call_operand.hbm [shape: f32[80,128], index: 14, kind: output, shape index: {3}]
  %15 = xla_tuple %s11, %s12, %s13, %s14
  %s16 = sld [smem:[#allocation0]]
  $region90: #{enhanced_meta_learning_forward.5} parent=0
    _
  %s18 = ssub.s32 1, %s16
  %s19 = scalar_select 0, %s18, %s16
  $region1: #{enhanced_meta_learning_forward.5} parent=0
    #allocation2 [shape = 'u8[65536]{0}', space=vmem, size = 0x10000, scoped, tag = 'input window, operand 3, single buffered']
    #allocation3 [shape = 's32[1]{0}', space=sflag, size = 0x4, scoped, tag = 'scoped memory for enhanced_meta_learning_forward.5']
    #allocation4 [shape = 's32[1]{0}', space=sflag, size = 0x4, scoped, tag = 'scoped memory for enhanced_meta_learning_forward.5']
    #allocation5 [shape = 'u8[327680]{0}', space=vmem, size = 0x50000, scoped, tag = 'input window, operand 5, single buffered']
    #allocation6 [shape = 's32[1]{0}', space=sflag, size = 0x4, scoped, tag = 'scoped memory for enhanced_meta_learning_forward.5']
    #allocation7 [shape = 'u8[655360]{0}', space=vmem, size = 0xa0000, scoped, tag = 'input window, operand 9, single buffered']
    #allocation8 [shape = 'u8[409600]{0}', space=vmem, size = 0x64000, scoped, tag = 'output window, operand 0, single buffered']
    #allocation9 [shape = 'u8[40960]{0}', space=vmem, size = 0xa000, scoped, tag = 'output window, operand 1, single buffered']
    #allocation10 [shape = 's32[1]{0}', space=sflag, size = 0x4, scoped, tag = 'scoped memory for enhanced_meta_learning_forward.5']
    #allocation11 [shape = 'u8[40960]{0}', space=vmem, size = 0xa000, scoped, tag = 'output window, operand 3, single buffered']
    %20 = vsyncpa [#allocation3], 0
    %21 = vsyncpa [#allocation6], 0
    %22 = vsyncpa [#allocation4], 0
    %23 = vsyncpa [#allocation10], 0
    // Predicated region
    $region2: #{enhanced_meta_learning_forward.5} parent=1 // pred_check
      _
    $region3: #{enhanced_meta_learning_forward.5} parent=1 // pred_check_branch
      %25 = sbr.rel (0) target = $region5
    $region4: #{enhanced_meta_learning_forward.5} parent=1 // pred_region
      _
    $region5: #{enhanced_meta_learning_forward.5} parent=1 // pred_fallthru
      _
    // Predicated region
    $region6: #{enhanced_meta_learning_forward.5} parent=1 // pred_check
      _
    $region7: #{enhanced_meta_learning_forward.5} parent=1 // pred_check_branch
      %27 = sbr.rel (0) target = $region9
    $region8: #{enhanced_meta_learning_forward.5} parent=1 // pred_region
      _
    $region9: #{enhanced_meta_learning_forward.5} parent=1 // pred_fallthru
      _
    // Predicated region
    $region10: #{enhanced_meta_learning_forward.5} parent=1 // pred_check
      _
    $region11: #{enhanced_meta_learning_forward.5} parent=1 // pred_check_branch
      %29 = sbr.rel (0) target = $region13
    $region12: #{enhanced_meta_learning_forward.5} parent=1 // pred_region
      _
    $region13: #{enhanced_meta_learning_forward.5} parent=1 // pred_fallthru
      _
    // Predicated region
    $region14: #{enhanced_meta_learning_forward.5} parent=1 // pred_check
      _
    $region15: #{enhanced_meta_learning_forward.5} parent=1 // pred_check_branch
      %31 = sbr.rel (0) target = $region17
    $region16: #{enhanced_meta_learning_forward.5} parent=1 // pred_region
      %33 = vsyncadd [#allocation3], 0
      %s34 = sshll.u32 %s3, 4
      %s35 = int_to_ptr.hbm [resolvable:$true] %s34
      %s36 = sshll.u32 [#allocation2], 4
      %s37 = int_to_ptr.vmem [resolvable:$true] %s36
      %42 = dma.hbm_to_vmem [thread:$0]  %s35, 2048, %s37, [#allocation3], 128, 128, 8
    $region17: #{enhanced_meta_learning_forward.5} parent=1 // pred_fallthru
      _
    // Predicated region
    $region18: #{enhanced_meta_learning_forward.5} parent=1 // pred_check
      _
    $region19: #{enhanced_meta_learning_forward.5} parent=1 // pred_check_branch
      %44 = sbr.rel (0) target = $region21
    $region20: #{enhanced_meta_learning_forward.5} parent=1 // pred_region
      _
    $region21: #{enhanced_meta_learning_forward.5} parent=1 // pred_fallthru
      _
    // Predicated region
    $region22: #{enhanced_meta_learning_forward.5} parent=1 // pred_check
      _
    $region23: #{enhanced_meta_learning_forward.5} parent=1 // pred_check_branch
      %46 = sbr.rel (0) target = $region25
    $region24: #{enhanced_meta_learning_forward.5} parent=1 // pred_region
      %48 = vsyncadd [#allocation6], 0
      %s49 = sshll.u32 %s5, 4
      %s50 = int_to_ptr.hbm [resolvable:$true] %s49
      %s51 = sshll.u32 [#allocation5], 4
      %s52 = int_to_ptr.vmem [resolvable:$true] %s51
      %57 = dma.hbm_to_vmem [thread:$0]  %s50, 10240, %s52, [#allocation6], 640, 640, 40
    $region25: #{enhanced_meta_learning_forward.5} parent=1 // pred_fallthru
      _
    // Predicated region
    $region26: #{enhanced_meta_learning_forward.5} parent=1 // pred_check
      _
    $region27: #{enhanced_meta_learning_forward.5} parent=1 // pred_check_branch
      %59 = sbr.rel (0) target = $region29
    $region28: #{enhanced_meta_learning_forward.5} parent=1 // pred_region
      _
    $region29: #{enhanced_meta_learning_forward.5} parent=1 // pred_fallthru
      _
    // Predicated region
    $region30: #{enhanced_meta_learning_forward.5} parent=1 // pred_check
      _
    $region31: #{enhanced_meta_learning_forward.5} parent=1 // pred_check_branch
      %61 = sbr.rel (0) target = $region33
    $region32: #{enhanced_meta_learning_forward.5} parent=1 // pred_region
      _
    $region33: #{enhanced_meta_learning_forward.5} parent=1 // pred_fallthru
      _
    // Predicated region
    $region34: #{enhanced_meta_learning_forward.5} parent=1 // pred_check
      _
    $region35: #{enhanced_meta_learning_forward.5} parent=1 // pred_check_branch
      %63 = sbr.rel (0) target = $region37
    $region36: #{enhanced_meta_learning_forward.5} parent=1 // pred_region
      _
    $region37: #{enhanced_meta_learning_forward.5} parent=1 // pred_fallthru
      _
    // Predicated region
    $region38: #{enhanced_meta_learning_forward.5} parent=1 // pred_check
      _
    $region39: #{enhanced_meta_learning_forward.5} parent=1 // pred_check_branch
      %65 = sbr.rel (0) target = $region41
    $region40: #{enhanced_meta_learning_forward.5} parent=1 // pred_region
      %67 = vsyncadd [#allocation6], 0
      %s68 = sshll.u32 %s9, 4
      %s69 = int_to_ptr.hbm [resolvable:$true] %s68
      %s70 = sshll.u32 [#allocation7], 4
      %s71 = int_to_ptr.vmem [resolvable:$true] %s70
      %76 = dma.hbm_to_vmem [thread:$0]  %s69, 20480, %s71, [#allocation6], 1280, 1280, 80
    $region41: #{enhanced_meta_learning_forward.5} parent=1 // pred_fallthru
      _
    // Predicated region
    $region42: #{enhanced_meta_learning_forward.5} parent=1 // pred_check
      _
    $region43: #{enhanced_meta_learning_forward.5} parent=1 // pred_check_branch
      %78 = sbr.rel (0) target = $region45
    $region44: #{enhanced_meta_learning_forward.5} parent=1 // pred_region
      _
    $region45: #{enhanced_meta_learning_forward.5} parent=1 // pred_fallthru
      _
    // Predicated region
    $region46: #{enhanced_meta_learning_forward.5} parent=1 // pred_check
      _
    $region47: #{enhanced_meta_learning_forward.5} parent=1 // pred_check_branch
      %80 = sbr.rel (0) target = $region49
    $region48: #{enhanced_meta_learning_forward.5} parent=1 // pred_region
      %82 = dma.done [#allocation3], 2048
    $region49: #{enhanced_meta_learning_forward.5} parent=1 // pred_fallthru
      _
    // Predicated region
    $region50: #{enhanced_meta_learning_forward.5} parent=1 // pred_check
      _
    $region51: #{enhanced_meta_learning_forward.5} parent=1 // pred_check_branch
      %84 = sbr.rel (0) target = $region53
    $region52: #{enhanced_meta_learning_forward.5} parent=1 // pred_region
      %86 = dma.done [#allocation6], 10240
    $region53: #{enhanced_meta_learning_forward.5} parent=1 // pred_fallthru
      _
    // Predicated region
    $region54: #{enhanced_meta_learning_forward.5} parent=1 // pred_check
      _
    $region55: #{enhanced_meta_learning_forward.5} parent=1 // pred_check_branch
      %88 = sbr.rel (0) target = $region57
    $region56: #{enhanced_meta_learning_forward.5} parent=1 // pred_region
      %90 = dma.done [#allocation6], 20480
    $region57: #{enhanced_meta_learning_forward.5} parent=1 // pred_fallthru
      _
    %v91 = vld [vmem:[%s0] sm:$0xff]
    %v92 = vld [vmem:[%s0 + $0x8] sm:$0xff]
    %v93 = vld [vmem:[%s2] sm:$0xff]
    %v94 = vld [vmem:[%s2 + $0x8] sm:$0xff]
    %v95 = vld [vmem:[%s2 + $0x10] sm:$0xff]
    %v96 = vld [vmem:[%s2 + $0x18] sm:$0xff]
    %v97 = vld [vmem:[%s2 + $0x20] sm:$0xff]
    %v98 = vld [vmem:[%s2 + $0x28] sm:$0xff]
    %v99 = vld [vmem:[%s2 + $0x30] sm:$0xff]
    %v100 = vld [vmem:[%s2 + $0x38] sm:$0xff]
    %v101 = vld [vmem:[%s2 + $0x40] sm:$0xff]
    %v102 = vld [vmem:[%s2 + $0x48] sm:$0xff]
    %v103 = vld [vmem:[%s2 + $0x50] sm:$0xff]
    %v104 = vld [vmem:[%s2 + $0x58] sm:$0xff]
    %v105 = vld [vmem:[%s2 + $0x60] sm:$0xff]
    %v106 = vld [vmem:[%s2 + $0x68] sm:$0xff]
    %v107 = vld [vmem:[%s2 + $0x70] sm:$0xff]
    %v108 = vld [vmem:[%s2 + $0x78] sm:$0xff]
    %109 = vmatpush.msra.mxu0 %v108
    %110 = vmatpush.msra.mxu0 %v107
    %111 = vmatpush.msra.mxu0 %v106
    %112 = vmatpush.msra.mxu0 %v105
    %113 = vmatpush.msra.mxu0 %v104
    %114 = vmatpush.msra.mxu0 %v103
    %115 = vmatpush.msra.mxu0 %v102
    %116 = vmatpush.msra.mxu0 %v101
    %117 = vmatpush.msra.mxu0 %v100
    %118 = vmatpush.msra.mxu0 %v99
    %119 = vmatpush.msra.mxu0 %v98
    %120 = vmatpush.msra.mxu0 %v97
    %121 = vmatpush.msra.mxu0 %v96
    %122 = vmatpush.msra.mxu0 %v95
    %123 = vmatpush.msra.mxu0 %v94
    %124 = vmatpush.msra.mxu0 %v93
    %125 = vmatmul.f32.gmra.mxu0 %v91
    %v126 = vpop.f32.mrf.mxu0
    %v127 = vadd.f32 0.0, %v126
    %128 = vmatmul.f32.gmra.mxu0 %v92
    %v129 = vpop.f32.mrf.mxu0
    %v130 = vadd.f32 0.0, %v129
    %131 = vdwg.mxu0
    %v132 = vadd.f32 %v127, %v130
    %v133 = vrot.slane %v132, 4
    %v134 = vadd.f32 %v132, %v133
    %v135 = vrot.slane %v134, 2
    %v136 = vadd.f32 %v134, %v135
    %v137 = vrot.slane %v136, 1
    %v138 = vadd.f32 %v136, %v137
    %v139 = vrcp.pop 16.0
    %v140 = vmul.f32 16.0, %v139
    %v141 = vsub.f32 1.0, %v140
    %v142 = vmul.f32 %v139, %v141
    %v143 = vadd.f32 %v139, %v142
    %vm144 = vweird.f32 %v139
    %v145 = vsel %vm144, %v139, %v143
    %v146 = vmul.f32 %v138, %v145
    %v147 = vld [vmem:[#allocation2] sm:$0xff]
    %v148 = vld [vmem:[#allocation2 + $0x8] sm:$0xff]
    %v149 = vld [vmem:[#allocation2 + $0x10] sm:$0xff]
    %v150 = vld [vmem:[#allocation2 + $0x18] sm:$0xff]
    %v151 = vld [vmem:[#allocation2 + $0x20] sm:$0xff]
    %v152 = vld [vmem:[#allocation2 + $0x28] sm:$0xff]
    %v153 = vld [vmem:[#allocation2 + $0x30] sm:$0xff]
    %v154 = vld [vmem:[#allocation2 + $0x38] sm:$0xff]
    %v155 = vld [vmem:[#allocation2 + $0x40] sm:$0xff]
    %v156 = vld [vmem:[#allocation2 + $0x48] sm:$0xff]
    %v157 = vld [vmem:[#allocation2 + $0x50] sm:$0xff]
    %v158 = vld [vmem:[#allocation2 + $0x58] sm:$0xff]
    %v159 = vld [vmem:[#allocation2 + $0x60] sm:$0xff]
    %v160 = vld [vmem:[#allocation2 + $0x68] sm:$0xff]
    %v161 = vld [vmem:[#allocation2 + $0x70] sm:$0xff]
    %v162 = vld [vmem:[#allocation2 + $0x78] sm:$0xff]
    %v164 = vrot.slane %v92, 7
    %166 = vmatpush.msra.mxu0 %v162
    %167 = vmatpush.msra.mxu0 %v161
    %168 = vmatpush.msra.mxu0 %v160
    %169 = vmatpush.msra.mxu0 %v159
    %170 = vmatpush.msra.mxu0 %v158
    %171 = vmatpush.msra.mxu0 %v157
    %172 = vmatpush.msra.mxu0 %v156
    %173 = vmatpush.msra.mxu0 %v155
    %174 = vmatpush.msra.mxu0 %v154
    %175 = vmatpush.msra.mxu0 %v153
    %176 = vmatpush.msra.mxu0 %v152
    %177 = vmatpush.msra.mxu0 %v151
    %178 = vmatpush.msra.mxu0 %v150
    %179 = vmatpush.msra.mxu0 %v149
    %180 = vmatpush.msra.mxu0 %v148
    %181 = vmatpush.msra.mxu0 %v147
    %182 = vmatmul.f32.gmra.mxu0 %v164
    %v183 = vpop.f32.mrf.mxu0
    %v184 = vadd.f32 0.0, %v183
    %185 = vdwg.mxu0
    %v186 = vadd.f32 %v146, %v184
    %v187 = vld [vmem:[%s4] sm:$0x1]
    %v188 = vadd.f32 %v186, %v187
    %189 = vst [vmem:[%s13] sm:$0x1] %v188
    %v190 = vld [vmem:[#allocation2] sm:$0xff]
    %v191 = vld [vmem:[#allocation2 + $0x8] sm:$0xff]
    %v192 = vld [vmem:[#allocation2 + $0x10] sm:$0xff]
    %v193 = vld [vmem:[#allocation2 + $0x18] sm:$0xff]
    %v194 = vld [vmem:[#allocation2 + $0x20] sm:$0xff]
    %v195 = vld [vmem:[#allocation2 + $0x28] sm:$0xff]
    %v196 = vld [vmem:[#allocation2 + $0x30] sm:$0xff]
    %v197 = vld [vmem:[#allocation2 + $0x38] sm:$0xff]
    %v198 = vld [vmem:[#allocation2 + $0x40] sm:$0xff]
    %v199 = vld [vmem:[#allocation2 + $0x48] sm:$0xff]
    %v200 = vld [vmem:[#allocation2 + $0x50] sm:$0xff]
    %v201 = vld [vmem:[#allocation2 + $0x58] sm:$0xff]
    %v202 = vld [vmem:[#allocation2 + $0x60] sm:$0xff]
    %v203 = vld [vmem:[#allocation2 + $0x68] sm:$0xff]
    %v204 = vld [vmem:[#allocation2 + $0x70] sm:$0xff]
    %v205 = vld [vmem:[#allocation2 + $0x78] sm:$0xff]
    %206 = vmatpush.msra.mxu0 %v205
    %207 = vmatpush.msra.mxu0 %v204
    %208 = vmatpush.msra.mxu0 %v203
    %209 = vmatpush.msra.mxu0 %v202
    %210 = vmatpush.msra.mxu0 %v201
    %211 = vmatpush.msra.mxu0 %v200
    %212 = vmatpush.msra.mxu0 %v199
    %213 = vmatpush.msra.mxu0 %v198
    %214 = vmatpush.msra.mxu0 %v197
    %215 = vmatpush.msra.mxu0 %v196
    %216 = vmatpush.msra.mxu0 %v195
    %217 = vmatpush.msra.mxu0 %v194
    %218 = vmatpush.msra.mxu0 %v193
    %219 = vmatpush.msra.mxu0 %v192
    %220 = vmatpush.msra.mxu0 %v191
    %221 = vmatpush.msra.mxu0 %v190
    %222 = vmatmul.f32.gmra.mxu0 %v188
    %v223 = vpop.f32.mrf.mxu0
    %v224 = vadd.f32 0.0, %v223
    %225 = vdwg.mxu0
    %v226 = vadd.f32 %v146, %v224
    %v227 = vld [vmem:[%s4] sm:$0x1]
    %v228 = vadd.f32 %v226, %v227
    %229 = vst [vmem:[%s13 + $0x1] sm:$0x1] %v228
    %v230 = vld [vmem:[#allocation2] sm:$0xff]
    %v231 = vld [vmem:[#allocation2 + $0x8] sm:$0xff]
    %v232 = vld [vmem:[#allocation2 + $0x10] sm:$0xff]
    %v233 = vld [vmem:[#allocation2 + $0x18] sm:$0xff]
    %v234 = vld [vmem:[#allocation2 + $0x20] sm:$0xff]
    %v235 = vld [vmem:[#allocation2 + $0x28] sm:$0xff]
    %v236 = vld [vmem:[#allocation2 + $0x30] sm:$0xff]
    %v237 = vld [vmem:[#allocation2 + $0x38] sm:$0xff]
    %v238 = vld [vmem:[#allocation2 + $0x40] sm:$0xff]
    %v239 = vld [vmem:[#allocation2 + $0x48] sm:$0xff]
    %v240 = vld [vmem:[#allocation2 + $0x50] sm:$0xff]
    %v241 = vld [vmem:[#allocation2 + $0x58] sm:$0xff]
    %v242 = vld [vmem:[#allocation2 + $0x60] sm:$0xff]
    %v243 = vld [vmem:[#allocation2 + $0x68] sm:$0xff]
    %v244 = vld [vmem:[#allocation2 + $0x70] sm:$0xff]
    %v245 = vld [vmem:[#allocation2 + $0x78] sm:$0xff]
    %246 = vmatpush.msra.mxu0 %v245
    %247 = vmatpush.msra.mxu0 %v244
    %248 = vmatpush.msra.mxu0 %v243
    %249 = vmatpush.msra.mxu0 %v242
    %250 = vmatpush.msra.mxu0 %v241
    %251 = vmatpush.msra.mxu0 %v240
    %252 = vmatpush.msra.mxu0 %v239
    %253 = vmatpush.msra.mxu0 %v238
    %254 = vmatpush.msra.mxu0 %v237
    %255 = vmatpush.msra.mxu0 %v236
    %256 = vmatpush.msra.mxu0 %v235
    %257 = vmatpush.msra.mxu0 %v234
    %258 = vmatpush.msra.mxu0 %v233
    %259 = vmatpush.msra.mxu0 %v232
    %260 = vmatpush.msra.mxu0 %v231
    %261 = vmatpush.msra.mxu0 %v230
    %262 = vmatmul.f32.gmra.mxu0 %v228
    %v263 = vpop.f32.mrf.mxu0
    %v264 = vadd.f32 0.0, %v263
    %265 = vdwg.mxu0
    %v266 = vadd.f32 %v146, %v264
    %v267 = vld [vmem:[%s4] sm:$0x1]
    %v268 = vadd.f32 %v266, %v267
    %269 = vst [vmem:[%s13 + $0x2] sm:$0x1] %v268
    %v270 = vld [vmem:[#allocation2] sm:$0xff]
    %v271 = vld [vmem:[#allocation2 + $0x8] sm:$0xff]
    %v272 = vld [vmem:[#allocation2 + $0x10] sm:$0xff]
    %v273 = vld [vmem:[#allocation2 + $0x18] sm:$0xff]
    %v274 = vld [vmem:[#allocation2 + $0x20] sm:$0xff]
    %v275 = vld [vmem:[#allocation2 + $0x28] sm:$0xff]
    %v276 = vld [vmem:[#allocation2 + $0x30] sm:$0xff]
    %v277 = vld [vmem:[#allocation2 + $0x38] sm:$0xff]
    %v278 = vld [vmem:[#allocation2 + $0x40] sm:$0xff]
    %v279 = vld [vmem:[#allocation2 + $0x48] sm:$0xff]
    %v280 = vld [vmem:[#allocation2 + $0x50] sm:$0xff]
    %v281 = vld [vmem:[#allocation2 + $0x58] sm:$0xff]
    %v282 = vld [vmem:[#allocation2 + $0x60] sm:$0xff]
    %v283 = vld [vmem:[#allocation2 + $0x68] sm:$0xff]
    %v284 = vld [vmem:[#allocation2 + $0x70] sm:$0xff]
    %v285 = vld [vmem:[#allocation2 + $0x78] sm:$0xff]
    %286 = vmatpush.msra.mxu0 %v285
    %287 = vmatpush.msra.mxu0 %v284
    %288 = vmatpush.msra.mxu0 %v283
    %289 = vmatpush.msra.mxu0 %v282
    %290 = vmatpush.msra.mxu0 %v281
    %291 = vmatpush.msra.mxu0 %v280
    %292 = vmatpush.msra.mxu0 %v279
    %293 = vmatpush.msra.mxu0 %v278
    %294 = vmatpush.msra.mxu0 %v277
    %295 = vmatpush.msra.mxu0 %v276
    %296 = vmatpush.msra.mxu0 %v275
    %297 = vmatpush.msra.mxu0 %v274
    %298 = vmatpush.msra.mxu0 %v273
    %299 = vmatpush.msra.mxu0 %v272
    %300 = vmatpush.msra.mxu0 %v271
    %301 = vmatpush.msra.mxu0 %v270
    %302 = vmatmul.f32.gmra.mxu0 %v268
    %v303 = vpop.f32.mrf.mxu0
    %v304 = vadd.f32 0.0, %v303
    %305 = vdwg.mxu0
    %v306 = vadd.f32 %v146, %v304
    %v307 = vld [vmem:[%s4] sm:$0x1]
    %v308 = vadd.f32 %v306, %v307
    %309 = vst [vmem:[%s13 + $0x3] sm:$0x1] %v308
    %v310 = vld [vmem:[#allocation2] sm:$0xff]
    %v311 = vld [vmem:[#allocation2 + $0x8] sm:$0xff]
    %v312 = vld [vmem:[#allocation2 + $0x10] sm:$0xff]
    %v313 = vld [vmem:[#allocation2 + $0x18] sm:$0xff]
    %v314 = vld [vmem:[#allocation2 + $0x20] sm:$0xff]
    %v315 = vld [vmem:[#allocation2 + $0x28] sm:$0xff]
    %v316 = vld [vmem:[#allocation2 + $0x30] sm:$0xff]
    %v317 = vld [vmem:[#allocation2 + $0x38] sm:$0xff]
    %v318 = vld [vmem:[#allocation2 + $0x40] sm:$0xff]
    %v319 = vld [vmem:[#allocation2 + $0x48] sm:$0xff]
    %v320 = vld [vmem:[#allocation2 + $0x50] sm:$0xff]
    %v321 = vld [vmem:[#allocation2 + $0x58] sm:$0xff]
    %v322 = vld [vmem:[#allocation2 + $0x60] sm:$0xff]
    %v323 = vld [vmem:[#allocation2 + $0x68] sm:$0xff]
    %v324 = vld [vmem:[#allocation2 + $0x70] sm:$0xff]
    %v325 = vld [vmem:[#allocation2 + $0x78] sm:$0xff]
    %326 = vmatpush.msra.mxu0 %v325
    %327 = vmatpush.msra.mxu0 %v324
    %328 = vmatpush.msra.mxu0 %v323
    %329 = vmatpush.msra.mxu0 %v322
    %330 = vmatpush.msra.mxu0 %v321
    %331 = vmatpush.msra.mxu0 %v320
    %332 = vmatpush.msra.mxu0 %v319
    %333 = vmatpush.msra.mxu0 %v318
    %334 = vmatpush.msra.mxu0 %v317
    %335 = vmatpush.msra.mxu0 %v316
    %336 = vmatpush.msra.mxu0 %v315
    %337 = vmatpush.msra.mxu0 %v314
    %338 = vmatpush.msra.mxu0 %v313
    %339 = vmatpush.msra.mxu0 %v312
    %340 = vmatpush.msra.mxu0 %v311
    %341 = vmatpush.msra.mxu0 %v310
    %342 = vmatmul.f32.gmra.mxu0 %v308
    %v343 = vpop.f32.mrf.mxu0
    %v344 = vadd.f32 0.0, %v343
    %345 = vdwg.mxu0
    %v346 = vadd.f32 %v146, %v344
    %v347 = vld [vmem:[%s4] sm:$0x1]
    %v348 = vadd.f32 %v346, %v347
    %349 = vst [vmem:[%s13 + $0x4] sm:$0x1] %v348
    %v350 = vld [vmem:[#allocation5] sm:$0xff]
    %v351 = vld [vmem:[#allocation5 + $0x8] sm:$0xff]
    %v352 = vld [vmem:[#allocation5 + $0x10] sm:$0xff]
    %v353 = vld [vmem:[#allocation5 + $0x18] sm:$0xff]
    %v354 = vld [vmem:[#allocation5 + $0x20] sm:$0xff]
    %v355 = vld [vmem:[#allocation5 + $0x28] sm:$0xff]
    %v356 = vld [vmem:[#allocation5 + $0x30] sm:$0xff]
    %v357 = vld [vmem:[#allocation5 + $0x38] sm:$0xff]
    %v358 = vld [vmem:[#allocation5 + $0x40] sm:$0xff]
    %v359 = vld [vmem:[#allocation5 + $0x48] sm:$0xff]
    %v360 = vld [vmem:[#allocation5 + $0x50] sm:$0xff]
    %v361 = vld [vmem:[#allocation5 + $0x58] sm:$0xff]
    %v362 = vld [vmem:[#allocation5 + $0x60] sm:$0xff]
    %v363 = vld [vmem:[#allocation5 + $0x68] sm:$0xff]
    %v364 = vld [vmem:[#allocation5 + $0x70] sm:$0xff]
    %v365 = vld [vmem:[#allocation5 + $0x78] sm:$0xff]
    %v366 = vld [vmem:[#allocation5 + $0x80] sm:$0xff]
    %v367 = vld [vmem:[#allocation5 + $0x88] sm:$0xff]
    %v368 = vld [vmem:[#allocation5 + $0x90] sm:$0xff]
    %v369 = vld [vmem:[#allocation5 + $0x98] sm:$0xff]
    %v370 = vld [vmem:[#allocation5 + $0xa0] sm:$0xff]
    %v371 = vld [vmem:[#allocation5 + $0xa8] sm:$0xff]
    %v372 = vld [vmem:[#allocation5 + $0xb0] sm:$0xff]
    %v373 = vld [vmem:[#allocation5 + $0xb8] sm:$0xff]
    %v374 = vld [vmem:[#allocation5 + $0xc0] sm:$0xff]
    %v375 = vld [vmem:[#allocation5 + $0xc8] sm:$0xff]
    %v376 = vld [vmem:[#allocation5 + $0xd0] sm:$0xff]
    %v377 = vld [vmem:[#allocation5 + $0xd8] sm:$0xff]
    %v378 = vld [vmem:[#allocation5 + $0xe0] sm:$0xff]
    %v379 = vld [vmem:[#allocation5 + $0xe8] sm:$0xff]
    %v380 = vld [vmem:[#allocation5 + $0xf0] sm:$0xff]
    %v381 = vld [vmem:[#allocation5 + $0xf8] sm:$0xff]
    %v382 = vld [vmem:[#allocation5 + $0x100] sm:$0xff]
    %v383 = vld [vmem:[#allocation5 + $0x108] sm:$0xff]
    %v384 = vld [vmem:[#allocation5 + $0x110] sm:$0xff]
    %v385 = vld [vmem:[#allocation5 + $0x118] sm:$0xff]
    %v386 = vld [vmem:[#allocation5 + $0x120] sm:$0xff]
    %v387 = vld [vmem:[#allocation5 + $0x128] sm:$0xff]
    %v388 = vld [vmem:[#allocation5 + $0x130] sm:$0xff]
    %v389 = vld [vmem:[#allocation5 + $0x138] sm:$0xff]
    %v390 = vld [vmem:[#allocation5 + $0x140] sm:$0xff]
    %v391 = vld [vmem:[#allocation5 + $0x148] sm:$0xff]
    %v392 = vld [vmem:[#allocation5 + $0x150] sm:$0xff]
    %v393 = vld [vmem:[#allocation5 + $0x158] sm:$0xff]
    %v394 = vld [vmem:[#allocation5 + $0x160] sm:$0xff]
    %v395 = vld [vmem:[#allocation5 + $0x168] sm:$0xff]
    %v396 = vld [vmem:[#allocation5 + $0x170] sm:$0xff]
    %v397 = vld [vmem:[#allocation5 + $0x178] sm:$0xff]
    %v398 = vld [vmem:[#allocation5 + $0x180] sm:$0xff]
    %v399 = vld [vmem:[#allocation5 + $0x188] sm:$0xff]
    %v400 = vld [vmem:[#allocation5 + $0x190] sm:$0xff]
    %v401 = vld [vmem:[#allocation5 + $0x198] sm:$0xff]
    %v402 = vld [vmem:[#allocation5 + $0x1a0] sm:$0xff]
    %v403 = vld [vmem:[#allocation5 + $0x1a8] sm:$0xff]
    %v404 = vld [vmem:[#allocation5 + $0x1b0] sm:$0xff]
    %v405 = vld [vmem:[#allocation5 + $0x1b8] sm:$0xff]
    %v406 = vld [vmem:[#allocation5 + $0x1c0] sm:$0xff]
    %v407 = vld [vmem:[#allocation5 + $0x1c8] sm:$0xff]
    %v408 = vld [vmem:[#allocation5 + $0x1d0] sm:$0xff]
    %v409 = vld [vmem:[#allocation5 + $0x1d8] sm:$0xff]
    %v410 = vld [vmem:[#allocation5 + $0x1e0] sm:$0xff]
    %v411 = vld [vmem:[#allocation5 + $0x1e8] sm:$0xff]
    %v412 = vld [vmem:[#allocation5 + $0x1f0] sm:$0xff]
    %v413 = vld [vmem:[#allocation5 + $0x1f8] sm:$0xff]
    %v414 = vld [vmem:[#allocation5 + $0x200] sm:$0xff]
    %v415 = vld [vmem:[#allocation5 + $0x208] sm:$0xff]
    %v416 = vld [vmem:[#allocation5 + $0x210] sm:$0xff]
    %v417 = vld [vmem:[#allocation5 + $0x218] sm:$0xff]
    %v418 = vld [vmem:[#allocation5 + $0x220] sm:$0xff]
    %v419 = vld [vmem:[#allocation5 + $0x228] sm:$0xff]
    %v420 = vld [vmem:[#allocation5 + $0x230] sm:$0xff]
    %v421 = vld [vmem:[#allocation5 + $0x238] sm:$0xff]
    %v422 = vld [vmem:[#allocation5 + $0x240] sm:$0xff]
    %v423 = vld [vmem:[#allocation5 + $0x248] sm:$0xff]
    %v424 = vld [vmem:[#allocation5 + $0x250] sm:$0xff]
    %v425 = vld [vmem:[#allocation5 + $0x258] sm:$0xff]
    %v426 = vld [vmem:[#allocation5 + $0x260] sm:$0xff]
    %v427 = vld [vmem:[#allocation5 + $0x268] sm:$0xff]
    %v428 = vld [vmem:[#allocation5 + $0x270] sm:$0xff]
    %v429 = vld [vmem:[#allocation5 + $0x278] sm:$0xff]
    %v430 = vld [vmem:[%s6] sm:$0x1f]
    %v432 = vperm.slane %v430, 0
    %v433 = vperm.slane %v430, 1
    %v434 = vperm.slane %v430, 2
    %v435 = vperm.slane %v430, 3
    %v436 = vperm.slane %v430, 4
    %442 = vmatpush.msra.mxu0 %v425
    %443 = vmatpush.msra.mxu0 %v420
    %444 = vmatpush.msra.mxu0 %v415
    %445 = vmatpush.msra.mxu0 %v410
    %446 = vmatpush.msra.mxu0 %v405
    %447 = vmatpush.msra.mxu0 %v400
    %448 = vmatpush.msra.mxu0 %v395
    %449 = vmatpush.msra.mxu0 %v390
    %450 = vmatpush.msra.mxu0 %v385
    %451 = vmatpush.msra.mxu0 %v380
    %452 = vmatpush.msra.mxu0 %v375
    %453 = vmatpush.msra.mxu0 %v370
    %454 = vmatpush.msra.mxu0 %v365
    %455 = vmatpush.msra.mxu0 %v360
    %456 = vmatpush.msra.mxu0 %v355
    %457 = vmatpush.msra.mxu0 %v350
    %458 = vmatmul.f32.gmra.mxu0 %v91
    %v459 = vpop.f32.mrf.mxu0
    %v460 = vadd.f32 %v432, %v459
    %461 = vmatmul.f32.gmra.mxu0 %v92
    %v462 = vpop.f32.mrf.mxu0
    %v463 = vadd.f32 %v432, %v462
    %464 = vdwg.mxu0
    %465 = vmatpush.msra.mxu0 %v426
    %466 = vmatpush.msra.mxu0 %v421
    %467 = vmatpush.msra.mxu0 %v416
    %468 = vmatpush.msra.mxu0 %v411
    %469 = vmatpush.msra.mxu0 %v406
    %470 = vmatpush.msra.mxu0 %v401
    %471 = vmatpush.msra.mxu0 %v396
    %472 = vmatpush.msra.mxu0 %v391
    %473 = vmatpush.msra.mxu0 %v386
    %474 = vmatpush.msra.mxu0 %v381
    %475 = vmatpush.msra.mxu0 %v376
    %476 = vmatpush.msra.mxu0 %v371
    %477 = vmatpush.msra.mxu0 %v366
    %478 = vmatpush.msra.mxu0 %v361
    %479 = vmatpush.msra.mxu0 %v356
    %480 = vmatpush.msra.mxu0 %v351
    %481 = vmatmul.f32.gmra.mxu0 %v91
    %v482 = vpop.f32.mrf.mxu0
    %v483 = vadd.f32 %v433, %v482
    %484 = vmatmul.f32.gmra.mxu0 %v92
    %v485 = vpop.f32.mrf.mxu0
    %v486 = vadd.f32 %v433, %v485
    %487 = vdwg.mxu0
    %488 = vmatpush.msra.mxu0 %v427
    %489 = vmatpush.msra.mxu0 %v422
    %490 = vmatpush.msra.mxu0 %v417
    %491 = vmatpush.msra.mxu0 %v412
    %492 = vmatpush.msra.mxu0 %v407
    %493 = vmatpush.msra.mxu0 %v402
    %494 = vmatpush.msra.mxu0 %v397
    %495 = vmatpush.msra.mxu0 %v392
    %496 = vmatpush.msra.mxu0 %v387
    %497 = vmatpush.msra.mxu0 %v382
    %498 = vmatpush.msra.mxu0 %v377
    %499 = vmatpush.msra.mxu0 %v372
    %500 = vmatpush.msra.mxu0 %v367
    %501 = vmatpush.msra.mxu0 %v362
    %502 = vmatpush.msra.mxu0 %v357
    %503 = vmatpush.msra.mxu0 %v352
    %504 = vmatmul.f32.gmra.mxu0 %v91
    %v505 = vpop.f32.mrf.mxu0
    %v506 = vadd.f32 %v434, %v505
    %507 = vmatmul.f32.gmra.mxu0 %v92
    %v508 = vpop.f32.mrf.mxu0
    %v509 = vadd.f32 %v434, %v508
    %510 = vdwg.mxu0
    %511 = vmatpush.msra.mxu0 %v428
    %512 = vmatpush.msra.mxu0 %v423
    %513 = vmatpush.msra.mxu0 %v418
    %514 = vmatpush.msra.mxu0 %v413
    %515 = vmatpush.msra.mxu0 %v408
    %516 = vmatpush.msra.mxu0 %v403
    %517 = vmatpush.msra.mxu0 %v398
    %518 = vmatpush.msra.mxu0 %v393
    %519 = vmatpush.msra.mxu0 %v388
    %520 = vmatpush.msra.mxu0 %v383
    %521 = vmatpush.msra.mxu0 %v378
    %522 = vmatpush.msra.mxu0 %v373
    %523 = vmatpush.msra.mxu0 %v368
    %524 = vmatpush.msra.mxu0 %v363
    %525 = vmatpush.msra.mxu0 %v358
    %526 = vmatpush.msra.mxu0 %v353
    %527 = vmatmul.f32.gmra.mxu0 %v91
    %v528 = vpop.f32.mrf.mxu0
    %v529 = vadd.f32 %v435, %v528
    %530 = vmatmul.f32.gmra.mxu0 %v92
    %v531 = vpop.f32.mrf.mxu0
    %v532 = vadd.f32 %v435, %v531
    %533 = vdwg.mxu0
    %534 = vmatpush.msra.mxu0 %v429
    %535 = vmatpush.msra.mxu0 %v424
    %536 = vmatpush.msra.mxu0 %v419
    %537 = vmatpush.msra.mxu0 %v414
    %538 = vmatpush.msra.mxu0 %v409
    %539 = vmatpush.msra.mxu0 %v404
    %540 = vmatpush.msra.mxu0 %v399
    %541 = vmatpush.msra.mxu0 %v394
    %542 = vmatpush.msra.mxu0 %v389
    %543 = vmatpush.msra.mxu0 %v384
    %544 = vmatpush.msra.mxu0 %v379
    %545 = vmatpush.msra.mxu0 %v374
    %546 = vmatpush.msra.mxu0 %v369
    %547 = vmatpush.msra.mxu0 %v364
    %548 = vmatpush.msra.mxu0 %v359
    %549 = vmatpush.msra.mxu0 %v354
    %550 = vmatmul.f32.gmra.mxu0 %v91
    %v551 = vpop.f32.mrf.mxu0
    %v552 = vadd.f32 %v436, %v551
    %553 = vmatmul.f32.gmra.mxu0 %v92
    %v554 = vpop.f32.mrf.mxu0
    %v555 = vadd.f32 %v436, %v554
    %556 = vdwg.mxu0
    %v557 = vadd.f32 %v460, %v483
    %v558 = vadd.f32 %v463, %v486
    %v559 = vadd.f32 %v557, %v506
    %v560 = vadd.f32 %v558, %v509
    %v561 = vadd.f32 %v559, %v529
    %v562 = vadd.f32 %v560, %v532
    %v563 = vadd.f32 %v561, %v552
    %v564 = vadd.f32 %v562, %v555
    %v565 = vadd.f32 %v91, %v92
    %v566 = vrot.slane %v565, 4
    %v567 = vadd.f32 %v565, %v566
    %v568 = vrot.slane %v567, 2
    %v569 = vadd.f32 %v567, %v568
    %v570 = vrot.slane %v569, 1
    %v571 = vadd.f32 %v569, %v570
    %v572 = vmul.f32 %v571, %v145
    %v573 = vld [vmem:[%s7] sm:$0xff]
    %v574 = vld [vmem:[%s7 + $0x8] sm:$0xff]
    %v575 = vld [vmem:[%s7 + $0x10] sm:$0xff]
    %v576 = vld [vmem:[%s7 + $0x18] sm:$0xff]
    %v577 = vld [vmem:[%s7 + $0x20] sm:$0xff]
    %v578 = vld [vmem:[%s7 + $0x28] sm:$0xff]
    %v579 = vld [vmem:[%s7 + $0x30] sm:$0xff]
    %v580 = vld [vmem:[%s7 + $0x38] sm:$0xff]
    %v581 = vld [vmem:[%s7 + $0x40] sm:$0xff]
    %v582 = vld [vmem:[%s7 + $0x48] sm:$0xff]
    %v583 = vld [vmem:[%s7 + $0x50] sm:$0xff]
    %v584 = vld [vmem:[%s7 + $0x58] sm:$0xff]
    %v585 = vld [vmem:[%s7 + $0x60] sm:$0xff]
    %v586 = vld [vmem:[%s7 + $0x68] sm:$0xff]
    %v587 = vld [vmem:[%s7 + $0x70] sm:$0xff]
    %v588 = vld [vmem:[%s7 + $0x78] sm:$0xff]
    %v589 = vld [vmem:[%s8] sm:$0x1]
    %590 = vmatpush.msra.mxu0 %v588
    %591 = vmatpush.msra.mxu0 %v587
    %592 = vmatpush.msra.mxu0 %v586
    %593 = vmatpush.msra.mxu0 %v585
    %594 = vmatpush.msra.mxu0 %v584
    %595 = vmatpush.msra.mxu0 %v583
    %596 = vmatpush.msra.mxu0 %v582
    %597 = vmatpush.msra.mxu0 %v581
    %598 = vmatpush.msra.mxu0 %v580
    %599 = vmatpush.msra.mxu0 %v579
    %600 = vmatpush.msra.mxu0 %v578
    %601 = vmatpush.msra.mxu0 %v577
    %602 = vmatpush.msra.mxu0 %v576
    %603 = vmatpush.msra.mxu0 %v575
    %604 = vmatpush.msra.mxu0 %v574
    %605 = vmatpush.msra.mxu0 %v573
    %606 = vmatmul.f32.gmra.mxu0 %v572
    %v607 = vpop.f32.mrf.mxu0
    %v608 = vadd.f32 %v589, %v607
    %609 = vdwg.mxu0
    %vm610 = vcmask 32768
    %v611 = vsel %vm610, %v608, -inf
    %612 = vmax.xlane.f32.xlu0 %v611
    %v613 = vpop.xlane.xlu0 %612
    %v614 = vsub.f32 %v608, %v613
    %v615 = vmul.f32 %v614, 1.442695
    %v616 = vpow.pop %v615
    %v617 = vsel %vm610, %v616, 0.0
    %618 = vadd.xlane.f32.xlu0 %v617
    %v619 = vpop.xlane.xlu0 %618
    %v620 = vrcp.pop %v619
    %v621 = vmul.f32 %v619, %v620
    %v622 = vsub.f32 1.0, %v621
    %v623 = vmul.f32 %v620, %v622
    %v624 = vadd.f32 %v620, %v623
    %vm625 = vweird.f32 %v619
    %vm626 = vweird.f32 %v620
    %vm627 = vmor %vm625, %vm626
    %v628 = vsel %vm627, %v620, %v624
    %v629 = vand.u32 2147483647, %v619
    %vm630 = vcmp.eq.f32.partialorder %v629, 8.507059e+37
    %v631 = vand.u32 %v619, 2147483648
    %v632 = vor.u32 1.1754944e-38, %v631
    %v633 = vsel %vm630, %v632, %v628
    %v634 = vmul.f32 %v616, %v633
    %v635 = vperm.slane %v348, 0
    %v636 = vadd.f32 %v91, %v635
    %v637 = vadd.f32 %v92, %v635
    %v638 = vld [vmem:[%s1] sm:$0x1]
    %v640 = vperm.slane %v638, 0
    %v642 = vadd.f32 %v636, %v640
    %v643 = vadd.f32 %v637, %v640
    %s645 = vtos %v634
    %v646 = vstv %s645
    %v648 = vmul.f32 %v646, %v563
    %v649 = vmul.f32 %v646, %v564
    %v650 = vadd.f32 %v642, %v648
    %v651 = vadd.f32 %v643, %v649
    %652 = vrot.lane.b32.xlu0 %v634, 127
    %v653 = vpop.permute.xlu0 %652
    %s654 = vtos %v653
    %v655 = vstv %s654
    %v657 = vmul.f32 %v655, %v563
    %v658 = vmul.f32 %v655, %v564
    %v659 = vadd.f32 %v642, %v657
    %v660 = vadd.f32 %v643, %v658
    %661 = vrot.lane.b32.xlu0 %v634, 126
    %v662 = vpop.permute.xlu0 %661
    %s663 = vtos %v662
    %v664 = vstv %s663
    %v666 = vmul.f32 %v664, %v563
    %v667 = vmul.f32 %v664, %v564
    %v668 = vadd.f32 %v642, %v666
    %v669 = vadd.f32 %v643, %v667
    %670 = vrot.lane.b32.xlu0 %v634, 125
    %v671 = vpop.permute.xlu0 %670
    %s672 = vtos %v671
    %v673 = vstv %s672
    %v675 = vmul.f32 %v673, %v563
    %v676 = vmul.f32 %v673, %v564
    %v677 = vadd.f32 %v642, %v675
    %v678 = vadd.f32 %v643, %v676
    %679 = vrot.lane.b32.xlu0 %v634, 124
    %v680 = vpop.permute.xlu0 %679
    %s681 = vtos %v680
    %v682 = vstv %s681
    %v684 = vmul.f32 %v682, %v563
    %v685 = vmul.f32 %v682, %v564
    %v686 = vadd.f32 %v642, %v684
    %v687 = vadd.f32 %v643, %v685
    %688 = vst [vmem:[#allocation11] sm:$0xff] %v648
    %689 = vst [vmem:[#allocation11 + $0x8] sm:$0xff] %v649
    %690 = vst [vmem:[#allocation11 + $0x10] sm:$0xff] %v657
    %691 = vst [vmem:[#allocation11 + $0x18] sm:$0xff] %v658
    %692 = vst [vmem:[#allocation11 + $0x20] sm:$0xff] %v666
    %693 = vst [vmem:[#allocation11 + $0x28] sm:$0xff] %v667
    %694 = vst [vmem:[#allocation11 + $0x30] sm:$0xff] %v675
    %695 = vst [vmem:[#allocation11 + $0x38] sm:$0xff] %v676
    %696 = vst [vmem:[#allocation11 + $0x40] sm:$0xff] %v684
    %697 = vst [vmem:[#allocation11 + $0x48] sm:$0xff] %v685
    %698 = vst [vmem:[#allocation9] sm:$0xff] %v650
    %699 = vst [vmem:[#allocation9 + $0x8] sm:$0xff] %v651
    %700 = vst [vmem:[#allocation9 + $0x10] sm:$0xff] %v659
    %701 = vst [vmem:[#allocation9 + $0x18] sm:$0xff] %v660
    %702 = vst [vmem:[#allocation9 + $0x20] sm:$0xff] %v668
    %703 = vst [vmem:[#allocation9 + $0x28] sm:$0xff] %v669
    %704 = vst [vmem:[#allocation9 + $0x30] sm:$0xff] %v677
    %705 = vst [vmem:[#allocation9 + $0x38] sm:$0xff] %v678
    %706 = vst [vmem:[#allocation9 + $0x40] sm:$0xff] %v686
    %707 = vst [vmem:[#allocation9 + $0x48] sm:$0xff] %v687
    %v708 = vld [vmem:[#allocation7] sm:$0xff]
    %v709 = vld [vmem:[#allocation7 + $0x8] sm:$0xff]
    %v710 = vld [vmem:[#allocation7 + $0x10] sm:$0xff]
    %v711 = vld [vmem:[#allocation7 + $0x18] sm:$0xff]
    %v712 = vld [vmem:[#allocation7 + $0x20] sm:$0xff]
    %v713 = vld [vmem:[#allocation7 + $0x28] sm:$0xff]
    %v714 = vld [vmem:[#allocation7 + $0x30] sm:$0xff]
    %v715 = vld [vmem:[#allocation7 + $0x38] sm:$0xff]
    %v716 = vld [vmem:[#allocation7 + $0x40] sm:$0xff]
    %v717 = vld [vmem:[#allocation7 + $0x48] sm:$0xff]
    %v718 = vld [vmem:[#allocation7 + $0x50] sm:$0xff]
    %v719 = vld [vmem:[#allocation7 + $0x58] sm:$0xff]
    %v720 = vld [vmem:[#allocation7 + $0x60] sm:$0xff]
    %v721 = vld [vmem:[#allocation7 + $0x68] sm:$0xff]
    %v722 = vld [vmem:[#allocation7 + $0x70] sm:$0xff]
    %v723 = vld [vmem:[#allocation7 + $0x78] sm:$0xff]
    %v724 = vld [vmem:[#allocation7 + $0x80] sm:$0xff]
    %v725 = vld [vmem:[#allocation7 + $0x88] sm:$0xff]
    %v726 = vld [vmem:[#allocation7 + $0x90] sm:$0xff]
    %v727 = vld [vmem:[#allocation7 + $0x98] sm:$0xff]
    %v728 = vld [vmem:[#allocation7 + $0xa0] sm:$0xff]
    %v729 = vld [vmem:[#allocation7 + $0xa8] sm:$0xff]
    %v730 = vld [vmem:[#allocation7 + $0xb0] sm:$0xff]
    %v731 = vld [vmem:[#allocation7 + $0xb8] sm:$0xff]
    %v732 = vld [vmem:[#allocation7 + $0xc0] sm:$0xff]
    %v733 = vld [vmem:[#allocation7 + $0xc8] sm:$0xff]
    %v734 = vld [vmem:[#allocation7 + $0xd0] sm:$0xff]
    %v735 = vld [vmem:[#allocation7 + $0xd8] sm:$0xff]
    %v736 = vld [vmem:[#allocation7 + $0xe0] sm:$0xff]
    %v737 = vld [vmem:[#allocation7 + $0xe8] sm:$0xff]
    %v738 = vld [vmem:[#allocation7 + $0xf0] sm:$0xff]
    %v739 = vld [vmem:[#allocation7 + $0xf8] sm:$0xff]
    %v740 = vld [vmem:[#allocation7 + $0x100] sm:$0xff]
    %v741 = vld [vmem:[#allocation7 + $0x108] sm:$0xff]
    %v742 = vld [vmem:[#allocation7 + $0x110] sm:$0xff]
    %v743 = vld [vmem:[#allocation7 + $0x118] sm:$0xff]
    %v744 = vld [vmem:[#allocation7 + $0x120] sm:$0xff]
    %v745 = vld [vmem:[#allocation7 + $0x128] sm:$0xff]
    %v746 = vld [vmem:[#allocation7 + $0x130] sm:$0xff]
    %v747 = vld [vmem:[#allocation7 + $0x138] sm:$0xff]
    %v748 = vld [vmem:[#allocation7 + $0x140] sm:$0xff]
    %v749 = vld [vmem:[#allocation7 + $0x148] sm:$0xff]
    %v750 = vld [vmem:[#allocation7 + $0x150] sm:$0xff]
    %v751 = vld [vmem:[#allocation7 + $0x158] sm:$0xff]
    %v752 = vld [vmem:[#allocation7 + $0x160] sm:$0xff]
    %v753 = vld [vmem:[#allocation7 + $0x168] sm:$0xff]
    %v754 = vld [vmem:[#allocation7 + $0x170] sm:$0xff]
    %v755 = vld [vmem:[#allocation7 + $0x178] sm:$0xff]
    %v756 = vld [vmem:[#allocation7 + $0x180] sm:$0xff]
    %v757 = vld [vmem:[#allocation7 + $0x188] sm:$0xff]
    %v758 = vld [vmem:[#allocation7 + $0x190] sm:$0xff]
    %v759 = vld [vmem:[#allocation7 + $0x198] sm:$0xff]
    %v760 = vld [vmem:[#allocation7 + $0x1a0] sm:$0xff]
    %v761 = vld [vmem:[#allocation7 + $0x1a8] sm:$0xff]
    %v762 = vld [vmem:[#allocation7 + $0x1b0] sm:$0xff]
    %v763 = vld [vmem:[#allocation7 + $0x1b8] sm:$0xff]
    %v764 = vld [vmem:[#allocation7 + $0x1c0] sm:$0xff]
    %v765 = vld [vmem:[#allocation7 + $0x1c8] sm:$0xff]
    %v766 = vld [vmem:[#allocation7 + $0x1d0] sm:$0xff]
    %v767 = vld [vmem:[#allocation7 + $0x1d8] sm:$0xff]
    %v768 = vld [vmem:[#allocation7 + $0x1e0] sm:$0xff]
    %v769 = vld [vmem:[#allocation7 + $0x1e8] sm:$0xff]
    %v770 = vld [vmem:[#allocation7 + $0x1f0] sm:$0xff]
    %v771 = vld [vmem:[#allocation7 + $0x1f8] sm:$0xff]
    %v772 = vld [vmem:[#allocation7 + $0x200] sm:$0xff]
    %v773 = vld [vmem:[#allocation7 + $0x208] sm:$0xff]
    %v774 = vld [vmem:[#allocation7 + $0x210] sm:$0xff]
    %v775 = vld [vmem:[#allocation7 + $0x218] sm:$0xff]
    %v776 = vld [vmem:[#allocation7 + $0x220] sm:$0xff]
    %v777 = vld [vmem:[#allocation7 + $0x228] sm:$0xff]
    %v778 = vld [vmem:[#allocation7 + $0x230] sm:$0xff]
    %v779 = vld [vmem:[#allocation7 + $0x238] sm:$0xff]
    %v780 = vld [vmem:[#allocation7 + $0x240] sm:$0xff]
    %v781 = vld [vmem:[#allocation7 + $0x248] sm:$0xff]
    %v782 = vld [vmem:[#allocation7 + $0x250] sm:$0xff]
    %v783 = vld [vmem:[#allocation7 + $0x258] sm:$0xff]
    %v784 = vld [vmem:[#allocation7 + $0x260] sm:$0xff]
    %v785 = vld [vmem:[#allocation7 + $0x268] sm:$0xff]
    %v786 = vld [vmem:[#allocation7 + $0x270] sm:$0xff]
    %v787 = vld [vmem:[#allocation7 + $0x278] sm:$0xff]
    %v788 = vld [vmem:[#allocation7 + $0x280] sm:$0xff]
    %v789 = vld [vmem:[#allocation7 + $0x288] sm:$0xff]
    %v790 = vld [vmem:[#allocation7 + $0x290] sm:$0xff]
    %v791 = vld [vmem:[#allocation7 + $0x298] sm:$0xff]
    %v792 = vld [vmem:[#allocation7 + $0x2a0] sm:$0xff]
    %v793 = vld [vmem:[#allocation7 + $0x2a8] sm:$0xff]
    %v794 = vld [vmem:[#allocation7 + $0x2b0] sm:$0xff]
    %v795 = vld [vmem:[#allocation7 + $0x2b8] sm:$0xff]
    %v796 = vld [vmem:[#allocation7 + $0x2c0] sm:$0xff]
    %v797 = vld [vmem:[#allocation7 + $0x2c8] sm:$0xff]
    %v798 = vld [vmem:[#allocation7 + $0x2d0] sm:$0xff]
    %v799 = vld [vmem:[#allocation7 + $0x2d8] sm:$0xff]
    %v800 = vld [vmem:[#allocation7 + $0x2e0] sm:$0xff]
    %v801 = vld [vmem:[#allocation7 + $0x2e8] sm:$0xff]
    %v802 = vld [vmem:[#allocation7 + $0x2f0] sm:$0xff]
    %v803 = vld [vmem:[#allocation7 + $0x2f8] sm:$0xff]
    %v804 = vld [vmem:[#allocation7 + $0x300] sm:$0xff]
    %v805 = vld [vmem:[#allocation7 + $0x308] sm:$0xff]
    %v806 = vld [vmem:[#allocation7 + $0x310] sm:$0xff]
    %v807 = vld [vmem:[#allocation7 + $0x318] sm:$0xff]
    %v808 = vld [vmem:[#allocation7 + $0x320] sm:$0xff]
    %v809 = vld [vmem:[#allocation7 + $0x328] sm:$0xff]
    %v810 = vld [vmem:[#allocation7 + $0x330] sm:$0xff]
    %v811 = vld [vmem:[#allocation7 + $0x338] sm:$0xff]
    %v812 = vld [vmem:[#allocation7 + $0x340] sm:$0xff]
    %v813 = vld [vmem:[#allocation7 + $0x348] sm:$0xff]
    %v814 = vld [vmem:[#allocation7 + $0x350] sm:$0xff]
    %v815 = vld [vmem:[#allocation7 + $0x358] sm:$0xff]
    %v816 = vld [vmem:[#allocation7 + $0x360] sm:$0xff]
    %v817 = vld [vmem:[#allocation7 + $0x368] sm:$0xff]
    %v818 = vld [vmem:[#allocation7 + $0x370] sm:$0xff]
    %v819 = vld [vmem:[#allocation7 + $0x378] sm:$0xff]
    %v820 = vld [vmem:[#allocation7 + $0x380] sm:$0xff]
    %v821 = vld [vmem:[#allocation7 + $0x388] sm:$0xff]
    %v822 = vld [vmem:[#allocation7 + $0x390] sm:$0xff]
    %v823 = vld [vmem:[#allocation7 + $0x398] sm:$0xff]
    %v824 = vld [vmem:[#allocation7 + $0x3a0] sm:$0xff]
    %v825 = vld [vmem:[#allocation7 + $0x3a8] sm:$0xff]
    %v826 = vld [vmem:[#allocation7 + $0x3b0] sm:$0xff]
    %v827 = vld [vmem:[#allocation7 + $0x3b8] sm:$0xff]
    %v828 = vld [vmem:[#allocation7 + $0x3c0] sm:$0xff]
    %v829 = vld [vmem:[#allocation7 + $0x3c8] sm:$0xff]
    %v830 = vld [vmem:[#allocation7 + $0x3d0] sm:$0xff]
    %v831 = vld [vmem:[#allocation7 + $0x3d8] sm:$0xff]
    %v832 = vld [vmem:[#allocation7 + $0x3e0] sm:$0xff]
    %v833 = vld [vmem:[#allocation7 + $0x3e8] sm:$0xff]
    %v834 = vld [vmem:[#allocation7 + $0x3f0] sm:$0xff]
    %v835 = vld [vmem:[#allocation7 + $0x3f8] sm:$0xff]
    %v836 = vld [vmem:[#allocation7 + $0x400] sm:$0xff]
    %v837 = vld [vmem:[#allocation7 + $0x408] sm:$0xff]
    %v838 = vld [vmem:[#allocation7 + $0x410] sm:$0xff]
    %v839 = vld [vmem:[#allocation7 + $0x418] sm:$0xff]
    %v840 = vld [vmem:[#allocation7 + $0x420] sm:$0xff]
    %v841 = vld [vmem:[#allocation7 + $0x428] sm:$0xff]
    %v842 = vld [vmem:[#allocation7 + $0x430] sm:$0xff]
    %v843 = vld [vmem:[#allocation7 + $0x438] sm:$0xff]
    %v844 = vld [vmem:[#allocation7 + $0x440] sm:$0xff]
    %v845 = vld [vmem:[#allocation7 + $0x448] sm:$0xff]
    %v846 = vld [vmem:[#allocation7 + $0x450] sm:$0xff]
    %v847 = vld [vmem:[#allocation7 + $0x458] sm:$0xff]
    %v848 = vld [vmem:[#allocation7 + $0x460] sm:$0xff]
    %v849 = vld [vmem:[#allocation7 + $0x468] sm:$0xff]
    %v850 = vld [vmem:[#allocation7 + $0x470] sm:$0xff]
    %v851 = vld [vmem:[#allocation7 + $0x478] sm:$0xff]
    %v852 = vld [vmem:[#allocation7 + $0x480] sm:$0xff]
    %v853 = vld [vmem:[#allocation7 + $0x488] sm:$0xff]
    %v854 = vld [vmem:[#allocation7 + $0x490] sm:$0xff]
    %v855 = vld [vmem:[#allocation7 + $0x498] sm:$0xff]
    %v856 = vld [vmem:[#allocation7 + $0x4a0] sm:$0xff]
    %v857 = vld [vmem:[#allocation7 + $0x4a8] sm:$0xff]
    %v858 = vld [vmem:[#allocation7 + $0x4b0] sm:$0xff]
    %v859 = vld [vmem:[#allocation7 + $0x4b8] sm:$0xff]
    %v860 = vld [vmem:[#allocation7 + $0x4c0] sm:$0xff]
    %v861 = vld [vmem:[#allocation7 + $0x4c8] sm:$0xff]
    %v862 = vld [vmem:[#allocation7 + $0x4d0] sm:$0xff]
    %v863 = vld [vmem:[#allocation7 + $0x4d8] sm:$0xff]
    %v864 = vld [vmem:[#allocation7 + $0x4e0] sm:$0xff]
    %v865 = vld [vmem:[#allocation7 + $0x4e8] sm:$0xff]
    %v866 = vld [vmem:[#allocation7 + $0x4f0] sm:$0xff]
    %v867 = vld [vmem:[#allocation7 + $0x4f8] sm:$0xff]
    %v868 = vld [vmem:[%s10] sm:$0xff]
    %v869 = vld [vmem:[%s10 + $0x8] sm:$0x3]
    %v872 = vperm.slane %v868, 0
    %v873 = vperm.slane %v868, 1
    %v874 = vperm.slane %v868, 2
    %v875 = vperm.slane %v868, 3
    %v876 = vperm.slane %v868, 4
    %v877 = vperm.slane %v868, 5
    %v878 = vperm.slane %v868, 6
    %v879 = vperm.slane %v868, 7
    %v880 = vperm.slane %v869, 0
    %v881 = vperm.slane %v869, 1
    %892 = vmatpush.msra.mxu0 %v858
    %893 = vmatpush.msra.mxu0 %v848
    %894 = vmatpush.msra.mxu0 %v838
    %895 = vmatpush.msra.mxu0 %v828
    %896 = vmatpush.msra.mxu0 %v818
    %897 = vmatpush.msra.mxu0 %v808
    %898 = vmatpush.msra.mxu0 %v798
    %899 = vmatpush.msra.mxu0 %v788
    %900 = vmatpush.msra.mxu0 %v778
    %901 = vmatpush.msra.mxu0 %v768
    %902 = vmatpush.msra.mxu0 %v758
    %903 = vmatpush.msra.mxu0 %v748
    %904 = vmatpush.msra.mxu0 %v738
    %905 = vmatpush.msra.mxu0 %v728
    %906 = vmatpush.msra.mxu0 %v718
    %907 = vmatpush.msra.mxu0 %v708
    %908 = vmatmul.f32.gmra.mxu0 %v650
    %v909 = vpop.f32.mrf.mxu0
    %v910 = vadd.f32 %v872, %v909
    %911 = vmatmul.f32.gmra.mxu0 %v651
    %v912 = vpop.f32.mrf.mxu0
    %v913 = vadd.f32 %v872, %v912
    %914 = vmatmul.f32.gmra.mxu0 %v659
    %v915 = vpop.f32.mrf.mxu0
    %v916 = vadd.f32 %v872, %v915
    %917 = vmatmul.f32.gmra.mxu0 %v660
    %v918 = vpop.f32.mrf.mxu0
    %v919 = vadd.f32 %v872, %v918
    %920 = vmatmul.f32.gmra.mxu0 %v668
    %v921 = vpop.f32.mrf.mxu0
    %v922 = vadd.f32 %v872, %v921
    %923 = vmatmul.f32.gmra.mxu0 %v669
    %v924 = vpop.f32.mrf.mxu0
    %v925 = vadd.f32 %v872, %v924
    %926 = vmatmul.f32.gmra.mxu0 %v677
    %v927 = vpop.f32.mrf.mxu0
    %v928 = vadd.f32 %v872, %v927
    %929 = vmatmul.f32.gmra.mxu0 %v678
    %v930 = vpop.f32.mrf.mxu0
    %v931 = vadd.f32 %v872, %v930
    %932 = vmatmul.f32.gmra.mxu0 %v686
    %v933 = vpop.f32.mrf.mxu0
    %v934 = vadd.f32 %v872, %v933
    %935 = vmatmul.f32.gmra.mxu0 %v687
    %v936 = vpop.f32.mrf.mxu0
    %v937 = vadd.f32 %v872, %v936
    %938 = vdwg.mxu0
    %939 = vmatpush.msra.mxu0 %v859
    %940 = vmatpush.msra.mxu0 %v849
    %941 = vmatpush.msra.mxu0 %v839
    %942 = vmatpush.msra.mxu0 %v829
    %943 = vmatpush.msra.mxu0 %v819
    %944 = vmatpush.msra.mxu0 %v809
    %945 = vmatpush.msra.mxu0 %v799
    %946 = vmatpush.msra.mxu0 %v789
    %947 = vmatpush.msra.mxu0 %v779
    %948 = vmatpush.msra.mxu0 %v769
    %949 = vmatpush.msra.mxu0 %v759
    %950 = vmatpush.msra.mxu0 %v749
    %951 = vmatpush.msra.mxu0 %v739
    %952 = vmatpush.msra.mxu0 %v729
    %953 = vmatpush.msra.mxu0 %v719
    %954 = vmatpush.msra.mxu0 %v709
    %955 = vmatmul.f32.gmra.mxu0 %v650
    %v956 = vpop.f32.mrf.mxu0
    %v957 = vadd.f32 %v873, %v956
    %958 = vmatmul.f32.gmra.mxu0 %v651
    %v959 = vpop.f32.mrf.mxu0
    %v960 = vadd.f32 %v873, %v959
    %961 = vmatmul.f32.gmra.mxu0 %v659
    %v962 = vpop.f32.mrf.mxu0
    %v963 = vadd.f32 %v873, %v962
    %964 = vmatmul.f32.gmra.mxu0 %v660
    %v965 = vpop.f32.mrf.mxu0
    %v966 = vadd.f32 %v873, %v965
    %967 = vmatmul.f32.gmra.mxu0 %v668
    %v968 = vpop.f32.mrf.mxu0
    %v969 = vadd.f32 %v873, %v968
    %970 = vmatmul.f32.gmra.mxu0 %v669
    %v971 = vpop.f32.mrf.mxu0
    %v972 = vadd.f32 %v873, %v971
    %973 = vmatmul.f32.gmra.mxu0 %v677
    %v974 = vpop.f32.mrf.mxu0
    %v975 = vadd.f32 %v873, %v974
    %976 = vmatmul.f32.gmra.mxu0 %v678
    %v977 = vpop.f32.mrf.mxu0
    %v978 = vadd.f32 %v873, %v977
    %979 = vmatmul.f32.gmra.mxu0 %v686
    %v980 = vpop.f32.mrf.mxu0
    %v981 = vadd.f32 %v873, %v980
    %982 = vmatmul.f32.gmra.mxu0 %v687
    %v983 = vpop.f32.mrf.mxu0
    %v984 = vadd.f32 %v873, %v983
    %985 = vdwg.mxu0
    %986 = vmatpush.msra.mxu0 %v860
    %987 = vmatpush.msra.mxu0 %v850
    %988 = vmatpush.msra.mxu0 %v840
    %989 = vmatpush.msra.mxu0 %v830
    %990 = vmatpush.msra.mxu0 %v820
    %991 = vmatpush.msra.mxu0 %v810
    %992 = vmatpush.msra.mxu0 %v800
    %993 = vmatpush.msra.mxu0 %v790
    %994 = vmatpush.msra.mxu0 %v780
    %995 = vmatpush.msra.mxu0 %v770
    %996 = vmatpush.msra.mxu0 %v760
    %997 = vmatpush.msra.mxu0 %v750
    %998 = vmatpush.msra.mxu0 %v740
    %999 = vmatpush.msra.mxu0 %v730
    %1000 = vmatpush.msra.mxu0 %v720
    %1001 = vmatpush.msra.mxu0 %v710
    %1002 = vmatmul.f32.gmra.mxu0 %v650
    %v1003 = vpop.f32.mrf.mxu0
    %v1004 = vadd.f32 %v874, %v1003
    %1005 = vmatmul.f32.gmra.mxu0 %v651
    %v1006 = vpop.f32.mrf.mxu0
    %v1007 = vadd.f32 %v874, %v1006
    %1008 = vmatmul.f32.gmra.mxu0 %v659
    %v1009 = vpop.f32.mrf.mxu0
    %v1010 = vadd.f32 %v874, %v1009
    %1011 = vmatmul.f32.gmra.mxu0 %v660
    %v1012 = vpop.f32.mrf.mxu0
    %v1013 = vadd.f32 %v874, %v1012
    %1014 = vmatmul.f32.gmra.mxu0 %v668
    %v1015 = vpop.f32.mrf.mxu0
    %v1016 = vadd.f32 %v874, %v1015
    %1017 = vmatmul.f32.gmra.mxu0 %v669
    %v1018 = vpop.f32.mrf.mxu0
    %v1019 = vadd.f32 %v874, %v1018
    %1020 = vmatmul.f32.gmra.mxu0 %v677
    %v1021 = vpop.f32.mrf.mxu0
    %v1022 = vadd.f32 %v874, %v1021
    %1023 = vmatmul.f32.gmra.mxu0 %v678
    %v1024 = vpop.f32.mrf.mxu0
    %v1025 = vadd.f32 %v874, %v1024
    %1026 = vmatmul.f32.gmra.mxu0 %v686
    %v1027 = vpop.f32.mrf.mxu0
    %v1028 = vadd.f32 %v874, %v1027
    %1029 = vmatmul.f32.gmra.mxu0 %v687
    %v1030 = vpop.f32.mrf.mxu0
    %v1031 = vadd.f32 %v874, %v1030
    %1032 = vdwg.mxu0
    %1033 = vmatpush.msra.mxu0 %v861
    %1034 = vmatpush.msra.mxu0 %v851
    %1035 = vmatpush.msra.mxu0 %v841
    %1036 = vmatpush.msra.mxu0 %v831
    %1037 = vmatpush.msra.mxu0 %v821
    %1038 = vmatpush.msra.mxu0 %v811
    %1039 = vmatpush.msra.mxu0 %v801
    %1040 = vmatpush.msra.mxu0 %v791
    %1041 = vmatpush.msra.mxu0 %v781
    %1042 = vmatpush.msra.mxu0 %v771
    %1043 = vmatpush.msra.mxu0 %v761
    %1044 = vmatpush.msra.mxu0 %v751
    %1045 = vmatpush.msra.mxu0 %v741
    %1046 = vmatpush.msra.mxu0 %v731
    %1047 = vmatpush.msra.mxu0 %v721
    %1048 = vmatpush.msra.mxu0 %v711
    %1049 = vmatmul.f32.gmra.mxu0 %v650
    %v1050 = vpop.f32.mrf.mxu0
    %v1051 = vadd.f32 %v875, %v1050
    %1052 = vmatmul.f32.gmra.mxu0 %v651
    %v1053 = vpop.f32.mrf.mxu0
    %v1054 = vadd.f32 %v875, %v1053
    %1055 = vmatmul.f32.gmra.mxu0 %v659
    %v1056 = vpop.f32.mrf.mxu0
    %v1057 = vadd.f32 %v875, %v1056
    %1058 = vmatmul.f32.gmra.mxu0 %v660
    %v1059 = vpop.f32.mrf.mxu0
    %v1060 = vadd.f32 %v875, %v1059
    %1061 = vmatmul.f32.gmra.mxu0 %v668
    %v1062 = vpop.f32.mrf.mxu0
    %v1063 = vadd.f32 %v875, %v1062
    %1064 = vmatmul.f32.gmra.mxu0 %v669
    %v1065 = vpop.f32.mrf.mxu0
    %v1066 = vadd.f32 %v875, %v1065
    %1067 = vmatmul.f32.gmra.mxu0 %v677
    %v1068 = vpop.f32.mrf.mxu0
    %v1069 = vadd.f32 %v875, %v1068
    %1070 = vmatmul.f32.gmra.mxu0 %v678
    %v1071 = vpop.f32.mrf.mxu0
    %v1072 = vadd.f32 %v875, %v1071
    %1073 = vmatmul.f32.gmra.mxu0 %v686
    %v1074 = vpop.f32.mrf.mxu0
    %v1075 = vadd.f32 %v875, %v1074
    %1076 = vmatmul.f32.gmra.mxu0 %v687
    %v1077 = vpop.f32.mrf.mxu0
    %v1078 = vadd.f32 %v875, %v1077
    %1079 = vdwg.mxu0
    %1080 = vmatpush.msra.mxu0 %v862
    %1081 = vmatpush.msra.mxu0 %v852
    %1082 = vmatpush.msra.mxu0 %v842
    %1083 = vmatpush.msra.mxu0 %v832
    %1084 = vmatpush.msra.mxu0 %v822
    %1085 = vmatpush.msra.mxu0 %v812
    %1086 = vmatpush.msra.mxu0 %v802
    %1087 = vmatpush.msra.mxu0 %v792
    %1088 = vmatpush.msra.mxu0 %v782
    %1089 = vmatpush.msra.mxu0 %v772
    %1090 = vmatpush.msra.mxu0 %v762
    %1091 = vmatpush.msra.mxu0 %v752
    %1092 = vmatpush.msra.mxu0 %v742
    %1093 = vmatpush.msra.mxu0 %v732
    %1094 = vmatpush.msra.mxu0 %v722
    %1095 = vmatpush.msra.mxu0 %v712
    %1096 = vmatmul.f32.gmra.mxu0 %v650
    %v1097 = vpop.f32.mrf.mxu0
    %v1098 = vadd.f32 %v876, %v1097
    %1099 = vmatmul.f32.gmra.mxu0 %v651
    %v1100 = vpop.f32.mrf.mxu0
    %v1101 = vadd.f32 %v876, %v1100
    %1102 = vmatmul.f32.gmra.mxu0 %v659
    %v1103 = vpop.f32.mrf.mxu0
    %v1104 = vadd.f32 %v876, %v1103
    %1105 = vmatmul.f32.gmra.mxu0 %v660
    %v1106 = vpop.f32.mrf.mxu0
    %v1107 = vadd.f32 %v876, %v1106
    %1108 = vmatmul.f32.gmra.mxu0 %v668
    %v1109 = vpop.f32.mrf.mxu0
    %v1110 = vadd.f32 %v876, %v1109
    %1111 = vmatmul.f32.gmra.mxu0 %v669
    %v1112 = vpop.f32.mrf.mxu0
    %v1113 = vadd.f32 %v876, %v1112
    %1114 = vmatmul.f32.gmra.mxu0 %v677
    %v1115 = vpop.f32.mrf.mxu0
    %v1116 = vadd.f32 %v876, %v1115
    %1117 = vmatmul.f32.gmra.mxu0 %v678
    %v1118 = vpop.f32.mrf.mxu0
    %v1119 = vadd.f32 %v876, %v1118
    %1120 = vmatmul.f32.gmra.mxu0 %v686
    %v1121 = vpop.f32.mrf.mxu0
    %v1122 = vadd.f32 %v876, %v1121
    %1123 = vmatmul.f32.gmra.mxu0 %v687
    %v1124 = vpop.f32.mrf.mxu0
    %v1125 = vadd.f32 %v876, %v1124
    %1126 = vdwg.mxu0
    %1127 = vmatpush.msra.mxu0 %v863
    %1128 = vmatpush.msra.mxu0 %v853
    %1129 = vmatpush.msra.mxu0 %v843
    %1130 = vmatpush.msra.mxu0 %v833
    %1131 = vmatpush.msra.mxu0 %v823
    %1132 = vmatpush.msra.mxu0 %v813
    %1133 = vmatpush.msra.mxu0 %v803
    %1134 = vmatpush.msra.mxu0 %v793
    %1135 = vmatpush.msra.mxu0 %v783
    %1136 = vmatpush.msra.mxu0 %v773
    %1137 = vmatpush.msra.mxu0 %v763
    %1138 = vmatpush.msra.mxu0 %v753
    %1139 = vmatpush.msra.mxu0 %v743
    %1140 = vmatpush.msra.mxu0 %v733
    %1141 = vmatpush.msra.mxu0 %v723
    %1142 = vmatpush.msra.mxu0 %v713
    %1143 = vmatmul.f32.gmra.mxu0 %v650
    %v1144 = vpop.f32.mrf.mxu0
    %v1145 = vadd.f32 %v877, %v1144
    %1146 = vmatmul.f32.gmra.mxu0 %v651
    %v1147 = vpop.f32.mrf.mxu0
    %v1148 = vadd.f32 %v877, %v1147
    %1149 = vmatmul.f32.gmra.mxu0 %v659
    %v1150 = vpop.f32.mrf.mxu0
    %v1151 = vadd.f32 %v877, %v1150
    %1152 = vmatmul.f32.gmra.mxu0 %v660
    %v1153 = vpop.f32.mrf.mxu0
    %v1154 = vadd.f32 %v877, %v1153
    %1155 = vmatmul.f32.gmra.mxu0 %v668
    %v1156 = vpop.f32.mrf.mxu0
    %v1157 = vadd.f32 %v877, %v1156
    %1158 = vmatmul.f32.gmra.mxu0 %v669
    %v1159 = vpop.f32.mrf.mxu0
    %v1160 = vadd.f32 %v877, %v1159
    %1161 = vmatmul.f32.gmra.mxu0 %v677
    %v1162 = vpop.f32.mrf.mxu0
    %v1163 = vadd.f32 %v877, %v1162
    %1164 = vmatmul.f32.gmra.mxu0 %v678
    %v1165 = vpop.f32.mrf.mxu0
    %v1166 = vadd.f32 %v877, %v1165
    %1167 = vmatmul.f32.gmra.mxu0 %v686
    %v1168 = vpop.f32.mrf.mxu0
    %v1169 = vadd.f32 %v877, %v1168
    %1170 = vmatmul.f32.gmra.mxu0 %v687
    %v1171 = vpop.f32.mrf.mxu0
    %v1172 = vadd.f32 %v877, %v1171
    %1173 = vdwg.mxu0
    %1174 = vmatpush.msra.mxu0 %v864
    %1175 = vmatpush.msra.mxu0 %v854
    %1176 = vmatpush.msra.mxu0 %v844
    %1177 = vmatpush.msra.mxu0 %v834
    %1178 = vmatpush.msra.mxu0 %v824
    %1179 = vmatpush.msra.mxu0 %v814
    %1180 = vmatpush.msra.mxu0 %v804
    %1181 = vmatpush.msra.mxu0 %v794
    %1182 = vmatpush.msra.mxu0 %v784
    %1183 = vmatpush.msra.mxu0 %v774
    %1184 = vmatpush.msra.mxu0 %v764
    %1185 = vmatpush.msra.mxu0 %v754
    %1186 = vmatpush.msra.mxu0 %v744
    %1187 = vmatpush.msra.mxu0 %v734
    %1188 = vmatpush.msra.mxu0 %v724
    %1189 = vmatpush.msra.mxu0 %v714
    %1190 = vmatmul.f32.gmra.mxu0 %v650
    %v1191 = vpop.f32.mrf.mxu0
    %v1192 = vadd.f32 %v878, %v1191
    %1193 = vmatmul.f32.gmra.mxu0 %v651
    %v1194 = vpop.f32.mrf.mxu0
    %v1195 = vadd.f32 %v878, %v1194
    %1196 = vmatmul.f32.gmra.mxu0 %v659
    %v1197 = vpop.f32.mrf.mxu0
    %v1198 = vadd.f32 %v878, %v1197
    %1199 = vmatmul.f32.gmra.mxu0 %v660
    %v1200 = vpop.f32.mrf.mxu0
    %v1201 = vadd.f32 %v878, %v1200
    %1202 = vmatmul.f32.gmra.mxu0 %v668
    %v1203 = vpop.f32.mrf.mxu0
    %v1204 = vadd.f32 %v878, %v1203
    %1205 = vmatmul.f32.gmra.mxu0 %v669
    %v1206 = vpop.f32.mrf.mxu0
    %v1207 = vadd.f32 %v878, %v1206
    %1208 = vmatmul.f32.gmra.mxu0 %v677
    %v1209 = vpop.f32.mrf.mxu0
    %v1210 = vadd.f32 %v878, %v1209
    %1211 = vmatmul.f32.gmra.mxu0 %v678
    %v1212 = vpop.f32.mrf.mxu0
    %v1213 = vadd.f32 %v878, %v1212
    %1214 = vmatmul.f32.gmra.mxu0 %v686
    %v1215 = vpop.f32.mrf.mxu0
    %v1216 = vadd.f32 %v878, %v1215
    %1217 = vmatmul.f32.gmra.mxu0 %v687
    %v1218 = vpop.f32.mrf.mxu0
    %v1219 = vadd.f32 %v878, %v1218
    %1220 = vdwg.mxu0
    %1221 = vmatpush.msra.mxu0 %v865
    %1222 = vmatpush.msra.mxu0 %v855
    %1223 = vmatpush.msra.mxu0 %v845
    %1224 = vmatpush.msra.mxu0 %v835
    %1225 = vmatpush.msra.mxu0 %v825
    %1226 = vmatpush.msra.mxu0 %v815
    %1227 = vmatpush.msra.mxu0 %v805
    %1228 = vmatpush.msra.mxu0 %v795
    %1229 = vmatpush.msra.mxu0 %v785
    %1230 = vmatpush.msra.mxu0 %v775
    %1231 = vmatpush.msra.mxu0 %v765
    %1232 = vmatpush.msra.mxu0 %v755
    %1233 = vmatpush.msra.mxu0 %v745
    %1234 = vmatpush.msra.mxu0 %v735
    %1235 = vmatpush.msra.mxu0 %v725
    %1236 = vmatpush.msra.mxu0 %v715
    %1237 = vmatmul.f32.gmra.mxu0 %v650
    %v1238 = vpop.f32.mrf.mxu0
    %v1239 = vadd.f32 %v879, %v1238
    %1240 = vmatmul.f32.gmra.mxu0 %v651
    %v1241 = vpop.f32.mrf.mxu0
    %v1242 = vadd.f32 %v879, %v1241
    %1243 = vmatmul.f32.gmra.mxu0 %v659
    %v1244 = vpop.f32.mrf.mxu0
    %v1245 = vadd.f32 %v879, %v1244
    %1246 = vmatmul.f32.gmra.mxu0 %v660
    %v1247 = vpop.f32.mrf.mxu0
    %v1248 = vadd.f32 %v879, %v1247
    %1249 = vmatmul.f32.gmra.mxu0 %v668
    %v1250 = vpop.f32.mrf.mxu0
    %v1251 = vadd.f32 %v879, %v1250
    %1252 = vmatmul.f32.gmra.mxu0 %v669
    %v1253 = vpop.f32.mrf.mxu0
    %v1254 = vadd.f32 %v879, %v1253
    %1255 = vmatmul.f32.gmra.mxu0 %v677
    %v1256 = vpop.f32.mrf.mxu0
    %v1257 = vadd.f32 %v879, %v1256
    %1258 = vmatmul.f32.gmra.mxu0 %v678
    %v1259 = vpop.f32.mrf.mxu0
    %v1260 = vadd.f32 %v879, %v1259
    %1261 = vmatmul.f32.gmra.mxu0 %v686
    %v1262 = vpop.f32.mrf.mxu0
    %v1263 = vadd.f32 %v879, %v1262
    %1264 = vmatmul.f32.gmra.mxu0 %v687
    %v1265 = vpop.f32.mrf.mxu0
    %v1266 = vadd.f32 %v879, %v1265
    %1267 = vdwg.mxu0
    %1268 = vmatpush.msra.mxu0 %v866
    %1269 = vmatpush.msra.mxu0 %v856
    %1270 = vmatpush.msra.mxu0 %v846
    %1271 = vmatpush.msra.mxu0 %v836
    %1272 = vmatpush.msra.mxu0 %v826
    %1273 = vmatpush.msra.mxu0 %v816
    %1274 = vmatpush.msra.mxu0 %v806
    %1275 = vmatpush.msra.mxu0 %v796
    %1276 = vmatpush.msra.mxu0 %v786
    %1277 = vmatpush.msra.mxu0 %v776
    %1278 = vmatpush.msra.mxu0 %v766
    %1279 = vmatpush.msra.mxu0 %v756
    %1280 = vmatpush.msra.mxu0 %v746
    %1281 = vmatpush.msra.mxu0 %v736
    %1282 = vmatpush.msra.mxu0 %v726
    %1283 = vmatpush.msra.mxu0 %v716
    %1284 = vmatmul.f32.gmra.mxu0 %v650
    %v1285 = vpop.f32.mrf.mxu0
    %v1286 = vadd.f32 %v880, %v1285
    %1287 = vmatmul.f32.gmra.mxu0 %v651
    %v1288 = vpop.f32.mrf.mxu0
    %v1289 = vadd.f32 %v880, %v1288
    %1290 = vmatmul.f32.gmra.mxu0 %v659
    %v1291 = vpop.f32.mrf.mxu0
    %v1292 = vadd.f32 %v880, %v1291
    %1293 = vmatmul.f32.gmra.mxu0 %v660
    %v1294 = vpop.f32.mrf.mxu0
    %v1295 = vadd.f32 %v880, %v1294
    %1296 = vmatmul.f32.gmra.mxu0 %v668
    %v1297 = vpop.f32.mrf.mxu0
    %v1298 = vadd.f32 %v880, %v1297
    %1299 = vmatmul.f32.gmra.mxu0 %v669
    %v1300 = vpop.f32.mrf.mxu0
    %v1301 = vadd.f32 %v880, %v1300
    %1302 = vmatmul.f32.gmra.mxu0 %v677
    %v1303 = vpop.f32.mrf.mxu0
    %v1304 = vadd.f32 %v880, %v1303
    %1305 = vmatmul.f32.gmra.mxu0 %v678
    %v1306 = vpop.f32.mrf.mxu0
    %v1307 = vadd.f32 %v880, %v1306
    %1308 = vmatmul.f32.gmra.mxu0 %v686
    %v1309 = vpop.f32.mrf.mxu0
    %v1310 = vadd.f32 %v880, %v1309
    %1311 = vmatmul.f32.gmra.mxu0 %v687
    %v1312 = vpop.f32.mrf.mxu0
    %v1313 = vadd.f32 %v880, %v1312
    %1314 = vdwg.mxu0
    %1315 = vmatpush.msra.mxu0 %v867
    %1316 = vmatpush.msra.mxu0 %v857
    %1317 = vmatpush.msra.mxu0 %v847
    %1318 = vmatpush.msra.mxu0 %v837
    %1319 = vmatpush.msra.mxu0 %v827
    %1320 = vmatpush.msra.mxu0 %v817
    %1321 = vmatpush.msra.mxu0 %v807
    %1322 = vmatpush.msra.mxu0 %v797
    %1323 = vmatpush.msra.mxu0 %v787
    %1324 = vmatpush.msra.mxu0 %v777
    %1325 = vmatpush.msra.mxu0 %v767
    %1326 = vmatpush.msra.mxu0 %v757
    %1327 = vmatpush.msra.mxu0 %v747
    %1328 = vmatpush.msra.mxu0 %v737
    %1329 = vmatpush.msra.mxu0 %v727
    %1330 = vmatpush.msra.mxu0 %v717
    %1331 = vmatmul.f32.gmra.mxu0 %v650
    %v1332 = vpop.f32.mrf.mxu0
    %v1333 = vadd.f32 %v881, %v1332
    %1334 = vmatmul.f32.gmra.mxu0 %v651
    %v1335 = vpop.f32.mrf.mxu0
    %v1336 = vadd.f32 %v881, %v1335
    %1337 = vmatmul.f32.gmra.mxu0 %v659
    %v1338 = vpop.f32.mrf.mxu0
    %v1339 = vadd.f32 %v881, %v1338
    %1340 = vmatmul.f32.gmra.mxu0 %v660
    %v1341 = vpop.f32.mrf.mxu0
    %v1342 = vadd.f32 %v881, %v1341
    %1343 = vmatmul.f32.gmra.mxu0 %v668
    %v1344 = vpop.f32.mrf.mxu0
    %v1345 = vadd.f32 %v881, %v1344
    %1346 = vmatmul.f32.gmra.mxu0 %v669
    %v1347 = vpop.f32.mrf.mxu0
    %v1348 = vadd.f32 %v881, %v1347
    %1349 = vmatmul.f32.gmra.mxu0 %v677
    %v1350 = vpop.f32.mrf.mxu0
    %v1351 = vadd.f32 %v881, %v1350
    %1352 = vmatmul.f32.gmra.mxu0 %v678
    %v1353 = vpop.f32.mrf.mxu0
    %v1354 = vadd.f32 %v881, %v1353
    %1355 = vmatmul.f32.gmra.mxu0 %v686
    %v1356 = vpop.f32.mrf.mxu0
    %v1357 = vadd.f32 %v881, %v1356
    %1358 = vmatmul.f32.gmra.mxu0 %v687
    %v1359 = vpop.f32.mrf.mxu0
    %v1360 = vadd.f32 %v881, %v1359
    %1361 = vdwg.mxu0
    %1362 = vst [vmem:[#allocation8] sm:$0xff] %v910
    %1363 = vst [vmem:[#allocation8 + $0x8] sm:$0xff] %v957
    %1364 = vst [vmem:[#allocation8 + $0x10] sm:$0xff] %v1004
    %1365 = vst [vmem:[#allocation8 + $0x18] sm:$0xff] %v1051
    %1366 = vst [vmem:[#allocation8 + $0x20] sm:$0xff] %v1098
    %1367 = vst [vmem:[#allocation8 + $0x28] sm:$0xff] %v1145
    %1368 = vst [vmem:[#allocation8 + $0x30] sm:$0xff] %v1192
    %1369 = vst [vmem:[#allocation8 + $0x38] sm:$0xff] %v1239
    %1370 = vst [vmem:[#allocation8 + $0x40] sm:$0xff] %v1286
    %1371 = vst [vmem:[#allocation8 + $0x48] sm:$0xff] %v1333
    %1372 = vst [vmem:[#allocation8 + $0x50] sm:$0xff] %v913
    %1373 = vst [vmem:[#allocation8 + $0x58] sm:$0xff] %v960
    %1374 = vst [vmem:[#allocation8 + $0x60] sm:$0xff] %v1007
    %1375 = vst [vmem:[#allocation8 + $0x68] sm:$0xff] %v1054
    %1376 = vst [vmem:[#allocation8 + $0x70] sm:$0xff] %v1101
    %1377 = vst [vmem:[#allocation8 + $0x78] sm:$0xff] %v1148
    %1378 = vst [vmem:[#allocation8 + $0x80] sm:$0xff] %v1195
    %1379 = vst [vmem:[#allocation8 + $0x88] sm:$0xff] %v1242
    %1380 = vst [vmem:[#allocation8 + $0x90] sm:$0xff] %v1289
    %1381 = vst [vmem:[#allocation8 + $0x98] sm:$0xff] %v1336
    %1382 = vst [vmem:[#allocation8 + $0xa0] sm:$0xff] %v916
    %1383 = vst [vmem:[#allocation8 + $0xa8] sm:$0xff] %v963
    %1384 = vst [vmem:[#allocation8 + $0xb0] sm:$0xff] %v1010
    %1385 = vst [vmem:[#allocation8 + $0xb8] sm:$0xff] %v1057
    %1386 = vst [vmem:[#allocation8 + $0xc0] sm:$0xff] %v1104
    %1387 = vst [vmem:[#allocation8 + $0xc8] sm:$0xff] %v1151
    %1388 = vst [vmem:[#allocation8 + $0xd0] sm:$0xff] %v1198
    %1389 = vst [vmem:[#allocation8 + $0xd8] sm:$0xff] %v1245
    %1390 = vst [vmem:[#allocation8 + $0xe0] sm:$0xff] %v1292
    %1391 = vst [vmem:[#allocation8 + $0xe8] sm:$0xff] %v1339
    %1392 = vst [vmem:[#allocation8 + $0xf0] sm:$0xff] %v919
    %1393 = vst [vmem:[#allocation8 + $0xf8] sm:$0xff] %v966
    %1394 = vst [vmem:[#allocation8 + $0x100] sm:$0xff] %v1013
    %1395 = vst [vmem:[#allocation8 + $0x108] sm:$0xff] %v1060
    %1396 = vst [vmem:[#allocation8 + $0x110] sm:$0xff] %v1107
    %1397 = vst [vmem:[#allocation8 + $0x118] sm:$0xff] %v1154
    %1398 = vst [vmem:[#allocation8 + $0x120] sm:$0xff] %v1201
    %1399 = vst [vmem:[#allocation8 + $0x128] sm:$0xff] %v1248
    %1400 = vst [vmem:[#allocation8 + $0x130] sm:$0xff] %v1295
    %1401 = vst [vmem:[#allocation8 + $0x138] sm:$0xff] %v1342
    %1402 = vst [vmem:[#allocation8 + $0x140] sm:$0xff] %v922
    %1403 = vst [vmem:[#allocation8 + $0x148] sm:$0xff] %v969
    %1404 = vst [vmem:[#allocation8 + $0x150] sm:$0xff] %v1016
    %1405 = vst [vmem:[#allocation8 + $0x158] sm:$0xff] %v1063
    %1406 = vst [vmem:[#allocation8 + $0x160] sm:$0xff] %v1110
    %1407 = vst [vmem:[#allocation8 + $0x168] sm:$0xff] %v1157
    %1408 = vst [vmem:[#allocation8 + $0x170] sm:$0xff] %v1204
    %1409 = vst [vmem:[#allocation8 + $0x178] sm:$0xff] %v1251
    %1410 = vst [vmem:[#allocation8 + $0x180] sm:$0xff] %v1298
    %1411 = vst [vmem:[#allocation8 + $0x188] sm:$0xff] %v1345
    %1412 = vst [vmem:[#allocation8 + $0x190] sm:$0xff] %v925
    %1413 = vst [vmem:[#allocation8 + $0x198] sm:$0xff] %v972
    %1414 = vst [vmem:[#allocation8 + $0x1a0] sm:$0xff] %v1019
    %1415 = vst [vmem:[#allocation8 + $0x1a8] sm:$0xff] %v1066
    %1416 = vst [vmem:[#allocation8 + $0x1b0] sm:$0xff] %v1113
    %1417 = vst [vmem:[#allocation8 + $0x1b8] sm:$0xff] %v1160
    %1418 = vst [vmem:[#allocation8 + $0x1c0] sm:$0xff] %v1207
    %1419 = vst [vmem:[#allocation8 + $0x1c8] sm:$0xff] %v1254
    %1420 = vst [vmem:[#allocation8 + $0x1d0] sm:$0xff] %v1301
    %1421 = vst [vmem:[#allocation8 + $0x1d8] sm:$0xff] %v1348
    %1422 = vst [vmem:[#allocation8 + $0x1e0] sm:$0xff] %v928
    %1423 = vst [vmem:[#allocation8 + $0x1e8] sm:$0xff] %v975
    %1424 = vst [vmem:[#allocation8 + $0x1f0] sm:$0xff] %v1022
    %1425 = vst [vmem:[#allocation8 + $0x1f8] sm:$0xff] %v1069
    %1426 = vst [vmem:[#allocation8 + $0x200] sm:$0xff] %v1116
    %1427 = vst [vmem:[#allocation8 + $0x208] sm:$0xff] %v1163
    %1428 = vst [vmem:[#allocation8 + $0x210] sm:$0xff] %v1210
    %1429 = vst [vmem:[#allocation8 + $0x218] sm:$0xff] %v1257
    %1430 = vst [vmem:[#allocation8 + $0x220] sm:$0xff] %v1304
    %1431 = vst [vmem:[#allocation8 + $0x228] sm:$0xff] %v1351
    %1432 = vst [vmem:[#allocation8 + $0x230] sm:$0xff] %v931
    %1433 = vst [vmem:[#allocation8 + $0x238] sm:$0xff] %v978
    %1434 = vst [vmem:[#allocation8 + $0x240] sm:$0xff] %v1025
    %1435 = vst [vmem:[#allocation8 + $0x248] sm:$0xff] %v1072
    %1436 = vst [vmem:[#allocation8 + $0x250] sm:$0xff] %v1119
    %1437 = vst [vmem:[#allocation8 + $0x258] sm:$0xff] %v1166
    %1438 = vst [vmem:[#allocation8 + $0x260] sm:$0xff] %v1213
    %1439 = vst [vmem:[#allocation8 + $0x268] sm:$0xff] %v1260
    %1440 = vst [vmem:[#allocation8 + $0x270] sm:$0xff] %v1307
    %1441 = vst [vmem:[#allocation8 + $0x278] sm:$0xff] %v1354
    %1442 = vst [vmem:[#allocation8 + $0x280] sm:$0xff] %v934
    %1443 = vst [vmem:[#allocation8 + $0x288] sm:$0xff] %v981
    %1444 = vst [vmem:[#allocation8 + $0x290] sm:$0xff] %v1028
    %1445 = vst [vmem:[#allocation8 + $0x298] sm:$0xff] %v1075
    %1446 = vst [vmem:[#allocation8 + $0x2a0] sm:$0xff] %v1122
    %1447 = vst [vmem:[#allocation8 + $0x2a8] sm:$0xff] %v1169
    %1448 = vst [vmem:[#allocation8 + $0x2b0] sm:$0xff] %v1216
    %1449 = vst [vmem:[#allocation8 + $0x2b8] sm:$0xff] %v1263
    %1450 = vst [vmem:[#allocation8 + $0x2c0] sm:$0xff] %v1310
    %1451 = vst [vmem:[#allocation8 + $0x2c8] sm:$0xff] %v1357
    %1452 = vst [vmem:[#allocation8 + $0x2d0] sm:$0xff] %v937
    %1453 = vst [vmem:[#allocation8 + $0x2d8] sm:$0xff] %v984
    %1454 = vst [vmem:[#allocation8 + $0x2e0] sm:$0xff] %v1031
    %1455 = vst [vmem:[#allocation8 + $0x2e8] sm:$0xff] %v1078
    %1456 = vst [vmem:[#allocation8 + $0x2f0] sm:$0xff] %v1125
    %1457 = vst [vmem:[#allocation8 + $0x2f8] sm:$0xff] %v1172
    %1458 = vst [vmem:[#allocation8 + $0x300] sm:$0xff] %v1219
    %1459 = vst [vmem:[#allocation8 + $0x308] sm:$0xff] %v1266
    %1460 = vst [vmem:[#allocation8 + $0x310] sm:$0xff] %v1313
    %1461 = vst [vmem:[#allocation8 + $0x318] sm:$0xff] %v1360
    // Predicated region
    $region58: #{enhanced_meta_learning_forward.5} parent=1 // pred_check
      _
    $region59: #{enhanced_meta_learning_forward.5} parent=1 // pred_check_branch
      %1463 = sbr.rel (0) target = $region61
    $region60: #{enhanced_meta_learning_forward.5} parent=1 // pred_region
      %1465 = vsyncadd [#allocation4], 0
      %s1466 = sshll.u32 [#allocation8], 4
      %s1467 = int_to_ptr.vmem [resolvable:$true] %s1466
      %s1468 = sshll.u32 %s11, 4
      %s1469 = int_to_ptr.hbm [resolvable:$true] %s1468
      %1474 = dma.vmem_to_hbm [thread:$0]  %s1467, 12800, %s1469, [#allocation4], 1280, 1280, 80
    $region61: #{enhanced_meta_learning_forward.5} parent=1 // pred_fallthru
      _
    // Predicated region
    $region62: #{enhanced_meta_learning_forward.5} parent=1 // pred_check
      _
    $region63: #{enhanced_meta_learning_forward.5} parent=1 // pred_check_branch
      %1476 = sbr.rel (0) target = $region65
    $region64: #{enhanced_meta_learning_forward.5} parent=1 // pred_region
      %1478 = vsyncadd [#allocation10], 0
      %s1479 = sshll.u32 [#allocation9], 4
      %s1480 = int_to_ptr.vmem [resolvable:$true] %s1479
      %s1481 = sshll.u32 %s12, 4
      %s1482 = int_to_ptr.hbm [resolvable:$true] %s1481
      %1487 = dma.vmem_to_hbm [thread:$0]  %s1480, 1280, %s1482, [#allocation10], 128, 128, 8
    $region65: #{enhanced_meta_learning_forward.5} parent=1 // pred_fallthru
      _
    // Predicated region
    $region66: #{enhanced_meta_learning_forward.5} parent=1 // pred_check
      _
    $region67: #{enhanced_meta_learning_forward.5} parent=1 // pred_check_branch
      %1489 = sbr.rel (0) target = $region69
    $region68: #{enhanced_meta_learning_forward.5} parent=1 // pred_region
      _
    $region69: #{enhanced_meta_learning_forward.5} parent=1 // pred_fallthru
      _
    // Predicated region
    $region70: #{enhanced_meta_learning_forward.5} parent=1 // pred_check
      _
    $region71: #{enhanced_meta_learning_forward.5} parent=1 // pred_check_branch
      %1491 = sbr.rel (0) target = $region73
    $region72: #{enhanced_meta_learning_forward.5} parent=1 // pred_region
      %1493 = vsyncadd [#allocation10], 0
      %s1494 = sshll.u32 [#allocation11], 4
      %s1495 = int_to_ptr.vmem [resolvable:$true] %s1494
      %s1496 = sshll.u32 %s14, 4
      %s1497 = int_to_ptr.hbm [resolvable:$true] %s1496
      %1502 = dma.vmem_to_hbm [thread:$0]  %s1495, 1280, %s1497, [#allocation10], 128, 128, 8
    $region73: #{enhanced_meta_learning_forward.5} parent=1 // pred_fallthru
      _
    // Predicated region
    $region74: #{enhanced_meta_learning_forward.5} parent=1 // pred_check
      _
    $region75: #{enhanced_meta_learning_forward.5} parent=1 // pred_check_branch
      %1504 = sbr.rel (0) target = $region77
    $region76: #{enhanced_meta_learning_forward.5} parent=1 // pred_region
      %1506 = dma.done [#allocation4], 12800
    $region77: #{enhanced_meta_learning_forward.5} parent=1 // pred_fallthru
      _
    // Predicated region
    $region78: #{enhanced_meta_learning_forward.5} parent=1 // pred_check
      _
    $region79: #{enhanced_meta_learning_forward.5} parent=1 // pred_check_branch
      %1508 = sbr.rel (0) target = $region81
    $region80: #{enhanced_meta_learning_forward.5} parent=1 // pred_region
      %1510 = dma.done [#allocation10], 1280
    $region81: #{enhanced_meta_learning_forward.5} parent=1 // pred_fallthru
      _
    // Predicated region
    $region82: #{enhanced_meta_learning_forward.5} parent=1 // pred_check
      _
    $region83: #{enhanced_meta_learning_forward.5} parent=1 // pred_check_branch
      %1512 = sbr.rel (0) target = $region85
    $region84: #{enhanced_meta_learning_forward.5} parent=1 // pred_region
      _
    $region85: #{enhanced_meta_learning_forward.5} parent=1 // pred_fallthru
      _
    // Predicated region
    $region86: #{enhanced_meta_learning_forward.5} parent=1 // pred_check
      _
    $region87: #{enhanced_meta_learning_forward.5} parent=1 // pred_check_branch
      %1514 = sbr.rel (0) target = $region89
    $region88: #{enhanced_meta_learning_forward.5} parent=1 // pred_region
      %1516 = dma.done [#allocation10], 1280
    $region89: #{enhanced_meta_learning_forward.5} parent=1 // pred_fallthru
      _
    %1517 = vsyncpa [#allocation3], 1
    %1518 = vsyncpa [#allocation6], 1
    %1519 = vsyncpa [#allocation4], 1
    %1520 = vsyncpa [#allocation10], 1

</llo_original>
